<compile_context>
chip_gen: v7x
topology: tpu7x:2x2x1
jax: 0.10.0
libtpu: 0.0.40
codegen_flags: <defaults>
</compile_context>

<pallas_src>
import functools

import jax
import jax.numpy as jnp
from jax.experimental import pallas as pl
from jax.experimental.pallas import tpu as pltpu


# ----------------------------------------------------------------------------
# Helpers
# ----------------------------------------------------------------------------
def _round_up(x, m):
    return (x + m - 1) // m * m


def _pick_tile(total, candidates):
    for c in candidates:
        if total % c == 0:
            return c
    return total


def _pad_last(a, new_last):
    pads = [(0, 0)] * (a.ndim - 1) + [(0, new_last - a.shape[-1])]
    return jnp.pad(a, pads)


def _pad2(a, rows, cols):
    return jnp.pad(a, ((0, rows - a.shape[0]), (0, cols - a.shape[1])))


def _pad_gate_last(a, H, Hp):
    """a: (..., 3H) -> (..., 3*Hp); each of the r/z/n chunks padded to Hp."""
    chunks = [_pad_last(a[..., g * H:(g + 1) * H], Hp) for g in range(3)]
    return jnp.concatenate(chunks, axis=-1)


def _pad_gate_weight(w, in_pad, H, Hp):
    """w: (..., in_dim, 3H) -> (..., in_pad, 3*Hp)."""
    w = _pad_gate_last(w, H, Hp)
    pads = [(0, 0)] * (w.ndim - 2) + [(0, in_pad - w.shape[-2]), (0, 0)]
    return jnp.pad(w, pads)


def _vmem_limit_bytes(frac=0.75, fallback=64 * 1024 * 1024):
    """Derive the VMEM cap from the actual chip instead of hard-coding."""
    try:
        cap = int(pltpu.get_tpu_info().vmem_capacity_bytes)
        if cap <= 0:
            cap = fallback
    except Exception:
        cap = fallback
    return int(cap * frac)


# ----------------------------------------------------------------------------
# Kernel 1: multi-layer GRU recurrence (emits top-layer hidden states)
# ----------------------------------------------------------------------------
def _recurrence_kernel(
    emb_ref,      # (Tt*Bs, Ep)   bf16  lane-dense embedding slab for this block
    h0_ref,       # (L, Bs, Hp)   f32   initial hidden state (batch-split slice)
    wx0_ref,      # (Ep, 3Hp)     bf16  layer-0 input->gates
    wh0_ref,      # (Hp, 3Hp)     bf16  layer-0 hidden->gates
    bxa0_ref,     # (1, 3Hp)      f32   folded biases [bx_r+bh_r, bx_z+bh_z, bx_n]
    bhn0_ref,     # (1, Hp)       f32   bh_n (layer 0)
    wxr_ref,      # (Lr, Hp, 3Hp) bf16  layers 1..L-1 input->gates
    whr_ref,      # (Lr, Hp, 3Hp) bf16
    bxar_ref,     # (Lr, 1, 3Hp)  f32
    bhnr_ref,     # (Lr, 1, Hp)   f32
    top_ref,      # (Tt, Bs, Hp)  bf16  OUTPUT: top-layer hidden per step
    h_scratch,    # VMEM (L, Bs, Hp) f32   carried hidden state
    hb_scratch,   # VMEM (L, Bs, Hp) bf16  bf16 shadow (matmul operand)
    gx0_scratch,  # VMEM (Tt*Bs, 3Hp) f32  precomputed layer-0 input gates
    *,
    num_layers,
    hidden_pad,
    t_block,
):
    Hp = hidden_pad
    Bs = h0_ref.shape[1]

    # (Re)load the carried hidden state at the start of each batch-split sweep.
    @pl.when(pl.program_id(1) == 0)
    def _():
        h0 = h0_ref[...]
        h_scratch[...] = h0
        hb_scratch[...] = h0.astype(jnp.bfloat16)

    # ---- Hoisted layer-0 input->gates matmul over the whole time block ----
    # One MXU call with M = Tt*Bs (instead of Tt serial calls with M = Bs),
    # and it sits entirely outside the serial time-dependency chain.
    gx_all = jnp.dot(emb_ref[...], wx0_ref[...],
                     preferred_element_type=jnp.float32) + bxa0_ref[...]
    gx0_scratch[...] = gx_all

    # ---- Hoisted bias broadcasts (JAX does not CSE broadcast_in_dim) -------
    bhn0_b = jnp.broadcast_to(bhn0_ref[...], (Bs, Hp))
    bxar_b = [jnp.broadcast_to(bxar_ref[l], (Bs, 3 * Hp))
              for l in range(num_layers - 1)]
    bhnr_b = [jnp.broadcast_to(bhnr_ref[l], (Bs, Hp))
              for l in range(num_layers - 1)]

    def gates(gx, gh, bhn, h_f32):
        r = jax.nn.sigmoid(gx[:, 0:Hp] + gh[:, 0:Hp])
        z = jax.nn.sigmoid(gx[:, Hp:2 * Hp] + gh[:, Hp:2 * Hp])
        n = jnp.tanh(gx[:, 2 * Hp:3 * Hp] + r * (gh[:, 2 * Hp:3 * Hp] + bhn))
        return (1.0 - z) * n + z * h_f32

    def step(s, carry):
        row = pl.multiple_of(s * Bs, 8)
        # --- layer 0 (input->gates precomputed above) ---
        gx = gx0_scratch[pl.ds(row, Bs), :]
        gh = jnp.dot(hb_scratch[0], wh0_ref[...],
                     preferred_element_type=jnp.float32)
        h_new = gates(gx, gh, bhn0_b, h_scratch[0])
        h_scratch[0] = h_new
        hb = h_new.astype(jnp.bfloat16)
        hb_scratch[0] = hb
        # --- layers 1..L-1 ---
        for l in range(1, num_layers):
            gx = jnp.dot(hb, wxr_ref[l - 1],
                         preferred_element_type=jnp.float32) + bxar_b[l - 1]
            gh = jnp.dot(hb_scratch[l], whr_ref[l - 1],
                         preferred_element_type=jnp.float32)
            h_new = gates(gx, gh, bhnr_b[l - 1], h_scratch[l])
            h_scratch[l] = h_new
            hb = h_new.astype(jnp.bfloat16)
            hb_scratch[l] = hb
        top_ref[s] = hb
        return carry

    jax.lax.fori_loop(0, t_block, step, 0, unroll=True)


# ----------------------------------------------------------------------------
# Kernel 2: batched output projection + generator (hoisted out of recurrence)
# ----------------------------------------------------------------------------
def _proj_gen_kernel(
    top_ref,      # (tm, Hp)  bf16   rows of top-layer hidden (valid T*B rows)
    p1w_ref,      # (Hp, Hp)  bf16
    p1b_ref,      # (1, Hp)   f32
    p2w_ref,      # (Hp, Ep)  bf16
    p2b_ref,      # (1, Ep)   f32
    genw_ref,     # (Ep, tv)  bf16   vocab tile of the generator
    genb_ref,     # (1, tv)   f32
    logit_ref,    # (tm, tv)         OUTPUT logits tile
    out_scratch,  # VMEM (tm, Ep) bf16  projected output, cached across vocab tiles
):
    @pl.when(pl.program_id(1) == 0)
    def _():
        proj = jnp.tanh(
            jnp.dot(top_ref[...], p1w_ref[...],
                    preferred_element_type=jnp.float32) + p1b_ref[...])
        out = (jnp.dot(proj.astype(jnp.bfloat16), p2w_ref[...],
                       preferred_element_type=jnp.float32) + p2b_ref[...])
        out_scratch[...] = out.astype(jnp.bfloat16)

    logit_ref[...] = (
        jnp.dot(out_scratch[...], genw_ref[...],
                preferred_element_type=jnp.float32)
        + genb_ref[...]).astype(logit_ref.dtype)


# ----------------------------------------------------------------------------
# Wrapper
# ----------------------------------------------------------------------------
def decoder_forward(params, hidden, trg, *, t_block=8, logits_dtype=jnp.float32):
    """hidden: (L, B, H) f32;  trg: (B, T) int32  ->  logits (B, T, V)."""
    L, B, H = hidden.shape
    T = trg.shape[1]
    V, E = params["emb"].shape

    # ---- padded / tiled dims ----
    Hp = _round_up(H, 128)
    Ep = _round_up(E, 128)
    Vp = _round_up(V, 128)
    Tt = max(1, min(t_block, T))
    Tp = _round_up(T, Tt)
    nT = Tp // Tt
    Lr = max(L - 1, 1)
    # Batch: split across the two v7x TensorCores when there is enough work.
    if B > 8:
        Bp = _round_up(B, 16)
        nsplit = 2
    else:
        Bp = 8
        nsplit = 1
    Bs = Bp // nsplit

    f32, bf16 = jnp.float32, jnp.bfloat16

    # --- embeddings: gather (glue), time-major, padded, lane-dense slabs ---
    emb_tb = jnp.transpose(params["emb"][trg].astype(f32), (1, 0, 2))  # (T,B,E)
    emb_p = jnp.pad(emb_tb, ((0, Tp - T), (0, Bp - B), (0, Ep - E)))
    # (nsplit, nT, Tt*Bs, Ep): each kernel block is a 2-D slab, rows = (step, b)
    emb_r = emb_p.reshape(nT, Tt, nsplit, Bs, Ep)
    emb_r = jnp.transpose(emb_r, (2, 0, 1, 3, 4)).reshape(nsplit, nT, Tt * Bs, Ep)
    emb_r = emb_r.astype(bf16)

    # --- initial hidden state, padded (padding stays exactly zero) ---
    h0_p = jnp.pad(hidden.astype(f32), ((0, 0), (0, Bp - B), (0, Hp - H)))

    # --- GRU weights: per-gate padded layout, bf16; biases folded, f32 ---
    wx0_p = _pad_gate_weight(params["wx0"], Ep, H, Hp).astype(bf16)
    wh0_p = _pad_gate_weight(params["wh0"], Hp, H, Hp).astype(bf16)
    bx0, bh0 = params["bx0"], params["bh0"]                      # (1, 3H)
    bxa0 = jnp.concatenate(
        [bx0[:, :2 * H] + bh0[:, :2 * H], bx0[:, 2 * H:]], axis=-1)
    bxa0_p = _pad_gate_last(bxa0, H, Hp).astype(f32)             # (1, 3Hp)
    bhn0_p = _pad_last(bh0[:, 2 * H:3 * H], Hp).astype(f32)      # (1, Hp)

    if L > 1:
        wxr_p = _pad_gate_weight(params["wxr"], Hp, H, Hp).astype(bf16)
        whr_p = _pad_gate_weight(params["whr"], Hp, H, Hp).astype(bf16)
        bxr, bhr = params["bxr"], params["bhr"]                  # (L-1, 1, 3H)
        bxar = jnp.concatenate(
            [bxr[..., :2 * H] + bhr[..., :2 * H], bxr[..., 2 * H:]], axis=-1)
        bxar_p = _pad_gate_last(bxar, H, Hp).astype(f32)         # (L-1, 1, 3Hp)
        bhnr_p = _pad_last(bhr[..., 2 * H:3 * H], Hp).astype(f32)  # (L-1, 1, Hp)
    else:  # dummies (unused) so shapes stay static
        wxr_p = jnp.zeros((Lr, Hp, 3 * Hp), bf16)
        whr_p = jnp.zeros((Lr, Hp, 3 * Hp), bf16)
        bxar_p = jnp.zeros((Lr, 1, 3 * Hp), f32)
        bhnr_p = jnp.zeros((Lr, 1, Hp), f32)

    # --- projection / generator weights, padded ---
    p1w_p = _pad2(params["p1w"], Hp, Hp).astype(bf16)
    p1b_p = _pad2(params["p1b"], 1, Hp).astype(f32)
    p2w_p = _pad2(params["p2w"], Hp, Ep).astype(bf16)
    p2b_p = _pad2(params["p2b"], 1, Ep).astype(f32)
    genw_p = _pad2(params["genw"], Ep, Vp).astype(bf16)
    genb_p = _pad2(params["genb"], 1, Vp).astype(f32)

    vmem = pl.BlockSpec(memory_space=pltpu.MemorySpace.VMEM)  # resident, 1-buffered
    vmem_cap = _vmem_limit_bytes()
    cparams = lambda sem: pltpu.CompilerParams(
        dimension_semantics=sem, vmem_limit_bytes=vmem_cap)

    # ---------------- kernel 1: recurrence -> top-layer hidden ----------------
    rec_kernel = functools.partial(
        _recurrence_kernel, num_layers=L, hidden_pad=Hp, t_block=Tt)

    top = pl.pallas_call(
        rec_kernel,
        grid_spec=pltpu.PrefetchScalarGridSpec(
            num_scalar_prefetch=0,
            grid=(nsplit, nT),                                  # (batch-split, time)
            in_specs=[
                pl.BlockSpec((None, None, Tt * Bs, Ep),
                             lambda c, t: (c, t, 0, 0)),        # embeddings slab
                pl.BlockSpec((L, Bs, Hp), lambda c, t: (0, c, 0)),  # h0 slice
                vmem, vmem, vmem, vmem,                         # layer 0
                vmem, vmem, vmem, vmem,                         # layers 1..L-1
            ],
            out_specs=pl.BlockSpec((Tt, Bs, Hp), lambda c, t: (t, c, 0)),
            scratch_shapes=[
                pltpu.VMEM((L, Bs, Hp), jnp.float32),           # carried h (f32)
                pltpu.VMEM((L, Bs, Hp), jnp.bfloat16),          # bf16 shadow
                pltpu.VMEM((Tt * Bs, 3 * Hp), jnp.float32),     # hoisted layer-0 gx
            ],
        ),
        out_shape=jax.ShapeDtypeStruct((Tp, Bp, Hp), bf16),
        compiler_params=cparams(("parallel", "arbitrary")),
    )(emb_r, h0_p, wx0_p, wh0_p, bxa0_p, bhn0_p,
      wxr_p, whr_p, bxar_p, bhnr_p)

    # ---------------- kernel 2: batched projection + generator ----------------
    # Compact M: only the valid T*B rows (drops batch and time padding).
    Mrows = T * B
    tm = min(512, _round_up(Mrows, 8))
    Mp = _round_up(Mrows, tm)
    tv = _pick_tile(Vp, (1024, 512, 256, 128))

    top_valid = top[:T, :B, :].reshape(Mrows, Hp)
    top2d = jnp.pad(top_valid, ((0, Mp - Mrows), (0, 0)))

    logits_p = pl.pallas_call(
        _proj_gen_kernel,
        grid_spec=pltpu.PrefetchScalarGridSpec(
            num_scalar_prefetch=0,
            grid=(Mp // tm, Vp // tv),
            in_specs=[
                pl.BlockSpec((tm, Hp), lambda i, j: (i, 0)),   # hidden rows
                vmem, vmem, vmem, vmem,                        # p1w, p1b, p2w, p2b
                pl.BlockSpec((Ep, tv), lambda i, j: (0, j)),   # generator V-tile
                pl.BlockSpec((1, tv), lambda i, j: (0, j)),    # generator bias
            ],
            out_specs=pl.BlockSpec((tm, tv), lambda i, j: (i, j)),
            scratch_shapes=[pltpu.VMEM((tm, Ep), bf16)],
        ),
        out_shape=jax.ShapeDtypeStruct((Mp, Vp), logits_dtype),
        compiler_params=cparams(("parallel", "arbitrary")),
    )(top2d, p1w_p, p1b_p, p2w_p, p2b_p, genw_p, genb_p)

    logits = logits_p[:Mrows, :V].reshape(T, B, V)
    return jnp.transpose(logits, (1, 0, 2)).astype(jnp.float32)  # (B, T, V)


# ----------------------------------------------------------------------------
# Pure-JAX reference (mirrors the PyTorch forward, full f32) for sanity check
# ----------------------------------------------------------------------------
def decoder_forward_ref(params, hidden, trg):
    L, B, H = hidden.shape
    T = trg.shape[1]
    emb = params["emb"][trg].astype(jnp.float32)  # (B, T, E)

    def gru(x, h, wx, wh, bx, bh):
        gx = x @ wx + bx
        gh = h @ wh + bh
        r = jax.nn.sigmoid(gx[:, :H] + gh[:, :H])
        z = jax.nn.sigmoid(gx[:, H:2 * H] + gh[:, H:2 * H])
        n = jnp.tanh(gx[:, 2 * H:] + r * gh[:, 2 * H:])
        return (1.0 - z) * n + z * h

    h = hidden
    outs = []
    for t in range(T):
        x = emb[:, t]
        new_h = []
        inp = x
        for l in range(L):
            if l == 0:
                hl = gru(inp, h[l], params["wx0"], params["wh0"],
                         params["bx0"][0], params["bh0"][0])
            else:
                hl = gru(inp, h[l], params["wxr"][l - 1], params["whr"][l - 1],
                         params["bxr"][l - 1, 0], params["bhr"][l - 1, 0])
            new_h.append(hl)
            inp = hl
        h = jnp.stack(new_h)
        proj = jnp.tanh(h[-1] @ params["p1w"] + params["p1b"][0])
        out = proj @ params["p2w"] + params["p2b"][0]
        outs.append(out @ params["genw"] + params["genb"][0])
    return jnp.stack(outs, axis=1)


# ----------------------------------------------------------------------------
# Main
# ----------------------------------------------------------------------------
if __name__ == "__main__":
    VOCAB, EMBED, HIDDEN, LAYERS = 64, 16, 32, 2
    BATCH, SEQ = 4, 8
    WEIGHT_TYING = True

    key = jax.random.PRNGKey(0)
    ks = jax.random.split(key, 16)
    nrm = lambda k, shape, s=0.1: (s * jax.random.normal(k, shape)).astype(jnp.float32)

    emb_table = nrm(ks[0], (VOCAB, EMBED))
    params = {
        "emb": emb_table,
        # layer-0 GRU (input size = EMBED); gate columns ordered [r | z | n]
        "wx0": nrm(ks[1], (EMBED, 3 * HIDDEN)),
        "wh0": nrm(ks[2], (HIDDEN, 3 * HIDDEN)),
        "bx0": nrm(ks[3], (1, 3 * HIDDEN)),
        "bh0": nrm(ks[4], (1, 3 * HIDDEN)),
        # layers 1..L-1 GRU (input size = HIDDEN)
        "wxr": nrm(ks[5], (LAYERS - 1, HIDDEN, 3 * HIDDEN)),
        "whr": nrm(ks[6], (LAYERS - 1, HIDDEN, 3 * HIDDEN)),
        "bxr": nrm(ks[7], (LAYERS - 1, 1, 3 * HIDDEN)),
        "bhr": nrm(ks[8], (LAYERS - 1, 1, 3 * HIDDEN)),
        # output_projection: Linear(H,H) -> Tanh -> Linear(H,E)
        "p1w": nrm(ks[9], (HIDDEN, HIDDEN)),
        "p1b": nrm(ks[10], (1, HIDDEN)),
        "p2w": nrm(ks[11], (HIDDEN, EMBED)),
        "p2b": nrm(ks[12], (1, EMBED)),
        # generator: Linear(E, V); weight tying shares the embedding matrix
        "genw": (emb_table.T if WEIGHT_TYING else nrm(ks[13], (EMBED, VOCAB))),
        "genb": nrm(ks[14], (1, VOCAB)),
    }

    hidden0 = nrm(ks[15], (LAYERS, BATCH, HIDDEN), s=0.5)
    trg = jax.random.randint(jax.random.PRNGKey(1), (BATCH, SEQ), 0, VOCAB,
                             dtype=jnp.int32)

    logits = decoder_forward(params, hidden0, trg)
    logits = jax.block_until_ready(logits)

    ref = decoder_forward_ref(params, hidden0, trg)
    assert logits.shape == (BATCH, SEQ, VOCAB)
    # bf16 matmul operands (f32 accumulation) -> modest tolerance vs f32 ref.
    assert jnp.allclose(logits, ref, atol=2e-2, rtol=2e-2), (
        float(jnp.max(jnp.abs(logits - ref))))

    print("KERNEL_OK")
</pallas_src>

<mosaic_0001>
module attributes {stable_mosaic.version = 11 : i64} {
  func.func @_recurrence_kernel(%arg0: i32, %arg1: i32, %arg2: memref<1x1x64x128xbf16, #tpu.memory_space<vmem>>, %arg3: memref<2x8x128xf32, #tpu.memory_space<vmem>>, %arg4: memref<128x384xbf16, #tpu.memory_space<vmem>>, %arg5: memref<128x384xbf16, #tpu.memory_space<vmem>>, %arg6: memref<1x384xf32, #tpu.memory_space<vmem>>, %arg7: memref<1x128xf32, #tpu.memory_space<vmem>>, %arg8: memref<1x128x384xbf16, #tpu.memory_space<vmem>>, %arg9: memref<1x128x384xbf16, #tpu.memory_space<vmem>>, %arg10: memref<1x1x384xf32, #tpu.memory_space<vmem>>, %arg11: memref<1x1x128xf32, #tpu.memory_space<vmem>>, %arg12: memref<8x8x128xbf16, #tpu.memory_space<vmem>>, %arg13: memref<2x8x128xf32, #tpu.memory_space<vmem>>, %arg14: memref<2x8x128xbf16, #tpu.memory_space<vmem>>, %arg15: memref<64x384xf32, #tpu.memory_space<vmem>>) attributes {dimension_semantics = [#tpu.dimension_semantics<parallel>, #tpu.dimension_semantics<arbitrary>], iteration_bounds = array<i64: 1, 1>, scalar_prefetch = 0 : i64, scratch_operands = 3 : i64, tpu.core_type = #tpu.core_type<tc>, window_params = [{transform_indices = @transform_0, window_bounds = array<i64: 1, 1, 64, 128>}, {transform_indices = @transform_1, window_bounds = array<i64: 2, 8, 128>}, {pipeline_mode = #tpu.pipeline_mode<synchronous>, transform_indices = @transform_2, window_bounds = array<i64: 128, 384>}, {pipeline_mode = #tpu.pipeline_mode<synchronous>, transform_indices = @transform_3, window_bounds = array<i64: 128, 384>}, {pipeline_mode = #tpu.pipeline_mode<synchronous>, transform_indices = @transform_4, window_bounds = array<i64: 1, 384>}, {pipeline_mode = #tpu.pipeline_mode<synchronous>, transform_indices = @transform_5, window_bounds = array<i64: 1, 128>}, {pipeline_mode = #tpu.pipeline_mode<synchronous>, transform_indices = @transform_6, window_bounds = array<i64: 1, 128, 384>}, {pipeline_mode = #tpu.pipeline_mode<synchronous>, transform_indices = @transform_7, window_bounds = array<i64: 1, 128, 384>}, {pipeline_mode = #tpu.pipeline_mode<synchronous>, transform_indices = @transform_8, window_bounds = array<i64: 1, 1, 384>}, {pipeline_mode = #tpu.pipeline_mode<synchronous>, transform_indices = @transform_9, window_bounds = array<i64: 1, 1, 128>}, {transform_indices = @transform_10, window_bounds = array<i64: 8, 8, 128>}]} {
    %c0_i32 = arith.constant 0 : i32
    %0 = arith.cmpi eq, %arg1, %c0_i32 : i32
    %1 = arith.extui %0 : i1 to i32
    %c0_i32_0 = arith.constant 0 : i32
    %2 = arith.cmpi ne, %1, %c0_i32_0 : i32
    scf.if %2 {
      %c0_378 = arith.constant 0 : index
      %c0_379 = arith.constant 0 : index
      %c0_380 = arith.constant 0 : index
      %766 = vector.load %arg3[%c0_378, %c0_379, %c0_380] : memref<2x8x128xf32, #tpu.memory_space<vmem>>, vector<2x8x128xf32>
      %c0_381 = arith.constant 0 : index
      %c0_382 = arith.constant 0 : index
      %c0_383 = arith.constant 0 : index
      %767 = vector.load %arg13[%c0_381, %c0_382, %c0_383] : memref<2x8x128xf32, #tpu.memory_space<vmem>>, vector<2x8x128xf32>
      tpu.vector_store %arg13[%c0_381, %c0_382, %c0_383], %766 {strides = array<i32>} : memref<2x8x128xf32, #tpu.memory_space<vmem>>, vector<2x8x128xf32>,
      %768 = arith.truncf %766 : vector<2x8x128xf32> to vector<2x8x128xbf16>
      %c0_384 = arith.constant 0 : index
      %c0_385 = arith.constant 0 : index
      %c0_386 = arith.constant 0 : index
      %769 = vector.load %arg14[%c0_384, %c0_385, %c0_386] : memref<2x8x128xbf16, #tpu.memory_space<vmem>>, vector<2x8x128xbf16>
      tpu.vector_store %arg14[%c0_384, %c0_385, %c0_386], %768 {strides = array<i32>} : memref<2x8x128xbf16, #tpu.memory_space<vmem>>, vector<2x8x128xbf16>,
    } else {
    }
    %c0 = arith.constant 0 : index
    %c0_1 = arith.constant 0 : index
    %c0_2 = arith.constant 0 : index
    %c0_3 = arith.constant 0 : index
    %3 = vector.load %arg2[%c0, %c0_1, %c0_2, %c0_3] : memref<1x1x64x128xbf16, #tpu.memory_space<vmem>>, vector<1x1x64x128xbf16>
    %4 = vector.shape_cast %3 : vector<1x1x64x128xbf16> to vector<64x128xbf16>
    %c0_4 = arith.constant 0 : index
    %c0_5 = arith.constant 0 : index
    %5 = vector.load %arg4[%c0_4, %c0_5] : memref<128x384xbf16, #tpu.memory_space<vmem>>, vector<128x384xbf16>
    %cst = arith.constant dense<0.000000e+00> : vector<64x384xf32>
    %6 = tpu.matmul %4, %5, %cst {dimension_numbers = #tpu.dot_dimension_numbers<[1], [0], [0], [1], [0, 0, 1, 1], [], []>} : vector<64x128xbf16>, vector<128x384xbf16>, vector<64x384xf32> -> vector<64x384xf32>
    %c0_6 = arith.constant 0 : index
    %c0_7 = arith.constant 0 : index
    %7 = vector.load %arg6[%c0_6, %c0_7] : memref<1x384xf32, #tpu.memory_space<vmem>>, vector<1x384xf32>
    %8 = vector.broadcast %7 : vector<1x384xf32> to vector<64x384xf32>
    %9 = arith.addf %6, %8 : vector<64x384xf32>
    %c0_8 = arith.constant 0 : index
    %c0_9 = arith.constant 0 : index
    %10 = vector.load %arg15[%c0_8, %c0_9] : memref<64x384xf32, #tpu.memory_space<vmem>>, vector<64x384xf32>
    tpu.vector_store %arg15[%c0_8, %c0_9], %9 {strides = array<i32>} : memref<64x384xf32, #tpu.memory_space<vmem>>, vector<64x384xf32>,
    %c0_10 = arith.constant 0 : index
    %c0_11 = arith.constant 0 : index
    %11 = vector.load %arg7[%c0_10, %c0_11] : memref<1x128xf32, #tpu.memory_space<vmem>>, vector<1x128xf32>
    %12 = vector.shape_cast %11 : vector<1x128xf32> to vector<1x128xf32>
    %13 = vector.broadcast %12 : vector<1x128xf32> to vector<8x128xf32>
    %c0_12 = arith.constant 0 : index
    %c0_13 = arith.constant 0 : index
    %c0_14 = arith.constant 0 : index
    %14 = vector.load %arg10[%c0_12, %c0_13, %c0_14] : memref<1x1x384xf32, #tpu.memory_space<vmem>>, vector<1x1x384xf32>
    %15 = vector.shape_cast %14 : vector<1x1x384xf32> to vector<1x384xf32>
    %16 = vector.shape_cast %15 : vector<1x384xf32> to vector<1x384xf32>
    %17 = vector.broadcast %16 : vector<1x384xf32> to vector<8x384xf32>
    %c0_15 = arith.constant 0 : index
    %c0_16 = arith.constant 0 : index
    %c0_17 = arith.constant 0 : index
    %18 = vector.load %arg11[%c0_15, %c0_16, %c0_17] : memref<1x1x128xf32, #tpu.memory_space<vmem>>, vector<1x1x128xf32>
    %19 = vector.shape_cast %18 : vector<1x1x128xf32> to vector<1x128xf32>
    %20 = vector.shape_cast %19 : vector<1x128xf32> to vector<1x128xf32>
    %21 = vector.broadcast %20 : vector<1x128xf32> to vector<8x128xf32>
    %c0_i32_18 = arith.constant 0 : i32
    %c8_i32 = arith.constant 8 : i32
    %22 = arith.muli %c0_i32_18, %c8_i32 : i32
    %23 = tpu.assume_multiple %22, 8 : i32
    %24 = arith.index_cast %23 : i32 to index
    %c0_19 = arith.constant 0 : index
    %25 = vector.load %arg15[%24, %c0_19] : memref<64x384xf32, #tpu.memory_space<vmem>>, vector<8x384xf32>
    %c0_20 = arith.constant 0 : index
    %c0_21 = arith.constant 0 : index
    %c0_22 = arith.constant 0 : index
    %26 = vector.load %arg14[%c0_20, %c0_21, %c0_22] : memref<2x8x128xbf16, #tpu.memory_space<vmem>>, vector<1x8x128xbf16>
    %27 = vector.shape_cast %26 : vector<1x8x128xbf16> to vector<8x128xbf16>
    %c0_23 = arith.constant 0 : index
    %c0_24 = arith.constant 0 : index
    %28 = vector.load %arg5[%c0_23, %c0_24] : memref<128x384xbf16, #tpu.memory_space<vmem>>, vector<128x384xbf16>
    %cst_25 = arith.constant dense<0.000000e+00> : vector<8x384xf32>
    %29 = tpu.matmul %27, %28, %cst_25 {dimension_numbers = #tpu.dot_dimension_numbers<[1], [0], [0], [1], [0, 0, 1, 1], [], []>} : vector<8x128xbf16>, vector<128x384xbf16>, vector<8x384xf32> -> vector<8x384xf32>
    %c0_26 = arith.constant 0 : index
    %c0_27 = arith.constant 0 : index
    %c0_28 = arith.constant 0 : index
    %30 = vector.load %arg13[%c0_26, %c0_27, %c0_28] : memref<2x8x128xf32, #tpu.memory_space<vmem>>, vector<1x8x128xf32>
    %31 = vector.shape_cast %30 : vector<1x8x128xf32> to vector<8x128xf32>
    %32 = vector.extract_strided_slice %25 {offsets = [0, 0], sizes = [8, 128], strides = [1, 1]} : vector<8x384xf32> to vector<8x128xf32>
    %33 = vector.extract_strided_slice %29 {offsets = [0, 0], sizes = [8, 128], strides = [1, 1]} : vector<8x384xf32> to vector<8x128xf32>
    %34 = arith.addf %32, %33 : vector<8x128xf32>
    %35 = arith.negf %34 : vector<8x128xf32>
    %36 = math.exp %35 : vector<8x128xf32>
    %cst_29 = arith.constant 1.000000e+00 : f32
    %37 = vector.broadcast %cst_29 : f32 to vector<8x128xf32>
    %38 = arith.addf %37, %36 : vector<8x128xf32>
    %39 = arith.divf %37, %38 : vector<8x128xf32>
    %40 = vector.extract_strided_slice %25 {offsets = [0, 128], sizes = [8, 128], strides = [1, 1]} : vector<8x384xf32> to vector<8x128xf32>
    %41 = vector.extract_strided_slice %29 {offsets = [0, 128], sizes = [8, 128], strides = [1, 1]} : vector<8x384xf32> to vector<8x128xf32>
    %42 = arith.addf %40, %41 : vector<8x128xf32>
    %43 = arith.negf %42 : vector<8x128xf32>
    %44 = math.exp %43 : vector<8x128xf32>
    %cst_30 = arith.constant 1.000000e+00 : f32
    %45 = vector.broadcast %cst_30 : f32 to vector<8x128xf32>
    %46 = arith.addf %45, %44 : vector<8x128xf32>
    %47 = arith.divf %45, %46 : vector<8x128xf32>
    %48 = vector.extract_strided_slice %25 {offsets = [0, 256], sizes = [8, 128], strides = [1, 1]} : vector<8x384xf32> to vector<8x128xf32>
    %49 = vector.extract_strided_slice %29 {offsets = [0, 256], sizes = [8, 128], strides = [1, 1]} : vector<8x384xf32> to vector<8x128xf32>
    %50 = arith.addf %49, %13 : vector<8x128xf32>
    %51 = arith.mulf %39, %50 : vector<8x128xf32>
    %52 = arith.addf %48, %51 : vector<8x128xf32>
    %53 = math.tanh %52 : vector<8x128xf32>
    %cst_31 = arith.constant 1.000000e+00 : f32
    %54 = vector.broadcast %cst_31 : f32 to vector<8x128xf32>
    %55 = arith.subf %54, %47 : vector<8x128xf32>
    %56 = arith.mulf %55, %53 : vector<8x128xf32>
    %57 = arith.mulf %47, %31 : vector<8x128xf32>
    %58 = arith.addf %56, %57 : vector<8x128xf32>
    %c0_32 = arith.constant 0 : index
    %c0_33 = arith.constant 0 : index
    %c0_34 = arith.constant 0 : index
    %59 = vector.load %arg13[%c0_32, %c0_33, %c0_34] : memref<2x8x128xf32, #tpu.memory_space<vmem>>, vector<1x8x128xf32>
    %60 = vector.shape_cast %59 : vector<1x8x128xf32> to vector<8x128xf32>
    %61 = vector.shape_cast %58 : vector<8x128xf32> to vector<1x8x128xf32>
    tpu.vector_store %arg13[%c0_32, %c0_33, %c0_34], %61 {strides = array<i32>} : memref<2x8x128xf32, #tpu.memory_space<vmem>>, vector<1x8x128xf32>,
    %62 = arith.truncf %58 : vector<8x128xf32> to vector<8x128xbf16>
    %c0_35 = arith.constant 0 : index
    %c0_36 = arith.constant 0 : index
    %c0_37 = arith.constant 0 : index
    %63 = vector.load %arg14[%c0_35, %c0_36, %c0_37] : memref<2x8x128xbf16, #tpu.memory_space<vmem>>, vector<1x8x128xbf16>
    %64 = vector.shape_cast %63 : vector<1x8x128xbf16> to vector<8x128xbf16>
    %65 = vector.shape_cast %62 : vector<8x128xbf16> to vector<1x8x128xbf16>
    tpu.vector_store %arg14[%c0_35, %c0_36, %c0_37], %65 {strides = array<i32>} : memref<2x8x128xbf16, #tpu.memory_space<vmem>>, vector<1x8x128xbf16>,
    %c0_38 = arith.constant 0 : index
    %c0_39 = arith.constant 0 : index
    %c0_40 = arith.constant 0 : index
    %66 = vector.load %arg8[%c0_38, %c0_39, %c0_40] : memref<1x128x384xbf16, #tpu.memory_space<vmem>>, vector<1x128x384xbf16>
    %67 = vector.shape_cast %66 : vector<1x128x384xbf16> to vector<128x384xbf16>
    %cst_41 = arith.constant dense<0.000000e+00> : vector<8x384xf32>
    %68 = tpu.matmul %62, %67, %cst_41 {dimension_numbers = #tpu.dot_dimension_numbers<[1], [0], [0], [1], [0, 0, 1, 1], [], []>} : vector<8x128xbf16>, vector<128x384xbf16>, vector<8x384xf32> -> vector<8x384xf32>
    %69 = arith.addf %68, %17 : vector<8x384xf32>
    %c1 = arith.constant 1 : index
    %c0_42 = arith.constant 0 : index
    %c0_43 = arith.constant 0 : index
    %70 = vector.load %arg14[%c1, %c0_42, %c0_43] : memref<2x8x128xbf16, #tpu.memory_space<vmem>>, vector<1x8x128xbf16>
    %71 = vector.shape_cast %70 : vector<1x8x128xbf16> to vector<8x128xbf16>
    %c0_44 = arith.constant 0 : index
    %c0_45 = arith.constant 0 : index
    %c0_46 = arith.constant 0 : index
    %72 = vector.load %arg9[%c0_44, %c0_45, %c0_46] : memref<1x128x384xbf16, #tpu.memory_space<vmem>>, vector<1x128x384xbf16>
    %73 = vector.shape_cast %72 : vector<1x128x384xbf16> to vector<128x384xbf16>
    %cst_47 = arith.constant dense<0.000000e+00> : vector<8x384xf32>
    %74 = tpu.matmul %71, %73, %cst_47 {dimension_numbers = #tpu.dot_dimension_numbers<[1], [0], [0], [1], [0, 0, 1, 1], [], []>} : vector<8x128xbf16>, vector<128x384xbf16>, vector<8x384xf32> -> vector<8x384xf32>
    %c1_48 = arith.constant 1 : index
    %c0_49 = arith.constant 0 : index
    %c0_50 = arith.constant 0 : index
    %75 = vector.load %arg13[%c1_48, %c0_49, %c0_50] : memref<2x8x128xf32, #tpu.memory_space<vmem>>, vector<1x8x128xf32>
    %76 = vector.shape_cast %75 : vector<1x8x128xf32> to vector<8x128xf32>
    %77 = vector.extract_strided_slice %69 {offsets = [0, 0], sizes = [8, 128], strides = [1, 1]} : vector<8x384xf32> to vector<8x128xf32>
    %78 = vector.extract_strided_slice %74 {offsets = [0, 0], sizes = [8, 128], strides = [1, 1]} : vector<8x384xf32> to vector<8x128xf32>
    %79 = arith.addf %77, %78 : vector<8x128xf32>
    %80 = arith.negf %79 : vector<8x128xf32>
    %81 = math.exp %80 : vector<8x128xf32>
    %cst_51 = arith.constant 1.000000e+00 : f32
    %82 = vector.broadcast %cst_51 : f32 to vector<8x128xf32>
    %83 = arith.addf %82, %81 : vector<8x128xf32>
    %84 = arith.divf %82, %83 : vector<8x128xf32>
    %85 = vector.extract_strided_slice %69 {offsets = [0, 128], sizes = [8, 128], strides = [1, 1]} : vector<8x384xf32> to vector<8x128xf32>
    %86 = vector.extract_strided_slice %74 {offsets = [0, 128], sizes = [8, 128], strides = [1, 1]} : vector<8x384xf32> to vector<8x128xf32>
    %87 = arith.addf %85, %86 : vector<8x128xf32>
    %88 = arith.negf %87 : vector<8x128xf32>
    %89 = math.exp %88 : vector<8x128xf32>
    %cst_52 = arith.constant 1.000000e+00 : f32
    %90 = vector.broadcast %cst_52 : f32 to vector<8x128xf32>
    %91 = arith.addf %90, %89 : vector<8x128xf32>
    %92 = arith.divf %90, %91 : vector<8x128xf32>
    %93 = vector.extract_strided_slice %69 {offsets = [0, 256], sizes = [8, 128], strides = [1, 1]} : vector<8x384xf32> to vector<8x128xf32>
    %94 = vector.extract_strided_slice %74 {offsets = [0, 256], sizes = [8, 128], strides = [1, 1]} : vector<8x384xf32> to vector<8x128xf32>
    %95 = arith.addf %94, %21 : vector<8x128xf32>
    %96 = arith.mulf %84, %95 : vector<8x128xf32>
    %97 = arith.addf %93, %96 : vector<8x128xf32>
    %98 = math.tanh %97 : vector<8x128xf32>
    %cst_53 = arith.constant 1.000000e+00 : f32
    %99 = vector.broadcast %cst_53 : f32 to vector<8x128xf32>
    %100 = arith.subf %99, %92 : vector<8x128xf32>
    %101 = arith.mulf %100, %98 : vector<8x128xf32>
    %102 = arith.mulf %92, %76 : vector<8x128xf32>
    %103 = arith.addf %101, %102 : vector<8x128xf32>
    %c1_54 = arith.constant 1 : index
    %c0_55 = arith.constant 0 : index
    %c0_56 = arith.constant 0 : index
    %104 = vector.load %arg13[%c1_54, %c0_55, %c0_56] : memref<2x8x128xf32, #tpu.memory_space<vmem>>, vector<1x8x128xf32>
    %105 = vector.shape_cast %104 : vector<1x8x128xf32> to vector<8x128xf32>
    %106 = vector.shape_cast %103 : vector<8x128xf32> to vector<1x8x128xf32>
    tpu.vector_store %arg13[%c1_54, %c0_55, %c0_56], %106 {strides = array<i32>} : memref<2x8x128xf32, #tpu.memory_space<vmem>>, vector<1x8x128xf32>,
    %107 = arith.truncf %103 : vector<8x128xf32> to vector<8x128xbf16>
    %c1_57 = arith.constant 1 : index
    %c0_58 = arith.constant 0 : index
    %c0_59 = arith.constant 0 : index
    %108 = vector.load %arg14[%c1_57, %c0_58, %c0_59] : memref<2x8x128xbf16, #tpu.memory_space<vmem>>, vector<1x8x128xbf16>
    %109 = vector.shape_cast %108 : vector<1x8x128xbf16> to vector<8x128xbf16>
    %110 = vector.shape_cast %107 : vector<8x128xbf16> to vector<1x8x128xbf16>
    tpu.vector_store %arg14[%c1_57, %c0_58, %c0_59], %110 {strides = array<i32>} : memref<2x8x128xbf16, #tpu.memory_space<vmem>>, vector<1x8x128xbf16>,
    %111 = arith.index_cast %c0_i32_18 : i32 to index
    %c0_60 = arith.constant 0 : index
    %c0_61 = arith.constant 0 : index
    %112 = vector.load %arg12[%111, %c0_60, %c0_61] : memref<8x8x128xbf16, #tpu.memory_space<vmem>>, vector<1x8x128xbf16>
    %113 = vector.shape_cast %112 : vector<1x8x128xbf16> to vector<8x128xbf16>
    %114 = vector.shape_cast %107 : vector<8x128xbf16> to vector<1x8x128xbf16>
    tpu.vector_store %arg12[%111, %c0_60, %c0_61], %114 {strides = array<i32>} : memref<8x8x128xbf16, #tpu.memory_space<vmem>>, vector<1x8x128xbf16>,
    %c1_i32 = arith.constant 1 : i32
    %c8_i32_62 = arith.constant 8 : i32
    %115 = arith.muli %c1_i32, %c8_i32_62 : i32
    %116 = tpu.assume_multiple %115, 8 : i32
    %117 = arith.index_cast %116 : i32 to index
    %c0_63 = arith.constant 0 : index
    %118 = vector.load %arg15[%117, %c0_63] : memref<64x384xf32, #tpu.memory_space<vmem>>, vector<8x384xf32>
    %c0_64 = arith.constant 0 : index
    %c0_65 = arith.constant 0 : index
    %c0_66 = arith.constant 0 : index
    %119 = vector.load %arg14[%c0_64, %c0_65, %c0_66] : memref<2x8x128xbf16, #tpu.memory_space<vmem>>, vector<1x8x128xbf16>
    %120 = vector.shape_cast %119 : vector<1x8x128xbf16> to vector<8x128xbf16>
    %c0_67 = arith.constant 0 : index
    %c0_68 = arith.constant 0 : index
    %121 = vector.load %arg5[%c0_67, %c0_68] : memref<128x384xbf16, #tpu.memory_space<vmem>>, vector<128x384xbf16>
    %cst_69 = arith.constant dense<0.000000e+00> : vector<8x384xf32>
    %122 = tpu.matmul %120, %121, %cst_69 {dimension_numbers = #tpu.dot_dimension_numbers<[1], [0], [0], [1], [0, 0, 1, 1], [], []>} : vector<8x128xbf16>, vector<128x384xbf16>, vector<8x384xf32> -> vector<8x384xf32>
    %c0_70 = arith.constant 0 : index
    %c0_71 = arith.constant 0 : index
    %c0_72 = arith.constant 0 : index
    %123 = vector.load %arg13[%c0_70, %c0_71, %c0_72] : memref<2x8x128xf32, #tpu.memory_space<vmem>>, vector<1x8x128xf32>
    %124 = vector.shape_cast %123 : vector<1x8x128xf32> to vector<8x128xf32>
    %125 = vector.extract_strided_slice %118 {offsets = [0, 0], sizes = [8, 128], strides = [1, 1]} : vector<8x384xf32> to vector<8x128xf32>
    %126 = vector.extract_strided_slice %122 {offsets = [0, 0], sizes = [8, 128], strides = [1, 1]} : vector<8x384xf32> to vector<8x128xf32>
    %127 = arith.addf %125, %126 : vector<8x128xf32>
    %128 = arith.negf %127 : vector<8x128xf32>
    %129 = math.exp %128 : vector<8x128xf32>
    %cst_73 = arith.constant 1.000000e+00 : f32
    %130 = vector.broadcast %cst_73 : f32 to vector<8x128xf32>
    %131 = arith.addf %130, %129 : vector<8x128xf32>
    %132 = arith.divf %130, %131 : vector<8x128xf32>
    %133 = vector.extract_strided_slice %118 {offsets = [0, 128], sizes = [8, 128], strides = [1, 1]} : vector<8x384xf32> to vector<8x128xf32>
    %134 = vector.extract_strided_slice %122 {offsets = [0, 128], sizes = [8, 128], strides = [1, 1]} : vector<8x384xf32> to vector<8x128xf32>
    %135 = arith.addf %133, %134 : vector<8x128xf32>
    %136 = arith.negf %135 : vector<8x128xf32>
    %137 = math.exp %136 : vector<8x128xf32>
    %cst_74 = arith.constant 1.000000e+00 : f32
    %138 = vector.broadcast %cst_74 : f32 to vector<8x128xf32>
    %139 = arith.addf %138, %137 : vector<8x128xf32>
    %140 = arith.divf %138, %139 : vector<8x128xf32>
    %141 = vector.extract_strided_slice %118 {offsets = [0, 256], sizes = [8, 128], strides = [1, 1]} : vector<8x384xf32> to vector<8x128xf32>
    %142 = vector.extract_strided_slice %122 {offsets = [0, 256], sizes = [8, 128], strides = [1, 1]} : vector<8x384xf32> to vector<8x128xf32>
    %143 = arith.addf %142, %13 : vector<8x128xf32>
    %144 = arith.mulf %132, %143 : vector<8x128xf32>
    %145 = arith.addf %141, %144 : vector<8x128xf32>
    %146 = math.tanh %145 : vector<8x128xf32>
    %cst_75 = arith.constant 1.000000e+00 : f32
    %147 = vector.broadcast %cst_75 : f32 to vector<8x128xf32>
    %148 = arith.subf %147, %140 : vector<8x128xf32>
    %149 = arith.mulf %148, %146 : vector<8x128xf32>
    %150 = arith.mulf %140, %124 : vector<8x128xf32>
    %151 = arith.addf %149, %150 : vector<8x128xf32>
    %c0_76 = arith.constant 0 : index
    %c0_77 = arith.constant 0 : index
    %c0_78 = arith.constant 0 : index
    %152 = vector.load %arg13[%c0_76, %c0_77, %c0_78] : memref<2x8x128xf32, #tpu.memory_space<vmem>>, vector<1x8x128xf32>
    %153 = vector.shape_cast %152 : vector<1x8x128xf32> to vector<8x128xf32>
    %154 = vector.shape_cast %151 : vector<8x128xf32> to vector<1x8x128xf32>
    tpu.vector_store %arg13[%c0_76, %c0_77, %c0_78], %154 {strides = array<i32>} : memref<2x8x128xf32, #tpu.memory_space<vmem>>, vector<1x8x128xf32>,
    %155 = arith.truncf %151 : vector<8x128xf32> to vector<8x128xbf16>
    %c0_79 = arith.constant 0 : index
    %c0_80 = arith.constant 0 : index
    %c0_81 = arith.constant 0 : index
    %156 = vector.load %arg14[%c0_79, %c0_80, %c0_81] : memref<2x8x128xbf16, #tpu.memory_space<vmem>>, vector<1x8x128xbf16>
    %157 = vector.shape_cast %156 : vector<1x8x128xbf16> to vector<8x128xbf16>
    %158 = vector.shape_cast %155 : vector<8x128xbf16> to vector<1x8x128xbf16>
    tpu.vector_store %arg14[%c0_79, %c0_80, %c0_81], %158 {strides = array<i32>} : memref<2x8x128xbf16, #tpu.memory_space<vmem>>, vector<1x8x128xbf16>,
    %c0_82 = arith.constant 0 : index
    %c0_83 = arith.constant 0 : index
    %c0_84 = arith.constant 0 : index
    %159 = vector.load %arg8[%c0_82, %c0_83, %c0_84] : memref<1x128x384xbf16, #tpu.memory_space<vmem>>, vector<1x128x384xbf16>
    %160 = vector.shape_cast %159 : vector<1x128x384xbf16> to vector<128x384xbf16>
    %cst_85 = arith.constant dense<0.000000e+00> : vector<8x384xf32>
    %161 = tpu.matmul %155, %160, %cst_85 {dimension_numbers = #tpu.dot_dimension_numbers<[1], [0], [0], [1], [0, 0, 1, 1], [], []>} : vector<8x128xbf16>, vector<128x384xbf16>, vector<8x384xf32> -> vector<8x384xf32>
    %162 = arith.addf %161, %17 : vector<8x384xf32>
    %c1_86 = arith.constant 1 : index
    %c0_87 = arith.constant 0 : index
    %c0_88 = arith.constant 0 : index
    %163 = vector.load %arg14[%c1_86, %c0_87, %c0_88] : memref<2x8x128xbf16, #tpu.memory_space<vmem>>, vector<1x8x128xbf16>
    %164 = vector.shape_cast %163 : vector<1x8x128xbf16> to vector<8x128xbf16>
    %c0_89 = arith.constant 0 : index
    %c0_90 = arith.constant 0 : index
    %c0_91 = arith.constant 0 : index
    %165 = vector.load %arg9[%c0_89, %c0_90, %c0_91] : memref<1x128x384xbf16, #tpu.memory_space<vmem>>, vector<1x128x384xbf16>
    %166 = vector.shape_cast %165 : vector<1x128x384xbf16> to vector<128x384xbf16>
    %cst_92 = arith.constant dense<0.000000e+00> : vector<8x384xf32>
    %167 = tpu.matmul %164, %166, %cst_92 {dimension_numbers = #tpu.dot_dimension_numbers<[1], [0], [0], [1], [0, 0, 1, 1], [], []>} : vector<8x128xbf16>, vector<128x384xbf16>, vector<8x384xf32> -> vector<8x384xf32>
    %c1_93 = arith.constant 1 : index
    %c0_94 = arith.constant 0 : index
    %c0_95 = arith.constant 0 : index
    %168 = vector.load %arg13[%c1_93, %c0_94, %c0_95] : memref<2x8x128xf32, #tpu.memory_space<vmem>>, vector<1x8x128xf32>
    %169 = vector.shape_cast %168 : vector<1x8x128xf32> to vector<8x128xf32>
    %170 = vector.extract_strided_slice %162 {offsets = [0, 0], sizes = [8, 128], strides = [1, 1]} : vector<8x384xf32> to vector<8x128xf32>
    %171 = vector.extract_strided_slice %167 {offsets = [0, 0], sizes = [8, 128], strides = [1, 1]} : vector<8x384xf32> to vector<8x128xf32>
    %172 = arith.addf %170, %171 : vector<8x128xf32>
    %173 = arith.negf %172 : vector<8x128xf32>
    %174 = math.exp %173 : vector<8x128xf32>
    %cst_96 = arith.constant 1.000000e+00 : f32
    %175 = vector.broadcast %cst_96 : f32 to vector<8x128xf32>
    %176 = arith.addf %175, %174 : vector<8x128xf32>
    %177 = arith.divf %175, %176 : vector<8x128xf32>
    %178 = vector.extract_strided_slice %162 {offsets = [0, 128], sizes = [8, 128], strides = [1, 1]} : vector<8x384xf32> to vector<8x128xf32>
    %179 = vector.extract_strided_slice %167 {offsets = [0, 128], sizes = [8, 128], strides = [1, 1]} : vector<8x384xf32> to vector<8x128xf32>
    %180 = arith.addf %178, %179 : vector<8x128xf32>
    %181 = arith.negf %180 : vector<8x128xf32>
    %182 = math.exp %181 : vector<8x128xf32>
    %cst_97 = arith.constant 1.000000e+00 : f32
    %183 = vector.broadcast %cst_97 : f32 to vector<8x128xf32>
    %184 = arith.addf %183, %182 : vector<8x128xf32>
    %185 = arith.divf %183, %184 : vector<8x128xf32>
    %186 = vector.extract_strided_slice %162 {offsets = [0, 256], sizes = [8, 128], strides = [1, 1]} : vector<8x384xf32> to vector<8x128xf32>
    %187 = vector.extract_strided_slice %167 {offsets = [0, 256], sizes = [8, 128], strides = [1, 1]} : vector<8x384xf32> to vector<8x128xf32>
    %188 = arith.addf %187, %21 : vector<8x128xf32>
    %189 = arith.mulf %177, %188 : vector<8x128xf32>
    %190 = arith.addf %186, %189 : vector<8x128xf32>
    %191 = math.tanh %190 : vector<8x128xf32>
    %cst_98 = arith.constant 1.000000e+00 : f32
    %192 = vector.broadcast %cst_98 : f32 to vector<8x128xf32>
    %193 = arith.subf %192, %185 : vector<8x128xf32>
    %194 = arith.mulf %193, %191 : vector<8x128xf32>
    %195 = arith.mulf %185, %169 : vector<8x128xf32>
    %196 = arith.addf %194, %195 : vector<8x128xf32>
    %c1_99 = arith.constant 1 : index
    %c0_100 = arith.constant 0 : index
    %c0_101 = arith.constant 0 : index
    %197 = vector.load %arg13[%c1_99, %c0_100, %c0_101] : memref<2x8x128xf32, #tpu.memory_space<vmem>>, vector<1x8x128xf32>
    %198 = vector.shape_cast %197 : vector<1x8x128xf32> to vector<8x128xf32>
    %199 = vector.shape_cast %196 : vector<8x128xf32> to vector<1x8x128xf32>
    tpu.vector_store %arg13[%c1_99, %c0_100, %c0_101], %199 {strides = array<i32>} : memref<2x8x128xf32, #tpu.memory_space<vmem>>, vector<1x8x128xf32>,
    %200 = arith.truncf %196 : vector<8x128xf32> to vector<8x128xbf16>
    %c1_102 = arith.constant 1 : index
    %c0_103 = arith.constant 0 : index
    %c0_104 = arith.constant 0 : index
    %201 = vector.load %arg14[%c1_102, %c0_103, %c0_104] : memref<2x8x128xbf16, #tpu.memory_space<vmem>>, vector<1x8x128xbf16>
    %202 = vector.shape_cast %201 : vector<1x8x128xbf16> to vector<8x128xbf16>
    %203 = vector.shape_cast %200 : vector<8x128xbf16> to vector<1x8x128xbf16>
    tpu.vector_store %arg14[%c1_102, %c0_103, %c0_104], %203 {strides = array<i32>} : memref<2x8x128xbf16, #tpu.memory_space<vmem>>, vector<1x8x128xbf16>,
    %204 = arith.index_cast %c1_i32 : i32 to index
    %c0_105 = arith.constant 0 : index
    %c0_106 = arith.constant 0 : index
    %205 = vector.load %arg12[%204, %c0_105, %c0_106] : memref<8x8x128xbf16, #tpu.memory_space<vmem>>, vector<1x8x128xbf16>
    %206 = vector.shape_cast %205 : vector<1x8x128xbf16> to vector<8x128xbf16>
    %207 = vector.shape_cast %200 : vector<8x128xbf16> to vector<1x8x128xbf16>
    tpu.vector_store %arg12[%204, %c0_105, %c0_106], %207 {strides = array<i32>} : memref<8x8x128xbf16, #tpu.memory_space<vmem>>, vector<1x8x128xbf16>,
    %c2_i32 = arith.constant 2 : i32
    %c8_i32_107 = arith.constant 8 : i32
    %208 = arith.muli %c2_i32, %c8_i32_107 : i32
    %209 = tpu.assume_multiple %208, 8 : i32
    %210 = arith.index_cast %209 : i32 to index
    %c0_108 = arith.constant 0 : index
    %211 = vector.load %arg15[%210, %c0_108] : memref<64x384xf32, #tpu.memory_space<vmem>>, vector<8x384xf32>
    %c0_109 = arith.constant 0 : index
    %c0_110 = arith.constant 0 : index
    %c0_111 = arith.constant 0 : index
    %212 = vector.load %arg14[%c0_109, %c0_110, %c0_111] : memref<2x8x128xbf16, #tpu.memory_space<vmem>>, vector<1x8x128xbf16>
    %213 = vector.shape_cast %212 : vector<1x8x128xbf16> to vector<8x128xbf16>
    %c0_112 = arith.constant 0 : index
    %c0_113 = arith.constant 0 : index
    %214 = vector.load %arg5[%c0_112, %c0_113] : memref<128x384xbf16, #tpu.memory_space<vmem>>, vector<128x384xbf16>
    %cst_114 = arith.constant dense<0.000000e+00> : vector<8x384xf32>
    %215 = tpu.matmul %213, %214, %cst_114 {dimension_numbers = #tpu.dot_dimension_numbers<[1], [0], [0], [1], [0, 0, 1, 1], [], []>} : vector<8x128xbf16>, vector<128x384xbf16>, vector<8x384xf32> -> vector<8x384xf32>
    %c0_115 = arith.constant 0 : index
    %c0_116 = arith.constant 0 : index
    %c0_117 = arith.constant 0 : index
    %216 = vector.load %arg13[%c0_115, %c0_116, %c0_117] : memref<2x8x128xf32, #tpu.memory_space<vmem>>, vector<1x8x128xf32>
    %217 = vector.shape_cast %216 : vector<1x8x128xf32> to vector<8x128xf32>
    %218 = vector.extract_strided_slice %211 {offsets = [0, 0], sizes = [8, 128], strides = [1, 1]} : vector<8x384xf32> to vector<8x128xf32>
    %219 = vector.extract_strided_slice %215 {offsets = [0, 0], sizes = [8, 128], strides = [1, 1]} : vector<8x384xf32> to vector<8x128xf32>
    %220 = arith.addf %218, %219 : vector<8x128xf32>
    %221 = arith.negf %220 : vector<8x128xf32>
    %222 = math.exp %221 : vector<8x128xf32>
    %cst_118 = arith.constant 1.000000e+00 : f32
    %223 = vector.broadcast %cst_118 : f32 to vector<8x128xf32>
    %224 = arith.addf %223, %222 : vector<8x128xf32>
    %225 = arith.divf %223, %224 : vector<8x128xf32>
    %226 = vector.extract_strided_slice %211 {offsets = [0, 128], sizes = [8, 128], strides = [1, 1]} : vector<8x384xf32> to vector<8x128xf32>
    %227 = vector.extract_strided_slice %215 {offsets = [0, 128], sizes = [8, 128], strides = [1, 1]} : vector<8x384xf32> to vector<8x128xf32>
    %228 = arith.addf %226, %227 : vector<8x128xf32>
    %229 = arith.negf %228 : vector<8x128xf32>
    %230 = math.exp %229 : vector<8x128xf32>
    %cst_119 = arith.constant 1.000000e+00 : f32
    %231 = vector.broadcast %cst_119 : f32 to vector<8x128xf32>
    %232 = arith.addf %231, %230 : vector<8x128xf32>
    %233 = arith.divf %231, %232 : vector<8x128xf32>
    %234 = vector.extract_strided_slice %211 {offsets = [0, 256], sizes = [8, 128], strides = [1, 1]} : vector<8x384xf32> to vector<8x128xf32>
    %235 = vector.extract_strided_slice %215 {offsets = [0, 256], sizes = [8, 128], strides = [1, 1]} : vector<8x384xf32> to vector<8x128xf32>
    %236 = arith.addf %235, %13 : vector<8x128xf32>
    %237 = arith.mulf %225, %236 : vector<8x128xf32>
    %238 = arith.addf %234, %237 : vector<8x128xf32>
    %239 = math.tanh %238 : vector<8x128xf32>
    %cst_120 = arith.constant 1.000000e+00 : f32
    %240 = vector.broadcast %cst_120 : f32 to vector<8x128xf32>
    %241 = arith.subf %240, %233 : vector<8x128xf32>
    %242 = arith.mulf %241, %239 : vector<8x128xf32>
    %243 = arith.mulf %233, %217 : vector<8x128xf32>
    %244 = arith.addf %242, %243 : vector<8x128xf32>
    %c0_121 = arith.constant 0 : index
    %c0_122 = arith.constant 0 : index
    %c0_123 = arith.constant 0 : index
    %245 = vector.load %arg13[%c0_121, %c0_122, %c0_123] : memref<2x8x128xf32, #tpu.memory_space<vmem>>, vector<1x8x128xf32>
    %246 = vector.shape_cast %245 : vector<1x8x128xf32> to vector<8x128xf32>
    %247 = vector.shape_cast %244 : vector<8x128xf32> to vector<1x8x128xf32>
    tpu.vector_store %arg13[%c0_121, %c0_122, %c0_123], %247 {strides = array<i32>} : memref<2x8x128xf32, #tpu.memory_space<vmem>>, vector<1x8x128xf32>,
    %248 = arith.truncf %244 : vector<8x128xf32> to vector<8x128xbf16>
    %c0_124 = arith.constant 0 : index
    %c0_125 = arith.constant 0 : index
    %c0_126 = arith.constant 0 : index
    %249 = vector.load %arg14[%c0_124, %c0_125, %c0_126] : memref<2x8x128xbf16, #tpu.memory_space<vmem>>, vector<1x8x128xbf16>
    %250 = vector.shape_cast %249 : vector<1x8x128xbf16> to vector<8x128xbf16>
    %251 = vector.shape_cast %248 : vector<8x128xbf16> to vector<1x8x128xbf16>
    tpu.vector_store %arg14[%c0_124, %c0_125, %c0_126], %251 {strides = array<i32>} : memref<2x8x128xbf16, #tpu.memory_space<vmem>>, vector<1x8x128xbf16>,
    %c0_127 = arith.constant 0 : index
    %c0_128 = arith.constant 0 : index
    %c0_129 = arith.constant 0 : index
    %252 = vector.load %arg8[%c0_127, %c0_128, %c0_129] : memref<1x128x384xbf16, #tpu.memory_space<vmem>>, vector<1x128x384xbf16>
    %253 = vector.shape_cast %252 : vector<1x128x384xbf16> to vector<128x384xbf16>
    %cst_130 = arith.constant dense<0.000000e+00> : vector<8x384xf32>
    %254 = tpu.matmul %248, %253, %cst_130 {dimension_numbers = #tpu.dot_dimension_numbers<[1], [0], [0], [1], [0, 0, 1, 1], [], []>} : vector<8x128xbf16>, vector<128x384xbf16>, vector<8x384xf32> -> vector<8x384xf32>
    %255 = arith.addf %254, %17 : vector<8x384xf32>
    %c1_131 = arith.constant 1 : index
    %c0_132 = arith.constant 0 : index
    %c0_133 = arith.constant 0 : index
    %256 = vector.load %arg14[%c1_131, %c0_132, %c0_133] : memref<2x8x128xbf16, #tpu.memory_space<vmem>>, vector<1x8x128xbf16>
    %257 = vector.shape_cast %256 : vector<1x8x128xbf16> to vector<8x128xbf16>
    %c0_134 = arith.constant 0 : index
    %c0_135 = arith.constant 0 : index
    %c0_136 = arith.constant 0 : index
    %258 = vector.load %arg9[%c0_134, %c0_135, %c0_136] : memref<1x128x384xbf16, #tpu.memory_space<vmem>>, vector<1x128x384xbf16>
    %259 = vector.shape_cast %258 : vector<1x128x384xbf16> to vector<128x384xbf16>
    %cst_137 = arith.constant dense<0.000000e+00> : vector<8x384xf32>
    %260 = tpu.matmul %257, %259, %cst_137 {dimension_numbers = #tpu.dot_dimension_numbers<[1], [0], [0], [1], [0, 0, 1, 1], [], []>} : vector<8x128xbf16>, vector<128x384xbf16>, vector<8x384xf32> -> vector<8x384xf32>
    %c1_138 = arith.constant 1 : index
    %c0_139 = arith.constant 0 : index
    %c0_140 = arith.constant 0 : index
    %261 = vector.load %arg13[%c1_138, %c0_139, %c0_140] : memref<2x8x128xf32, #tpu.memory_space<vmem>>, vector<1x8x128xf32>
    %262 = vector.shape_cast %261 : vector<1x8x128xf32> to vector<8x128xf32>
    %263 = vector.extract_strided_slice %255 {offsets = [0, 0], sizes = [8, 128], strides = [1, 1]} : vector<8x384xf32> to vector<8x128xf32>
    %264 = vector.extract_strided_slice %260 {offsets = [0, 0], sizes = [8, 128], strides = [1, 1]} : vector<8x384xf32> to vector<8x128xf32>
    %265 = arith.addf %263, %264 : vector<8x128xf32>
    %266 = arith.negf %265 : vector<8x128xf32>
    %267 = math.exp %266 : vector<8x128xf32>
    %cst_141 = arith.constant 1.000000e+00 : f32
    %268 = vector.broadcast %cst_141 : f32 to vector<8x128xf32>
    %269 = arith.addf %268, %267 : vector<8x128xf32>
    %270 = arith.divf %268, %269 : vector<8x128xf32>
    %271 = vector.extract_strided_slice %255 {offsets = [0, 128], sizes = [8, 128], strides = [1, 1]} : vector<8x384xf32> to vector<8x128xf32>
    %272 = vector.extract_strided_slice %260 {offsets = [0, 128], sizes = [8, 128], strides = [1, 1]} : vector<8x384xf32> to vector<8x128xf32>
    %273 = arith.addf %271, %272 : vector<8x128xf32>
    %274 = arith.negf %273 : vector<8x128xf32>
    %275 = math.exp %274 : vector<8x128xf32>
    %cst_142 = arith.constant 1.000000e+00 : f32
    %276 = vector.broadcast %cst_142 : f32 to vector<8x128xf32>
    %277 = arith.addf %276, %275 : vector<8x128xf32>
    %278 = arith.divf %276, %277 : vector<8x128xf32>
    %279 = vector.extract_strided_slice %255 {offsets = [0, 256], sizes = [8, 128], strides = [1, 1]} : vector<8x384xf32> to vector<8x128xf32>
    %280 = vector.extract_strided_slice %260 {offsets = [0, 256], sizes = [8, 128], strides = [1, 1]} : vector<8x384xf32> to vector<8x128xf32>
    %281 = arith.addf %280, %21 : vector<8x128xf32>
    %282 = arith.mulf %270, %281 : vector<8x128xf32>
    %283 = arith.addf %279, %282 : vector<8x128xf32>
    %284 = math.tanh %283 : vector<8x128xf32>
    %cst_143 = arith.constant 1.000000e+00 : f32
    %285 = vector.broadcast %cst_143 : f32 to vector<8x128xf32>
    %286 = arith.subf %285, %278 : vector<8x128xf32>
    %287 = arith.mulf %286, %284 : vector<8x128xf32>
    %288 = arith.mulf %278, %262 : vector<8x128xf32>
    %289 = arith.addf %287, %288 : vector<8x128xf32>
    %c1_144 = arith.constant 1 : index
    %c0_145 = arith.constant 0 : index
    %c0_146 = arith.constant 0 : index
    %290 = vector.load %arg13[%c1_144, %c0_145, %c0_146] : memref<2x8x128xf32, #tpu.memory_space<vmem>>, vector<1x8x128xf32>
    %291 = vector.shape_cast %290 : vector<1x8x128xf32> to vector<8x128xf32>
    %292 = vector.shape_cast %289 : vector<8x128xf32> to vector<1x8x128xf32>
    tpu.vector_store %arg13[%c1_144, %c0_145, %c0_146], %292 {strides = array<i32>} : memref<2x8x128xf32, #tpu.memory_space<vmem>>, vector<1x8x128xf32>,
    %293 = arith.truncf %289 : vector<8x128xf32> to vector<8x128xbf16>
    %c1_147 = arith.constant 1 : index
    %c0_148 = arith.constant 0 : index
    %c0_149 = arith.constant 0 : index
    %294 = vector.load %arg14[%c1_147, %c0_148, %c0_149] : memref<2x8x128xbf16, #tpu.memory_space<vmem>>, vector<1x8x128xbf16>
    %295 = vector.shape_cast %294 : vector<1x8x128xbf16> to vector<8x128xbf16>
    %296 = vector.shape_cast %293 : vector<8x128xbf16> to vector<1x8x128xbf16>
    tpu.vector_store %arg14[%c1_147, %c0_148, %c0_149], %296 {strides = array<i32>} : memref<2x8x128xbf16, #tpu.memory_space<vmem>>, vector<1x8x128xbf16>,
    %297 = arith.index_cast %c2_i32 : i32 to index
    %c0_150 = arith.constant 0 : index
    %c0_151 = arith.constant 0 : index
    %298 = vector.load %arg12[%297, %c0_150, %c0_151] : memref<8x8x128xbf16, #tpu.memory_space<vmem>>, vector<1x8x128xbf16>
    %299 = vector.shape_cast %298 : vector<1x8x128xbf16> to vector<8x128xbf16>
    %300 = vector.shape_cast %293 : vector<8x128xbf16> to vector<1x8x128xbf16>
    tpu.vector_store %arg12[%297, %c0_150, %c0_151], %300 {strides = array<i32>} : memref<8x8x128xbf16, #tpu.memory_space<vmem>>, vector<1x8x128xbf16>,
    %c3_i32 = arith.constant 3 : i32
    %c8_i32_152 = arith.constant 8 : i32
    %301 = arith.muli %c3_i32, %c8_i32_152 : i32
    %302 = tpu.assume_multiple %301, 8 : i32
    %303 = arith.index_cast %302 : i32 to index
    %c0_153 = arith.constant 0 : index
    %304 = vector.load %arg15[%303, %c0_153] : memref<64x384xf32, #tpu.memory_space<vmem>>, vector<8x384xf32>
    %c0_154 = arith.constant 0 : index
    %c0_155 = arith.constant 0 : index
    %c0_156 = arith.constant 0 : index
    %305 = vector.load %arg14[%c0_154, %c0_155, %c0_156] : memref<2x8x128xbf16, #tpu.memory_space<vmem>>, vector<1x8x128xbf16>
    %306 = vector.shape_cast %305 : vector<1x8x128xbf16> to vector<8x128xbf16>
    %c0_157 = arith.constant 0 : index
    %c0_158 = arith.constant 0 : index
    %307 = vector.load %arg5[%c0_157, %c0_158] : memref<128x384xbf16, #tpu.memory_space<vmem>>, vector<128x384xbf16>
    %cst_159 = arith.constant dense<0.000000e+00> : vector<8x384xf32>
    %308 = tpu.matmul %306, %307, %cst_159 {dimension_numbers = #tpu.dot_dimension_numbers<[1], [0], [0], [1], [0, 0, 1, 1], [], []>} : vector<8x128xbf16>, vector<128x384xbf16>, vector<8x384xf32> -> vector<8x384xf32>
    %c0_160 = arith.constant 0 : index
    %c0_161 = arith.constant 0 : index
    %c0_162 = arith.constant 0 : index
    %309 = vector.load %arg13[%c0_160, %c0_161, %c0_162] : memref<2x8x128xf32, #tpu.memory_space<vmem>>, vector<1x8x128xf32>
    %310 = vector.shape_cast %309 : vector<1x8x128xf32> to vector<8x128xf32>
    %311 = vector.extract_strided_slice %304 {offsets = [0, 0], sizes = [8, 128], strides = [1, 1]} : vector<8x384xf32> to vector<8x128xf32>
    %312 = vector.extract_strided_slice %308 {offsets = [0, 0], sizes = [8, 128], strides = [1, 1]} : vector<8x384xf32> to vector<8x128xf32>
    %313 = arith.addf %311, %312 : vector<8x128xf32>
    %314 = arith.negf %313 : vector<8x128xf32>
    %315 = math.exp %314 : vector<8x128xf32>
    %cst_163 = arith.constant 1.000000e+00 : f32
    %316 = vector.broadcast %cst_163 : f32 to vector<8x128xf32>
    %317 = arith.addf %316, %315 : vector<8x128xf32>
    %318 = arith.divf %316, %317 : vector<8x128xf32>
    %319 = vector.extract_strided_slice %304 {offsets = [0, 128], sizes = [8, 128], strides = [1, 1]} : vector<8x384xf32> to vector<8x128xf32>
    %320 = vector.extract_strided_slice %308 {offsets = [0, 128], sizes = [8, 128], strides = [1, 1]} : vector<8x384xf32> to vector<8x128xf32>
    %321 = arith.addf %319, %320 : vector<8x128xf32>
    %322 = arith.negf %321 : vector<8x128xf32>
    %323 = math.exp %322 : vector<8x128xf32>
    %cst_164 = arith.constant 1.000000e+00 : f32
    %324 = vector.broadcast %cst_164 : f32 to vector<8x128xf32>
    %325 = arith.addf %324, %323 : vector<8x128xf32>
    %326 = arith.divf %324, %325 : vector<8x128xf32>
    %327 = vector.extract_strided_slice %304 {offsets = [0, 256], sizes = [8, 128], strides = [1, 1]} : vector<8x384xf32> to vector<8x128xf32>
    %328 = vector.extract_strided_slice %308 {offsets = [0, 256], sizes = [8, 128], strides = [1, 1]} : vector<8x384xf32> to vector<8x128xf32>
    %329 = arith.addf %328, %13 : vector<8x128xf32>
    %330 = arith.mulf %318, %329 : vector<8x128xf32>
    %331 = arith.addf %327, %330 : vector<8x128xf32>
    %332 = math.tanh %331 : vector<8x128xf32>
    %cst_165 = arith.constant 1.000000e+00 : f32
    %333 = vector.broadcast %cst_165 : f32 to vector<8x128xf32>
    %334 = arith.subf %333, %326 : vector<8x128xf32>
    %335 = arith.mulf %334, %332 : vector<8x128xf32>
    %336 = arith.mulf %326, %310 : vector<8x128xf32>
    %337 = arith.addf %335, %336 : vector<8x128xf32>
    %c0_166 = arith.constant 0 : index
    %c0_167 = arith.constant 0 : index
    %c0_168 = arith.constant 0 : index
    %338 = vector.load %arg13[%c0_166, %c0_167, %c0_168] : memref<2x8x128xf32, #tpu.memory_space<vmem>>, vector<1x8x128xf32>
    %339 = vector.shape_cast %338 : vector<1x8x128xf32> to vector<8x128xf32>
    %340 = vector.shape_cast %337 : vector<8x128xf32> to vector<1x8x128xf32>
    tpu.vector_store %arg13[%c0_166, %c0_167, %c0_168], %340 {strides = array<i32>} : memref<2x8x128xf32, #tpu.memory_space<vmem>>, vector<1x8x128xf32>,
    %341 = arith.truncf %337 : vector<8x128xf32> to vector<8x128xbf16>
    %c0_169 = arith.constant 0 : index
    %c0_170 = arith.constant 0 : index
    %c0_171 = arith.constant 0 : index
    %342 = vector.load %arg14[%c0_169, %c0_170, %c0_171] : memref<2x8x128xbf16, #tpu.memory_space<vmem>>, vector<1x8x128xbf16>
    %343 = vector.shape_cast %342 : vector<1x8x128xbf16> to vector<8x128xbf16>
    %344 = vector.shape_cast %341 : vector<8x128xbf16> to vector<1x8x128xbf16>
    tpu.vector_store %arg14[%c0_169, %c0_170, %c0_171], %344 {strides = array<i32>} : memref<2x8x128xbf16, #tpu.memory_space<vmem>>, vector<1x8x128xbf16>,
    %c0_172 = arith.constant 0 : index
    %c0_173 = arith.constant 0 : index
    %c0_174 = arith.constant 0 : index
    %345 = vector.load %arg8[%c0_172, %c0_173, %c0_174] : memref<1x128x384xbf16, #tpu.memory_space<vmem>>, vector<1x128x384xbf16>
    %346 = vector.shape_cast %345 : vector<1x128x384xbf16> to vector<128x384xbf16>
    %cst_175 = arith.constant dense<0.000000e+00> : vector<8x384xf32>
    %347 = tpu.matmul %341, %346, %cst_175 {dimension_numbers = #tpu.dot_dimension_numbers<[1], [0], [0], [1], [0, 0, 1, 1], [], []>} : vector<8x128xbf16>, vector<128x384xbf16>, vector<8x384xf32> -> vector<8x384xf32>
    %348 = arith.addf %347, %17 : vector<8x384xf32>
    %c1_176 = arith.constant 1 : index
    %c0_177 = arith.constant 0 : index
    %c0_178 = arith.constant 0 : index
    %349 = vector.load %arg14[%c1_176, %c0_177, %c0_178] : memref<2x8x128xbf16, #tpu.memory_space<vmem>>, vector<1x8x128xbf16>
    %350 = vector.shape_cast %349 : vector<1x8x128xbf16> to vector<8x128xbf16>
    %c0_179 = arith.constant 0 : index
    %c0_180 = arith.constant 0 : index
    %c0_181 = arith.constant 0 : index
    %351 = vector.load %arg9[%c0_179, %c0_180, %c0_181] : memref<1x128x384xbf16, #tpu.memory_space<vmem>>, vector<1x128x384xbf16>
    %352 = vector.shape_cast %351 : vector<1x128x384xbf16> to vector<128x384xbf16>
    %cst_182 = arith.constant dense<0.000000e+00> : vector<8x384xf32>
    %353 = tpu.matmul %350, %352, %cst_182 {dimension_numbers = #tpu.dot_dimension_numbers<[1], [0], [0], [1], [0, 0, 1, 1], [], []>} : vector<8x128xbf16>, vector<128x384xbf16>, vector<8x384xf32> -> vector<8x384xf32>
    %c1_183 = arith.constant 1 : index
    %c0_184 = arith.constant 0 : index
    %c0_185 = arith.constant 0 : index
    %354 = vector.load %arg13[%c1_183, %c0_184, %c0_185] : memref<2x8x128xf32, #tpu.memory_space<vmem>>, vector<1x8x128xf32>
    %355 = vector.shape_cast %354 : vector<1x8x128xf32> to vector<8x128xf32>
    %356 = vector.extract_strided_slice %348 {offsets = [0, 0], sizes = [8, 128], strides = [1, 1]} : vector<8x384xf32> to vector<8x128xf32>
    %357 = vector.extract_strided_slice %353 {offsets = [0, 0], sizes = [8, 128], strides = [1, 1]} : vector<8x384xf32> to vector<8x128xf32>
    %358 = arith.addf %356, %357 : vector<8x128xf32>
    %359 = arith.negf %358 : vector<8x128xf32>
    %360 = math.exp %359 : vector<8x128xf32>
    %cst_186 = arith.constant 1.000000e+00 : f32
    %361 = vector.broadcast %cst_186 : f32 to vector<8x128xf32>
    %362 = arith.addf %361, %360 : vector<8x128xf32>
    %363 = arith.divf %361, %362 : vector<8x128xf32>
    %364 = vector.extract_strided_slice %348 {offsets = [0, 128], sizes = [8, 128], strides = [1, 1]} : vector<8x384xf32> to vector<8x128xf32>
    %365 = vector.extract_strided_slice %353 {offsets = [0, 128], sizes = [8, 128], strides = [1, 1]} : vector<8x384xf32> to vector<8x128xf32>
    %366 = arith.addf %364, %365 : vector<8x128xf32>
    %367 = arith.negf %366 : vector<8x128xf32>
    %368 = math.exp %367 : vector<8x128xf32>
    %cst_187 = arith.constant 1.000000e+00 : f32
    %369 = vector.broadcast %cst_187 : f32 to vector<8x128xf32>
    %370 = arith.addf %369, %368 : vector<8x128xf32>
    %371 = arith.divf %369, %370 : vector<8x128xf32>
    %372 = vector.extract_strided_slice %348 {offsets = [0, 256], sizes = [8, 128], strides = [1, 1]} : vector<8x384xf32> to vector<8x128xf32>
    %373 = vector.extract_strided_slice %353 {offsets = [0, 256], sizes = [8, 128], strides = [1, 1]} : vector<8x384xf32> to vector<8x128xf32>
    %374 = arith.addf %373, %21 : vector<8x128xf32>
    %375 = arith.mulf %363, %374 : vector<8x128xf32>
    %376 = arith.addf %372, %375 : vector<8x128xf32>
    %377 = math.tanh %376 : vector<8x128xf32>
    %cst_188 = arith.constant 1.000000e+00 : f32
    %378 = vector.broadcast %cst_188 : f32 to vector<8x128xf32>
    %379 = arith.subf %378, %371 : vector<8x128xf32>
    %380 = arith.mulf %379, %377 : vector<8x128xf32>
    %381 = arith.mulf %371, %355 : vector<8x128xf32>
    %382 = arith.addf %380, %381 : vector<8x128xf32>
    %c1_189 = arith.constant 1 : index
    %c0_190 = arith.constant 0 : index
    %c0_191 = arith.constant 0 : index
    %383 = vector.load %arg13[%c1_189, %c0_190, %c0_191] : memref<2x8x128xf32, #tpu.memory_space<vmem>>, vector<1x8x128xf32>
    %384 = vector.shape_cast %383 : vector<1x8x128xf32> to vector<8x128xf32>
    %385 = vector.shape_cast %382 : vector<8x128xf32> to vector<1x8x128xf32>
    tpu.vector_store %arg13[%c1_189, %c0_190, %c0_191], %385 {strides = array<i32>} : memref<2x8x128xf32, #tpu.memory_space<vmem>>, vector<1x8x128xf32>,
    %386 = arith.truncf %382 : vector<8x128xf32> to vector<8x128xbf16>
    %c1_192 = arith.constant 1 : index
    %c0_193 = arith.constant 0 : index
    %c0_194 = arith.constant 0 : index
    %387 = vector.load %arg14[%c1_192, %c0_193, %c0_194] : memref<2x8x128xbf16, #tpu.memory_space<vmem>>, vector<1x8x128xbf16>
    %388 = vector.shape_cast %387 : vector<1x8x128xbf16> to vector<8x128xbf16>
    %389 = vector.shape_cast %386 : vector<8x128xbf16> to vector<1x8x128xbf16>
    tpu.vector_store %arg14[%c1_192, %c0_193, %c0_194], %389 {strides = array<i32>} : memref<2x8x128xbf16, #tpu.memory_space<vmem>>, vector<1x8x128xbf16>,
    %390 = arith.index_cast %c3_i32 : i32 to index
    %c0_195 = arith.constant 0 : index
    %c0_196 = arith.constant 0 : index
    %391 = vector.load %arg12[%390, %c0_195, %c0_196] : memref<8x8x128xbf16, #tpu.memory_space<vmem>>, vector<1x8x128xbf16>
    %392 = vector.shape_cast %391 : vector<1x8x128xbf16> to vector<8x128xbf16>
    %393 = vector.shape_cast %386 : vector<8x128xbf16> to vector<1x8x128xbf16>
    tpu.vector_store %arg12[%390, %c0_195, %c0_196], %393 {strides = array<i32>} : memref<8x8x128xbf16, #tpu.memory_space<vmem>>, vector<1x8x128xbf16>,
    %c4_i32 = arith.constant 4 : i32
    %c8_i32_197 = arith.constant 8 : i32
    %394 = arith.muli %c4_i32, %c8_i32_197 : i32
    %395 = tpu.assume_multiple %394, 8 : i32
    %396 = arith.index_cast %395 : i32 to index
    %c0_198 = arith.constant 0 : index
    %397 = vector.load %arg15[%396, %c0_198] : memref<64x384xf32, #tpu.memory_space<vmem>>, vector<8x384xf32>
    %c0_199 = arith.constant 0 : index
    %c0_200 = arith.constant 0 : index
    %c0_201 = arith.constant 0 : index
    %398 = vector.load %arg14[%c0_199, %c0_200, %c0_201] : memref<2x8x128xbf16, #tpu.memory_space<vmem>>, vector<1x8x128xbf16>
    %399 = vector.shape_cast %398 : vector<1x8x128xbf16> to vector<8x128xbf16>
    %c0_202 = arith.constant 0 : index
    %c0_203 = arith.constant 0 : index
    %400 = vector.load %arg5[%c0_202, %c0_203] : memref<128x384xbf16, #tpu.memory_space<vmem>>, vector<128x384xbf16>
    %cst_204 = arith.constant dense<0.000000e+00> : vector<8x384xf32>
    %401 = tpu.matmul %399, %400, %cst_204 {dimension_numbers = #tpu.dot_dimension_numbers<[1], [0], [0], [1], [0, 0, 1, 1], [], []>} : vector<8x128xbf16>, vector<128x384xbf16>, vector<8x384xf32> -> vector<8x384xf32>
    %c0_205 = arith.constant 0 : index
    %c0_206 = arith.constant 0 : index
    %c0_207 = arith.constant 0 : index
    %402 = vector.load %arg13[%c0_205, %c0_206, %c0_207] : memref<2x8x128xf32, #tpu.memory_space<vmem>>, vector<1x8x128xf32>
    %403 = vector.shape_cast %402 : vector<1x8x128xf32> to vector<8x128xf32>
    %404 = vector.extract_strided_slice %397 {offsets = [0, 0], sizes = [8, 128], strides = [1, 1]} : vector<8x384xf32> to vector<8x128xf32>
    %405 = vector.extract_strided_slice %401 {offsets = [0, 0], sizes = [8, 128], strides = [1, 1]} : vector<8x384xf32> to vector<8x128xf32>
    %406 = arith.addf %404, %405 : vector<8x128xf32>
    %407 = arith.negf %406 : vector<8x128xf32>
    %408 = math.exp %407 : vector<8x128xf32>
    %cst_208 = arith.constant 1.000000e+00 : f32
    %409 = vector.broadcast %cst_208 : f32 to vector<8x128xf32>
    %410 = arith.addf %409, %408 : vector<8x128xf32>
    %411 = arith.divf %409, %410 : vector<8x128xf32>
    %412 = vector.extract_strided_slice %397 {offsets = [0, 128], sizes = [8, 128], strides = [1, 1]} : vector<8x384xf32> to vector<8x128xf32>
    %413 = vector.extract_strided_slice %401 {offsets = [0, 128], sizes = [8, 128], strides = [1, 1]} : vector<8x384xf32> to vector<8x128xf32>
    %414 = arith.addf %412, %413 : vector<8x128xf32>
    %415 = arith.negf %414 : vector<8x128xf32>
    %416 = math.exp %415 : vector<8x128xf32>
    %cst_209 = arith.constant 1.000000e+00 : f32
    %417 = vector.broadcast %cst_209 : f32 to vector<8x128xf32>
    %418 = arith.addf %417, %416 : vector<8x128xf32>
    %419 = arith.divf %417, %418 : vector<8x128xf32>
    %420 = vector.extract_strided_slice %397 {offsets = [0, 256], sizes = [8, 128], strides = [1, 1]} : vector<8x384xf32> to vector<8x128xf32>
    %421 = vector.extract_strided_slice %401 {offsets = [0, 256], sizes = [8, 128], strides = [1, 1]} : vector<8x384xf32> to vector<8x128xf32>
    %422 = arith.addf %421, %13 : vector<8x128xf32>
    %423 = arith.mulf %411, %422 : vector<8x128xf32>
    %424 = arith.addf %420, %423 : vector<8x128xf32>
    %425 = math.tanh %424 : vector<8x128xf32>
    %cst_210 = arith.constant 1.000000e+00 : f32
    %426 = vector.broadcast %cst_210 : f32 to vector<8x128xf32>
    %427 = arith.subf %426, %419 : vector<8x128xf32>
    %428 = arith.mulf %427, %425 : vector<8x128xf32>
    %429 = arith.mulf %419, %403 : vector<8x128xf32>
    %430 = arith.addf %428, %429 : vector<8x128xf32>
    %c0_211 = arith.constant 0 : index
    %c0_212 = arith.constant 0 : index
    %c0_213 = arith.constant 0 : index
    %431 = vector.load %arg13[%c0_211, %c0_212, %c0_213] : memref<2x8x128xf32, #tpu.memory_space<vmem>>, vector<1x8x128xf32>
    %432 = vector.shape_cast %431 : vector<1x8x128xf32> to vector<8x128xf32>
    %433 = vector.shape_cast %430 : vector<8x128xf32> to vector<1x8x128xf32>
    tpu.vector_store %arg13[%c0_211, %c0_212, %c0_213], %433 {strides = array<i32>} : memref<2x8x128xf32, #tpu.memory_space<vmem>>, vector<1x8x128xf32>,
    %434 = arith.truncf %430 : vector<8x128xf32> to vector<8x128xbf16>
    %c0_214 = arith.constant 0 : index
    %c0_215 = arith.constant 0 : index
    %c0_216 = arith.constant 0 : index
    %435 = vector.load %arg14[%c0_214, %c0_215, %c0_216] : memref<2x8x128xbf16, #tpu.memory_space<vmem>>, vector<1x8x128xbf16>
    %436 = vector.shape_cast %435 : vector<1x8x128xbf16> to vector<8x128xbf16>
    %437 = vector.shape_cast %434 : vector<8x128xbf16> to vector<1x8x128xbf16>
    tpu.vector_store %arg14[%c0_214, %c0_215, %c0_216], %437 {strides = array<i32>} : memref<2x8x128xbf16, #tpu.memory_space<vmem>>, vector<1x8x128xbf16>,
    %c0_217 = arith.constant 0 : index
    %c0_218 = arith.constant 0 : index
    %c0_219 = arith.constant 0 : index
    %438 = vector.load %arg8[%c0_217, %c0_218, %c0_219] : memref<1x128x384xbf16, #tpu.memory_space<vmem>>, vector<1x128x384xbf16>
    %439 = vector.shape_cast %438 : vector<1x128x384xbf16> to vector<128x384xbf16>
    %cst_220 = arith.constant dense<0.000000e+00> : vector<8x384xf32>
    %440 = tpu.matmul %434, %439, %cst_220 {dimension_numbers = #tpu.dot_dimension_numbers<[1], [0], [0], [1], [0, 0, 1, 1], [], []>} : vector<8x128xbf16>, vector<128x384xbf16>, vector<8x384xf32> -> vector<8x384xf32>
    %441 = arith.addf %440, %17 : vector<8x384xf32>
    %c1_221 = arith.constant 1 : index
    %c0_222 = arith.constant 0 : index
    %c0_223 = arith.constant 0 : index
    %442 = vector.load %arg14[%c1_221, %c0_222, %c0_223] : memref<2x8x128xbf16, #tpu.memory_space<vmem>>, vector<1x8x128xbf16>
    %443 = vector.shape_cast %442 : vector<1x8x128xbf16> to vector<8x128xbf16>
    %c0_224 = arith.constant 0 : index
    %c0_225 = arith.constant 0 : index
    %c0_226 = arith.constant 0 : index
    %444 = vector.load %arg9[%c0_224, %c0_225, %c0_226] : memref<1x128x384xbf16, #tpu.memory_space<vmem>>, vector<1x128x384xbf16>
    %445 = vector.shape_cast %444 : vector<1x128x384xbf16> to vector<128x384xbf16>
    %cst_227 = arith.constant dense<0.000000e+00> : vector<8x384xf32>
    %446 = tpu.matmul %443, %445, %cst_227 {dimension_numbers = #tpu.dot_dimension_numbers<[1], [0], [0], [1], [0, 0, 1, 1], [], []>} : vector<8x128xbf16>, vector<128x384xbf16>, vector<8x384xf32> -> vector<8x384xf32>
    %c1_228 = arith.constant 1 : index
    %c0_229 = arith.constant 0 : index
    %c0_230 = arith.constant 0 : index
    %447 = vector.load %arg13[%c1_228, %c0_229, %c0_230] : memref<2x8x128xf32, #tpu.memory_space<vmem>>, vector<1x8x128xf32>
    %448 = vector.shape_cast %447 : vector<1x8x128xf32> to vector<8x128xf32>
    %449 = vector.extract_strided_slice %441 {offsets = [0, 0], sizes = [8, 128], strides = [1, 1]} : vector<8x384xf32> to vector<8x128xf32>
    %450 = vector.extract_strided_slice %446 {offsets = [0, 0], sizes = [8, 128], strides = [1, 1]} : vector<8x384xf32> to vector<8x128xf32>
    %451 = arith.addf %449, %450 : vector<8x128xf32>
    %452 = arith.negf %451 : vector<8x128xf32>
    %453 = math.exp %452 : vector<8x128xf32>
    %cst_231 = arith.constant 1.000000e+00 : f32
    %454 = vector.broadcast %cst_231 : f32 to vector<8x128xf32>
    %455 = arith.addf %454, %453 : vector<8x128xf32>
    %456 = arith.divf %454, %455 : vector<8x128xf32>
    %457 = vector.extract_strided_slice %441 {offsets = [0, 128], sizes = [8, 128], strides = [1, 1]} : vector<8x384xf32> to vector<8x128xf32>
    %458 = vector.extract_strided_slice %446 {offsets = [0, 128], sizes = [8, 128], strides = [1, 1]} : vector<8x384xf32> to vector<8x128xf32>
    %459 = arith.addf %457, %458 : vector<8x128xf32>
    %460 = arith.negf %459 : vector<8x128xf32>
    %461 = math.exp %460 : vector<8x128xf32>
    %cst_232 = arith.constant 1.000000e+00 : f32
    %462 = vector.broadcast %cst_232 : f32 to vector<8x128xf32>
    %463 = arith.addf %462, %461 : vector<8x128xf32>
    %464 = arith.divf %462, %463 : vector<8x128xf32>
    %465 = vector.extract_strided_slice %441 {offsets = [0, 256], sizes = [8, 128], strides = [1, 1]} : vector<8x384xf32> to vector<8x128xf32>
    %466 = vector.extract_strided_slice %446 {offsets = [0, 256], sizes = [8, 128], strides = [1, 1]} : vector<8x384xf32> to vector<8x128xf32>
    %467 = arith.addf %466, %21 : vector<8x128xf32>
    %468 = arith.mulf %456, %467 : vector<8x128xf32>
    %469 = arith.addf %465, %468 : vector<8x128xf32>
    %470 = math.tanh %469 : vector<8x128xf32>
    %cst_233 = arith.constant 1.000000e+00 : f32
    %471 = vector.broadcast %cst_233 : f32 to vector<8x128xf32>
    %472 = arith.subf %471, %464 : vector<8x128xf32>
    %473 = arith.mulf %472, %470 : vector<8x128xf32>
    %474 = arith.mulf %464, %448 : vector<8x128xf32>
    %475 = arith.addf %473, %474 : vector<8x128xf32>
    %c1_234 = arith.constant 1 : index
    %c0_235 = arith.constant 0 : index
    %c0_236 = arith.constant 0 : index
    %476 = vector.load %arg13[%c1_234, %c0_235, %c0_236] : memref<2x8x128xf32, #tpu.memory_space<vmem>>, vector<1x8x128xf32>
    %477 = vector.shape_cast %476 : vector<1x8x128xf32> to vector<8x128xf32>
    %478 = vector.shape_cast %475 : vector<8x128xf32> to vector<1x8x128xf32>
    tpu.vector_store %arg13[%c1_234, %c0_235, %c0_236], %478 {strides = array<i32>} : memref<2x8x128xf32, #tpu.memory_space<vmem>>, vector<1x8x128xf32>,
    %479 = arith.truncf %475 : vector<8x128xf32> to vector<8x128xbf16>
    %c1_237 = arith.constant 1 : index
    %c0_238 = arith.constant 0 : index
    %c0_239 = arith.constant 0 : index
    %480 = vector.load %arg14[%c1_237, %c0_238, %c0_239] : memref<2x8x128xbf16, #tpu.memory_space<vmem>>, vector<1x8x128xbf16>
    %481 = vector.shape_cast %480 : vector<1x8x128xbf16> to vector<8x128xbf16>
    %482 = vector.shape_cast %479 : vector<8x128xbf16> to vector<1x8x128xbf16>
    tpu.vector_store %arg14[%c1_237, %c0_238, %c0_239], %482 {strides = array<i32>} : memref<2x8x128xbf16, #tpu.memory_space<vmem>>, vector<1x8x128xbf16>,
    %483 = arith.index_cast %c4_i32 : i32 to index
    %c0_240 = arith.constant 0 : index
    %c0_241 = arith.constant 0 : index
    %484 = vector.load %arg12[%483, %c0_240, %c0_241] : memref<8x8x128xbf16, #tpu.memory_space<vmem>>, vector<1x8x128xbf16>
    %485 = vector.shape_cast %484 : vector<1x8x128xbf16> to vector<8x128xbf16>
    %486 = vector.shape_cast %479 : vector<8x128xbf16> to vector<1x8x128xbf16>
    tpu.vector_store %arg12[%483, %c0_240, %c0_241], %486 {strides = array<i32>} : memref<8x8x128xbf16, #tpu.memory_space<vmem>>, vector<1x8x128xbf16>,
    %c5_i32 = arith.constant 5 : i32
    %c8_i32_242 = arith.constant 8 : i32
    %487 = arith.muli %c5_i32, %c8_i32_242 : i32
    %488 = tpu.assume_multiple %487, 8 : i32
    %489 = arith.index_cast %488 : i32 to index
    %c0_243 = arith.constant 0 : index
    %490 = vector.load %arg15[%489, %c0_243] : memref<64x384xf32, #tpu.memory_space<vmem>>, vector<8x384xf32>
    %c0_244 = arith.constant 0 : index
    %c0_245 = arith.constant 0 : index
    %c0_246 = arith.constant 0 : index
    %491 = vector.load %arg14[%c0_244, %c0_245, %c0_246] : memref<2x8x128xbf16, #tpu.memory_space<vmem>>, vector<1x8x128xbf16>
    %492 = vector.shape_cast %491 : vector<1x8x128xbf16> to vector<8x128xbf16>
    %c0_247 = arith.constant 0 : index
    %c0_248 = arith.constant 0 : index
    %493 = vector.load %arg5[%c0_247, %c0_248] : memref<128x384xbf16, #tpu.memory_space<vmem>>, vector<128x384xbf16>
    %cst_249 = arith.constant dense<0.000000e+00> : vector<8x384xf32>
    %494 = tpu.matmul %492, %493, %cst_249 {dimension_numbers = #tpu.dot_dimension_numbers<[1], [0], [0], [1], [0, 0, 1, 1], [], []>} : vector<8x128xbf16>, vector<128x384xbf16>, vector<8x384xf32> -> vector<8x384xf32>
    %c0_250 = arith.constant 0 : index
    %c0_251 = arith.constant 0 : index
    %c0_252 = arith.constant 0 : index
    %495 = vector.load %arg13[%c0_250, %c0_251, %c0_252] : memref<2x8x128xf32, #tpu.memory_space<vmem>>, vector<1x8x128xf32>
    %496 = vector.shape_cast %495 : vector<1x8x128xf32> to vector<8x128xf32>
    %497 = vector.extract_strided_slice %490 {offsets = [0, 0], sizes = [8, 128], strides = [1, 1]} : vector<8x384xf32> to vector<8x128xf32>
    %498 = vector.extract_strided_slice %494 {offsets = [0, 0], sizes = [8, 128], strides = [1, 1]} : vector<8x384xf32> to vector<8x128xf32>
    %499 = arith.addf %497, %498 : vector<8x128xf32>
    %500 = arith.negf %499 : vector<8x128xf32>
    %501 = math.exp %500 : vector<8x128xf32>
    %cst_253 = arith.constant 1.000000e+00 : f32
    %502 = vector.broadcast %cst_253 : f32 to vector<8x128xf32>
    %503 = arith.addf %502, %501 : vector<8x128xf32>
    %504 = arith.divf %502, %503 : vector<8x128xf32>
    %505 = vector.extract_strided_slice %490 {offsets = [0, 128], sizes = [8, 128], strides = [1, 1]} : vector<8x384xf32> to vector<8x128xf32>
    %506 = vector.extract_strided_slice %494 {offsets = [0, 128], sizes = [8, 128], strides = [1, 1]} : vector<8x384xf32> to vector<8x128xf32>
    %507 = arith.addf %505, %506 : vector<8x128xf32>
    %508 = arith.negf %507 : vector<8x128xf32>
    %509 = math.exp %508 : vector<8x128xf32>
    %cst_254 = arith.constant 1.000000e+00 : f32
    %510 = vector.broadcast %cst_254 : f32 to vector<8x128xf32>
    %511 = arith.addf %510, %509 : vector<8x128xf32>
    %512 = arith.divf %510, %511 : vector<8x128xf32>
    %513 = vector.extract_strided_slice %490 {offsets = [0, 256], sizes = [8, 128], strides = [1, 1]} : vector<8x384xf32> to vector<8x128xf32>
    %514 = vector.extract_strided_slice %494 {offsets = [0, 256], sizes = [8, 128], strides = [1, 1]} : vector<8x384xf32> to vector<8x128xf32>
    %515 = arith.addf %514, %13 : vector<8x128xf32>
    %516 = arith.mulf %504, %515 : vector<8x128xf32>
    %517 = arith.addf %513, %516 : vector<8x128xf32>
    %518 = math.tanh %517 : vector<8x128xf32>
    %cst_255 = arith.constant 1.000000e+00 : f32
    %519 = vector.broadcast %cst_255 : f32 to vector<8x128xf32>
    %520 = arith.subf %519, %512 : vector<8x128xf32>
    %521 = arith.mulf %520, %518 : vector<8x128xf32>
    %522 = arith.mulf %512, %496 : vector<8x128xf32>
    %523 = arith.addf %521, %522 : vector<8x128xf32>
    %c0_256 = arith.constant 0 : index
    %c0_257 = arith.constant 0 : index
    %c0_258 = arith.constant 0 : index
    %524 = vector.load %arg13[%c0_256, %c0_257, %c0_258] : memref<2x8x128xf32, #tpu.memory_space<vmem>>, vector<1x8x128xf32>
    %525 = vector.shape_cast %524 : vector<1x8x128xf32> to vector<8x128xf32>
    %526 = vector.shape_cast %523 : vector<8x128xf32> to vector<1x8x128xf32>
    tpu.vector_store %arg13[%c0_256, %c0_257, %c0_258], %526 {strides = array<i32>} : memref<2x8x128xf32, #tpu.memory_space<vmem>>, vector<1x8x128xf32>,
    %527 = arith.truncf %523 : vector<8x128xf32> to vector<8x128xbf16>
    %c0_259 = arith.constant 0 : index
    %c0_260 = arith.constant 0 : index
    %c0_261 = arith.constant 0 : index
    %528 = vector.load %arg14[%c0_259, %c0_260, %c0_261] : memref<2x8x128xbf16, #tpu.memory_space<vmem>>, vector<1x8x128xbf16>
    %529 = vector.shape_cast %528 : vector<1x8x128xbf16> to vector<8x128xbf16>
    %530 = vector.shape_cast %527 : vector<8x128xbf16> to vector<1x8x128xbf16>
    tpu.vector_store %arg14[%c0_259, %c0_260, %c0_261], %530 {strides = array<i32>} : memref<2x8x128xbf16, #tpu.memory_space<vmem>>, vector<1x8x128xbf16>,
    %c0_262 = arith.constant 0 : index
    %c0_263 = arith.constant 0 : index
    %c0_264 = arith.constant 0 : index
    %531 = vector.load %arg8[%c0_262, %c0_263, %c0_264] : memref<1x128x384xbf16, #tpu.memory_space<vmem>>, vector<1x128x384xbf16>
    %532 = vector.shape_cast %531 : vector<1x128x384xbf16> to vector<128x384xbf16>
    %cst_265 = arith.constant dense<0.000000e+00> : vector<8x384xf32>
    %533 = tpu.matmul %527, %532, %cst_265 {dimension_numbers = #tpu.dot_dimension_numbers<[1], [0], [0], [1], [0, 0, 1, 1], [], []>} : vector<8x128xbf16>, vector<128x384xbf16>, vector<8x384xf32> -> vector<8x384xf32>
    %534 = arith.addf %533, %17 : vector<8x384xf32>
    %c1_266 = arith.constant 1 : index
    %c0_267 = arith.constant 0 : index
    %c0_268 = arith.constant 0 : index
    %535 = vector.load %arg14[%c1_266, %c0_267, %c0_268] : memref<2x8x128xbf16, #tpu.memory_space<vmem>>, vector<1x8x128xbf16>
    %536 = vector.shape_cast %535 : vector<1x8x128xbf16> to vector<8x128xbf16>
    %c0_269 = arith.constant 0 : index
    %c0_270 = arith.constant 0 : index
    %c0_271 = arith.constant 0 : index
    %537 = vector.load %arg9[%c0_269, %c0_270, %c0_271] : memref<1x128x384xbf16, #tpu.memory_space<vmem>>, vector<1x128x384xbf16>
    %538 = vector.shape_cast %537 : vector<1x128x384xbf16> to vector<128x384xbf16>
    %cst_272 = arith.constant dense<0.000000e+00> : vector<8x384xf32>
    %539 = tpu.matmul %536, %538, %cst_272 {dimension_numbers = #tpu.dot_dimension_numbers<[1], [0], [0], [1], [0, 0, 1, 1], [], []>} : vector<8x128xbf16>, vector<128x384xbf16>, vector<8x384xf32> -> vector<8x384xf32>
    %c1_273 = arith.constant 1 : index
    %c0_274 = arith.constant 0 : index
    %c0_275 = arith.constant 0 : index
    %540 = vector.load %arg13[%c1_273, %c0_274, %c0_275] : memref<2x8x128xf32, #tpu.memory_space<vmem>>, vector<1x8x128xf32>
    %541 = vector.shape_cast %540 : vector<1x8x128xf32> to vector<8x128xf32>
    %542 = vector.extract_strided_slice %534 {offsets = [0, 0], sizes = [8, 128], strides = [1, 1]} : vector<8x384xf32> to vector<8x128xf32>
    %543 = vector.extract_strided_slice %539 {offsets = [0, 0], sizes = [8, 128], strides = [1, 1]} : vector<8x384xf32> to vector<8x128xf32>
    %544 = arith.addf %542, %543 : vector<8x128xf32>
    %545 = arith.negf %544 : vector<8x128xf32>
    %546 = math.exp %545 : vector<8x128xf32>
    %cst_276 = arith.constant 1.000000e+00 : f32
    %547 = vector.broadcast %cst_276 : f32 to vector<8x128xf32>
    %548 = arith.addf %547, %546 : vector<8x128xf32>
    %549 = arith.divf %547, %548 : vector<8x128xf32>
    %550 = vector.extract_strided_slice %534 {offsets = [0, 128], sizes = [8, 128], strides = [1, 1]} : vector<8x384xf32> to vector<8x128xf32>
    %551 = vector.extract_strided_slice %539 {offsets = [0, 128], sizes = [8, 128], strides = [1, 1]} : vector<8x384xf32> to vector<8x128xf32>
    %552 = arith.addf %550, %551 : vector<8x128xf32>
    %553 = arith.negf %552 : vector<8x128xf32>
    %554 = math.exp %553 : vector<8x128xf32>
    %cst_277 = arith.constant 1.000000e+00 : f32
    %555 = vector.broadcast %cst_277 : f32 to vector<8x128xf32>
    %556 = arith.addf %555, %554 : vector<8x128xf32>
    %557 = arith.divf %555, %556 : vector<8x128xf32>
    %558 = vector.extract_strided_slice %534 {offsets = [0, 256], sizes = [8, 128], strides = [1, 1]} : vector<8x384xf32> to vector<8x128xf32>
    %559 = vector.extract_strided_slice %539 {offsets = [0, 256], sizes = [8, 128], strides = [1, 1]} : vector<8x384xf32> to vector<8x128xf32>
    %560 = arith.addf %559, %21 : vector<8x128xf32>
    %561 = arith.mulf %549, %560 : vector<8x128xf32>
    %562 = arith.addf %558, %561 : vector<8x128xf32>
    %563 = math.tanh %562 : vector<8x128xf32>
    %cst_278 = arith.constant 1.000000e+00 : f32
    %564 = vector.broadcast %cst_278 : f32 to vector<8x128xf32>
    %565 = arith.subf %564, %557 : vector<8x128xf32>
    %566 = arith.mulf %565, %563 : vector<8x128xf32>
    %567 = arith.mulf %557, %541 : vector<8x128xf32>
    %568 = arith.addf %566, %567 : vector<8x128xf32>
    %c1_279 = arith.constant 1 : index
    %c0_280 = arith.constant 0 : index
    %c0_281 = arith.constant 0 : index
    %569 = vector.load %arg13[%c1_279, %c0_280, %c0_281] : memref<2x8x128xf32, #tpu.memory_space<vmem>>, vector<1x8x128xf32>
    %570 = vector.shape_cast %569 : vector<1x8x128xf32> to vector<8x128xf32>
    %571 = vector.shape_cast %568 : vector<8x128xf32> to vector<1x8x128xf32>
    tpu.vector_store %arg13[%c1_279, %c0_280, %c0_281], %571 {strides = array<i32>} : memref<2x8x128xf32, #tpu.memory_space<vmem>>, vector<1x8x128xf32>,
    %572 = arith.truncf %568 : vector<8x128xf32> to vector<8x128xbf16>
    %c1_282 = arith.constant 1 : index
    %c0_283 = arith.constant 0 : index
    %c0_284 = arith.constant 0 : index
    %573 = vector.load %arg14[%c1_282, %c0_283, %c0_284] : memref<2x8x128xbf16, #tpu.memory_space<vmem>>, vector<1x8x128xbf16>
    %574 = vector.shape_cast %573 : vector<1x8x128xbf16> to vector<8x128xbf16>
    %575 = vector.shape_cast %572 : vector<8x128xbf16> to vector<1x8x128xbf16>
    tpu.vector_store %arg14[%c1_282, %c0_283, %c0_284], %575 {strides = array<i32>} : memref<2x8x128xbf16, #tpu.memory_space<vmem>>, vector<1x8x128xbf16>,
    %576 = arith.index_cast %c5_i32 : i32 to index
    %c0_285 = arith.constant 0 : index
    %c0_286 = arith.constant 0 : index
    %577 = vector.load %arg12[%576, %c0_285, %c0_286] : memref<8x8x128xbf16, #tpu.memory_space<vmem>>, vector<1x8x128xbf16>
    %578 = vector.shape_cast %577 : vector<1x8x128xbf16> to vector<8x128xbf16>
    %579 = vector.shape_cast %572 : vector<8x128xbf16> to vector<1x8x128xbf16>
    tpu.vector_store %arg12[%576, %c0_285, %c0_286], %579 {strides = array<i32>} : memref<8x8x128xbf16, #tpu.memory_space<vmem>>, vector<1x8x128xbf16>,
    %c6_i32 = arith.constant 6 : i32
    %c8_i32_287 = arith.constant 8 : i32
    %580 = arith.muli %c6_i32, %c8_i32_287 : i32
    %581 = tpu.assume_multiple %580, 8 : i32
    %582 = arith.index_cast %581 : i32 to index
    %c0_288 = arith.constant 0 : index
    %583 = vector.load %arg15[%582, %c0_288] : memref<64x384xf32, #tpu.memory_space<vmem>>, vector<8x384xf32>
    %c0_289 = arith.constant 0 : index
    %c0_290 = arith.constant 0 : index
    %c0_291 = arith.constant 0 : index
    %584 = vector.load %arg14[%c0_289, %c0_290, %c0_291] : memref<2x8x128xbf16, #tpu.memory_space<vmem>>, vector<1x8x128xbf16>
    %585 = vector.shape_cast %584 : vector<1x8x128xbf16> to vector<8x128xbf16>
    %c0_292 = arith.constant 0 : index
    %c0_293 = arith.constant 0 : index
    %586 = vector.load %arg5[%c0_292, %c0_293] : memref<128x384xbf16, #tpu.memory_space<vmem>>, vector<128x384xbf16>
    %cst_294 = arith.constant dense<0.000000e+00> : vector<8x384xf32>
    %587 = tpu.matmul %585, %586, %cst_294 {dimension_numbers = #tpu.dot_dimension_numbers<[1], [0], [0], [1], [0, 0, 1, 1], [], []>} : vector<8x128xbf16>, vector<128x384xbf16>, vector<8x384xf32> -> vector<8x384xf32>
    %c0_295 = arith.constant 0 : index
    %c0_296 = arith.constant 0 : index
    %c0_297 = arith.constant 0 : index
    %588 = vector.load %arg13[%c0_295, %c0_296, %c0_297] : memref<2x8x128xf32, #tpu.memory_space<vmem>>, vector<1x8x128xf32>
    %589 = vector.shape_cast %588 : vector<1x8x128xf32> to vector<8x128xf32>
    %590 = vector.extract_strided_slice %583 {offsets = [0, 0], sizes = [8, 128], strides = [1, 1]} : vector<8x384xf32> to vector<8x128xf32>
    %591 = vector.extract_strided_slice %587 {offsets = [0, 0], sizes = [8, 128], strides = [1, 1]} : vector<8x384xf32> to vector<8x128xf32>
    %592 = arith.addf %590, %591 : vector<8x128xf32>
    %593 = arith.negf %592 : vector<8x128xf32>
    %594 = math.exp %593 : vector<8x128xf32>
    %cst_298 = arith.constant 1.000000e+00 : f32
    %595 = vector.broadcast %cst_298 : f32 to vector<8x128xf32>
    %596 = arith.addf %595, %594 : vector<8x128xf32>
    %597 = arith.divf %595, %596 : vector<8x128xf32>
    %598 = vector.extract_strided_slice %583 {offsets = [0, 128], sizes = [8, 128], strides = [1, 1]} : vector<8x384xf32> to vector<8x128xf32>
    %599 = vector.extract_strided_slice %587 {offsets = [0, 128], sizes = [8, 128], strides = [1, 1]} : vector<8x384xf32> to vector<8x128xf32>
    %600 = arith.addf %598, %599 : vector<8x128xf32>
    %601 = arith.negf %600 : vector<8x128xf32>
    %602 = math.exp %601 : vector<8x128xf32>
    %cst_299 = arith.constant 1.000000e+00 : f32
    %603 = vector.broadcast %cst_299 : f32 to vector<8x128xf32>
    %604 = arith.addf %603, %602 : vector<8x128xf32>
    %605 = arith.divf %603, %604 : vector<8x128xf32>
    %606 = vector.extract_strided_slice %583 {offsets = [0, 256], sizes = [8, 128], strides = [1, 1]} : vector<8x384xf32> to vector<8x128xf32>
    %607 = vector.extract_strided_slice %587 {offsets = [0, 256], sizes = [8, 128], strides = [1, 1]} : vector<8x384xf32> to vector<8x128xf32>
    %608 = arith.addf %607, %13 : vector<8x128xf32>
    %609 = arith.mulf %597, %608 : vector<8x128xf32>
    %610 = arith.addf %606, %609 : vector<8x128xf32>
    %611 = math.tanh %610 : vector<8x128xf32>
    %cst_300 = arith.constant 1.000000e+00 : f32
    %612 = vector.broadcast %cst_300 : f32 to vector<8x128xf32>
    %613 = arith.subf %612, %605 : vector<8x128xf32>
    %614 = arith.mulf %613, %611 : vector<8x128xf32>
    %615 = arith.mulf %605, %589 : vector<8x128xf32>
    %616 = arith.addf %614, %615 : vector<8x128xf32>
    %c0_301 = arith.constant 0 : index
    %c0_302 = arith.constant 0 : index
    %c0_303 = arith.constant 0 : index
    %617 = vector.load %arg13[%c0_301, %c0_302, %c0_303] : memref<2x8x128xf32, #tpu.memory_space<vmem>>, vector<1x8x128xf32>
    %618 = vector.shape_cast %617 : vector<1x8x128xf32> to vector<8x128xf32>
    %619 = vector.shape_cast %616 : vector<8x128xf32> to vector<1x8x128xf32>
    tpu.vector_store %arg13[%c0_301, %c0_302, %c0_303], %619 {strides = array<i32>} : memref<2x8x128xf32, #tpu.memory_space<vmem>>, vector<1x8x128xf32>,
    %620 = arith.truncf %616 : vector<8x128xf32> to vector<8x128xbf16>
    %c0_304 = arith.constant 0 : index
    %c0_305 = arith.constant 0 : index
    %c0_306 = arith.constant 0 : index
    %621 = vector.load %arg14[%c0_304, %c0_305, %c0_306] : memref<2x8x128xbf16, #tpu.memory_space<vmem>>, vector<1x8x128xbf16>
    %622 = vector.shape_cast %621 : vector<1x8x128xbf16> to vector<8x128xbf16>
    %623 = vector.shape_cast %620 : vector<8x128xbf16> to vector<1x8x128xbf16>
    tpu.vector_store %arg14[%c0_304, %c0_305, %c0_306], %623 {strides = array<i32>} : memref<2x8x128xbf16, #tpu.memory_space<vmem>>, vector<1x8x128xbf16>,
    %c0_307 = arith.constant 0 : index
    %c0_308 = arith.constant 0 : index
    %c0_309 = arith.constant 0 : index
    %624 = vector.load %arg8[%c0_307, %c0_308, %c0_309] : memref<1x128x384xbf16, #tpu.memory_space<vmem>>, vector<1x128x384xbf16>
    %625 = vector.shape_cast %624 : vector<1x128x384xbf16> to vector<128x384xbf16>
    %cst_310 = arith.constant dense<0.000000e+00> : vector<8x384xf32>
    %626 = tpu.matmul %620, %625, %cst_310 {dimension_numbers = #tpu.dot_dimension_numbers<[1], [0], [0], [1], [0, 0, 1, 1], [], []>} : vector<8x128xbf16>, vector<128x384xbf16>, vector<8x384xf32> -> vector<8x384xf32>
    %627 = arith.addf %626, %17 : vector<8x384xf32>
    %c1_311 = arith.constant 1 : index
    %c0_312 = arith.constant 0 : index
    %c0_313 = arith.constant 0 : index
    %628 = vector.load %arg14[%c1_311, %c0_312, %c0_313] : memref<2x8x128xbf16, #tpu.memory_space<vmem>>, vector<1x8x128xbf16>
    %629 = vector.shape_cast %628 : vector<1x8x128xbf16> to vector<8x128xbf16>
    %c0_314 = arith.constant 0 : index
    %c0_315 = arith.constant 0 : index
    %c0_316 = arith.constant 0 : index
    %630 = vector.load %arg9[%c0_314, %c0_315, %c0_316] : memref<1x128x384xbf16, #tpu.memory_space<vmem>>, vector<1x128x384xbf16>
    %631 = vector.shape_cast %630 : vector<1x128x384xbf16> to vector<128x384xbf16>
    %cst_317 = arith.constant dense<0.000000e+00> : vector<8x384xf32>
    %632 = tpu.matmul %629, %631, %cst_317 {dimension_numbers = #tpu.dot_dimension_numbers<[1], [0], [0], [1], [0, 0, 1, 1], [], []>} : vector<8x128xbf16>, vector<128x384xbf16>, vector<8x384xf32> -> vector<8x384xf32>
    %c1_318 = arith.constant 1 : index
    %c0_319 = arith.constant 0 : index
    %c0_320 = arith.constant 0 : index
    %633 = vector.load %arg13[%c1_318, %c0_319, %c0_320] : memref<2x8x128xf32, #tpu.memory_space<vmem>>, vector<1x8x128xf32>
    %634 = vector.shape_cast %633 : vector<1x8x128xf32> to vector<8x128xf32>
    %635 = vector.extract_strided_slice %627 {offsets = [0, 0], sizes = [8, 128], strides = [1, 1]} : vector<8x384xf32> to vector<8x128xf32>
    %636 = vector.extract_strided_slice %632 {offsets = [0, 0], sizes = [8, 128], strides = [1, 1]} : vector<8x384xf32> to vector<8x128xf32>
    %637 = arith.addf %635, %636 : vector<8x128xf32>
    %638 = arith.negf %637 : vector<8x128xf32>
    %639 = math.exp %638 : vector<8x128xf32>
    %cst_321 = arith.constant 1.000000e+00 : f32
    %640 = vector.broadcast %cst_321 : f32 to vector<8x128xf32>
    %641 = arith.addf %640, %639 : vector<8x128xf32>
    %642 = arith.divf %640, %641 : vector<8x128xf32>
    %643 = vector.extract_strided_slice %627 {offsets = [0, 128], sizes = [8, 128], strides = [1, 1]} : vector<8x384xf32> to vector<8x128xf32>
    %644 = vector.extract_strided_slice %632 {offsets = [0, 128], sizes = [8, 128], strides = [1, 1]} : vector<8x384xf32> to vector<8x128xf32>
    %645 = arith.addf %643, %644 : vector<8x128xf32>
    %646 = arith.negf %645 : vector<8x128xf32>
    %647 = math.exp %646 : vector<8x128xf32>
    %cst_322 = arith.constant 1.000000e+00 : f32
    %648 = vector.broadcast %cst_322 : f32 to vector<8x128xf32>
    %649 = arith.addf %648, %647 : vector<8x128xf32>
    %650 = arith.divf %648, %649 : vector<8x128xf32>
    %651 = vector.extract_strided_slice %627 {offsets = [0, 256], sizes = [8, 128], strides = [1, 1]} : vector<8x384xf32> to vector<8x128xf32>
    %652 = vector.extract_strided_slice %632 {offsets = [0, 256], sizes = [8, 128], strides = [1, 1]} : vector<8x384xf32> to vector<8x128xf32>
    %653 = arith.addf %652, %21 : vector<8x128xf32>
    %654 = arith.mulf %642, %653 : vector<8x128xf32>
    %655 = arith.addf %651, %654 : vector<8x128xf32>
    %656 = math.tanh %655 : vector<8x128xf32>
    %cst_323 = arith.constant 1.000000e+00 : f32
    %657 = vector.broadcast %cst_323 : f32 to vector<8x128xf32>
    %658 = arith.subf %657, %650 : vector<8x128xf32>
    %659 = arith.mulf %658, %656 : vector<8x128xf32>
    %660 = arith.mulf %650, %634 : vector<8x128xf32>
    %661 = arith.addf %659, %660 : vector<8x128xf32>
    %c1_324 = arith.constant 1 : index
    %c0_325 = arith.constant 0 : index
    %c0_326 = arith.constant 0 : index
    %662 = vector.load %arg13[%c1_324, %c0_325, %c0_326] : memref<2x8x128xf32, #tpu.memory_space<vmem>>, vector<1x8x128xf32>
    %663 = vector.shape_cast %662 : vector<1x8x128xf32> to vector<8x128xf32>
    %664 = vector.shape_cast %661 : vector<8x128xf32> to vector<1x8x128xf32>
    tpu.vector_store %arg13[%c1_324, %c0_325, %c0_326], %664 {strides = array<i32>} : memref<2x8x128xf32, #tpu.memory_space<vmem>>, vector<1x8x128xf32>,
    %665 = arith.truncf %661 : vector<8x128xf32> to vector<8x128xbf16>
    %c1_327 = arith.constant 1 : index
    %c0_328 = arith.constant 0 : index
    %c0_329 = arith.constant 0 : index
    %666 = vector.load %arg14[%c1_327, %c0_328, %c0_329] : memref<2x8x128xbf16, #tpu.memory_space<vmem>>, vector<1x8x128xbf16>
    %667 = vector.shape_cast %666 : vector<1x8x128xbf16> to vector<8x128xbf16>
    %668 = vector.shape_cast %665 : vector<8x128xbf16> to vector<1x8x128xbf16>
    tpu.vector_store %arg14[%c1_327, %c0_328, %c0_329], %668 {strides = array<i32>} : memref<2x8x128xbf16, #tpu.memory_space<vmem>>, vector<1x8x128xbf16>,
    %669 = arith.index_cast %c6_i32 : i32 to index
    %c0_330 = arith.constant 0 : index
    %c0_331 = arith.constant 0 : index
    %670 = vector.load %arg12[%669, %c0_330, %c0_331] : memref<8x8x128xbf16, #tpu.memory_space<vmem>>, vector<1x8x128xbf16>
    %671 = vector.shape_cast %670 : vector<1x8x128xbf16> to vector<8x128xbf16>
    %672 = vector.shape_cast %665 : vector<8x128xbf16> to vector<1x8x128xbf16>
    tpu.vector_store %arg12[%669, %c0_330, %c0_331], %672 {strides = array<i32>} : memref<8x8x128xbf16, #tpu.memory_space<vmem>>, vector<1x8x128xbf16>,
    %c7_i32 = arith.constant 7 : i32
    %c8_i32_332 = arith.constant 8 : i32
    %673 = arith.muli %c7_i32, %c8_i32_332 : i32
    %674 = tpu.assume_multiple %673, 8 : i32
    %675 = arith.index_cast %674 : i32 to index
    %c0_333 = arith.constant 0 : index
    %676 = vector.load %arg15[%675, %c0_333] : memref<64x384xf32, #tpu.memory_space<vmem>>, vector<8x384xf32>
    %c0_334 = arith.constant 0 : index
    %c0_335 = arith.constant 0 : index
    %c0_336 = arith.constant 0 : index
    %677 = vector.load %arg14[%c0_334, %c0_335, %c0_336] : memref<2x8x128xbf16, #tpu.memory_space<vmem>>, vector<1x8x128xbf16>
    %678 = vector.shape_cast %677 : vector<1x8x128xbf16> to vector<8x128xbf16>
    %c0_337 = arith.constant 0 : index
    %c0_338 = arith.constant 0 : index
    %679 = vector.load %arg5[%c0_337, %c0_338] : memref<128x384xbf16, #tpu.memory_space<vmem>>, vector<128x384xbf16>
    %cst_339 = arith.constant dense<0.000000e+00> : vector<8x384xf32>
    %680 = tpu.matmul %678, %679, %cst_339 {dimension_numbers = #tpu.dot_dimension_numbers<[1], [0], [0], [1], [0, 0, 1, 1], [], []>} : vector<8x128xbf16>, vector<128x384xbf16>, vector<8x384xf32> -> vector<8x384xf32>
    %c0_340 = arith.constant 0 : index
    %c0_341 = arith.constant 0 : index
    %c0_342 = arith.constant 0 : index
    %681 = vector.load %arg13[%c0_340, %c0_341, %c0_342] : memref<2x8x128xf32, #tpu.memory_space<vmem>>, vector<1x8x128xf32>
    %682 = vector.shape_cast %681 : vector<1x8x128xf32> to vector<8x128xf32>
    %683 = vector.extract_strided_slice %676 {offsets = [0, 0], sizes = [8, 128], strides = [1, 1]} : vector<8x384xf32> to vector<8x128xf32>
    %684 = vector.extract_strided_slice %680 {offsets = [0, 0], sizes = [8, 128], strides = [1, 1]} : vector<8x384xf32> to vector<8x128xf32>
    %685 = arith.addf %683, %684 : vector<8x128xf32>
    %686 = arith.negf %685 : vector<8x128xf32>
    %687 = math.exp %686 : vector<8x128xf32>
    %cst_343 = arith.constant 1.000000e+00 : f32
    %688 = vector.broadcast %cst_343 : f32 to vector<8x128xf32>
    %689 = arith.addf %688, %687 : vector<8x128xf32>
    %690 = arith.divf %688, %689 : vector<8x128xf32>
    %691 = vector.extract_strided_slice %676 {offsets = [0, 128], sizes = [8, 128], strides = [1, 1]} : vector<8x384xf32> to vector<8x128xf32>
    %692 = vector.extract_strided_slice %680 {offsets = [0, 128], sizes = [8, 128], strides = [1, 1]} : vector<8x384xf32> to vector<8x128xf32>
    %693 = arith.addf %691, %692 : vector<8x128xf32>
    %694 = arith.negf %693 : vector<8x128xf32>
    %695 = math.exp %694 : vector<8x128xf32>
    %cst_344 = arith.constant 1.000000e+00 : f32
    %696 = vector.broadcast %cst_344 : f32 to vector<8x128xf32>
    %697 = arith.addf %696, %695 : vector<8x128xf32>
    %698 = arith.divf %696, %697 : vector<8x128xf32>
    %699 = vector.extract_strided_slice %676 {offsets = [0, 256], sizes = [8, 128], strides = [1, 1]} : vector<8x384xf32> to vector<8x128xf32>
    %700 = vector.extract_strided_slice %680 {offsets = [0, 256], sizes = [8, 128], strides = [1, 1]} : vector<8x384xf32> to vector<8x128xf32>
    %701 = arith.addf %700, %13 : vector<8x128xf32>
    %702 = arith.mulf %690, %701 : vector<8x128xf32>
    %703 = arith.addf %699, %702 : vector<8x128xf32>
    %704 = math.tanh %703 : vector<8x128xf32>
    %cst_345 = arith.constant 1.000000e+00 : f32
    %705 = vector.broadcast %cst_345 : f32 to vector<8x128xf32>
    %706 = arith.subf %705, %698 : vector<8x128xf32>
    %707 = arith.mulf %706, %704 : vector<8x128xf32>
    %708 = arith.mulf %698, %682 : vector<8x128xf32>
    %709 = arith.addf %707, %708 : vector<8x128xf32>
    %c0_346 = arith.constant 0 : index
    %c0_347 = arith.constant 0 : index
    %c0_348 = arith.constant 0 : index
    %710 = vector.load %arg13[%c0_346, %c0_347, %c0_348] : memref<2x8x128xf32, #tpu.memory_space<vmem>>, vector<1x8x128xf32>
    %711 = vector.shape_cast %710 : vector<1x8x128xf32> to vector<8x128xf32>
    %712 = vector.shape_cast %709 : vector<8x128xf32> to vector<1x8x128xf32>
    tpu.vector_store %arg13[%c0_346, %c0_347, %c0_348], %712 {strides = array<i32>} : memref<2x8x128xf32, #tpu.memory_space<vmem>>, vector<1x8x128xf32>,
    %713 = arith.truncf %709 : vector<8x128xf32> to vector<8x128xbf16>
    %c0_349 = arith.constant 0 : index
    %c0_350 = arith.constant 0 : index
    %c0_351 = arith.constant 0 : index
    %714 = vector.load %arg14[%c0_349, %c0_350, %c0_351] : memref<2x8x128xbf16, #tpu.memory_space<vmem>>, vector<1x8x128xbf16>
    %715 = vector.shape_cast %714 : vector<1x8x128xbf16> to vector<8x128xbf16>
    %716 = vector.shape_cast %713 : vector<8x128xbf16> to vector<1x8x128xbf16>
    tpu.vector_store %arg14[%c0_349, %c0_350, %c0_351], %716 {strides = array<i32>} : memref<2x8x128xbf16, #tpu.memory_space<vmem>>, vector<1x8x128xbf16>,
    %c0_352 = arith.constant 0 : index
    %c0_353 = arith.constant 0 : index
    %c0_354 = arith.constant 0 : index
    %717 = vector.load %arg8[%c0_352, %c0_353, %c0_354] : memref<1x128x384xbf16, #tpu.memory_space<vmem>>, vector<1x128x384xbf16>
    %718 = vector.shape_cast %717 : vector<1x128x384xbf16> to vector<128x384xbf16>
    %cst_355 = arith.constant dense<0.000000e+00> : vector<8x384xf32>
    %719 = tpu.matmul %713, %718, %cst_355 {dimension_numbers = #tpu.dot_dimension_numbers<[1], [0], [0], [1], [0, 0, 1, 1], [], []>} : vector<8x128xbf16>, vector<128x384xbf16>, vector<8x384xf32> -> vector<8x384xf32>
    %720 = arith.addf %719, %17 : vector<8x384xf32>
    %c1_356 = arith.constant 1 : index
    %c0_357 = arith.constant 0 : index
    %c0_358 = arith.constant 0 : index
    %721 = vector.load %arg14[%c1_356, %c0_357, %c0_358] : memref<2x8x128xbf16, #tpu.memory_space<vmem>>, vector<1x8x128xbf16>
    %722 = vector.shape_cast %721 : vector<1x8x128xbf16> to vector<8x128xbf16>
    %c0_359 = arith.constant 0 : index
    %c0_360 = arith.constant 0 : index
    %c0_361 = arith.constant 0 : index
    %723 = vector.load %arg9[%c0_359, %c0_360, %c0_361] : memref<1x128x384xbf16, #tpu.memory_space<vmem>>, vector<1x128x384xbf16>
    %724 = vector.shape_cast %723 : vector<1x128x384xbf16> to vector<128x384xbf16>
    %cst_362 = arith.constant dense<0.000000e+00> : vector<8x384xf32>
    %725 = tpu.matmul %722, %724, %cst_362 {dimension_numbers = #tpu.dot_dimension_numbers<[1], [0], [0], [1], [0, 0, 1, 1], [], []>} : vector<8x128xbf16>, vector<128x384xbf16>, vector<8x384xf32> -> vector<8x384xf32>
    %c1_363 = arith.constant 1 : index
    %c0_364 = arith.constant 0 : index
    %c0_365 = arith.constant 0 : index
    %726 = vector.load %arg13[%c1_363, %c0_364, %c0_365] : memref<2x8x128xf32, #tpu.memory_space<vmem>>, vector<1x8x128xf32>
    %727 = vector.shape_cast %726 : vector<1x8x128xf32> to vector<8x128xf32>
    %728 = vector.extract_strided_slice %720 {offsets = [0, 0], sizes = [8, 128], strides = [1, 1]} : vector<8x384xf32> to vector<8x128xf32>
    %729 = vector.extract_strided_slice %725 {offsets = [0, 0], sizes = [8, 128], strides = [1, 1]} : vector<8x384xf32> to vector<8x128xf32>
    %730 = arith.addf %728, %729 : vector<8x128xf32>
    %731 = arith.negf %730 : vector<8x128xf32>
    %732 = math.exp %731 : vector<8x128xf32>
    %cst_366 = arith.constant 1.000000e+00 : f32
    %733 = vector.broadcast %cst_366 : f32 to vector<8x128xf32>
    %734 = arith.addf %733, %732 : vector<8x128xf32>
    %735 = arith.divf %733, %734 : vector<8x128xf32>
    %736 = vector.extract_strided_slice %720 {offsets = [0, 128], sizes = [8, 128], strides = [1, 1]} : vector<8x384xf32> to vector<8x128xf32>
    %737 = vector.extract_strided_slice %725 {offsets = [0, 128], sizes = [8, 128], strides = [1, 1]} : vector<8x384xf32> to vector<8x128xf32>
    %738 = arith.addf %736, %737 : vector<8x128xf32>
    %739 = arith.negf %738 : vector<8x128xf32>
    %740 = math.exp %739 : vector<8x128xf32>
    %cst_367 = arith.constant 1.000000e+00 : f32
    %741 = vector.broadcast %cst_367 : f32 to vector<8x128xf32>
    %742 = arith.addf %741, %740 : vector<8x128xf32>
    %743 = arith.divf %741, %742 : vector<8x128xf32>
    %744 = vector.extract_strided_slice %720 {offsets = [0, 256], sizes = [8, 128], strides = [1, 1]} : vector<8x384xf32> to vector<8x128xf32>
    %745 = vector.extract_strided_slice %725 {offsets = [0, 256], sizes = [8, 128], strides = [1, 1]} : vector<8x384xf32> to vector<8x128xf32>
    %746 = arith.addf %745, %21 : vector<8x128xf32>
    %747 = arith.mulf %735, %746 : vector<8x128xf32>
    %748 = arith.addf %744, %747 : vector<8x128xf32>
    %749 = math.tanh %748 : vector<8x128xf32>
    %cst_368 = arith.constant 1.000000e+00 : f32
    %750 = vector.broadcast %cst_368 : f32 to vector<8x128xf32>
    %751 = arith.subf %750, %743 : vector<8x128xf32>
    %752 = arith.mulf %751, %749 : vector<8x128xf32>
    %753 = arith.mulf %743, %727 : vector<8x128xf32>
    %754 = arith.addf %752, %753 : vector<8x128xf32>
    %c1_369 = arith.constant 1 : index
    %c0_370 = arith.constant 0 : index
    %c0_371 = arith.constant 0 : index
    %755 = vector.load %arg13[%c1_369, %c0_370, %c0_371] : memref<2x8x128xf32, #tpu.memory_space<vmem>>, vector<1x8x128xf32>
    %756 = vector.shape_cast %755 : vector<1x8x128xf32> to vector<8x128xf32>
    %757 = vector.shape_cast %754 : vector<8x128xf32> to vector<1x8x128xf32>
    tpu.vector_store %arg13[%c1_369, %c0_370, %c0_371], %757 {strides = array<i32>} : memref<2x8x128xf32, #tpu.memory_space<vmem>>, vector<1x8x128xf32>,
    %758 = arith.truncf %754 : vector<8x128xf32> to vector<8x128xbf16>
    %c1_372 = arith.constant 1 : index
    %c0_373 = arith.constant 0 : index
    %c0_374 = arith.constant 0 : index
    %759 = vector.load %arg14[%c1_372, %c0_373, %c0_374] : memref<2x8x128xbf16, #tpu.memory_space<vmem>>, vector<1x8x128xbf16>
    %760 = vector.shape_cast %759 : vector<1x8x128xbf16> to vector<8x128xbf16>
    %761 = vector.shape_cast %758 : vector<8x128xbf16> to vector<1x8x128xbf16>
    tpu.vector_store %arg14[%c1_372, %c0_373, %c0_374], %761 {strides = array<i32>} : memref<2x8x128xbf16, #tpu.memory_space<vmem>>, vector<1x8x128xbf16>,
    %762 = arith.index_cast %c7_i32 : i32 to index
    %c0_375 = arith.constant 0 : index
    %c0_376 = arith.constant 0 : index
    %763 = vector.load %arg12[%762, %c0_375, %c0_376] : memref<8x8x128xbf16, #tpu.memory_space<vmem>>, vector<1x8x128xbf16>
    %764 = vector.shape_cast %763 : vector<1x8x128xbf16> to vector<8x128xbf16>
    %765 = vector.shape_cast %758 : vector<8x128xbf16> to vector<1x8x128xbf16>
    tpu.vector_store %arg12[%762, %c0_375, %c0_376], %765 {strides = array<i32>} : memref<8x8x128xbf16, #tpu.memory_space<vmem>>, vector<1x8x128xbf16>,
    %c8_i32_377 = arith.constant 8 : i32
    return
  }
  func.func @transform_0(%arg0: i32, %arg1: i32) -> (i32, i32, i32, i32) {
    %c0_i32 = arith.constant 0 : i32
    %c0_i32_0 = arith.constant 0 : i32
    %c0_i32_1 = arith.constant 0 : i32
    return %arg0, %arg1, %c0_i32, %c0_i32_0 : i32, i32, i32, i32
  }
  func.func @transform_1(%arg0: i32, %arg1: i32) -> (i32, i32, i32) {
    %c0_i32 = arith.constant 0 : i32
    %c0_i32_0 = arith.constant 0 : i32
    %c0_i32_1 = arith.constant 0 : i32
    return %c0_i32, %arg0, %c0_i32_0 : i32, i32, i32
  }
  func.func @transform_2(%arg0: i32, %arg1: i32) -> (i32, i32) {
    %c0_i32 = arith.constant 0 : i32
    %c0_i32_0 = arith.constant 0 : i32
    %c0_i32_1 = arith.constant 0 : i32
    return %c0_i32, %c0_i32_0 : i32, i32
  }
  func.func @transform_3(%arg0: i32, %arg1: i32) -> (i32, i32) {
    %c0_i32 = arith.constant 0 : i32
    %c0_i32_0 = arith.constant 0 : i32
    %c0_i32_1 = arith.constant 0 : i32
    return %c0_i32, %c0_i32_0 : i32, i32
  }
  func.func @transform_4(%arg0: i32, %arg1: i32) -> (i32, i32) {
    %c0_i32 = arith.constant 0 : i32
    %c0_i32_0 = arith.constant 0 : i32
    %c0_i32_1 = arith.constant 0 : i32
    return %c0_i32, %c0_i32_0 : i32, i32
  }
  func.func @transform_5(%arg0: i32, %arg1: i32) -> (i32, i32) {
    %c0_i32 = arith.constant 0 : i32
    %c0_i32_0 = arith.constant 0 : i32
    %c0_i32_1 = arith.constant 0 : i32
    return %c0_i32, %c0_i32_0 : i32, i32
  }
  func.func @transform_6(%arg0: i32, %arg1: i32) -> (i32, i32, i32) {
    %c0_i32 = arith.constant 0 : i32
    %c0_i32_0 = arith.constant 0 : i32
    %c0_i32_1 = arith.constant 0 : i32
    %c0_i32_2 = arith.constant 0 : i32
    return %c0_i32, %c0_i32_0, %c0_i32_1 : i32, i32, i32
  }
  func.func @transform_7(%arg0: i32, %arg1: i32) -> (i32, i32, i32) {
    %c0_i32 = arith.constant 0 : i32
    %c0_i32_0 = arith.constant 0 : i32
    %c0_i32_1 = arith.constant 0 : i32
    %c0_i32_2 = arith.constant 0 : i32
    return %c0_i32, %c0_i32_0, %c0_i32_1 : i32, i32, i32
  }
  func.func @transform_8(%arg0: i32, %arg1: i32) -> (i32, i32, i32) {
    %c0_i32 = arith.constant 0 : i32
    %c0_i32_0 = arith.constant 0 : i32
    %c0_i32_1 = arith.constant 0 : i32
    %c0_i32_2 = arith.constant 0 : i32
    return %c0_i32, %c0_i32_0, %c0_i32_1 : i32, i32, i32
  }
  func.func @transform_9(%arg0: i32, %arg1: i32) -> (i32, i32, i32) {
    %c0_i32 = arith.constant 0 : i32
    %c0_i32_0 = arith.constant 0 : i32
    %c0_i32_1 = arith.constant 0 : i32
    %c0_i32_2 = arith.constant 0 : i32
    return %c0_i32, %c0_i32_0, %c0_i32_1 : i32, i32, i32
  }
  func.func @transform_10(%arg0: i32, %arg1: i32) -> (i32, i32, i32) {
    %c0_i32 = arith.constant 0 : i32
    %c0_i32_0 = arith.constant 0 : i32
    return %arg1, %arg0, %c0_i32 : i32, i32, i32
  }
}

</mosaic_0001>

<llo_original>
// kernel: tpu_custom_call.1
$region0: #{tpu_custom_call.1}
  #allocation0 [shape = 'u32[]', space=smem, size = 0x4, offset = 0x4, fixed_abs, tag = 'smem constant byte address 0x4 - core index']
  #allocation1 [shape = 'u32[144,128]{1,0:T(1,128)}', space=vmem, size = 0x12000, scoped, tag = 'internal scratch']
  #allocation2 [shape = 'f32[2,8,128]{2,1,0:T(8,128)}', space=vmem, size = 0x2000, scoped, tag = 'scratch operand']
  #allocation3 [shape = 'bf16[2,8,128]{2,1,0:T(8,128)(2,1)}', space=vmem, size = 0x1000, scoped, tag = 'scratch operand']
  #allocation4 [shape = 'f32[64,384]{1,0:T(8,128)}', space=vmem, size = 0x18000, scoped, tag = 'scratch operand']
  %s0 = inlined_call_operand.hbm [shape: bf16[1,1,64,128], index: 0, kind: input, shape index: {}]
  %s1 = inlined_call_operand.hbm [shape: f32[2,8,128], index: 1, kind: input, shape index: {}]
  %s2 = inlined_call_operand.hbm [shape: bf16[128,384], index: 2, kind: input, shape index: {}]
  %s3 = inlined_call_operand.hbm [shape: bf16[128,384], index: 3, kind: input, shape index: {}]
  %s4 = inlined_call_operand.vmem [shape: f32[1,384], index: 4, kind: input, shape index: {}]
  %s5 = inlined_call_operand.vmem [shape: f32[1,128], index: 5, kind: input, shape index: {}]
  %s6 = inlined_call_operand.hbm [shape: bf16[1,128,384], index: 6, kind: input, shape index: {}]
  %s7 = inlined_call_operand.hbm [shape: bf16[1,128,384], index: 7, kind: input, shape index: {}]
  %s8 = inlined_call_operand.vmem [shape: f32[1,1,384], index: 8, kind: input, shape index: {}]
  %s9 = inlined_call_operand.vmem [shape: f32[1,1,128], index: 9, kind: input, shape index: {}]
  %s10 = inlined_call_operand.hbm [shape: bf16[8,8,128], index: 10, kind: output, shape index: {}]
  %s11 = sld [smem:[#allocation0]]
  $region78: #{tpu_custom_call.1} parent=0
    _
  %s13 = ssub.s32 1, %s11
  %s14 = scalar_select 0, %s13, %s11
  $region1: #{tpu_custom_call.1} parent=0
    #allocation5 [shape = 'u8[16384]{0}', space=vmem, size = 0x4000, scoped, tag = 'input window, operand 0, single buffered']
    #allocation6 [shape = 's32[1]{0}', space=sflag, size = 0x4, scoped, tag = 'scoped memory for tpu_custom_call.1']
    #allocation7 [shape = 's32[1]{0}', space=sflag, size = 0x4, scoped, tag = 'scoped memory for tpu_custom_call.1']
    #allocation8 [shape = 'u8[8192]{0}', space=vmem, size = 0x2000, scoped, tag = 'input window, operand 1, single buffered']
    #allocation9 [shape = 's32[1]{0}', space=sflag, size = 0x4, scoped, tag = 'scoped memory for tpu_custom_call.1']
    #allocation10 [shape = 'u8[98304]{0}', space=vmem, size = 0x18000, scoped, tag = 'input window, operand 2, single buffered']
    #allocation11 [shape = 'u8[98304]{0}', space=vmem, size = 0x18000, scoped, tag = 'input window, operand 3, single buffered']
    #allocation12 [shape = 's32[1]{0}', space=sflag, size = 0x4, scoped, tag = 'scoped memory for tpu_custom_call.1']
    #allocation13 [shape = 'u8[98304]{0}', space=vmem, size = 0x18000, scoped, tag = 'input window, operand 6, single buffered']
    #allocation14 [shape = 'u8[98304]{0}', space=vmem, size = 0x18000, scoped, tag = 'input window, operand 7, single buffered']
    #allocation15 [shape = 's32[1]{0}', space=sflag, size = 0x4, scoped, tag = 'scoped memory for tpu_custom_call.1']
    #allocation16 [shape = 'u8[16384]{0}', space=vmem, size = 0x4000, scoped, tag = 'output window, operand 0, single buffered']
    %15 = vsyncpa [#allocation6], 0
    %16 = vsyncpa [#allocation9], 0
    %17 = vsyncpa [#allocation12], 0
    %18 = vsyncpa [#allocation15], 0
    %19 = vsyncpa [#allocation7], 0
    // Predicated region
    $region2: #{tpu_custom_call.1} parent=1 // pred_check
      _
    $region3: #{tpu_custom_call.1} parent=1 // pred_check_branch
      %21 = sbr.rel (0) target = $region5
    $region4: #{tpu_custom_call.1} parent=1 // pred_region
      %s23 = ssub.s32 512, 512
      %24 = vsyncadd [#allocation6], %s23
      %s25 = sshll.u32 [#allocation5], 4
      %s26 = int_to_ptr.vmem [resolvable:$true] %s25
      %31 = dma.hbm_to_vmem [thread:$0]  %s0, 512, %s26, [#allocation6], 64, 64, 4
    $region5: #{tpu_custom_call.1} parent=1 // pred_fallthru
      _
    // Predicated region
    $region6: #{tpu_custom_call.1} parent=1 // pred_check
      _
    $region7: #{tpu_custom_call.1} parent=1 // pred_check_branch
      %33 = sbr.rel (0) target = $region9
    $region8: #{tpu_custom_call.1} parent=1 // pred_region
      %s35 = ssub.s32 256, 256
      %36 = vsyncadd [#allocation9], %s35
      %s37 = sshll.u32 [#allocation8], 4
      %s38 = int_to_ptr.vmem [resolvable:$true] %s37
      %43 = dma.hbm_to_vmem [thread:$0]  %s1, 256, %s38, [#allocation9], 128, 128, 8
    $region9: #{tpu_custom_call.1} parent=1 // pred_fallthru
      _
    // Predicated region
    $region10: #{tpu_custom_call.1} parent=1 // pred_check
      _
    $region11: #{tpu_custom_call.1} parent=1 // pred_check_branch
      %45 = sbr.rel (0) target = $region13
    $region12: #{tpu_custom_call.1} parent=1 // pred_region
      %s47 = ssub.s32 3072, 3072
      %48 = vsyncadd [#allocation9], %s47
      %s49 = sshll.u32 [#allocation10], 4
      %s50 = int_to_ptr.vmem [resolvable:$true] %s49
      %55 = dma.hbm_to_vmem [thread:$0]  %s2, 3072, %s50, [#allocation9], 192, 192, 12
    $region13: #{tpu_custom_call.1} parent=1 // pred_fallthru
      _
    // Predicated region
    $region14: #{tpu_custom_call.1} parent=1 // pred_check
      _
    $region15: #{tpu_custom_call.1} parent=1 // pred_check_branch
      %57 = sbr.rel (0) target = $region17
    $region16: #{tpu_custom_call.1} parent=1 // pred_region
      %s59 = ssub.s32 3072, 3072
      %60 = vsyncadd [#allocation12], %s59
      %s61 = sshll.u32 [#allocation11], 4
      %s62 = int_to_ptr.vmem [resolvable:$true] %s61
      %67 = dma.hbm_to_vmem [thread:$0]  %s3, 3072, %s62, [#allocation12], 192, 192, 12
    $region17: #{tpu_custom_call.1} parent=1 // pred_fallthru
      _
    // Predicated region
    $region18: #{tpu_custom_call.1} parent=1 // pred_check
      _
    $region19: #{tpu_custom_call.1} parent=1 // pred_check_branch
      %69 = sbr.rel (0) target = $region21
    $region20: #{tpu_custom_call.1} parent=1 // pred_region
      _
    $region21: #{tpu_custom_call.1} parent=1 // pred_fallthru
      _
    // Predicated region
    $region22: #{tpu_custom_call.1} parent=1 // pred_check
      _
    $region23: #{tpu_custom_call.1} parent=1 // pred_check_branch
      %71 = sbr.rel (0) target = $region25
    $region24: #{tpu_custom_call.1} parent=1 // pred_region
      _
    $region25: #{tpu_custom_call.1} parent=1 // pred_fallthru
      _
    // Predicated region
    $region26: #{tpu_custom_call.1} parent=1 // pred_check
      _
    $region27: #{tpu_custom_call.1} parent=1 // pred_check_branch
      %73 = sbr.rel (0) target = $region29
    $region28: #{tpu_custom_call.1} parent=1 // pred_region
      %s75 = ssub.s32 3072, 3072
      %76 = vsyncadd [#allocation12], %s75
      %s77 = sshll.u32 [#allocation13], 4
      %s78 = int_to_ptr.vmem [resolvable:$true] %s77
      %83 = dma.hbm_to_vmem [thread:$0]  %s6, 3072, %s78, [#allocation12], 192, 192, 12
    $region29: #{tpu_custom_call.1} parent=1 // pred_fallthru
      _
    // Predicated region
    $region30: #{tpu_custom_call.1} parent=1 // pred_check
      _
    $region31: #{tpu_custom_call.1} parent=1 // pred_check_branch
      %85 = sbr.rel (0) target = $region33
    $region32: #{tpu_custom_call.1} parent=1 // pred_region
      %s87 = ssub.s32 3072, 3072
      %88 = vsyncadd [#allocation15], %s87
      %s89 = sshll.u32 [#allocation14], 4
      %s90 = int_to_ptr.vmem [resolvable:$true] %s89
      %95 = dma.hbm_to_vmem [thread:$0]  %s7, 3072, %s90, [#allocation15], 192, 192, 12
    $region33: #{tpu_custom_call.1} parent=1 // pred_fallthru
      _
    // Predicated region
    $region34: #{tpu_custom_call.1} parent=1 // pred_check
      _
    $region35: #{tpu_custom_call.1} parent=1 // pred_check_branch
      %97 = sbr.rel (0) target = $region37
    $region36: #{tpu_custom_call.1} parent=1 // pred_region
      _
    $region37: #{tpu_custom_call.1} parent=1 // pred_fallthru
      _
    // Predicated region
    $region38: #{tpu_custom_call.1} parent=1 // pred_check
      _
    $region39: #{tpu_custom_call.1} parent=1 // pred_check_branch
      %99 = sbr.rel (0) target = $region41
    $region40: #{tpu_custom_call.1} parent=1 // pred_region
      _
    $region41: #{tpu_custom_call.1} parent=1 // pred_fallthru
      _
    // Predicated region
    $region42: #{tpu_custom_call.1} parent=1 // pred_check
      _
    $region43: #{tpu_custom_call.1} parent=1 // pred_check_branch
      %101 = sbr.rel (0) target = $region45
    $region44: #{tpu_custom_call.1} parent=1 // pred_region
      %102 = dma.done [#allocation6], 512
    $region45: #{tpu_custom_call.1} parent=1 // pred_fallthru
      _
    // Predicated region
    $region46: #{tpu_custom_call.1} parent=1 // pred_check
      _
    $region47: #{tpu_custom_call.1} parent=1 // pred_check_branch
      %104 = sbr.rel (0) target = $region49
    $region48: #{tpu_custom_call.1} parent=1 // pred_region
      %105 = dma.done [#allocation9], 256
    $region49: #{tpu_custom_call.1} parent=1 // pred_fallthru
      _
    // Predicated region
    $region50: #{tpu_custom_call.1} parent=1 // pred_check
      _
    $region51: #{tpu_custom_call.1} parent=1 // pred_check_branch
      %107 = sbr.rel (0) target = $region53
    $region52: #{tpu_custom_call.1} parent=1 // pred_region
      %108 = dma.done [#allocation9], 3072
    $region53: #{tpu_custom_call.1} parent=1 // pred_fallthru
      _
    // Predicated region
    $region54: #{tpu_custom_call.1} parent=1 // pred_check
      _
    $region55: #{tpu_custom_call.1} parent=1 // pred_check_branch
      %110 = sbr.rel (0) target = $region57
    $region56: #{tpu_custom_call.1} parent=1 // pred_region
      %111 = dma.done [#allocation12], 3072
    $region57: #{tpu_custom_call.1} parent=1 // pred_fallthru
      _
    // Predicated region
    $region58: #{tpu_custom_call.1} parent=1 // pred_check
      _
    $region59: #{tpu_custom_call.1} parent=1 // pred_check_branch
      %113 = sbr.rel (0) target = $region61
    $region60: #{tpu_custom_call.1} parent=1 // pred_region
      %114 = dma.done [#allocation12], 3072
    $region61: #{tpu_custom_call.1} parent=1 // pred_fallthru
      _
    // Predicated region
    $region62: #{tpu_custom_call.1} parent=1 // pred_check
      _
    $region63: #{tpu_custom_call.1} parent=1 // pred_check_branch
      %116 = sbr.rel (0) target = $region65
    $region64: #{tpu_custom_call.1} parent=1 // pred_region
      %117 = dma.done [#allocation15], 3072
    $region65: #{tpu_custom_call.1} parent=1 // pred_fallthru
      _
    %p119 = scmp.eq.s32.totalorder 0, 0
    // Predicated region
    $region66: #{tpu_custom_call.1} parent=1 // pred_check
      %p120 = pneg %p119
    $region67: #{tpu_custom_call.1} parent=1 // pred_check_branch
      %122 = sbr.rel (%p120) target = $region69
    $region68: #{tpu_custom_call.1} parent=1 // pred_region
      %v123 = vld [vmem:[#allocation8] sm:$0xff]
      %v124 = vld [vmem:[#allocation8 + $0x8] sm:$0xff]
      %125 = vst [vmem:[#allocation2] sm:$0xff] %v123
      %126 = vst [vmem:[#allocation2 + $0x8] sm:$0xff] %v124
      %v127 = vpack.c.bf16 %v123, %v123
      %v128 = vpack.c.bf16 %v124, %v124
      %129 = vst [vmem:[#allocation3] sm:$0xf] %v127
      %130 = vst [vmem:[#allocation3 + $0x4] sm:$0xf] %v128
    $region69: #{tpu_custom_call.1} parent=1 // pred_fallthru
      _
    %v131 = vld [vmem:[#allocation5] sm:$0xf]
    %v132 = vld [vmem:[#allocation5 + $0x4] sm:$0xf]
    %v133 = vld [vmem:[#allocation5 + $0x8] sm:$0xf]
    %v134 = vld [vmem:[#allocation5 + $0xc] sm:$0xf]
    %v135 = vld [vmem:[#allocation5 + $0x10] sm:$0xf]
    %v136 = vld [vmem:[#allocation5 + $0x14] sm:$0xf]
    %v137 = vld [vmem:[#allocation5 + $0x18] sm:$0xf]
    %v138 = vld [vmem:[#allocation5 + $0x1c] sm:$0xf]
    %v139 = vld [vmem:[#allocation10] sm:$0xff]
    %v140 = vld [vmem:[#allocation10 + $0x8] sm:$0xf]
    %v141 = vld [vmem:[#allocation10 + $0xc] sm:$0xff]
    %v142 = vld [vmem:[#allocation10 + $0x14] sm:$0xf]
    %v143 = vld [vmem:[#allocation10 + $0x18] sm:$0xff]
    %v144 = vld [vmem:[#allocation10 + $0x20] sm:$0xf]
    %v145 = vld [vmem:[#allocation10 + $0x24] sm:$0xff]
    %v146 = vld [vmem:[#allocation10 + $0x2c] sm:$0xf]
    %v147 = vld [vmem:[#allocation10 + $0x30] sm:$0xff]
    %v148 = vld [vmem:[#allocation10 + $0x38] sm:$0xf]
    %v149 = vld [vmem:[#allocation10 + $0x3c] sm:$0xff]
    %v150 = vld [vmem:[#allocation10 + $0x44] sm:$0xf]
    %v151 = vld [vmem:[#allocation10 + $0x48] sm:$0xff]
    %v152 = vld [vmem:[#allocation10 + $0x50] sm:$0xf]
    %v153 = vld [vmem:[#allocation10 + $0x54] sm:$0xff]
    %v154 = vld [vmem:[#allocation10 + $0x5c] sm:$0xf]
    %v155 = vld [vmem:[#allocation10 + $0x60] sm:$0xff]
    %v156 = vld [vmem:[#allocation10 + $0x68] sm:$0xf]
    %v157 = vld [vmem:[#allocation10 + $0x6c] sm:$0xff]
    %v158 = vld [vmem:[#allocation10 + $0x74] sm:$0xf]
    %v159 = vld [vmem:[#allocation10 + $0x78] sm:$0xff]
    %v160 = vld [vmem:[#allocation10 + $0x80] sm:$0xf]
    %v161 = vld [vmem:[#allocation10 + $0x84] sm:$0xff]
    %v162 = vld [vmem:[#allocation10 + $0x8c] sm:$0xf]
    %v163 = vld [vmem:[#allocation10 + $0x90] sm:$0xff]
    %v164 = vld [vmem:[#allocation10 + $0x98] sm:$0xf]
    %v165 = vld [vmem:[#allocation10 + $0x9c] sm:$0xff]
    %v166 = vld [vmem:[#allocation10 + $0xa4] sm:$0xf]
    %v167 = vld [vmem:[#allocation10 + $0xa8] sm:$0xff]
    %v168 = vld [vmem:[#allocation10 + $0xb0] sm:$0xf]
    %v169 = vld [vmem:[#allocation10 + $0xb4] sm:$0xff]
    %v170 = vld [vmem:[#allocation10 + $0xbc] sm:$0xf]
    %v171 = vld [vmem:[%s4] sm:$0x7]
    %v173 = vlaneseq
    %v174 = vshrl.u32 %v173, 7
    %v175 = vsub.s32 0, %v174
    %v176 = vrot.slane %v171, %v175
    %v177 = vlaneseq
    %v178 = vshrl.u32 %v177, 7
    %v179 = vsub.s32 1, %v178
    %v180 = vrot.slane %v171, %v179
    %v181 = vlaneseq
    %v182 = vshrl.u32 %v181, 7
    %v183 = vsub.s32 2, %v182
    %v184 = vrot.slane %v171, %v183
    %v196 = vunpack.c.l.b16 %v131
    %v197 = vunpack.c.l.b16 %v132
    %v198 = vunpack.c.l.b16 %v133
    %v199 = vunpack.c.l.b16 %v134
    %v200 = vunpack.c.l.b16 %v135
    %v201 = vunpack.c.l.b16 %v136
    %v202 = vunpack.c.l.b16 %v137
    %v203 = vunpack.c.l.b16 %v138
    %v204 = vpack.c.b16 %v197, %v196
    %v205 = vpack.c.b16 %v199, %v198
    %v206 = vpack.c.b16 %v201, %v200
    %v207 = vpack.c.b16 %v203, %v202
    %v244 = vunpack.c.l.b16 %v139
    %v245 = vunpack.c.h.b16 %v139
    %v246 = vunpack.c.l.b16 %v140
    %v247 = vunpack.c.l.b16 %v141
    %v248 = vunpack.c.h.b16 %v141
    %v249 = vunpack.c.l.b16 %v142
    %v250 = vunpack.c.l.b16 %v143
    %v251 = vunpack.c.h.b16 %v143
    %v252 = vunpack.c.l.b16 %v144
    %v253 = vunpack.c.l.b16 %v145
    %v254 = vunpack.c.h.b16 %v145
    %v255 = vunpack.c.l.b16 %v146
    %v256 = vunpack.c.l.b16 %v147
    %v257 = vunpack.c.h.b16 %v147
    %v258 = vunpack.c.l.b16 %v148
    %v259 = vunpack.c.l.b16 %v149
    %v260 = vunpack.c.h.b16 %v149
    %v261 = vunpack.c.l.b16 %v150
    %v262 = vunpack.c.l.b16 %v151
    %v263 = vunpack.c.h.b16 %v151
    %v264 = vunpack.c.l.b16 %v152
    %v265 = vunpack.c.l.b16 %v153
    %v266 = vunpack.c.h.b16 %v153
    %v267 = vunpack.c.l.b16 %v154
    %v268 = vunpack.c.l.b16 %v155
    %v269 = vunpack.c.h.b16 %v155
    %v270 = vunpack.c.l.b16 %v156
    %v271 = vunpack.c.l.b16 %v157
    %v272 = vunpack.c.h.b16 %v157
    %v273 = vunpack.c.l.b16 %v158
    %v274 = vunpack.c.l.b16 %v159
    %v275 = vunpack.c.h.b16 %v159
    %v276 = vunpack.c.l.b16 %v160
    %v277 = vunpack.c.l.b16 %v161
    %v278 = vunpack.c.h.b16 %v161
    %v279 = vunpack.c.l.b16 %v162
    %v280 = vunpack.c.l.b16 %v163
    %v281 = vunpack.c.h.b16 %v163
    %v282 = vunpack.c.l.b16 %v164
    %v283 = vunpack.c.l.b16 %v165
    %v284 = vunpack.c.h.b16 %v165
    %v285 = vunpack.c.l.b16 %v166
    %v286 = vunpack.c.l.b16 %v167
    %v287 = vunpack.c.h.b16 %v167
    %v288 = vunpack.c.l.b16 %v168
    %v289 = vunpack.c.l.b16 %v169
    %v290 = vunpack.c.h.b16 %v169
    %v291 = vunpack.c.l.b16 %v170
    %v292 = vpack.c.b16 %v247, %v244
    %v293 = vpack.c.b16 %v248, %v245
    %v294 = vpack.c.b16 %v249, %v246
    %v295 = vpack.c.b16 %v253, %v250
    %v296 = vpack.c.b16 %v254, %v251
    %v297 = vpack.c.b16 %v255, %v252
    %v298 = vpack.c.b16 %v259, %v256
    %v299 = vpack.c.b16 %v260, %v257
    %v300 = vpack.c.b16 %v261, %v258
    %v301 = vpack.c.b16 %v265, %v262
    %v302 = vpack.c.b16 %v266, %v263
    %v303 = vpack.c.b16 %v267, %v264
    %v304 = vpack.c.b16 %v271, %v268
    %v305 = vpack.c.b16 %v272, %v269
    %v306 = vpack.c.b16 %v273, %v270
    %v307 = vpack.c.b16 %v277, %v274
    %v308 = vpack.c.b16 %v278, %v275
    %v309 = vpack.c.b16 %v279, %v276
    %v310 = vpack.c.b16 %v283, %v280
    %v311 = vpack.c.b16 %v284, %v281
    %v312 = vpack.c.b16 %v285, %v282
    %v313 = vpack.c.b16 %v289, %v286
    %v314 = vpack.c.b16 %v290, %v287
    %v315 = vpack.c.b16 %v291, %v288
    %340 = vmatprep.subr.bf16.mxu0 %v293
    %341 = vmatpush1.bf16.msra.mxu0 %v292
    %342 = vmatprep.subr.bf16.mxu0 %v296
    %343 = vmatpush1.bf16.msra.mxu0 %v295
    %344 = vmatprep.subr.bf16.mxu0 %v299
    %345 = vmatpush1.bf16.msra.mxu0 %v298
    %346 = vmatprep.subr.bf16.mxu0 %v302
    %347 = vmatpush1.bf16.msra.mxu0 %v301
    %348 = vmatprep.subr.bf16.mxu0 %v305
    %349 = vmatpush1.bf16.msra.mxu0 %v304
    %350 = vmatprep.subr.bf16.mxu0 %v308
    %351 = vmatpush1.bf16.msra.mxu0 %v307
    %352 = vmatprep.subr.bf16.mxu0 %v311
    %353 = vmatpush1.bf16.msra.mxu0 %v310
    %354 = vmatprep.subr.bf16.mxu0 %v314
    %355 = vmatpush1.bf16.msra.mxu0 %v313
    %356 = vmatprep.subr.bf16.mxu0 0
    %357 = vmatpush1.bf16.msra.mxu0 0
    %358 = vmatprep.subr.bf16.mxu0 0
    %359 = vmatpush1.bf16.msra.mxu0 0
    %360 = vmatprep.subr.bf16.mxu0 0
    %361 = vmatpush1.bf16.msra.mxu0 0
    %362 = vmatprep.subr.bf16.mxu0 0
    %363 = vmatpush1.bf16.msra.mxu0 0
    %364 = vmatprep.subr.bf16.mxu0 0
    %365 = vmatpush1.bf16.msra.mxu0 0
    %366 = vmatprep.subr.bf16.mxu0 0
    %367 = vmatpush1.bf16.msra.mxu0 0
    %368 = vmatprep.subr.bf16.mxu0 0
    %369 = vmatpush1.bf16.msra.mxu0 0
    %370 = vmatprep.subr.bf16.mxu0 0
    %371 = vmatpush1.bf16.msra.mxu0 0
    %372 = vmatprep.mubr.bf16.mxu0 0
    %373 = vmatmul.mubr.bf16.gmra.mrb[0].mxu0 %v204
    %v374 = vpop.f32.mrb[0].mxu0
    %v375 = vadd.f32 %v176, %v374
    %v376 = vpop.f32.mrb[0].mxu0
    %v377 = vadd.f32 %v180, %v376
    %v378 = vpop.f32.mrb[0].mxu0
    %v379 = vadd.f32 %v176, %v378
    %v380 = vpop.f32.mrb[0].mxu0
    %v381 = vadd.f32 %v180, %v380
    %382 = vmatprep.mubr.bf16.mxu0 0
    %383 = vmatmul.mubr.bf16.gmra.mrb[0].mxu0 %v205
    %v384 = vpop.f32.mrb[0].mxu0
    %v385 = vadd.f32 %v176, %v384
    %v386 = vpop.f32.mrb[0].mxu0
    %v387 = vadd.f32 %v180, %v386
    %v388 = vpop.f32.mrb[0].mxu0
    %v389 = vadd.f32 %v176, %v388
    %v390 = vpop.f32.mrb[0].mxu0
    %v391 = vadd.f32 %v180, %v390
    %392 = vmatprep.mubr.bf16.mxu0 0
    %393 = vmatmul.mubr.bf16.gmra.mrb[0].mxu0 %v206
    %v394 = vpop.f32.mrb[0].mxu0
    %v395 = vadd.f32 %v176, %v394
    %v396 = vpop.f32.mrb[0].mxu0
    %v397 = vadd.f32 %v180, %v396
    %v398 = vpop.f32.mrb[0].mxu0
    %v399 = vadd.f32 %v176, %v398
    %v400 = vpop.f32.mrb[0].mxu0
    %v401 = vadd.f32 %v180, %v400
    %402 = vmatprep.mubr.bf16.mxu0 0
    %403 = vmatmul.mubr.bf16.gmra.mrb[0].mxu0 %v207
    %v404 = vpop.f32.mrb[0].mxu0
    %v405 = vadd.f32 %v176, %v404
    %v406 = vpop.f32.mrb[0].mxu0
    %v407 = vadd.f32 %v180, %v406
    %v408 = vpop.f32.mrb[0].mxu0
    %v409 = vadd.f32 %v176, %v408
    %v410 = vpop.f32.mrb[0].mxu0
    %v411 = vadd.f32 %v180, %v410
    %412 = vdwg.mxu0
    %413 = vmatprep.subr.bf16.mxu0 0
    %414 = vmatpush1.bf16.msra.mxu0 %v294
    %415 = vmatprep.subr.bf16.mxu0 0
    %416 = vmatpush1.bf16.msra.mxu0 %v297
    %417 = vmatprep.subr.bf16.mxu0 0
    %418 = vmatpush1.bf16.msra.mxu0 %v300
    %419 = vmatprep.subr.bf16.mxu0 0
    %420 = vmatpush1.bf16.msra.mxu0 %v303
    %421 = vmatprep.subr.bf16.mxu0 0
    %422 = vmatpush1.bf16.msra.mxu0 %v306
    %423 = vmatprep.subr.bf16.mxu0 0
    %424 = vmatpush1.bf16.msra.mxu0 %v309
    %425 = vmatprep.subr.bf16.mxu0 0
    %426 = vmatpush1.bf16.msra.mxu0 %v312
    %427 = vmatprep.subr.bf16.mxu0 0
    %428 = vmatpush1.bf16.msra.mxu0 %v315
    %429 = vmatprep.subr.bf16.mxu0 0
    %430 = vmatpush1.bf16.msra.mxu0 0
    %431 = vmatprep.subr.bf16.mxu0 0
    %432 = vmatpush1.bf16.msra.mxu0 0
    %433 = vmatprep.subr.bf16.mxu0 0
    %434 = vmatpush1.bf16.msra.mxu0 0
    %435 = vmatprep.subr.bf16.mxu0 0
    %436 = vmatpush1.bf16.msra.mxu0 0
    %437 = vmatprep.subr.bf16.mxu0 0
    %438 = vmatpush1.bf16.msra.mxu0 0
    %439 = vmatprep.subr.bf16.mxu0 0
    %440 = vmatpush1.bf16.msra.mxu0 0
    %441 = vmatprep.subr.bf16.mxu0 0
    %442 = vmatpush1.bf16.msra.mxu0 0
    %443 = vmatprep.subr.bf16.mxu0 0
    %444 = vmatpush1.bf16.msra.mxu0 0
    %445 = vmatprep.mubr.bf16.mxu0 0
    %446 = vmatmul.mubr.bf16.gmra.mrb[0].mxu0 %v204
    %v447 = vpop.f32.mrb[0].mxu0
    %v448 = vadd.f32 %v184, %v447
    %v449 = vpop.f32.mrb[0].mxu0
    %v450 = vpop.f32.mrb[0].mxu0
    %v451 = vadd.f32 %v184, %v450
    %v452 = vpop.f32.mrb[0].mxu0
    %453 = vmatprep.mubr.bf16.mxu0 0
    %454 = vmatmul.mubr.bf16.gmra.mrb[0].mxu0 %v205
    %v455 = vpop.f32.mrb[0].mxu0
    %v456 = vadd.f32 %v184, %v455
    %v457 = vpop.f32.mrb[0].mxu0
    %v458 = vpop.f32.mrb[0].mxu0
    %v459 = vadd.f32 %v184, %v458
    %v460 = vpop.f32.mrb[0].mxu0
    %461 = vmatprep.mubr.bf16.mxu0 0
    %462 = vmatmul.mubr.bf16.gmra.mrb[0].mxu0 %v206
    %v463 = vpop.f32.mrb[0].mxu0
    %v464 = vadd.f32 %v184, %v463
    %v465 = vpop.f32.mrb[0].mxu0
    %v466 = vpop.f32.mrb[0].mxu0
    %v467 = vadd.f32 %v184, %v466
    %v468 = vpop.f32.mrb[0].mxu0
    %469 = vmatprep.mubr.bf16.mxu0 0
    %470 = vmatmul.mubr.bf16.gmra.mrb[0].mxu0 %v207
    %v471 = vpop.f32.mrb[0].mxu0
    %v472 = vadd.f32 %v184, %v471
    %v473 = vpop.f32.mrb[0].mxu0
    %v474 = vpop.f32.mrb[0].mxu0
    %v475 = vadd.f32 %v184, %v474
    %v476 = vpop.f32.mrb[0].mxu0
    %477 = vdwg.mxu0
    %478 = vst [vmem:[#allocation4] sm:$0xff] %v375
    %479 = vst [vmem:[#allocation4 + $0x8] sm:$0xff] %v377
    %480 = vst [vmem:[#allocation4 + $0x10] sm:$0xff] %v448
    %481 = vst [vmem:[#allocation4 + $0x18] sm:$0xff] %v379
    %482 = vst [vmem:[#allocation4 + $0x20] sm:$0xff] %v381
    %483 = vst [vmem:[#allocation4 + $0x28] sm:$0xff] %v451
    %484 = vst [vmem:[#allocation4 + $0x30] sm:$0xff] %v385
    %485 = vst [vmem:[#allocation4 + $0x38] sm:$0xff] %v387
    %486 = vst [vmem:[#allocation4 + $0x40] sm:$0xff] %v456
    %487 = vst [vmem:[#allocation4 + $0x48] sm:$0xff] %v389
    %488 = vst [vmem:[#allocation4 + $0x50] sm:$0xff] %v391
    %489 = vst [vmem:[#allocation4 + $0x58] sm:$0xff] %v459
    %490 = vst [vmem:[#allocation4 + $0x60] sm:$0xff] %v395
    %491 = vst [vmem:[#allocation4 + $0x68] sm:$0xff] %v397
    %492 = vst [vmem:[#allocation4 + $0x70] sm:$0xff] %v464
    %493 = vst [vmem:[#allocation4 + $0x78] sm:$0xff] %v399
    %494 = vst [vmem:[#allocation4 + $0x80] sm:$0xff] %v401
    %495 = vst [vmem:[#allocation4 + $0x88] sm:$0xff] %v467
    %496 = vst [vmem:[#allocation4 + $0x90] sm:$0xff] %v405
    %497 = vst [vmem:[#allocation4 + $0x98] sm:$0xff] %v407
    %498 = vst [vmem:[#allocation4 + $0xa0] sm:$0xff] %v472
    %499 = vst [vmem:[#allocation4 + $0xa8] sm:$0xff] %v409
    %500 = vst [vmem:[#allocation4 + $0xb0] sm:$0xff] %v411
    %501 = vst [vmem:[#allocation4 + $0xb8] sm:$0xff] %v475
    %v502 = vld [vmem:[%s5] sm:$0x1]
    %v504 = vlaneseq
    %v505 = vshrl.u32 %v504, 7
    %v506 = vsub.s32 0, %v505
    %v507 = vrot.slane %v502, %v506
    %v509 = vld [vmem:[%s8] sm:$0x7]
    %v511 = vlaneseq
    %v512 = vshrl.u32 %v511, 7
    %v513 = vsub.s32 0, %v512
    %v514 = vrot.slane %v509, %v513
    %v515 = vlaneseq
    %v516 = vshrl.u32 %v515, 7
    %v517 = vsub.s32 1, %v516
    %v518 = vrot.slane %v509, %v517
    %v519 = vlaneseq
    %v520 = vshrl.u32 %v519, 7
    %v521 = vsub.s32 2, %v520
    %v522 = vrot.slane %v509, %v521
    %v526 = vld [vmem:[%s9] sm:$0x1]
    %v528 = vlaneseq
    %v529 = vshrl.u32 %v528, 7
    %v530 = vsub.s32 0, %v529
    %v531 = vrot.slane %v526, %v530
    %s533 = smul.u32 0, 3
    %s534 = smul.addr %s533, 8
    %s535 = scalar_lea.vmem [#allocation4], %s534
    %v536 = vld [vmem:[%s535] sm:$0xff]
    %v537 = vld [vmem:[%s535 + $0x8] sm:$0xff]
    %v538 = vld [vmem:[%s535 + $0x10] sm:$0xff]
    %v539 = vld [vmem:[#allocation3] sm:$0xf]
    %v540 = vld [vmem:[#allocation11] sm:$0xff]
    %v541 = vld [vmem:[#allocation11 + $0x8] sm:$0xf]
    %v542 = vld [vmem:[#allocation11 + $0xc] sm:$0xff]
    %v543 = vld [vmem:[#allocation11 + $0x14] sm:$0xf]
    %v544 = vld [vmem:[#allocation11 + $0x18] sm:$0xff]
    %v545 = vld [vmem:[#allocation11 + $0x20] sm:$0xf]
    %v546 = vld [vmem:[#allocation11 + $0x24] sm:$0xff]
    %v547 = vld [vmem:[#allocation11 + $0x2c] sm:$0xf]
    %v548 = vld [vmem:[#allocation11 + $0x30] sm:$0xff]
    %v549 = vld [vmem:[#allocation11 + $0x38] sm:$0xf]
    %v550 = vld [vmem:[#allocation11 + $0x3c] sm:$0xff]
    %v551 = vld [vmem:[#allocation11 + $0x44] sm:$0xf]
    %v552 = vld [vmem:[#allocation11 + $0x48] sm:$0xff]
    %v553 = vld [vmem:[#allocation11 + $0x50] sm:$0xf]
    %v554 = vld [vmem:[#allocation11 + $0x54] sm:$0xff]
    %v555 = vld [vmem:[#allocation11 + $0x5c] sm:$0xf]
    %v556 = vld [vmem:[#allocation11 + $0x60] sm:$0xff]
    %v557 = vld [vmem:[#allocation11 + $0x68] sm:$0xf]
    %v558 = vld [vmem:[#allocation11 + $0x6c] sm:$0xff]
    %v559 = vld [vmem:[#allocation11 + $0x74] sm:$0xf]
    %v560 = vld [vmem:[#allocation11 + $0x78] sm:$0xff]
    %v561 = vld [vmem:[#allocation11 + $0x80] sm:$0xf]
    %v562 = vld [vmem:[#allocation11 + $0x84] sm:$0xff]
    %v563 = vld [vmem:[#allocation11 + $0x8c] sm:$0xf]
    %v564 = vld [vmem:[#allocation11 + $0x90] sm:$0xff]
    %v565 = vld [vmem:[#allocation11 + $0x98] sm:$0xf]
    %v566 = vld [vmem:[#allocation11 + $0x9c] sm:$0xff]
    %v567 = vld [vmem:[#allocation11 + $0xa4] sm:$0xf]
    %v568 = vld [vmem:[#allocation11 + $0xa8] sm:$0xff]
    %v569 = vld [vmem:[#allocation11 + $0xb0] sm:$0xf]
    %v570 = vld [vmem:[#allocation11 + $0xb4] sm:$0xff]
    %v571 = vld [vmem:[#allocation11 + $0xbc] sm:$0xf]
    %v604 = vunpack.c.l.b16 %v540
    %v605 = vunpack.c.h.b16 %v540
    %v606 = vunpack.c.l.b16 %v541
    %v607 = vunpack.c.l.b16 %v542
    %v608 = vunpack.c.h.b16 %v542
    %v609 = vunpack.c.l.b16 %v543
    %v610 = vunpack.c.l.b16 %v544
    %v611 = vunpack.c.h.b16 %v544
    %v612 = vunpack.c.l.b16 %v545
    %v613 = vunpack.c.l.b16 %v546
    %v614 = vunpack.c.h.b16 %v546
    %v615 = vunpack.c.l.b16 %v547
    %v616 = vunpack.c.l.b16 %v548
    %v617 = vunpack.c.h.b16 %v548
    %v618 = vunpack.c.l.b16 %v549
    %v619 = vunpack.c.l.b16 %v550
    %v620 = vunpack.c.h.b16 %v550
    %v621 = vunpack.c.l.b16 %v551
    %v622 = vunpack.c.l.b16 %v552
    %v623 = vunpack.c.h.b16 %v552
    %v624 = vunpack.c.l.b16 %v553
    %v625 = vunpack.c.l.b16 %v554
    %v626 = vunpack.c.h.b16 %v554
    %v627 = vunpack.c.l.b16 %v555
    %v628 = vunpack.c.l.b16 %v556
    %v629 = vunpack.c.h.b16 %v556
    %v630 = vunpack.c.l.b16 %v557
    %v631 = vunpack.c.l.b16 %v558
    %v632 = vunpack.c.h.b16 %v558
    %v633 = vunpack.c.l.b16 %v559
    %v634 = vunpack.c.l.b16 %v560
    %v635 = vunpack.c.h.b16 %v560
    %v636 = vunpack.c.l.b16 %v561
    %v637 = vunpack.c.l.b16 %v562
    %v638 = vunpack.c.h.b16 %v562
    %v639 = vunpack.c.l.b16 %v563
    %v640 = vunpack.c.l.b16 %v564
    %v641 = vunpack.c.h.b16 %v564
    %v642 = vunpack.c.l.b16 %v565
    %v643 = vunpack.c.l.b16 %v566
    %v644 = vunpack.c.h.b16 %v566
    %v645 = vunpack.c.l.b16 %v567
    %v646 = vunpack.c.l.b16 %v568
    %v647 = vunpack.c.h.b16 %v568
    %v648 = vunpack.c.l.b16 %v569
    %v649 = vunpack.c.l.b16 %v570
    %v650 = vunpack.c.h.b16 %v570
    %v651 = vunpack.c.l.b16 %v571
    %v652 = vpack.c.b16 %v607, %v604
    %v653 = vpack.c.b16 %v608, %v605
    %v654 = vpack.c.b16 %v609, %v606
    %v655 = vpack.c.b16 %v613, %v610
    %v656 = vpack.c.b16 %v614, %v611
    %v657 = vpack.c.b16 %v615, %v612
    %v658 = vpack.c.b16 %v619, %v616
    %v659 = vpack.c.b16 %v620, %v617
    %v660 = vpack.c.b16 %v621, %v618
    %v661 = vpack.c.b16 %v625, %v622
    %v662 = vpack.c.b16 %v626, %v623
    %v663 = vpack.c.b16 %v627, %v624
    %v664 = vpack.c.b16 %v631, %v628
    %v665 = vpack.c.b16 %v632, %v629
    %v666 = vpack.c.b16 %v633, %v630
    %v667 = vpack.c.b16 %v637, %v634
    %v668 = vpack.c.b16 %v638, %v635
    %v669 = vpack.c.b16 %v639, %v636
    %v670 = vpack.c.b16 %v643, %v640
    %v671 = vpack.c.b16 %v644, %v641
    %v672 = vpack.c.b16 %v645, %v642
    %v673 = vpack.c.b16 %v649, %v646
    %v674 = vpack.c.b16 %v650, %v647
    %v675 = vpack.c.b16 %v651, %v648
    %700 = vmatprep.subr.bf16.mxu0 %v653
    %701 = vmatpush1.bf16.msra.mxu0 %v652
    %702 = vmatprep.subr.bf16.mxu0 %v656
    %703 = vmatpush1.bf16.msra.mxu0 %v655
    %704 = vmatprep.subr.bf16.mxu0 %v659
    %705 = vmatpush1.bf16.msra.mxu0 %v658
    %706 = vmatprep.subr.bf16.mxu0 %v662
    %707 = vmatpush1.bf16.msra.mxu0 %v661
    %708 = vmatprep.subr.bf16.mxu0 %v665
    %709 = vmatpush1.bf16.msra.mxu0 %v664
    %710 = vmatprep.subr.bf16.mxu0 %v668
    %711 = vmatpush1.bf16.msra.mxu0 %v667
    %712 = vmatprep.subr.bf16.mxu0 %v671
    %713 = vmatpush1.bf16.msra.mxu0 %v670
    %714 = vmatprep.subr.bf16.mxu0 %v674
    %715 = vmatpush1.bf16.msra.mxu0 %v673
    %716 = vmatprep.subr.bf16.mxu0 0
    %717 = vmatpush1.bf16.msra.mxu0 0
    %718 = vmatprep.subr.bf16.mxu0 0
    %719 = vmatpush1.bf16.msra.mxu0 0
    %720 = vmatprep.subr.bf16.mxu0 0
    %721 = vmatpush1.bf16.msra.mxu0 0
    %722 = vmatprep.subr.bf16.mxu0 0
    %723 = vmatpush1.bf16.msra.mxu0 0
    %724 = vmatprep.subr.bf16.mxu0 0
    %725 = vmatpush1.bf16.msra.mxu0 0
    %726 = vmatprep.subr.bf16.mxu0 0
    %727 = vmatpush1.bf16.msra.mxu0 0
    %728 = vmatprep.subr.bf16.mxu0 0
    %729 = vmatpush1.bf16.msra.mxu0 0
    %730 = vmatprep.subr.bf16.mxu0 0
    %731 = vmatpush1.bf16.msra.mxu0 0
    %732 = vmatprep.mubr.bf16.mxu0 0
    %733 = vmatmul.mubr.bf16.gmra.mrb[0].mxu0 %v539
    %v734 = vpop.f32.mrb[0].mxu0
    %v735 = vadd.f32 0.0, %v734
    %v736 = vpop.f32.mrb[0].mxu0
    %v737 = vadd.f32 0.0, %v736
    %v738 = vpop.f32.mrb[0].mxu0
    %v739 = vpop.f32.mrb[0].mxu0
    %740 = vdwg.mxu0
    %741 = vmatprep.subr.bf16.mxu0 0
    %742 = vmatpush1.bf16.msra.mxu0 %v654
    %743 = vmatprep.subr.bf16.mxu0 0
    %744 = vmatpush1.bf16.msra.mxu0 %v657
    %745 = vmatprep.subr.bf16.mxu0 0
    %746 = vmatpush1.bf16.msra.mxu0 %v660
    %747 = vmatprep.subr.bf16.mxu0 0
    %748 = vmatpush1.bf16.msra.mxu0 %v663
    %749 = vmatprep.subr.bf16.mxu0 0
    %750 = vmatpush1.bf16.msra.mxu0 %v666
    %751 = vmatprep.subr.bf16.mxu0 0
    %752 = vmatpush1.bf16.msra.mxu0 %v669
    %753 = vmatprep.subr.bf16.mxu0 0
    %754 = vmatpush1.bf16.msra.mxu0 %v672
    %755 = vmatprep.subr.bf16.mxu0 0
    %756 = vmatpush1.bf16.msra.mxu0 %v675
    %757 = vmatprep.subr.bf16.mxu0 0
    %758 = vmatpush1.bf16.msra.mxu0 0
    %759 = vmatprep.subr.bf16.mxu0 0
    %760 = vmatpush1.bf16.msra.mxu0 0
    %761 = vmatprep.subr.bf16.mxu0 0
    %762 = vmatpush1.bf16.msra.mxu0 0
    %763 = vmatprep.subr.bf16.mxu0 0
    %764 = vmatpush1.bf16.msra.mxu0 0
    %765 = vmatprep.subr.bf16.mxu0 0
    %766 = vmatpush1.bf16.msra.mxu0 0
    %767 = vmatprep.subr.bf16.mxu0 0
    %768 = vmatpush1.bf16.msra.mxu0 0
    %769 = vmatprep.subr.bf16.mxu0 0
    %770 = vmatpush1.bf16.msra.mxu0 0
    %771 = vmatprep.subr.bf16.mxu0 0
    %772 = vmatpush1.bf16.msra.mxu0 0
    %773 = vmatprep.mubr.bf16.mxu0 0
    %774 = vmatmul.mubr.bf16.gmra.mrb[0].mxu0 %v539
    %v775 = vpop.f32.mrb[0].mxu0
    %v776 = vadd.f32 0.0, %v775
    %v777 = vpop.f32.mrb[0].mxu0
    %v778 = vpop.f32.mrb[0].mxu0
    %v779 = vpop.f32.mrb[0].mxu0
    %780 = vdwg.mxu0
    %v781 = vld [vmem:[#allocation2] sm:$0xff]
    %v782 = vadd.f32 %v536, %v735
    %v783 = vxor.u32 %v782, 2147483648
    %v784 = vmul.f32 %v783, 1.442695
    %v785 = vpow.pop %v784
    %v786 = vadd.f32 %v785, 1.0
    %v787 = vrcp.pop %v786
    %v788 = vmul.f32 1.0, %v787
    %v789 = vadd.f32 %v537, %v737
    %v790 = vxor.u32 %v789, 2147483648
    %v791 = vmul.f32 %v790, 1.442695
    %v792 = vpow.pop %v791
    %v793 = vadd.f32 %v792, 1.0
    %v794 = vrcp.pop %v793
    %v795 = vmul.f32 1.0, %v794
    %v796 = vadd.f32 %v776, %v507
    %v797 = vmul.f32 %v788, %v796
    %v798 = vadd.f32 %v538, %v797
    %v799 = vtanh.pop %v798
    %v800 = vsub.f32 1.0, %v795
    %v801 = vmul.f32 %v800, %v799
    %v802 = vmul.f32 %v795, %v781
    %v803 = vadd.f32 %v801, %v802
    %804 = vst [vmem:[#allocation2] sm:$0xff] %v803
    %v805 = vpack.c.bf16 %v803, %v803
    %806 = vst [vmem:[#allocation3] sm:$0xf] %v805
    %v807 = vld [vmem:[#allocation13] sm:$0xff]
    %v808 = vld [vmem:[#allocation13 + $0x8] sm:$0xf]
    %v809 = vld [vmem:[#allocation13 + $0xc] sm:$0xff]
    %v810 = vld [vmem:[#allocation13 + $0x14] sm:$0xf]
    %v811 = vld [vmem:[#allocation13 + $0x18] sm:$0xff]
    %v812 = vld [vmem:[#allocation13 + $0x20] sm:$0xf]
    %v813 = vld [vmem:[#allocation13 + $0x24] sm:$0xff]
    %v814 = vld [vmem:[#allocation13 + $0x2c] sm:$0xf]
    %v815 = vld [vmem:[#allocation13 + $0x30] sm:$0xff]
    %v816 = vld [vmem:[#allocation13 + $0x38] sm:$0xf]
    %v817 = vld [vmem:[#allocation13 + $0x3c] sm:$0xff]
    %v818 = vld [vmem:[#allocation13 + $0x44] sm:$0xf]
    %v819 = vld [vmem:[#allocation13 + $0x48] sm:$0xff]
    %v820 = vld [vmem:[#allocation13 + $0x50] sm:$0xf]
    %v821 = vld [vmem:[#allocation13 + $0x54] sm:$0xff]
    %v822 = vld [vmem:[#allocation13 + $0x5c] sm:$0xf]
    %v823 = vld [vmem:[#allocation13 + $0x60] sm:$0xff]
    %v824 = vld [vmem:[#allocation13 + $0x68] sm:$0xf]
    %v825 = vld [vmem:[#allocation13 + $0x6c] sm:$0xff]
    %v826 = vld [vmem:[#allocation13 + $0x74] sm:$0xf]
    %v827 = vld [vmem:[#allocation13 + $0x78] sm:$0xff]
    %v828 = vld [vmem:[#allocation13 + $0x80] sm:$0xf]
    %v829 = vld [vmem:[#allocation13 + $0x84] sm:$0xff]
    %v830 = vld [vmem:[#allocation13 + $0x8c] sm:$0xf]
    %v831 = vld [vmem:[#allocation13 + $0x90] sm:$0xff]
    %v832 = vld [vmem:[#allocation13 + $0x98] sm:$0xf]
    %v833 = vld [vmem:[#allocation13 + $0x9c] sm:$0xff]
    %v834 = vld [vmem:[#allocation13 + $0xa4] sm:$0xf]
    %v835 = vld [vmem:[#allocation13 + $0xa8] sm:$0xff]
    %v836 = vld [vmem:[#allocation13 + $0xb0] sm:$0xf]
    %v837 = vld [vmem:[#allocation13 + $0xb4] sm:$0xff]
    %v838 = vld [vmem:[#allocation13 + $0xbc] sm:$0xf]
    %v871 = vunpack.c.l.b16 %v807
    %v872 = vunpack.c.h.b16 %v807
    %v873 = vunpack.c.l.b16 %v808
    %v874 = vunpack.c.l.b16 %v809
    %v875 = vunpack.c.h.b16 %v809
    %v876 = vunpack.c.l.b16 %v810
    %v877 = vunpack.c.l.b16 %v811
    %v878 = vunpack.c.h.b16 %v811
    %v879 = vunpack.c.l.b16 %v812
    %v880 = vunpack.c.l.b16 %v813
    %v881 = vunpack.c.h.b16 %v813
    %v882 = vunpack.c.l.b16 %v814
    %v883 = vunpack.c.l.b16 %v815
    %v884 = vunpack.c.h.b16 %v815
    %v885 = vunpack.c.l.b16 %v816
    %v886 = vunpack.c.l.b16 %v817
    %v887 = vunpack.c.h.b16 %v817
    %v888 = vunpack.c.l.b16 %v818
    %v889 = vunpack.c.l.b16 %v819
    %v890 = vunpack.c.h.b16 %v819
    %v891 = vunpack.c.l.b16 %v820
    %v892 = vunpack.c.l.b16 %v821
    %v893 = vunpack.c.h.b16 %v821
    %v894 = vunpack.c.l.b16 %v822
    %v895 = vunpack.c.l.b16 %v823
    %v896 = vunpack.c.h.b16 %v823
    %v897 = vunpack.c.l.b16 %v824
    %v898 = vunpack.c.l.b16 %v825
    %v899 = vunpack.c.h.b16 %v825
    %v900 = vunpack.c.l.b16 %v826
    %v901 = vunpack.c.l.b16 %v827
    %v902 = vunpack.c.h.b16 %v827
    %v903 = vunpack.c.l.b16 %v828
    %v904 = vunpack.c.l.b16 %v829
    %v905 = vunpack.c.h.b16 %v829
    %v906 = vunpack.c.l.b16 %v830
    %v907 = vunpack.c.l.b16 %v831
    %v908 = vunpack.c.h.b16 %v831
    %v909 = vunpack.c.l.b16 %v832
    %v910 = vunpack.c.l.b16 %v833
    %v911 = vunpack.c.h.b16 %v833
    %v912 = vunpack.c.l.b16 %v834
    %v913 = vunpack.c.l.b16 %v835
    %v914 = vunpack.c.h.b16 %v835
    %v915 = vunpack.c.l.b16 %v836
    %v916 = vunpack.c.l.b16 %v837
    %v917 = vunpack.c.h.b16 %v837
    %v918 = vunpack.c.l.b16 %v838
    %v919 = vpack.c.b16 %v874, %v871
    %v920 = vpack.c.b16 %v875, %v872
    %v921 = vpack.c.b16 %v876, %v873
    %v922 = vpack.c.b16 %v880, %v877
    %v923 = vpack.c.b16 %v881, %v878
    %v924 = vpack.c.b16 %v882, %v879
    %v925 = vpack.c.b16 %v886, %v883
    %v926 = vpack.c.b16 %v887, %v884
    %v927 = vpack.c.b16 %v888, %v885
    %v928 = vpack.c.b16 %v892, %v889
    %v929 = vpack.c.b16 %v893, %v890
    %v930 = vpack.c.b16 %v894, %v891
    %v931 = vpack.c.b16 %v898, %v895
    %v932 = vpack.c.b16 %v899, %v896
    %v933 = vpack.c.b16 %v900, %v897
    %v934 = vpack.c.b16 %v904, %v901
    %v935 = vpack.c.b16 %v905, %v902
    %v936 = vpack.c.b16 %v906, %v903
    %v937 = vpack.c.b16 %v910, %v907
    %v938 = vpack.c.b16 %v911, %v908
    %v939 = vpack.c.b16 %v912, %v909
    %v940 = vpack.c.b16 %v916, %v913
    %v941 = vpack.c.b16 %v917, %v914
    %v942 = vpack.c.b16 %v918, %v915
    %967 = vmatprep.subr.bf16.mxu0 %v920
    %968 = vmatpush1.bf16.msra.mxu0 %v919
    %969 = vmatprep.subr.bf16.mxu0 %v923
    %970 = vmatpush1.bf16.msra.mxu0 %v922
    %971 = vmatprep.subr.bf16.mxu0 %v926
    %972 = vmatpush1.bf16.msra.mxu0 %v925
    %973 = vmatprep.subr.bf16.mxu0 %v929
    %974 = vmatpush1.bf16.msra.mxu0 %v928
    %975 = vmatprep.subr.bf16.mxu0 %v932
    %976 = vmatpush1.bf16.msra.mxu0 %v931
    %977 = vmatprep.subr.bf16.mxu0 %v935
    %978 = vmatpush1.bf16.msra.mxu0 %v934
    %979 = vmatprep.subr.bf16.mxu0 %v938
    %980 = vmatpush1.bf16.msra.mxu0 %v937
    %981 = vmatprep.subr.bf16.mxu0 %v941
    %982 = vmatpush1.bf16.msra.mxu0 %v940
    %983 = vmatprep.subr.bf16.mxu0 0
    %984 = vmatpush1.bf16.msra.mxu0 0
    %985 = vmatprep.subr.bf16.mxu0 0
    %986 = vmatpush1.bf16.msra.mxu0 0
    %987 = vmatprep.subr.bf16.mxu0 0
    %988 = vmatpush1.bf16.msra.mxu0 0
    %989 = vmatprep.subr.bf16.mxu0 0
    %990 = vmatpush1.bf16.msra.mxu0 0
    %991 = vmatprep.subr.bf16.mxu0 0
    %992 = vmatpush1.bf16.msra.mxu0 0
    %993 = vmatprep.subr.bf16.mxu0 0
    %994 = vmatpush1.bf16.msra.mxu0 0
    %995 = vmatprep.subr.bf16.mxu0 0
    %996 = vmatpush1.bf16.msra.mxu0 0
    %997 = vmatprep.subr.bf16.mxu0 0
    %998 = vmatpush1.bf16.msra.mxu0 0
    %999 = vmatprep.mubr.bf16.mxu0 0
    %1000 = vmatmul.mubr.bf16.gmra.mrb[0].mxu0 %v805
    %v1001 = vpop.f32.mrb[0].mxu0
    %v1002 = vadd.f32 %v514, %v1001
    %v1003 = vpop.f32.mrb[0].mxu0
    %v1004 = vadd.f32 %v518, %v1003
    %v1005 = vpop.f32.mrb[0].mxu0
    %v1006 = vpop.f32.mrb[0].mxu0
    %1007 = vdwg.mxu0
    %1008 = vmatprep.subr.bf16.mxu0 0
    %1009 = vmatpush1.bf16.msra.mxu0 %v921
    %1010 = vmatprep.subr.bf16.mxu0 0
    %1011 = vmatpush1.bf16.msra.mxu0 %v924
    %1012 = vmatprep.subr.bf16.mxu0 0
    %1013 = vmatpush1.bf16.msra.mxu0 %v927
    %1014 = vmatprep.subr.bf16.mxu0 0
    %1015 = vmatpush1.bf16.msra.mxu0 %v930
    %1016 = vmatprep.subr.bf16.mxu0 0
    %1017 = vmatpush1.bf16.msra.mxu0 %v933
    %1018 = vmatprep.subr.bf16.mxu0 0
    %1019 = vmatpush1.bf16.msra.mxu0 %v936
    %1020 = vmatprep.subr.bf16.mxu0 0
    %1021 = vmatpush1.bf16.msra.mxu0 %v939
    %1022 = vmatprep.subr.bf16.mxu0 0
    %1023 = vmatpush1.bf16.msra.mxu0 %v942
    %1024 = vmatprep.subr.bf16.mxu0 0
    %1025 = vmatpush1.bf16.msra.mxu0 0
    %1026 = vmatprep.subr.bf16.mxu0 0
    %1027 = vmatpush1.bf16.msra.mxu0 0
    %1028 = vmatprep.subr.bf16.mxu0 0
    %1029 = vmatpush1.bf16.msra.mxu0 0
    %1030 = vmatprep.subr.bf16.mxu0 0
    %1031 = vmatpush1.bf16.msra.mxu0 0
    %1032 = vmatprep.subr.bf16.mxu0 0
    %1033 = vmatpush1.bf16.msra.mxu0 0
    %1034 = vmatprep.subr.bf16.mxu0 0
    %1035 = vmatpush1.bf16.msra.mxu0 0
    %1036 = vmatprep.subr.bf16.mxu0 0
    %1037 = vmatpush1.bf16.msra.mxu0 0
    %1038 = vmatprep.subr.bf16.mxu0 0
    %1039 = vmatpush1.bf16.msra.mxu0 0
    %1040 = vmatprep.mubr.bf16.mxu0 0
    %1041 = vmatmul.mubr.bf16.gmra.mrb[0].mxu0 %v805
    %v1042 = vpop.f32.mrb[0].mxu0
    %v1043 = vadd.f32 %v522, %v1042
    %v1044 = vpop.f32.mrb[0].mxu0
    %v1045 = vpop.f32.mrb[0].mxu0
    %v1046 = vpop.f32.mrb[0].mxu0
    %1047 = vdwg.mxu0
    %s1048 = scalar_lea.vmem [#allocation3], 4
    %v1049 = vld [vmem:[%s1048] sm:$0xf]
    %v1050 = vld [vmem:[#allocation14] sm:$0xff]
    %v1051 = vld [vmem:[#allocation14 + $0x8] sm:$0xf]
    %v1052 = vld [vmem:[#allocation14 + $0xc] sm:$0xff]
    %v1053 = vld [vmem:[#allocation14 + $0x14] sm:$0xf]
    %v1054 = vld [vmem:[#allocation14 + $0x18] sm:$0xff]
    %v1055 = vld [vmem:[#allocation14 + $0x20] sm:$0xf]
    %v1056 = vld [vmem:[#allocation14 + $0x24] sm:$0xff]
    %v1057 = vld [vmem:[#allocation14 + $0x2c] sm:$0xf]
    %v1058 = vld [vmem:[#allocation14 + $0x30] sm:$0xff]
    %v1059 = vld [vmem:[#allocation14 + $0x38] sm:$0xf]
    %v1060 = vld [vmem:[#allocation14 + $0x3c] sm:$0xff]
    %v1061 = vld [vmem:[#allocation14 + $0x44] sm:$0xf]
    %v1062 = vld [vmem:[#allocation14 + $0x48] sm:$0xff]
    %v1063 = vld [vmem:[#allocation14 + $0x50] sm:$0xf]
    %v1064 = vld [vmem:[#allocation14 + $0x54] sm:$0xff]
    %v1065 = vld [vmem:[#allocation14 + $0x5c] sm:$0xf]
    %v1066 = vld [vmem:[#allocation14 + $0x60] sm:$0xff]
    %v1067 = vld [vmem:[#allocation14 + $0x68] sm:$0xf]
    %v1068 = vld [vmem:[#allocation14 + $0x6c] sm:$0xff]
    %v1069 = vld [vmem:[#allocation14 + $0x74] sm:$0xf]
    %v1070 = vld [vmem:[#allocation14 + $0x78] sm:$0xff]
    %v1071 = vld [vmem:[#allocation14 + $0x80] sm:$0xf]
    %v1072 = vld [vmem:[#allocation14 + $0x84] sm:$0xff]
    %v1073 = vld [vmem:[#allocation14 + $0x8c] sm:$0xf]
    %v1074 = vld [vmem:[#allocation14 + $0x90] sm:$0xff]
    %v1075 = vld [vmem:[#allocation14 + $0x98] sm:$0xf]
    %v1076 = vld [vmem:[#allocation14 + $0x9c] sm:$0xff]
    %v1077 = vld [vmem:[#allocation14 + $0xa4] sm:$0xf]
    %v1078 = vld [vmem:[#allocation14 + $0xa8] sm:$0xff]
    %v1079 = vld [vmem:[#allocation14 + $0xb0] sm:$0xf]
    %v1080 = vld [vmem:[#allocation14 + $0xb4] sm:$0xff]
    %v1081 = vld [vmem:[#allocation14 + $0xbc] sm:$0xf]
    %v1114 = vunpack.c.l.b16 %v1050
    %v1115 = vunpack.c.h.b16 %v1050
    %v1116 = vunpack.c.l.b16 %v1051
    %v1117 = vunpack.c.l.b16 %v1052
    %v1118 = vunpack.c.h.b16 %v1052
    %v1119 = vunpack.c.l.b16 %v1053
    %v1120 = vunpack.c.l.b16 %v1054
    %v1121 = vunpack.c.h.b16 %v1054
    %v1122 = vunpack.c.l.b16 %v1055
    %v1123 = vunpack.c.l.b16 %v1056
    %v1124 = vunpack.c.h.b16 %v1056
    %v1125 = vunpack.c.l.b16 %v1057
    %v1126 = vunpack.c.l.b16 %v1058
    %v1127 = vunpack.c.h.b16 %v1058
    %v1128 = vunpack.c.l.b16 %v1059
    %v1129 = vunpack.c.l.b16 %v1060
    %v1130 = vunpack.c.h.b16 %v1060
    %v1131 = vunpack.c.l.b16 %v1061
    %v1132 = vunpack.c.l.b16 %v1062
    %v1133 = vunpack.c.h.b16 %v1062
    %v1134 = vunpack.c.l.b16 %v1063
    %v1135 = vunpack.c.l.b16 %v1064
    %v1136 = vunpack.c.h.b16 %v1064
    %v1137 = vunpack.c.l.b16 %v1065
    %v1138 = vunpack.c.l.b16 %v1066
    %v1139 = vunpack.c.h.b16 %v1066
    %v1140 = vunpack.c.l.b16 %v1067
    %v1141 = vunpack.c.l.b16 %v1068
    %v1142 = vunpack.c.h.b16 %v1068
    %v1143 = vunpack.c.l.b16 %v1069
    %v1144 = vunpack.c.l.b16 %v1070
    %v1145 = vunpack.c.h.b16 %v1070
    %v1146 = vunpack.c.l.b16 %v1071
    %v1147 = vunpack.c.l.b16 %v1072
    %v1148 = vunpack.c.h.b16 %v1072
    %v1149 = vunpack.c.l.b16 %v1073
    %v1150 = vunpack.c.l.b16 %v1074
    %v1151 = vunpack.c.h.b16 %v1074
    %v1152 = vunpack.c.l.b16 %v1075
    %v1153 = vunpack.c.l.b16 %v1076
    %v1154 = vunpack.c.h.b16 %v1076
    %v1155 = vunpack.c.l.b16 %v1077
    %v1156 = vunpack.c.l.b16 %v1078
    %v1157 = vunpack.c.h.b16 %v1078
    %v1158 = vunpack.c.l.b16 %v1079
    %v1159 = vunpack.c.l.b16 %v1080
    %v1160 = vunpack.c.h.b16 %v1080
    %v1161 = vunpack.c.l.b16 %v1081
    %v1162 = vpack.c.b16 %v1117, %v1114
    %v1163 = vpack.c.b16 %v1118, %v1115
    %v1164 = vpack.c.b16 %v1119, %v1116
    %v1165 = vpack.c.b16 %v1123, %v1120
    %v1166 = vpack.c.b16 %v1124, %v1121
    %v1167 = vpack.c.b16 %v1125, %v1122
    %v1168 = vpack.c.b16 %v1129, %v1126
    %v1169 = vpack.c.b16 %v1130, %v1127
    %v1170 = vpack.c.b16 %v1131, %v1128
    %v1171 = vpack.c.b16 %v1135, %v1132
    %v1172 = vpack.c.b16 %v1136, %v1133
    %v1173 = vpack.c.b16 %v1137, %v1134
    %v1174 = vpack.c.b16 %v1141, %v1138
    %v1175 = vpack.c.b16 %v1142, %v1139
    %v1176 = vpack.c.b16 %v1143, %v1140
    %v1177 = vpack.c.b16 %v1147, %v1144
    %v1178 = vpack.c.b16 %v1148, %v1145
    %v1179 = vpack.c.b16 %v1149, %v1146
    %v1180 = vpack.c.b16 %v1153, %v1150
    %v1181 = vpack.c.b16 %v1154, %v1151
    %v1182 = vpack.c.b16 %v1155, %v1152
    %v1183 = vpack.c.b16 %v1159, %v1156
    %v1184 = vpack.c.b16 %v1160, %v1157
    %v1185 = vpack.c.b16 %v1161, %v1158
    %1210 = vmatprep.subr.bf16.mxu0 %v1163
    %1211 = vmatpush1.bf16.msra.mxu0 %v1162
    %1212 = vmatprep.subr.bf16.mxu0 %v1166
    %1213 = vmatpush1.bf16.msra.mxu0 %v1165
    %1214 = vmatprep.subr.bf16.mxu0 %v1169
    %1215 = vmatpush1.bf16.msra.mxu0 %v1168
    %1216 = vmatprep.subr.bf16.mxu0 %v1172
    %1217 = vmatpush1.bf16.msra.mxu0 %v1171
    %1218 = vmatprep.subr.bf16.mxu0 %v1175
    %1219 = vmatpush1.bf16.msra.mxu0 %v1174
    %1220 = vmatprep.subr.bf16.mxu0 %v1178
    %1221 = vmatpush1.bf16.msra.mxu0 %v1177
    %1222 = vmatprep.subr.bf16.mxu0 %v1181
    %1223 = vmatpush1.bf16.msra.mxu0 %v1180
    %1224 = vmatprep.subr.bf16.mxu0 %v1184
    %1225 = vmatpush1.bf16.msra.mxu0 %v1183
    %1226 = vmatprep.subr.bf16.mxu0 0
    %1227 = vmatpush1.bf16.msra.mxu0 0
    %1228 = vmatprep.subr.bf16.mxu0 0
    %1229 = vmatpush1.bf16.msra.mxu0 0
    %1230 = vmatprep.subr.bf16.mxu0 0
    %1231 = vmatpush1.bf16.msra.mxu0 0
    %1232 = vmatprep.subr.bf16.mxu0 0
    %1233 = vmatpush1.bf16.msra.mxu0 0
    %1234 = vmatprep.subr.bf16.mxu0 0
    %1235 = vmatpush1.bf16.msra.mxu0 0
    %1236 = vmatprep.subr.bf16.mxu0 0
    %1237 = vmatpush1.bf16.msra.mxu0 0
    %1238 = vmatprep.subr.bf16.mxu0 0
    %1239 = vmatpush1.bf16.msra.mxu0 0
    %1240 = vmatprep.subr.bf16.mxu0 0
    %1241 = vmatpush1.bf16.msra.mxu0 0
    %1242 = vmatprep.mubr.bf16.mxu0 0
    %1243 = vmatmul.mubr.bf16.gmra.mrb[0].mxu0 %v1049
    %v1244 = vpop.f32.mrb[0].mxu0
    %v1245 = vadd.f32 0.0, %v1244
    %v1246 = vpop.f32.mrb[0].mxu0
    %v1247 = vadd.f32 0.0, %v1246
    %v1248 = vpop.f32.mrb[0].mxu0
    %v1249 = vpop.f32.mrb[0].mxu0
    %1250 = vdwg.mxu0
    %1251 = vmatprep.subr.bf16.mxu0 0
    %1252 = vmatpush1.bf16.msra.mxu0 %v1164
    %1253 = vmatprep.subr.bf16.mxu0 0
    %1254 = vmatpush1.bf16.msra.mxu0 %v1167
    %1255 = vmatprep.subr.bf16.mxu0 0
    %1256 = vmatpush1.bf16.msra.mxu0 %v1170
    %1257 = vmatprep.subr.bf16.mxu0 0
    %1258 = vmatpush1.bf16.msra.mxu0 %v1173
    %1259 = vmatprep.subr.bf16.mxu0 0
    %1260 = vmatpush1.bf16.msra.mxu0 %v1176
    %1261 = vmatprep.subr.bf16.mxu0 0
    %1262 = vmatpush1.bf16.msra.mxu0 %v1179
    %1263 = vmatprep.subr.bf16.mxu0 0
    %1264 = vmatpush1.bf16.msra.mxu0 %v1182
    %1265 = vmatprep.subr.bf16.mxu0 0
    %1266 = vmatpush1.bf16.msra.mxu0 %v1185
    %1267 = vmatprep.subr.bf16.mxu0 0
    %1268 = vmatpush1.bf16.msra.mxu0 0
    %1269 = vmatprep.subr.bf16.mxu0 0
    %1270 = vmatpush1.bf16.msra.mxu0 0
    %1271 = vmatprep.subr.bf16.mxu0 0
    %1272 = vmatpush1.bf16.msra.mxu0 0
    %1273 = vmatprep.subr.bf16.mxu0 0
    %1274 = vmatpush1.bf16.msra.mxu0 0
    %1275 = vmatprep.subr.bf16.mxu0 0
    %1276 = vmatpush1.bf16.msra.mxu0 0
    %1277 = vmatprep.subr.bf16.mxu0 0
    %1278 = vmatpush1.bf16.msra.mxu0 0
    %1279 = vmatprep.subr.bf16.mxu0 0
    %1280 = vmatpush1.bf16.msra.mxu0 0
    %1281 = vmatprep.subr.bf16.mxu0 0
    %1282 = vmatpush1.bf16.msra.mxu0 0
    %1283 = vmatprep.mubr.bf16.mxu0 0
    %1284 = vmatmul.mubr.bf16.gmra.mrb[0].mxu0 %v1049
    %v1285 = vpop.f32.mrb[0].mxu0
    %v1286 = vadd.f32 0.0, %v1285
    %v1287 = vpop.f32.mrb[0].mxu0
    %v1288 = vpop.f32.mrb[0].mxu0
    %v1289 = vpop.f32.mrb[0].mxu0
    %1290 = vdwg.mxu0
    %s1291 = scalar_lea.vmem [#allocation2], 8
    %v1292 = vld [vmem:[%s1291] sm:$0xff]
    %v1293 = vadd.f32 %v1002, %v1245
    %v1294 = vxor.u32 %v1293, 2147483648
    %v1295 = vmul.f32 %v1294, 1.442695
    %v1296 = vpow.pop %v1295
    %v1297 = vadd.f32 %v1296, 1.0
    %v1298 = vrcp.pop %v1297
    %v1299 = vmul.f32 1.0, %v1298
    %v1300 = vadd.f32 %v1004, %v1247
    %v1301 = vxor.u32 %v1300, 2147483648
    %v1302 = vmul.f32 %v1301, 1.442695
    %v1303 = vpow.pop %v1302
    %v1304 = vadd.f32 %v1303, 1.0
    %v1305 = vrcp.pop %v1304
    %v1306 = vmul.f32 1.0, %v1305
    %v1307 = vadd.f32 %v1286, %v531
    %v1308 = vmul.f32 %v1299, %v1307
    %v1309 = vadd.f32 %v1043, %v1308
    %v1310 = vtanh.pop %v1309
    %v1311 = vsub.f32 1.0, %v1306
    %v1312 = vmul.f32 %v1311, %v1310
    %v1313 = vmul.f32 %v1306, %v1292
    %v1314 = vadd.f32 %v1312, %v1313
    %1315 = vst [vmem:[%s1291] sm:$0xff] %v1314
    %v1316 = vpack.c.bf16 %v1314, %v1314
    %1317 = vst [vmem:[%s1048] sm:$0xf] %v1316
    %1318 = vst [vmem:[#allocation16] sm:$0xf] %v1316
    %s1319 = smul.u32 1, 3
    %s1320 = smul.addr %s1319, 8
    %s1321 = scalar_lea.vmem [#allocation4], %s1320
    %v1322 = vld [vmem:[%s1321] sm:$0xff]
    %v1323 = vld [vmem:[%s1321 + $0x8] sm:$0xff]
    %v1324 = vld [vmem:[%s1321 + $0x10] sm:$0xff]
    %v1325 = vld [vmem:[#allocation3] sm:$0xf]
    %v1326 = vld [vmem:[#allocation11] sm:$0xff]
    %v1327 = vld [vmem:[#allocation11 + $0x8] sm:$0xf]
    %v1328 = vld [vmem:[#allocation11 + $0xc] sm:$0xff]
    %v1329 = vld [vmem:[#allocation11 + $0x14] sm:$0xf]
    %v1330 = vld [vmem:[#allocation11 + $0x18] sm:$0xff]
    %v1331 = vld [vmem:[#allocation11 + $0x20] sm:$0xf]
    %v1332 = vld [vmem:[#allocation11 + $0x24] sm:$0xff]
    %v1333 = vld [vmem:[#allocation11 + $0x2c] sm:$0xf]
    %v1334 = vld [vmem:[#allocation11 + $0x30] sm:$0xff]
    %v1335 = vld [vmem:[#allocation11 + $0x38] sm:$0xf]
    %v1336 = vld [vmem:[#allocation11 + $0x3c] sm:$0xff]
    %v1337 = vld [vmem:[#allocation11 + $0x44] sm:$0xf]
    %v1338 = vld [vmem:[#allocation11 + $0x48] sm:$0xff]
    %v1339 = vld [vmem:[#allocation11 + $0x50] sm:$0xf]
    %v1340 = vld [vmem:[#allocation11 + $0x54] sm:$0xff]
    %v1341 = vld [vmem:[#allocation11 + $0x5c] sm:$0xf]
    %v1342 = vld [vmem:[#allocation11 + $0x60] sm:$0xff]
    %v1343 = vld [vmem:[#allocation11 + $0x68] sm:$0xf]
    %v1344 = vld [vmem:[#allocation11 + $0x6c] sm:$0xff]
    %v1345 = vld [vmem:[#allocation11 + $0x74] sm:$0xf]
    %v1346 = vld [vmem:[#allocation11 + $0x78] sm:$0xff]
    %v1347 = vld [vmem:[#allocation11 + $0x80] sm:$0xf]
    %v1348 = vld [vmem:[#allocation11 + $0x84] sm:$0xff]
    %v1349 = vld [vmem:[#allocation11 + $0x8c] sm:$0xf]
    %v1350 = vld [vmem:[#allocation11 + $0x90] sm:$0xff]
    %v1351 = vld [vmem:[#allocation11 + $0x98] sm:$0xf]
    %v1352 = vld [vmem:[#allocation11 + $0x9c] sm:$0xff]
    %v1353 = vld [vmem:[#allocation11 + $0xa4] sm:$0xf]
    %v1354 = vld [vmem:[#allocation11 + $0xa8] sm:$0xff]
    %v1355 = vld [vmem:[#allocation11 + $0xb0] sm:$0xf]
    %v1356 = vld [vmem:[#allocation11 + $0xb4] sm:$0xff]
    %v1357 = vld [vmem:[#allocation11 + $0xbc] sm:$0xf]
    %v1390 = vunpack.c.l.b16 %v1326
    %v1391 = vunpack.c.h.b16 %v1326
    %v1392 = vunpack.c.l.b16 %v1327
    %v1393 = vunpack.c.l.b16 %v1328
    %v1394 = vunpack.c.h.b16 %v1328
    %v1395 = vunpack.c.l.b16 %v1329
    %v1396 = vunpack.c.l.b16 %v1330
    %v1397 = vunpack.c.h.b16 %v1330
    %v1398 = vunpack.c.l.b16 %v1331
    %v1399 = vunpack.c.l.b16 %v1332
    %v1400 = vunpack.c.h.b16 %v1332
    %v1401 = vunpack.c.l.b16 %v1333
    %v1402 = vunpack.c.l.b16 %v1334
    %v1403 = vunpack.c.h.b16 %v1334
    %v1404 = vunpack.c.l.b16 %v1335
    %v1405 = vunpack.c.l.b16 %v1336
    %v1406 = vunpack.c.h.b16 %v1336
    %v1407 = vunpack.c.l.b16 %v1337
    %v1408 = vunpack.c.l.b16 %v1338
    %v1409 = vunpack.c.h.b16 %v1338
    %v1410 = vunpack.c.l.b16 %v1339
    %v1411 = vunpack.c.l.b16 %v1340
    %v1412 = vunpack.c.h.b16 %v1340
    %v1413 = vunpack.c.l.b16 %v1341
    %v1414 = vunpack.c.l.b16 %v1342
    %v1415 = vunpack.c.h.b16 %v1342
    %v1416 = vunpack.c.l.b16 %v1343
    %v1417 = vunpack.c.l.b16 %v1344
    %v1418 = vunpack.c.h.b16 %v1344
    %v1419 = vunpack.c.l.b16 %v1345
    %v1420 = vunpack.c.l.b16 %v1346
    %v1421 = vunpack.c.h.b16 %v1346
    %v1422 = vunpack.c.l.b16 %v1347
    %v1423 = vunpack.c.l.b16 %v1348
    %v1424 = vunpack.c.h.b16 %v1348
    %v1425 = vunpack.c.l.b16 %v1349
    %v1426 = vunpack.c.l.b16 %v1350
    %v1427 = vunpack.c.h.b16 %v1350
    %v1428 = vunpack.c.l.b16 %v1351
    %v1429 = vunpack.c.l.b16 %v1352
    %v1430 = vunpack.c.h.b16 %v1352
    %v1431 = vunpack.c.l.b16 %v1353
    %v1432 = vunpack.c.l.b16 %v1354
    %v1433 = vunpack.c.h.b16 %v1354
    %v1434 = vunpack.c.l.b16 %v1355
    %v1435 = vunpack.c.l.b16 %v1356
    %v1436 = vunpack.c.h.b16 %v1356
    %v1437 = vunpack.c.l.b16 %v1357
    %v1438 = vpack.c.b16 %v1393, %v1390
    %v1439 = vpack.c.b16 %v1394, %v1391
    %v1440 = vpack.c.b16 %v1395, %v1392
    %v1441 = vpack.c.b16 %v1399, %v1396
    %v1442 = vpack.c.b16 %v1400, %v1397
    %v1443 = vpack.c.b16 %v1401, %v1398
    %v1444 = vpack.c.b16 %v1405, %v1402
    %v1445 = vpack.c.b16 %v1406, %v1403
    %v1446 = vpack.c.b16 %v1407, %v1404
    %v1447 = vpack.c.b16 %v1411, %v1408
    %v1448 = vpack.c.b16 %v1412, %v1409
    %v1449 = vpack.c.b16 %v1413, %v1410
    %v1450 = vpack.c.b16 %v1417, %v1414
    %v1451 = vpack.c.b16 %v1418, %v1415
    %v1452 = vpack.c.b16 %v1419, %v1416
    %v1453 = vpack.c.b16 %v1423, %v1420
    %v1454 = vpack.c.b16 %v1424, %v1421
    %v1455 = vpack.c.b16 %v1425, %v1422
    %v1456 = vpack.c.b16 %v1429, %v1426
    %v1457 = vpack.c.b16 %v1430, %v1427
    %v1458 = vpack.c.b16 %v1431, %v1428
    %v1459 = vpack.c.b16 %v1435, %v1432
    %v1460 = vpack.c.b16 %v1436, %v1433
    %v1461 = vpack.c.b16 %v1437, %v1434
    %1486 = vmatprep.subr.bf16.mxu0 %v1439
    %1487 = vmatpush1.bf16.msra.mxu0 %v1438
    %1488 = vmatprep.subr.bf16.mxu0 %v1442
    %1489 = vmatpush1.bf16.msra.mxu0 %v1441
    %1490 = vmatprep.subr.bf16.mxu0 %v1445
    %1491 = vmatpush1.bf16.msra.mxu0 %v1444
    %1492 = vmatprep.subr.bf16.mxu0 %v1448
    %1493 = vmatpush1.bf16.msra.mxu0 %v1447
    %1494 = vmatprep.subr.bf16.mxu0 %v1451
    %1495 = vmatpush1.bf16.msra.mxu0 %v1450
    %1496 = vmatprep.subr.bf16.mxu0 %v1454
    %1497 = vmatpush1.bf16.msra.mxu0 %v1453
    %1498 = vmatprep.subr.bf16.mxu0 %v1457
    %1499 = vmatpush1.bf16.msra.mxu0 %v1456
    %1500 = vmatprep.subr.bf16.mxu0 %v1460
    %1501 = vmatpush1.bf16.msra.mxu0 %v1459
    %1502 = vmatprep.subr.bf16.mxu0 0
    %1503 = vmatpush1.bf16.msra.mxu0 0
    %1504 = vmatprep.subr.bf16.mxu0 0
    %1505 = vmatpush1.bf16.msra.mxu0 0
    %1506 = vmatprep.subr.bf16.mxu0 0
    %1507 = vmatpush1.bf16.msra.mxu0 0
    %1508 = vmatprep.subr.bf16.mxu0 0
    %1509 = vmatpush1.bf16.msra.mxu0 0
    %1510 = vmatprep.subr.bf16.mxu0 0
    %1511 = vmatpush1.bf16.msra.mxu0 0
    %1512 = vmatprep.subr.bf16.mxu0 0
    %1513 = vmatpush1.bf16.msra.mxu0 0
    %1514 = vmatprep.subr.bf16.mxu0 0
    %1515 = vmatpush1.bf16.msra.mxu0 0
    %1516 = vmatprep.subr.bf16.mxu0 0
    %1517 = vmatpush1.bf16.msra.mxu0 0
    %1518 = vmatprep.mubr.bf16.mxu0 0
    %1519 = vmatmul.mubr.bf16.gmra.mrb[0].mxu0 %v1325
    %v1520 = vpop.f32.mrb[0].mxu0
    %v1521 = vadd.f32 0.0, %v1520
    %v1522 = vpop.f32.mrb[0].mxu0
    %v1523 = vadd.f32 0.0, %v1522
    %v1524 = vpop.f32.mrb[0].mxu0
    %v1525 = vpop.f32.mrb[0].mxu0
    %1526 = vdwg.mxu0
    %1527 = vmatprep.subr.bf16.mxu0 0
    %1528 = vmatpush1.bf16.msra.mxu0 %v1440
    %1529 = vmatprep.subr.bf16.mxu0 0
    %1530 = vmatpush1.bf16.msra.mxu0 %v1443
    %1531 = vmatprep.subr.bf16.mxu0 0
    %1532 = vmatpush1.bf16.msra.mxu0 %v1446
    %1533 = vmatprep.subr.bf16.mxu0 0
    %1534 = vmatpush1.bf16.msra.mxu0 %v1449
    %1535 = vmatprep.subr.bf16.mxu0 0
    %1536 = vmatpush1.bf16.msra.mxu0 %v1452
    %1537 = vmatprep.subr.bf16.mxu0 0
    %1538 = vmatpush1.bf16.msra.mxu0 %v1455
    %1539 = vmatprep.subr.bf16.mxu0 0
    %1540 = vmatpush1.bf16.msra.mxu0 %v1458
    %1541 = vmatprep.subr.bf16.mxu0 0
    %1542 = vmatpush1.bf16.msra.mxu0 %v1461
    %1543 = vmatprep.subr.bf16.mxu0 0
    %1544 = vmatpush1.bf16.msra.mxu0 0
    %1545 = vmatprep.subr.bf16.mxu0 0
    %1546 = vmatpush1.bf16.msra.mxu0 0
    %1547 = vmatprep.subr.bf16.mxu0 0
    %1548 = vmatpush1.bf16.msra.mxu0 0
    %1549 = vmatprep.subr.bf16.mxu0 0
    %1550 = vmatpush1.bf16.msra.mxu0 0
    %1551 = vmatprep.subr.bf16.mxu0 0
    %1552 = vmatpush1.bf16.msra.mxu0 0
    %1553 = vmatprep.subr.bf16.mxu0 0
    %1554 = vmatpush1.bf16.msra.mxu0 0
    %1555 = vmatprep.subr.bf16.mxu0 0
    %1556 = vmatpush1.bf16.msra.mxu0 0
    %1557 = vmatprep.subr.bf16.mxu0 0
    %1558 = vmatpush1.bf16.msra.mxu0 0
    %1559 = vmatprep.mubr.bf16.mxu0 0
    %1560 = vmatmul.mubr.bf16.gmra.mrb[0].mxu0 %v1325
    %v1561 = vpop.f32.mrb[0].mxu0
    %v1562 = vadd.f32 0.0, %v1561
    %v1563 = vpop.f32.mrb[0].mxu0
    %v1564 = vpop.f32.mrb[0].mxu0
    %v1565 = vpop.f32.mrb[0].mxu0
    %1566 = vdwg.mxu0
    %v1567 = vld [vmem:[#allocation2] sm:$0xff]
    %v1568 = vadd.f32 %v1322, %v1521
    %v1569 = vxor.u32 %v1568, 2147483648
    %v1570 = vmul.f32 %v1569, 1.442695
    %v1571 = vpow.pop %v1570
    %v1572 = vadd.f32 %v1571, 1.0
    %v1573 = vrcp.pop %v1572
    %v1574 = vmul.f32 1.0, %v1573
    %v1575 = vadd.f32 %v1323, %v1523
    %v1576 = vxor.u32 %v1575, 2147483648
    %v1577 = vmul.f32 %v1576, 1.442695
    %v1578 = vpow.pop %v1577
    %v1579 = vadd.f32 %v1578, 1.0
    %v1580 = vrcp.pop %v1579
    %v1581 = vmul.f32 1.0, %v1580
    %v1582 = vadd.f32 %v1562, %v507
    %v1583 = vmul.f32 %v1574, %v1582
    %v1584 = vadd.f32 %v1324, %v1583
    %v1585 = vtanh.pop %v1584
    %v1586 = vsub.f32 1.0, %v1581
    %v1587 = vmul.f32 %v1586, %v1585
    %v1588 = vmul.f32 %v1581, %v1567
    %v1589 = vadd.f32 %v1587, %v1588
    %1590 = vst [vmem:[#allocation2] sm:$0xff] %v1589
    %v1591 = vpack.c.bf16 %v1589, %v1589
    %1592 = vst [vmem:[#allocation3] sm:$0xf] %v1591
    %v1593 = vld [vmem:[#allocation13] sm:$0xff]
    %v1594 = vld [vmem:[#allocation13 + $0x8] sm:$0xf]
    %v1595 = vld [vmem:[#allocation13 + $0xc] sm:$0xff]
    %v1596 = vld [vmem:[#allocation13 + $0x14] sm:$0xf]
    %v1597 = vld [vmem:[#allocation13 + $0x18] sm:$0xff]
    %v1598 = vld [vmem:[#allocation13 + $0x20] sm:$0xf]
    %v1599 = vld [vmem:[#allocation13 + $0x24] sm:$0xff]
    %v1600 = vld [vmem:[#allocation13 + $0x2c] sm:$0xf]
    %v1601 = vld [vmem:[#allocation13 + $0x30] sm:$0xff]
    %v1602 = vld [vmem:[#allocation13 + $0x38] sm:$0xf]
    %v1603 = vld [vmem:[#allocation13 + $0x3c] sm:$0xff]
    %v1604 = vld [vmem:[#allocation13 + $0x44] sm:$0xf]
    %v1605 = vld [vmem:[#allocation13 + $0x48] sm:$0xff]
    %v1606 = vld [vmem:[#allocation13 + $0x50] sm:$0xf]
    %v1607 = vld [vmem:[#allocation13 + $0x54] sm:$0xff]
    %v1608 = vld [vmem:[#allocation13 + $0x5c] sm:$0xf]
    %v1609 = vld [vmem:[#allocation13 + $0x60] sm:$0xff]
    %v1610 = vld [vmem:[#allocation13 + $0x68] sm:$0xf]
    %v1611 = vld [vmem:[#allocation13 + $0x6c] sm:$0xff]
    %v1612 = vld [vmem:[#allocation13 + $0x74] sm:$0xf]
    %v1613 = vld [vmem:[#allocation13 + $0x78] sm:$0xff]
    %v1614 = vld [vmem:[#allocation13 + $0x80] sm:$0xf]
    %v1615 = vld [vmem:[#allocation13 + $0x84] sm:$0xff]
    %v1616 = vld [vmem:[#allocation13 + $0x8c] sm:$0xf]
    %v1617 = vld [vmem:[#allocation13 + $0x90] sm:$0xff]
    %v1618 = vld [vmem:[#allocation13 + $0x98] sm:$0xf]
    %v1619 = vld [vmem:[#allocation13 + $0x9c] sm:$0xff]
    %v1620 = vld [vmem:[#allocation13 + $0xa4] sm:$0xf]
    %v1621 = vld [vmem:[#allocation13 + $0xa8] sm:$0xff]
    %v1622 = vld [vmem:[#allocation13 + $0xb0] sm:$0xf]
    %v1623 = vld [vmem:[#allocation13 + $0xb4] sm:$0xff]
    %v1624 = vld [vmem:[#allocation13 + $0xbc] sm:$0xf]
    %v1657 = vunpack.c.l.b16 %v1593
    %v1658 = vunpack.c.h.b16 %v1593
    %v1659 = vunpack.c.l.b16 %v1594
    %v1660 = vunpack.c.l.b16 %v1595
    %v1661 = vunpack.c.h.b16 %v1595
    %v1662 = vunpack.c.l.b16 %v1596
    %v1663 = vunpack.c.l.b16 %v1597
    %v1664 = vunpack.c.h.b16 %v1597
    %v1665 = vunpack.c.l.b16 %v1598
    %v1666 = vunpack.c.l.b16 %v1599
    %v1667 = vunpack.c.h.b16 %v1599
    %v1668 = vunpack.c.l.b16 %v1600
    %v1669 = vunpack.c.l.b16 %v1601
    %v1670 = vunpack.c.h.b16 %v1601
    %v1671 = vunpack.c.l.b16 %v1602
    %v1672 = vunpack.c.l.b16 %v1603
    %v1673 = vunpack.c.h.b16 %v1603
    %v1674 = vunpack.c.l.b16 %v1604
    %v1675 = vunpack.c.l.b16 %v1605
    %v1676 = vunpack.c.h.b16 %v1605
    %v1677 = vunpack.c.l.b16 %v1606
    %v1678 = vunpack.c.l.b16 %v1607
    %v1679 = vunpack.c.h.b16 %v1607
    %v1680 = vunpack.c.l.b16 %v1608
    %v1681 = vunpack.c.l.b16 %v1609
    %v1682 = vunpack.c.h.b16 %v1609
    %v1683 = vunpack.c.l.b16 %v1610
    %v1684 = vunpack.c.l.b16 %v1611
    %v1685 = vunpack.c.h.b16 %v1611
    %v1686 = vunpack.c.l.b16 %v1612
    %v1687 = vunpack.c.l.b16 %v1613
    %v1688 = vunpack.c.h.b16 %v1613
    %v1689 = vunpack.c.l.b16 %v1614
    %v1690 = vunpack.c.l.b16 %v1615
    %v1691 = vunpack.c.h.b16 %v1615
    %v1692 = vunpack.c.l.b16 %v1616
    %v1693 = vunpack.c.l.b16 %v1617
    %v1694 = vunpack.c.h.b16 %v1617
    %v1695 = vunpack.c.l.b16 %v1618
    %v1696 = vunpack.c.l.b16 %v1619
    %v1697 = vunpack.c.h.b16 %v1619
    %v1698 = vunpack.c.l.b16 %v1620
    %v1699 = vunpack.c.l.b16 %v1621
    %v1700 = vunpack.c.h.b16 %v1621
    %v1701 = vunpack.c.l.b16 %v1622
    %v1702 = vunpack.c.l.b16 %v1623
    %v1703 = vunpack.c.h.b16 %v1623
    %v1704 = vunpack.c.l.b16 %v1624
    %v1705 = vpack.c.b16 %v1660, %v1657
    %v1706 = vpack.c.b16 %v1661, %v1658
    %v1707 = vpack.c.b16 %v1662, %v1659
    %v1708 = vpack.c.b16 %v1666, %v1663
    %v1709 = vpack.c.b16 %v1667, %v1664
    %v1710 = vpack.c.b16 %v1668, %v1665
    %v1711 = vpack.c.b16 %v1672, %v1669
    %v1712 = vpack.c.b16 %v1673, %v1670
    %v1713 = vpack.c.b16 %v1674, %v1671
    %v1714 = vpack.c.b16 %v1678, %v1675
    %v1715 = vpack.c.b16 %v1679, %v1676
    %v1716 = vpack.c.b16 %v1680, %v1677
    %v1717 = vpack.c.b16 %v1684, %v1681
    %v1718 = vpack.c.b16 %v1685, %v1682
    %v1719 = vpack.c.b16 %v1686, %v1683
    %v1720 = vpack.c.b16 %v1690, %v1687
    %v1721 = vpack.c.b16 %v1691, %v1688
    %v1722 = vpack.c.b16 %v1692, %v1689
    %v1723 = vpack.c.b16 %v1696, %v1693
    %v1724 = vpack.c.b16 %v1697, %v1694
    %v1725 = vpack.c.b16 %v1698, %v1695
    %v1726 = vpack.c.b16 %v1702, %v1699
    %v1727 = vpack.c.b16 %v1703, %v1700
    %v1728 = vpack.c.b16 %v1704, %v1701
    %1753 = vmatprep.subr.bf16.mxu0 %v1706
    %1754 = vmatpush1.bf16.msra.mxu0 %v1705
    %1755 = vmatprep.subr.bf16.mxu0 %v1709
    %1756 = vmatpush1.bf16.msra.mxu0 %v1708
    %1757 = vmatprep.subr.bf16.mxu0 %v1712
    %1758 = vmatpush1.bf16.msra.mxu0 %v1711
    %1759 = vmatprep.subr.bf16.mxu0 %v1715
    %1760 = vmatpush1.bf16.msra.mxu0 %v1714
    %1761 = vmatprep.subr.bf16.mxu0 %v1718
    %1762 = vmatpush1.bf16.msra.mxu0 %v1717
    %1763 = vmatprep.subr.bf16.mxu0 %v1721
    %1764 = vmatpush1.bf16.msra.mxu0 %v1720
    %1765 = vmatprep.subr.bf16.mxu0 %v1724
    %1766 = vmatpush1.bf16.msra.mxu0 %v1723
    %1767 = vmatprep.subr.bf16.mxu0 %v1727
    %1768 = vmatpush1.bf16.msra.mxu0 %v1726
    %1769 = vmatprep.subr.bf16.mxu0 0
    %1770 = vmatpush1.bf16.msra.mxu0 0
    %1771 = vmatprep.subr.bf16.mxu0 0
    %1772 = vmatpush1.bf16.msra.mxu0 0
    %1773 = vmatprep.subr.bf16.mxu0 0
    %1774 = vmatpush1.bf16.msra.mxu0 0
    %1775 = vmatprep.subr.bf16.mxu0 0
    %1776 = vmatpush1.bf16.msra.mxu0 0
    %1777 = vmatprep.subr.bf16.mxu0 0
    %1778 = vmatpush1.bf16.msra.mxu0 0
    %1779 = vmatprep.subr.bf16.mxu0 0
    %1780 = vmatpush1.bf16.msra.mxu0 0
    %1781 = vmatprep.subr.bf16.mxu0 0
    %1782 = vmatpush1.bf16.msra.mxu0 0
    %1783 = vmatprep.subr.bf16.mxu0 0
    %1784 = vmatpush1.bf16.msra.mxu0 0
    %1785 = vmatprep.mubr.bf16.mxu0 0
    %1786 = vmatmul.mubr.bf16.gmra.mrb[0].mxu0 %v1591
    %v1787 = vpop.f32.mrb[0].mxu0
    %v1788 = vadd.f32 %v514, %v1787
    %v1789 = vpop.f32.mrb[0].mxu0
    %v1790 = vadd.f32 %v518, %v1789
    %v1791 = vpop.f32.mrb[0].mxu0
    %v1792 = vpop.f32.mrb[0].mxu0
    %1793 = vdwg.mxu0
    %1794 = vmatprep.subr.bf16.mxu0 0
    %1795 = vmatpush1.bf16.msra.mxu0 %v1707
    %1796 = vmatprep.subr.bf16.mxu0 0
    %1797 = vmatpush1.bf16.msra.mxu0 %v1710
    %1798 = vmatprep.subr.bf16.mxu0 0
    %1799 = vmatpush1.bf16.msra.mxu0 %v1713
    %1800 = vmatprep.subr.bf16.mxu0 0
    %1801 = vmatpush1.bf16.msra.mxu0 %v1716
    %1802 = vmatprep.subr.bf16.mxu0 0
    %1803 = vmatpush1.bf16.msra.mxu0 %v1719
    %1804 = vmatprep.subr.bf16.mxu0 0
    %1805 = vmatpush1.bf16.msra.mxu0 %v1722
    %1806 = vmatprep.subr.bf16.mxu0 0
    %1807 = vmatpush1.bf16.msra.mxu0 %v1725
    %1808 = vmatprep.subr.bf16.mxu0 0
    %1809 = vmatpush1.bf16.msra.mxu0 %v1728
    %1810 = vmatprep.subr.bf16.mxu0 0
    %1811 = vmatpush1.bf16.msra.mxu0 0
    %1812 = vmatprep.subr.bf16.mxu0 0
    %1813 = vmatpush1.bf16.msra.mxu0 0
    %1814 = vmatprep.subr.bf16.mxu0 0
    %1815 = vmatpush1.bf16.msra.mxu0 0
    %1816 = vmatprep.subr.bf16.mxu0 0
    %1817 = vmatpush1.bf16.msra.mxu0 0
    %1818 = vmatprep.subr.bf16.mxu0 0
    %1819 = vmatpush1.bf16.msra.mxu0 0
    %1820 = vmatprep.subr.bf16.mxu0 0
    %1821 = vmatpush1.bf16.msra.mxu0 0
    %1822 = vmatprep.subr.bf16.mxu0 0
    %1823 = vmatpush1.bf16.msra.mxu0 0
    %1824 = vmatprep.subr.bf16.mxu0 0
    %1825 = vmatpush1.bf16.msra.mxu0 0
    %1826 = vmatprep.mubr.bf16.mxu0 0
    %1827 = vmatmul.mubr.bf16.gmra.mrb[0].mxu0 %v1591
    %v1828 = vpop.f32.mrb[0].mxu0
    %v1829 = vadd.f32 %v522, %v1828
    %v1830 = vpop.f32.mrb[0].mxu0
    %v1831 = vpop.f32.mrb[0].mxu0
    %v1832 = vpop.f32.mrb[0].mxu0
    %1833 = vdwg.mxu0
    %v1834 = vld [vmem:[%s1048] sm:$0xf]
    %v1835 = vld [vmem:[#allocation14] sm:$0xff]
    %v1836 = vld [vmem:[#allocation14 + $0x8] sm:$0xf]
    %v1837 = vld [vmem:[#allocation14 + $0xc] sm:$0xff]
    %v1838 = vld [vmem:[#allocation14 + $0x14] sm:$0xf]
    %v1839 = vld [vmem:[#allocation14 + $0x18] sm:$0xff]
    %v1840 = vld [vmem:[#allocation14 + $0x20] sm:$0xf]
    %v1841 = vld [vmem:[#allocation14 + $0x24] sm:$0xff]
    %v1842 = vld [vmem:[#allocation14 + $0x2c] sm:$0xf]
    %v1843 = vld [vmem:[#allocation14 + $0x30] sm:$0xff]
    %v1844 = vld [vmem:[#allocation14 + $0x38] sm:$0xf]
    %v1845 = vld [vmem:[#allocation14 + $0x3c] sm:$0xff]
    %v1846 = vld [vmem:[#allocation14 + $0x44] sm:$0xf]
    %v1847 = vld [vmem:[#allocation14 + $0x48] sm:$0xff]
    %v1848 = vld [vmem:[#allocation14 + $0x50] sm:$0xf]
    %v1849 = vld [vmem:[#allocation14 + $0x54] sm:$0xff]
    %v1850 = vld [vmem:[#allocation14 + $0x5c] sm:$0xf]
    %v1851 = vld [vmem:[#allocation14 + $0x60] sm:$0xff]
    %v1852 = vld [vmem:[#allocation14 + $0x68] sm:$0xf]
    %v1853 = vld [vmem:[#allocation14 + $0x6c] sm:$0xff]
    %v1854 = vld [vmem:[#allocation14 + $0x74] sm:$0xf]
    %v1855 = vld [vmem:[#allocation14 + $0x78] sm:$0xff]
    %v1856 = vld [vmem:[#allocation14 + $0x80] sm:$0xf]
    %v1857 = vld [vmem:[#allocation14 + $0x84] sm:$0xff]
    %v1858 = vld [vmem:[#allocation14 + $0x8c] sm:$0xf]
    %v1859 = vld [vmem:[#allocation14 + $0x90] sm:$0xff]
    %v1860 = vld [vmem:[#allocation14 + $0x98] sm:$0xf]
    %v1861 = vld [vmem:[#allocation14 + $0x9c] sm:$0xff]
    %v1862 = vld [vmem:[#allocation14 + $0xa4] sm:$0xf]
    %v1863 = vld [vmem:[#allocation14 + $0xa8] sm:$0xff]
    %v1864 = vld [vmem:[#allocation14 + $0xb0] sm:$0xf]
    %v1865 = vld [vmem:[#allocation14 + $0xb4] sm:$0xff]
    %v1866 = vld [vmem:[#allocation14 + $0xbc] sm:$0xf]
    %v1899 = vunpack.c.l.b16 %v1835
    %v1900 = vunpack.c.h.b16 %v1835
    %v1901 = vunpack.c.l.b16 %v1836
    %v1902 = vunpack.c.l.b16 %v1837
    %v1903 = vunpack.c.h.b16 %v1837
    %v1904 = vunpack.c.l.b16 %v1838
    %v1905 = vunpack.c.l.b16 %v1839
    %v1906 = vunpack.c.h.b16 %v1839
    %v1907 = vunpack.c.l.b16 %v1840
    %v1908 = vunpack.c.l.b16 %v1841
    %v1909 = vunpack.c.h.b16 %v1841
    %v1910 = vunpack.c.l.b16 %v1842
    %v1911 = vunpack.c.l.b16 %v1843
    %v1912 = vunpack.c.h.b16 %v1843
    %v1913 = vunpack.c.l.b16 %v1844
    %v1914 = vunpack.c.l.b16 %v1845
    %v1915 = vunpack.c.h.b16 %v1845
    %v1916 = vunpack.c.l.b16 %v1846
    %v1917 = vunpack.c.l.b16 %v1847
    %v1918 = vunpack.c.h.b16 %v1847
    %v1919 = vunpack.c.l.b16 %v1848
    %v1920 = vunpack.c.l.b16 %v1849
    %v1921 = vunpack.c.h.b16 %v1849
    %v1922 = vunpack.c.l.b16 %v1850
    %v1923 = vunpack.c.l.b16 %v1851
    %v1924 = vunpack.c.h.b16 %v1851
    %v1925 = vunpack.c.l.b16 %v1852
    %v1926 = vunpack.c.l.b16 %v1853
    %v1927 = vunpack.c.h.b16 %v1853
    %v1928 = vunpack.c.l.b16 %v1854
    %v1929 = vunpack.c.l.b16 %v1855
    %v1930 = vunpack.c.h.b16 %v1855
    %v1931 = vunpack.c.l.b16 %v1856
    %v1932 = vunpack.c.l.b16 %v1857
    %v1933 = vunpack.c.h.b16 %v1857
    %v1934 = vunpack.c.l.b16 %v1858
    %v1935 = vunpack.c.l.b16 %v1859
    %v1936 = vunpack.c.h.b16 %v1859
    %v1937 = vunpack.c.l.b16 %v1860
    %v1938 = vunpack.c.l.b16 %v1861
    %v1939 = vunpack.c.h.b16 %v1861
    %v1940 = vunpack.c.l.b16 %v1862
    %v1941 = vunpack.c.l.b16 %v1863
    %v1942 = vunpack.c.h.b16 %v1863
    %v1943 = vunpack.c.l.b16 %v1864
    %v1944 = vunpack.c.l.b16 %v1865
    %v1945 = vunpack.c.h.b16 %v1865
    %v1946 = vunpack.c.l.b16 %v1866
    %v1947 = vpack.c.b16 %v1902, %v1899
    %v1948 = vpack.c.b16 %v1903, %v1900
    %v1949 = vpack.c.b16 %v1904, %v1901
    %v1950 = vpack.c.b16 %v1908, %v1905
    %v1951 = vpack.c.b16 %v1909, %v1906
    %v1952 = vpack.c.b16 %v1910, %v1907
    %v1953 = vpack.c.b16 %v1914, %v1911
    %v1954 = vpack.c.b16 %v1915, %v1912
    %v1955 = vpack.c.b16 %v1916, %v1913
    %v1956 = vpack.c.b16 %v1920, %v1917
    %v1957 = vpack.c.b16 %v1921, %v1918
    %v1958 = vpack.c.b16 %v1922, %v1919
    %v1959 = vpack.c.b16 %v1926, %v1923
    %v1960 = vpack.c.b16 %v1927, %v1924
    %v1961 = vpack.c.b16 %v1928, %v1925
    %v1962 = vpack.c.b16 %v1932, %v1929
    %v1963 = vpack.c.b16 %v1933, %v1930
    %v1964 = vpack.c.b16 %v1934, %v1931
    %v1965 = vpack.c.b16 %v1938, %v1935
    %v1966 = vpack.c.b16 %v1939, %v1936
    %v1967 = vpack.c.b16 %v1940, %v1937
    %v1968 = vpack.c.b16 %v1944, %v1941
    %v1969 = vpack.c.b16 %v1945, %v1942
    %v1970 = vpack.c.b16 %v1946, %v1943
    %1995 = vmatprep.subr.bf16.mxu0 %v1948
    %1996 = vmatpush1.bf16.msra.mxu0 %v1947
    %1997 = vmatprep.subr.bf16.mxu0 %v1951
    %1998 = vmatpush1.bf16.msra.mxu0 %v1950
    %1999 = vmatprep.subr.bf16.mxu0 %v1954
    %2000 = vmatpush1.bf16.msra.mxu0 %v1953
    %2001 = vmatprep.subr.bf16.mxu0 %v1957
    %2002 = vmatpush1.bf16.msra.mxu0 %v1956
    %2003 = vmatprep.subr.bf16.mxu0 %v1960
    %2004 = vmatpush1.bf16.msra.mxu0 %v1959
    %2005 = vmatprep.subr.bf16.mxu0 %v1963
    %2006 = vmatpush1.bf16.msra.mxu0 %v1962
    %2007 = vmatprep.subr.bf16.mxu0 %v1966
    %2008 = vmatpush1.bf16.msra.mxu0 %v1965
    %2009 = vmatprep.subr.bf16.mxu0 %v1969
    %2010 = vmatpush1.bf16.msra.mxu0 %v1968
    %2011 = vmatprep.subr.bf16.mxu0 0
    %2012 = vmatpush1.bf16.msra.mxu0 0
    %2013 = vmatprep.subr.bf16.mxu0 0
    %2014 = vmatpush1.bf16.msra.mxu0 0
    %2015 = vmatprep.subr.bf16.mxu0 0
    %2016 = vmatpush1.bf16.msra.mxu0 0
    %2017 = vmatprep.subr.bf16.mxu0 0
    %2018 = vmatpush1.bf16.msra.mxu0 0
    %2019 = vmatprep.subr.bf16.mxu0 0
    %2020 = vmatpush1.bf16.msra.mxu0 0
    %2021 = vmatprep.subr.bf16.mxu0 0
    %2022 = vmatpush1.bf16.msra.mxu0 0
    %2023 = vmatprep.subr.bf16.mxu0 0
    %2024 = vmatpush1.bf16.msra.mxu0 0
    %2025 = vmatprep.subr.bf16.mxu0 0
    %2026 = vmatpush1.bf16.msra.mxu0 0
    %2027 = vmatprep.mubr.bf16.mxu0 0
    %2028 = vmatmul.mubr.bf16.gmra.mrb[0].mxu0 %v1834
    %v2029 = vpop.f32.mrb[0].mxu0
    %v2030 = vadd.f32 0.0, %v2029
    %v2031 = vpop.f32.mrb[0].mxu0
    %v2032 = vadd.f32 0.0, %v2031
    %v2033 = vpop.f32.mrb[0].mxu0
    %v2034 = vpop.f32.mrb[0].mxu0
    %2035 = vdwg.mxu0
    %2036 = vmatprep.subr.bf16.mxu0 0
    %2037 = vmatpush1.bf16.msra.mxu0 %v1949
    %2038 = vmatprep.subr.bf16.mxu0 0
    %2039 = vmatpush1.bf16.msra.mxu0 %v1952
    %2040 = vmatprep.subr.bf16.mxu0 0
    %2041 = vmatpush1.bf16.msra.mxu0 %v1955
    %2042 = vmatprep.subr.bf16.mxu0 0
    %2043 = vmatpush1.bf16.msra.mxu0 %v1958
    %2044 = vmatprep.subr.bf16.mxu0 0
    %2045 = vmatpush1.bf16.msra.mxu0 %v1961
    %2046 = vmatprep.subr.bf16.mxu0 0
    %2047 = vmatpush1.bf16.msra.mxu0 %v1964
    %2048 = vmatprep.subr.bf16.mxu0 0
    %2049 = vmatpush1.bf16.msra.mxu0 %v1967
    %2050 = vmatprep.subr.bf16.mxu0 0
    %2051 = vmatpush1.bf16.msra.mxu0 %v1970
    %2052 = vmatprep.subr.bf16.mxu0 0
    %2053 = vmatpush1.bf16.msra.mxu0 0
    %2054 = vmatprep.subr.bf16.mxu0 0
    %2055 = vmatpush1.bf16.msra.mxu0 0
    %2056 = vmatprep.subr.bf16.mxu0 0
    %2057 = vmatpush1.bf16.msra.mxu0 0
    %2058 = vmatprep.subr.bf16.mxu0 0
    %2059 = vmatpush1.bf16.msra.mxu0 0
    %2060 = vmatprep.subr.bf16.mxu0 0
    %2061 = vmatpush1.bf16.msra.mxu0 0
    %2062 = vmatprep.subr.bf16.mxu0 0
    %2063 = vmatpush1.bf16.msra.mxu0 0
    %2064 = vmatprep.subr.bf16.mxu0 0
    %2065 = vmatpush1.bf16.msra.mxu0 0
    %2066 = vmatprep.subr.bf16.mxu0 0
    %2067 = vmatpush1.bf16.msra.mxu0 0
    %2068 = vmatprep.mubr.bf16.mxu0 0
    %2069 = vmatmul.mubr.bf16.gmra.mrb[0].mxu0 %v1834
    %v2070 = vpop.f32.mrb[0].mxu0
    %v2071 = vadd.f32 0.0, %v2070
    %v2072 = vpop.f32.mrb[0].mxu0
    %v2073 = vpop.f32.mrb[0].mxu0
    %v2074 = vpop.f32.mrb[0].mxu0
    %2075 = vdwg.mxu0
    %v2076 = vld [vmem:[%s1291] sm:$0xff]
    %v2077 = vadd.f32 %v1788, %v2030
    %v2078 = vxor.u32 %v2077, 2147483648
    %v2079 = vmul.f32 %v2078, 1.442695
    %v2080 = vpow.pop %v2079
    %v2081 = vadd.f32 %v2080, 1.0
    %v2082 = vrcp.pop %v2081
    %v2083 = vmul.f32 1.0, %v2082
    %v2084 = vadd.f32 %v1790, %v2032
    %v2085 = vxor.u32 %v2084, 2147483648
    %v2086 = vmul.f32 %v2085, 1.442695
    %v2087 = vpow.pop %v2086
    %v2088 = vadd.f32 %v2087, 1.0
    %v2089 = vrcp.pop %v2088
    %v2090 = vmul.f32 1.0, %v2089
    %v2091 = vadd.f32 %v2071, %v531
    %v2092 = vmul.f32 %v2083, %v2091
    %v2093 = vadd.f32 %v1829, %v2092
    %v2094 = vtanh.pop %v2093
    %v2095 = vsub.f32 1.0, %v2090
    %v2096 = vmul.f32 %v2095, %v2094
    %v2097 = vmul.f32 %v2090, %v2076
    %v2098 = vadd.f32 %v2096, %v2097
    %2099 = vst [vmem:[%s1291] sm:$0xff] %v2098
    %v2100 = vpack.c.bf16 %v2098, %v2098
    %2101 = vst [vmem:[%s1048] sm:$0xf] %v2100
    %s2102 = scalar_lea.vmem [#allocation16], 4
    %2103 = vst [vmem:[%s2102] sm:$0xf] %v2100
    %s2104 = smul.u32 2, 3
    %s2105 = smul.addr %s2104, 8
    %s2106 = scalar_lea.vmem [#allocation4], %s2105
    %v2107 = vld [vmem:[%s2106] sm:$0xff]
    %v2108 = vld [vmem:[%s2106 + $0x8] sm:$0xff]
    %v2109 = vld [vmem:[%s2106 + $0x10] sm:$0xff]
    %v2110 = vld [vmem:[#allocation3] sm:$0xf]
    %v2111 = vld [vmem:[#allocation11] sm:$0xff]
    %v2112 = vld [vmem:[#allocation11 + $0x8] sm:$0xf]
    %v2113 = vld [vmem:[#allocation11 + $0xc] sm:$0xff]
    %v2114 = vld [vmem:[#allocation11 + $0x14] sm:$0xf]
    %v2115 = vld [vmem:[#allocation11 + $0x18] sm:$0xff]
    %v2116 = vld [vmem:[#allocation11 + $0x20] sm:$0xf]
    %v2117 = vld [vmem:[#allocation11 + $0x24] sm:$0xff]
    %v2118 = vld [vmem:[#allocation11 + $0x2c] sm:$0xf]
    %v2119 = vld [vmem:[#allocation11 + $0x30] sm:$0xff]
    %v2120 = vld [vmem:[#allocation11 + $0x38] sm:$0xf]
    %v2121 = vld [vmem:[#allocation11 + $0x3c] sm:$0xff]
    %v2122 = vld [vmem:[#allocation11 + $0x44] sm:$0xf]
    %v2123 = vld [vmem:[#allocation11 + $0x48] sm:$0xff]
    %v2124 = vld [vmem:[#allocation11 + $0x50] sm:$0xf]
    %v2125 = vld [vmem:[#allocation11 + $0x54] sm:$0xff]
    %v2126 = vld [vmem:[#allocation11 + $0x5c] sm:$0xf]
    %v2127 = vld [vmem:[#allocation11 + $0x60] sm:$0xff]
    %v2128 = vld [vmem:[#allocation11 + $0x68] sm:$0xf]
    %v2129 = vld [vmem:[#allocation11 + $0x6c] sm:$0xff]
    %v2130 = vld [vmem:[#allocation11 + $0x74] sm:$0xf]
    %v2131 = vld [vmem:[#allocation11 + $0x78] sm:$0xff]
    %v2132 = vld [vmem:[#allocation11 + $0x80] sm:$0xf]
    %v2133 = vld [vmem:[#allocation11 + $0x84] sm:$0xff]
    %v2134 = vld [vmem:[#allocation11 + $0x8c] sm:$0xf]
    %v2135 = vld [vmem:[#allocation11 + $0x90] sm:$0xff]
    %v2136 = vld [vmem:[#allocation11 + $0x98] sm:$0xf]
    %v2137 = vld [vmem:[#allocation11 + $0x9c] sm:$0xff]
    %v2138 = vld [vmem:[#allocation11 + $0xa4] sm:$0xf]
    %v2139 = vld [vmem:[#allocation11 + $0xa8] sm:$0xff]
    %v2140 = vld [vmem:[#allocation11 + $0xb0] sm:$0xf]
    %v2141 = vld [vmem:[#allocation11 + $0xb4] sm:$0xff]
    %v2142 = vld [vmem:[#allocation11 + $0xbc] sm:$0xf]
    %v2175 = vunpack.c.l.b16 %v2111
    %v2176 = vunpack.c.h.b16 %v2111
    %v2177 = vunpack.c.l.b16 %v2112
    %v2178 = vunpack.c.l.b16 %v2113
    %v2179 = vunpack.c.h.b16 %v2113
    %v2180 = vunpack.c.l.b16 %v2114
    %v2181 = vunpack.c.l.b16 %v2115
    %v2182 = vunpack.c.h.b16 %v2115
    %v2183 = vunpack.c.l.b16 %v2116
    %v2184 = vunpack.c.l.b16 %v2117
    %v2185 = vunpack.c.h.b16 %v2117
    %v2186 = vunpack.c.l.b16 %v2118
    %v2187 = vunpack.c.l.b16 %v2119
    %v2188 = vunpack.c.h.b16 %v2119
    %v2189 = vunpack.c.l.b16 %v2120
    %v2190 = vunpack.c.l.b16 %v2121
    %v2191 = vunpack.c.h.b16 %v2121
    %v2192 = vunpack.c.l.b16 %v2122
    %v2193 = vunpack.c.l.b16 %v2123
    %v2194 = vunpack.c.h.b16 %v2123
    %v2195 = vunpack.c.l.b16 %v2124
    %v2196 = vunpack.c.l.b16 %v2125
    %v2197 = vunpack.c.h.b16 %v2125
    %v2198 = vunpack.c.l.b16 %v2126
    %v2199 = vunpack.c.l.b16 %v2127
    %v2200 = vunpack.c.h.b16 %v2127
    %v2201 = vunpack.c.l.b16 %v2128
    %v2202 = vunpack.c.l.b16 %v2129
    %v2203 = vunpack.c.h.b16 %v2129
    %v2204 = vunpack.c.l.b16 %v2130
    %v2205 = vunpack.c.l.b16 %v2131
    %v2206 = vunpack.c.h.b16 %v2131
    %v2207 = vunpack.c.l.b16 %v2132
    %v2208 = vunpack.c.l.b16 %v2133
    %v2209 = vunpack.c.h.b16 %v2133
    %v2210 = vunpack.c.l.b16 %v2134
    %v2211 = vunpack.c.l.b16 %v2135
    %v2212 = vunpack.c.h.b16 %v2135
    %v2213 = vunpack.c.l.b16 %v2136
    %v2214 = vunpack.c.l.b16 %v2137
    %v2215 = vunpack.c.h.b16 %v2137
    %v2216 = vunpack.c.l.b16 %v2138
    %v2217 = vunpack.c.l.b16 %v2139
    %v2218 = vunpack.c.h.b16 %v2139
    %v2219 = vunpack.c.l.b16 %v2140
    %v2220 = vunpack.c.l.b16 %v2141
    %v2221 = vunpack.c.h.b16 %v2141
    %v2222 = vunpack.c.l.b16 %v2142
    %v2223 = vpack.c.b16 %v2178, %v2175
    %v2224 = vpack.c.b16 %v2179, %v2176
    %v2225 = vpack.c.b16 %v2180, %v2177
    %v2226 = vpack.c.b16 %v2184, %v2181
    %v2227 = vpack.c.b16 %v2185, %v2182
    %v2228 = vpack.c.b16 %v2186, %v2183
    %v2229 = vpack.c.b16 %v2190, %v2187
    %v2230 = vpack.c.b16 %v2191, %v2188
    %v2231 = vpack.c.b16 %v2192, %v2189
    %v2232 = vpack.c.b16 %v2196, %v2193
    %v2233 = vpack.c.b16 %v2197, %v2194
    %v2234 = vpack.c.b16 %v2198, %v2195
    %v2235 = vpack.c.b16 %v2202, %v2199
    %v2236 = vpack.c.b16 %v2203, %v2200
    %v2237 = vpack.c.b16 %v2204, %v2201
    %v2238 = vpack.c.b16 %v2208, %v2205
    %v2239 = vpack.c.b16 %v2209, %v2206
    %v2240 = vpack.c.b16 %v2210, %v2207
    %v2241 = vpack.c.b16 %v2214, %v2211
    %v2242 = vpack.c.b16 %v2215, %v2212
    %v2243 = vpack.c.b16 %v2216, %v2213
    %v2244 = vpack.c.b16 %v2220, %v2217
    %v2245 = vpack.c.b16 %v2221, %v2218
    %v2246 = vpack.c.b16 %v2222, %v2219
    %2271 = vmatprep.subr.bf16.mxu0 %v2224
    %2272 = vmatpush1.bf16.msra.mxu0 %v2223
    %2273 = vmatprep.subr.bf16.mxu0 %v2227
    %2274 = vmatpush1.bf16.msra.mxu0 %v2226
    %2275 = vmatprep.subr.bf16.mxu0 %v2230
    %2276 = vmatpush1.bf16.msra.mxu0 %v2229
    %2277 = vmatprep.subr.bf16.mxu0 %v2233
    %2278 = vmatpush1.bf16.msra.mxu0 %v2232
    %2279 = vmatprep.subr.bf16.mxu0 %v2236
    %2280 = vmatpush1.bf16.msra.mxu0 %v2235
    %2281 = vmatprep.subr.bf16.mxu0 %v2239
    %2282 = vmatpush1.bf16.msra.mxu0 %v2238
    %2283 = vmatprep.subr.bf16.mxu0 %v2242
    %2284 = vmatpush1.bf16.msra.mxu0 %v2241
    %2285 = vmatprep.subr.bf16.mxu0 %v2245
    %2286 = vmatpush1.bf16.msra.mxu0 %v2244
    %2287 = vmatprep.subr.bf16.mxu0 0
    %2288 = vmatpush1.bf16.msra.mxu0 0
    %2289 = vmatprep.subr.bf16.mxu0 0
    %2290 = vmatpush1.bf16.msra.mxu0 0
    %2291 = vmatprep.subr.bf16.mxu0 0
    %2292 = vmatpush1.bf16.msra.mxu0 0
    %2293 = vmatprep.subr.bf16.mxu0 0
    %2294 = vmatpush1.bf16.msra.mxu0 0
    %2295 = vmatprep.subr.bf16.mxu0 0
    %2296 = vmatpush1.bf16.msra.mxu0 0
    %2297 = vmatprep.subr.bf16.mxu0 0
    %2298 = vmatpush1.bf16.msra.mxu0 0
    %2299 = vmatprep.subr.bf16.mxu0 0
    %2300 = vmatpush1.bf16.msra.mxu0 0
    %2301 = vmatprep.subr.bf16.mxu0 0
    %2302 = vmatpush1.bf16.msra.mxu0 0
    %2303 = vmatprep.mubr.bf16.mxu0 0
    %2304 = vmatmul.mubr.bf16.gmra.mrb[0].mxu0 %v2110
    %v2305 = vpop.f32.mrb[0].mxu0
    %v2306 = vadd.f32 0.0, %v2305
    %v2307 = vpop.f32.mrb[0].mxu0
    %v2308 = vadd.f32 0.0, %v2307
    %v2309 = vpop.f32.mrb[0].mxu0
    %v2310 = vpop.f32.mrb[0].mxu0
    %2311 = vdwg.mxu0
    %2312 = vmatprep.subr.bf16.mxu0 0
    %2313 = vmatpush1.bf16.msra.mxu0 %v2225
    %2314 = vmatprep.subr.bf16.mxu0 0
    %2315 = vmatpush1.bf16.msra.mxu0 %v2228
    %2316 = vmatprep.subr.bf16.mxu0 0
    %2317 = vmatpush1.bf16.msra.mxu0 %v2231
    %2318 = vmatprep.subr.bf16.mxu0 0
    %2319 = vmatpush1.bf16.msra.mxu0 %v2234
    %2320 = vmatprep.subr.bf16.mxu0 0
    %2321 = vmatpush1.bf16.msra.mxu0 %v2237
    %2322 = vmatprep.subr.bf16.mxu0 0
    %2323 = vmatpush1.bf16.msra.mxu0 %v2240
    %2324 = vmatprep.subr.bf16.mxu0 0
    %2325 = vmatpush1.bf16.msra.mxu0 %v2243
    %2326 = vmatprep.subr.bf16.mxu0 0
    %2327 = vmatpush1.bf16.msra.mxu0 %v2246
    %2328 = vmatprep.subr.bf16.mxu0 0
    %2329 = vmatpush1.bf16.msra.mxu0 0
    %2330 = vmatprep.subr.bf16.mxu0 0
    %2331 = vmatpush1.bf16.msra.mxu0 0
    %2332 = vmatprep.subr.bf16.mxu0 0
    %2333 = vmatpush1.bf16.msra.mxu0 0
    %2334 = vmatprep.subr.bf16.mxu0 0
    %2335 = vmatpush1.bf16.msra.mxu0 0
    %2336 = vmatprep.subr.bf16.mxu0 0
    %2337 = vmatpush1.bf16.msra.mxu0 0
    %2338 = vmatprep.subr.bf16.mxu0 0
    %2339 = vmatpush1.bf16.msra.mxu0 0
    %2340 = vmatprep.subr.bf16.mxu0 0
    %2341 = vmatpush1.bf16.msra.mxu0 0
    %2342 = vmatprep.subr.bf16.mxu0 0
    %2343 = vmatpush1.bf16.msra.mxu0 0
    %2344 = vmatprep.mubr.bf16.mxu0 0
    %2345 = vmatmul.mubr.bf16.gmra.mrb[0].mxu0 %v2110
    %v2346 = vpop.f32.mrb[0].mxu0
    %v2347 = vadd.f32 0.0, %v2346
    %v2348 = vpop.f32.mrb[0].mxu0
    %v2349 = vpop.f32.mrb[0].mxu0
    %v2350 = vpop.f32.mrb[0].mxu0
    %2351 = vdwg.mxu0
    %v2352 = vld [vmem:[#allocation2] sm:$0xff]
    %v2353 = vadd.f32 %v2107, %v2306
    %v2354 = vxor.u32 %v2353, 2147483648
    %v2355 = vmul.f32 %v2354, 1.442695
    %v2356 = vpow.pop %v2355
    %v2357 = vadd.f32 %v2356, 1.0
    %v2358 = vrcp.pop %v2357
    %v2359 = vmul.f32 1.0, %v2358
    %v2360 = vadd.f32 %v2108, %v2308
    %v2361 = vxor.u32 %v2360, 2147483648
    %v2362 = vmul.f32 %v2361, 1.442695
    %v2363 = vpow.pop %v2362
    %v2364 = vadd.f32 %v2363, 1.0
    %v2365 = vrcp.pop %v2364
    %v2366 = vmul.f32 1.0, %v2365
    %v2367 = vadd.f32 %v2347, %v507
    %v2368 = vmul.f32 %v2359, %v2367
    %v2369 = vadd.f32 %v2109, %v2368
    %v2370 = vtanh.pop %v2369
    %v2371 = vsub.f32 1.0, %v2366
    %v2372 = vmul.f32 %v2371, %v2370
    %v2373 = vmul.f32 %v2366, %v2352
    %v2374 = vadd.f32 %v2372, %v2373
    %2375 = vst [vmem:[#allocation2] sm:$0xff] %v2374
    %v2376 = vpack.c.bf16 %v2374, %v2374
    %2377 = vst [vmem:[#allocation3] sm:$0xf] %v2376
    %v2378 = vld [vmem:[#allocation13] sm:$0xff]
    %v2379 = vld [vmem:[#allocation13 + $0x8] sm:$0xf]
    %v2380 = vld [vmem:[#allocation13 + $0xc] sm:$0xff]
    %v2381 = vld [vmem:[#allocation13 + $0x14] sm:$0xf]
    %v2382 = vld [vmem:[#allocation13 + $0x18] sm:$0xff]
    %v2383 = vld [vmem:[#allocation13 + $0x20] sm:$0xf]
    %v2384 = vld [vmem:[#allocation13 + $0x24] sm:$0xff]
    %v2385 = vld [vmem:[#allocation13 + $0x2c] sm:$0xf]
    %v2386 = vld [vmem:[#allocation13 + $0x30] sm:$0xff]
    %v2387 = vld [vmem:[#allocation13 + $0x38] sm:$0xf]
    %v2388 = vld [vmem:[#allocation13 + $0x3c] sm:$0xff]
    %v2389 = vld [vmem:[#allocation13 + $0x44] sm:$0xf]
    %v2390 = vld [vmem:[#allocation13 + $0x48] sm:$0xff]
    %v2391 = vld [vmem:[#allocation13 + $0x50] sm:$0xf]
    %v2392 = vld [vmem:[#allocation13 + $0x54] sm:$0xff]
    %v2393 = vld [vmem:[#allocation13 + $0x5c] sm:$0xf]
    %v2394 = vld [vmem:[#allocation13 + $0x60] sm:$0xff]
    %v2395 = vld [vmem:[#allocation13 + $0x68] sm:$0xf]
    %v2396 = vld [vmem:[#allocation13 + $0x6c] sm:$0xff]
    %v2397 = vld [vmem:[#allocation13 + $0x74] sm:$0xf]
    %v2398 = vld [vmem:[#allocation13 + $0x78] sm:$0xff]
    %v2399 = vld [vmem:[#allocation13 + $0x80] sm:$0xf]
    %v2400 = vld [vmem:[#allocation13 + $0x84] sm:$0xff]
    %v2401 = vld [vmem:[#allocation13 + $0x8c] sm:$0xf]
    %v2402 = vld [vmem:[#allocation13 + $0x90] sm:$0xff]
    %v2403 = vld [vmem:[#allocation13 + $0x98] sm:$0xf]
    %v2404 = vld [vmem:[#allocation13 + $0x9c] sm:$0xff]
    %v2405 = vld [vmem:[#allocation13 + $0xa4] sm:$0xf]
    %v2406 = vld [vmem:[#allocation13 + $0xa8] sm:$0xff]
    %v2407 = vld [vmem:[#allocation13 + $0xb0] sm:$0xf]
    %v2408 = vld [vmem:[#allocation13 + $0xb4] sm:$0xff]
    %v2409 = vld [vmem:[#allocation13 + $0xbc] sm:$0xf]
    %v2442 = vunpack.c.l.b16 %v2378
    %v2443 = vunpack.c.h.b16 %v2378
    %v2444 = vunpack.c.l.b16 %v2379
    %v2445 = vunpack.c.l.b16 %v2380
    %v2446 = vunpack.c.h.b16 %v2380
    %v2447 = vunpack.c.l.b16 %v2381
    %v2448 = vunpack.c.l.b16 %v2382
    %v2449 = vunpack.c.h.b16 %v2382
    %v2450 = vunpack.c.l.b16 %v2383
    %v2451 = vunpack.c.l.b16 %v2384
    %v2452 = vunpack.c.h.b16 %v2384
    %v2453 = vunpack.c.l.b16 %v2385
    %v2454 = vunpack.c.l.b16 %v2386
    %v2455 = vunpack.c.h.b16 %v2386
    %v2456 = vunpack.c.l.b16 %v2387
    %v2457 = vunpack.c.l.b16 %v2388
    %v2458 = vunpack.c.h.b16 %v2388
    %v2459 = vunpack.c.l.b16 %v2389
    %v2460 = vunpack.c.l.b16 %v2390
    %v2461 = vunpack.c.h.b16 %v2390
    %v2462 = vunpack.c.l.b16 %v2391
    %v2463 = vunpack.c.l.b16 %v2392
    %v2464 = vunpack.c.h.b16 %v2392
    %v2465 = vunpack.c.l.b16 %v2393
    %v2466 = vunpack.c.l.b16 %v2394
    %v2467 = vunpack.c.h.b16 %v2394
    %v2468 = vunpack.c.l.b16 %v2395
    %v2469 = vunpack.c.l.b16 %v2396
    %v2470 = vunpack.c.h.b16 %v2396
    %v2471 = vunpack.c.l.b16 %v2397
    %v2472 = vunpack.c.l.b16 %v2398
    %v2473 = vunpack.c.h.b16 %v2398
    %v2474 = vunpack.c.l.b16 %v2399
    %v2475 = vunpack.c.l.b16 %v2400
    %v2476 = vunpack.c.h.b16 %v2400
    %v2477 = vunpack.c.l.b16 %v2401
    %v2478 = vunpack.c.l.b16 %v2402
    %v2479 = vunpack.c.h.b16 %v2402
    %v2480 = vunpack.c.l.b16 %v2403
    %v2481 = vunpack.c.l.b16 %v2404
    %v2482 = vunpack.c.h.b16 %v2404
    %v2483 = vunpack.c.l.b16 %v2405
    %v2484 = vunpack.c.l.b16 %v2406
    %v2485 = vunpack.c.h.b16 %v2406
    %v2486 = vunpack.c.l.b16 %v2407
    %v2487 = vunpack.c.l.b16 %v2408
    %v2488 = vunpack.c.h.b16 %v2408
    %v2489 = vunpack.c.l.b16 %v2409
    %v2490 = vpack.c.b16 %v2445, %v2442
    %v2491 = vpack.c.b16 %v2446, %v2443
    %v2492 = vpack.c.b16 %v2447, %v2444
    %v2493 = vpack.c.b16 %v2451, %v2448
    %v2494 = vpack.c.b16 %v2452, %v2449
    %v2495 = vpack.c.b16 %v2453, %v2450
    %v2496 = vpack.c.b16 %v2457, %v2454
    %v2497 = vpack.c.b16 %v2458, %v2455
    %v2498 = vpack.c.b16 %v2459, %v2456
    %v2499 = vpack.c.b16 %v2463, %v2460
    %v2500 = vpack.c.b16 %v2464, %v2461
    %v2501 = vpack.c.b16 %v2465, %v2462
    %v2502 = vpack.c.b16 %v2469, %v2466
    %v2503 = vpack.c.b16 %v2470, %v2467
    %v2504 = vpack.c.b16 %v2471, %v2468
    %v2505 = vpack.c.b16 %v2475, %v2472
    %v2506 = vpack.c.b16 %v2476, %v2473
    %v2507 = vpack.c.b16 %v2477, %v2474
    %v2508 = vpack.c.b16 %v2481, %v2478
    %v2509 = vpack.c.b16 %v2482, %v2479
    %v2510 = vpack.c.b16 %v2483, %v2480
    %v2511 = vpack.c.b16 %v2487, %v2484
    %v2512 = vpack.c.b16 %v2488, %v2485
    %v2513 = vpack.c.b16 %v2489, %v2486
    %2538 = vmatprep.subr.bf16.mxu0 %v2491
    %2539 = vmatpush1.bf16.msra.mxu0 %v2490
    %2540 = vmatprep.subr.bf16.mxu0 %v2494
    %2541 = vmatpush1.bf16.msra.mxu0 %v2493
    %2542 = vmatprep.subr.bf16.mxu0 %v2497
    %2543 = vmatpush1.bf16.msra.mxu0 %v2496
    %2544 = vmatprep.subr.bf16.mxu0 %v2500
    %2545 = vmatpush1.bf16.msra.mxu0 %v2499
    %2546 = vmatprep.subr.bf16.mxu0 %v2503
    %2547 = vmatpush1.bf16.msra.mxu0 %v2502
    %2548 = vmatprep.subr.bf16.mxu0 %v2506
    %2549 = vmatpush1.bf16.msra.mxu0 %v2505
    %2550 = vmatprep.subr.bf16.mxu0 %v2509
    %2551 = vmatpush1.bf16.msra.mxu0 %v2508
    %2552 = vmatprep.subr.bf16.mxu0 %v2512
    %2553 = vmatpush1.bf16.msra.mxu0 %v2511
    %2554 = vmatprep.subr.bf16.mxu0 0
    %2555 = vmatpush1.bf16.msra.mxu0 0
    %2556 = vmatprep.subr.bf16.mxu0 0
    %2557 = vmatpush1.bf16.msra.mxu0 0
    %2558 = vmatprep.subr.bf16.mxu0 0
    %2559 = vmatpush1.bf16.msra.mxu0 0
    %2560 = vmatprep.subr.bf16.mxu0 0
    %2561 = vmatpush1.bf16.msra.mxu0 0
    %2562 = vmatprep.subr.bf16.mxu0 0
    %2563 = vmatpush1.bf16.msra.mxu0 0
    %2564 = vmatprep.subr.bf16.mxu0 0
    %2565 = vmatpush1.bf16.msra.mxu0 0
    %2566 = vmatprep.subr.bf16.mxu0 0
    %2567 = vmatpush1.bf16.msra.mxu0 0
    %2568 = vmatprep.subr.bf16.mxu0 0
    %2569 = vmatpush1.bf16.msra.mxu0 0
    %2570 = vmatprep.mubr.bf16.mxu0 0
    %2571 = vmatmul.mubr.bf16.gmra.mrb[0].mxu0 %v2376
    %v2572 = vpop.f32.mrb[0].mxu0
    %v2573 = vadd.f32 %v514, %v2572
    %v2574 = vpop.f32.mrb[0].mxu0
    %v2575 = vadd.f32 %v518, %v2574
    %v2576 = vpop.f32.mrb[0].mxu0
    %v2577 = vpop.f32.mrb[0].mxu0
    %2578 = vdwg.mxu0
    %2579 = vmatprep.subr.bf16.mxu0 0
    %2580 = vmatpush1.bf16.msra.mxu0 %v2492
    %2581 = vmatprep.subr.bf16.mxu0 0
    %2582 = vmatpush1.bf16.msra.mxu0 %v2495
    %2583 = vmatprep.subr.bf16.mxu0 0
    %2584 = vmatpush1.bf16.msra.mxu0 %v2498
    %2585 = vmatprep.subr.bf16.mxu0 0
    %2586 = vmatpush1.bf16.msra.mxu0 %v2501
    %2587 = vmatprep.subr.bf16.mxu0 0
    %2588 = vmatpush1.bf16.msra.mxu0 %v2504
    %2589 = vmatprep.subr.bf16.mxu0 0
    %2590 = vmatpush1.bf16.msra.mxu0 %v2507
    %2591 = vmatprep.subr.bf16.mxu0 0
    %2592 = vmatpush1.bf16.msra.mxu0 %v2510
    %2593 = vmatprep.subr.bf16.mxu0 0
    %2594 = vmatpush1.bf16.msra.mxu0 %v2513
    %2595 = vmatprep.subr.bf16.mxu0 0
    %2596 = vmatpush1.bf16.msra.mxu0 0
    %2597 = vmatprep.subr.bf16.mxu0 0
    %2598 = vmatpush1.bf16.msra.mxu0 0
    %2599 = vmatprep.subr.bf16.mxu0 0
    %2600 = vmatpush1.bf16.msra.mxu0 0
    %2601 = vmatprep.subr.bf16.mxu0 0
    %2602 = vmatpush1.bf16.msra.mxu0 0
    %2603 = vmatprep.subr.bf16.mxu0 0
    %2604 = vmatpush1.bf16.msra.mxu0 0
    %2605 = vmatprep.subr.bf16.mxu0 0
    %2606 = vmatpush1.bf16.msra.mxu0 0
    %2607 = vmatprep.subr.bf16.mxu0 0
    %2608 = vmatpush1.bf16.msra.mxu0 0
    %2609 = vmatprep.subr.bf16.mxu0 0
    %2610 = vmatpush1.bf16.msra.mxu0 0
    %2611 = vmatprep.mubr.bf16.mxu0 0
    %2612 = vmatmul.mubr.bf16.gmra.mrb[0].mxu0 %v2376
    %v2613 = vpop.f32.mrb[0].mxu0
    %v2614 = vadd.f32 %v522, %v2613
    %v2615 = vpop.f32.mrb[0].mxu0
    %v2616 = vpop.f32.mrb[0].mxu0
    %v2617 = vpop.f32.mrb[0].mxu0
    %2618 = vdwg.mxu0
    %v2619 = vld [vmem:[%s1048] sm:$0xf]
    %v2620 = vld [vmem:[#allocation14] sm:$0xff]
    %v2621 = vld [vmem:[#allocation14 + $0x8] sm:$0xf]
    %v2622 = vld [vmem:[#allocation14 + $0xc] sm:$0xff]
    %v2623 = vld [vmem:[#allocation14 + $0x14] sm:$0xf]
    %v2624 = vld [vmem:[#allocation14 + $0x18] sm:$0xff]
    %v2625 = vld [vmem:[#allocation14 + $0x20] sm:$0xf]
    %v2626 = vld [vmem:[#allocation14 + $0x24] sm:$0xff]
    %v2627 = vld [vmem:[#allocation14 + $0x2c] sm:$0xf]
    %v2628 = vld [vmem:[#allocation14 + $0x30] sm:$0xff]
    %v2629 = vld [vmem:[#allocation14 + $0x38] sm:$0xf]
    %v2630 = vld [vmem:[#allocation14 + $0x3c] sm:$0xff]
    %v2631 = vld [vmem:[#allocation14 + $0x44] sm:$0xf]
    %v2632 = vld [vmem:[#allocation14 + $0x48] sm:$0xff]
    %v2633 = vld [vmem:[#allocation14 + $0x50] sm:$0xf]
    %v2634 = vld [vmem:[#allocation14 + $0x54] sm:$0xff]
    %v2635 = vld [vmem:[#allocation14 + $0x5c] sm:$0xf]
    %v2636 = vld [vmem:[#allocation14 + $0x60] sm:$0xff]
    %v2637 = vld [vmem:[#allocation14 + $0x68] sm:$0xf]
    %v2638 = vld [vmem:[#allocation14 + $0x6c] sm:$0xff]
    %v2639 = vld [vmem:[#allocation14 + $0x74] sm:$0xf]
    %v2640 = vld [vmem:[#allocation14 + $0x78] sm:$0xff]
    %v2641 = vld [vmem:[#allocation14 + $0x80] sm:$0xf]
    %v2642 = vld [vmem:[#allocation14 + $0x84] sm:$0xff]
    %v2643 = vld [vmem:[#allocation14 + $0x8c] sm:$0xf]
    %v2644 = vld [vmem:[#allocation14 + $0x90] sm:$0xff]
    %v2645 = vld [vmem:[#allocation14 + $0x98] sm:$0xf]
    %v2646 = vld [vmem:[#allocation14 + $0x9c] sm:$0xff]
    %v2647 = vld [vmem:[#allocation14 + $0xa4] sm:$0xf]
    %v2648 = vld [vmem:[#allocation14 + $0xa8] sm:$0xff]
    %v2649 = vld [vmem:[#allocation14 + $0xb0] sm:$0xf]
    %v2650 = vld [vmem:[#allocation14 + $0xb4] sm:$0xff]
    %v2651 = vld [vmem:[#allocation14 + $0xbc] sm:$0xf]
    %v2684 = vunpack.c.l.b16 %v2620
    %v2685 = vunpack.c.h.b16 %v2620
    %v2686 = vunpack.c.l.b16 %v2621
    %v2687 = vunpack.c.l.b16 %v2622
    %v2688 = vunpack.c.h.b16 %v2622
    %v2689 = vunpack.c.l.b16 %v2623
    %v2690 = vunpack.c.l.b16 %v2624
    %v2691 = vunpack.c.h.b16 %v2624
    %v2692 = vunpack.c.l.b16 %v2625
    %v2693 = vunpack.c.l.b16 %v2626
    %v2694 = vunpack.c.h.b16 %v2626
    %v2695 = vunpack.c.l.b16 %v2627
    %v2696 = vunpack.c.l.b16 %v2628
    %v2697 = vunpack.c.h.b16 %v2628
    %v2698 = vunpack.c.l.b16 %v2629
    %v2699 = vunpack.c.l.b16 %v2630
    %v2700 = vunpack.c.h.b16 %v2630
    %v2701 = vunpack.c.l.b16 %v2631
    %v2702 = vunpack.c.l.b16 %v2632
    %v2703 = vunpack.c.h.b16 %v2632
    %v2704 = vunpack.c.l.b16 %v2633
    %v2705 = vunpack.c.l.b16 %v2634
    %v2706 = vunpack.c.h.b16 %v2634
    %v2707 = vunpack.c.l.b16 %v2635
    %v2708 = vunpack.c.l.b16 %v2636
    %v2709 = vunpack.c.h.b16 %v2636
    %v2710 = vunpack.c.l.b16 %v2637
    %v2711 = vunpack.c.l.b16 %v2638
    %v2712 = vunpack.c.h.b16 %v2638
    %v2713 = vunpack.c.l.b16 %v2639
    %v2714 = vunpack.c.l.b16 %v2640
    %v2715 = vunpack.c.h.b16 %v2640
    %v2716 = vunpack.c.l.b16 %v2641
    %v2717 = vunpack.c.l.b16 %v2642
    %v2718 = vunpack.c.h.b16 %v2642
    %v2719 = vunpack.c.l.b16 %v2643
    %v2720 = vunpack.c.l.b16 %v2644
    %v2721 = vunpack.c.h.b16 %v2644
    %v2722 = vunpack.c.l.b16 %v2645
    %v2723 = vunpack.c.l.b16 %v2646
    %v2724 = vunpack.c.h.b16 %v2646
    %v2725 = vunpack.c.l.b16 %v2647
    %v2726 = vunpack.c.l.b16 %v2648
    %v2727 = vunpack.c.h.b16 %v2648
    %v2728 = vunpack.c.l.b16 %v2649
    %v2729 = vunpack.c.l.b16 %v2650
    %v2730 = vunpack.c.h.b16 %v2650
    %v2731 = vunpack.c.l.b16 %v2651
    %v2732 = vpack.c.b16 %v2687, %v2684
    %v2733 = vpack.c.b16 %v2688, %v2685
    %v2734 = vpack.c.b16 %v2689, %v2686
    %v2735 = vpack.c.b16 %v2693, %v2690
    %v2736 = vpack.c.b16 %v2694, %v2691
    %v2737 = vpack.c.b16 %v2695, %v2692
    %v2738 = vpack.c.b16 %v2699, %v2696
    %v2739 = vpack.c.b16 %v2700, %v2697
    %v2740 = vpack.c.b16 %v2701, %v2698
    %v2741 = vpack.c.b16 %v2705, %v2702
    %v2742 = vpack.c.b16 %v2706, %v2703
    %v2743 = vpack.c.b16 %v2707, %v2704
    %v2744 = vpack.c.b16 %v2711, %v2708
    %v2745 = vpack.c.b16 %v2712, %v2709
    %v2746 = vpack.c.b16 %v2713, %v2710
    %v2747 = vpack.c.b16 %v2717, %v2714
    %v2748 = vpack.c.b16 %v2718, %v2715
    %v2749 = vpack.c.b16 %v2719, %v2716
    %v2750 = vpack.c.b16 %v2723, %v2720
    %v2751 = vpack.c.b16 %v2724, %v2721
    %v2752 = vpack.c.b16 %v2725, %v2722
    %v2753 = vpack.c.b16 %v2729, %v2726
    %v2754 = vpack.c.b16 %v2730, %v2727
    %v2755 = vpack.c.b16 %v2731, %v2728
    %2780 = vmatprep.subr.bf16.mxu0 %v2733
    %2781 = vmatpush1.bf16.msra.mxu0 %v2732
    %2782 = vmatprep.subr.bf16.mxu0 %v2736
    %2783 = vmatpush1.bf16.msra.mxu0 %v2735
    %2784 = vmatprep.subr.bf16.mxu0 %v2739
    %2785 = vmatpush1.bf16.msra.mxu0 %v2738
    %2786 = vmatprep.subr.bf16.mxu0 %v2742
    %2787 = vmatpush1.bf16.msra.mxu0 %v2741
    %2788 = vmatprep.subr.bf16.mxu0 %v2745
    %2789 = vmatpush1.bf16.msra.mxu0 %v2744
    %2790 = vmatprep.subr.bf16.mxu0 %v2748
    %2791 = vmatpush1.bf16.msra.mxu0 %v2747
    %2792 = vmatprep.subr.bf16.mxu0 %v2751
    %2793 = vmatpush1.bf16.msra.mxu0 %v2750
    %2794 = vmatprep.subr.bf16.mxu0 %v2754
    %2795 = vmatpush1.bf16.msra.mxu0 %v2753
    %2796 = vmatprep.subr.bf16.mxu0 0
    %2797 = vmatpush1.bf16.msra.mxu0 0
    %2798 = vmatprep.subr.bf16.mxu0 0
    %2799 = vmatpush1.bf16.msra.mxu0 0
    %2800 = vmatprep.subr.bf16.mxu0 0
    %2801 = vmatpush1.bf16.msra.mxu0 0
    %2802 = vmatprep.subr.bf16.mxu0 0
    %2803 = vmatpush1.bf16.msra.mxu0 0
    %2804 = vmatprep.subr.bf16.mxu0 0
    %2805 = vmatpush1.bf16.msra.mxu0 0
    %2806 = vmatprep.subr.bf16.mxu0 0
    %2807 = vmatpush1.bf16.msra.mxu0 0
    %2808 = vmatprep.subr.bf16.mxu0 0
    %2809 = vmatpush1.bf16.msra.mxu0 0
    %2810 = vmatprep.subr.bf16.mxu0 0
    %2811 = vmatpush1.bf16.msra.mxu0 0
    %2812 = vmatprep.mubr.bf16.mxu0 0
    %2813 = vmatmul.mubr.bf16.gmra.mrb[0].mxu0 %v2619
    %v2814 = vpop.f32.mrb[0].mxu0
    %v2815 = vadd.f32 0.0, %v2814
    %v2816 = vpop.f32.mrb[0].mxu0
    %v2817 = vadd.f32 0.0, %v2816
    %v2818 = vpop.f32.mrb[0].mxu0
    %v2819 = vpop.f32.mrb[0].mxu0
    %2820 = vdwg.mxu0
    %2821 = vmatprep.subr.bf16.mxu0 0
    %2822 = vmatpush1.bf16.msra.mxu0 %v2734
    %2823 = vmatprep.subr.bf16.mxu0 0
    %2824 = vmatpush1.bf16.msra.mxu0 %v2737
    %2825 = vmatprep.subr.bf16.mxu0 0
    %2826 = vmatpush1.bf16.msra.mxu0 %v2740
    %2827 = vmatprep.subr.bf16.mxu0 0
    %2828 = vmatpush1.bf16.msra.mxu0 %v2743
    %2829 = vmatprep.subr.bf16.mxu0 0
    %2830 = vmatpush1.bf16.msra.mxu0 %v2746
    %2831 = vmatprep.subr.bf16.mxu0 0
    %2832 = vmatpush1.bf16.msra.mxu0 %v2749
    %2833 = vmatprep.subr.bf16.mxu0 0
    %2834 = vmatpush1.bf16.msra.mxu0 %v2752
    %2835 = vmatprep.subr.bf16.mxu0 0
    %2836 = vmatpush1.bf16.msra.mxu0 %v2755
    %2837 = vmatprep.subr.bf16.mxu0 0
    %2838 = vmatpush1.bf16.msra.mxu0 0
    %2839 = vmatprep.subr.bf16.mxu0 0
    %2840 = vmatpush1.bf16.msra.mxu0 0
    %2841 = vmatprep.subr.bf16.mxu0 0
    %2842 = vmatpush1.bf16.msra.mxu0 0
    %2843 = vmatprep.subr.bf16.mxu0 0
    %2844 = vmatpush1.bf16.msra.mxu0 0
    %2845 = vmatprep.subr.bf16.mxu0 0
    %2846 = vmatpush1.bf16.msra.mxu0 0
    %2847 = vmatprep.subr.bf16.mxu0 0
    %2848 = vmatpush1.bf16.msra.mxu0 0
    %2849 = vmatprep.subr.bf16.mxu0 0
    %2850 = vmatpush1.bf16.msra.mxu0 0
    %2851 = vmatprep.subr.bf16.mxu0 0
    %2852 = vmatpush1.bf16.msra.mxu0 0
    %2853 = vmatprep.mubr.bf16.mxu0 0
    %2854 = vmatmul.mubr.bf16.gmra.mrb[0].mxu0 %v2619
    %v2855 = vpop.f32.mrb[0].mxu0
    %v2856 = vadd.f32 0.0, %v2855
    %v2857 = vpop.f32.mrb[0].mxu0
    %v2858 = vpop.f32.mrb[0].mxu0
    %v2859 = vpop.f32.mrb[0].mxu0
    %2860 = vdwg.mxu0
    %v2861 = vld [vmem:[%s1291] sm:$0xff]
    %v2862 = vadd.f32 %v2573, %v2815
    %v2863 = vxor.u32 %v2862, 2147483648
    %v2864 = vmul.f32 %v2863, 1.442695
    %v2865 = vpow.pop %v2864
    %v2866 = vadd.f32 %v2865, 1.0
    %v2867 = vrcp.pop %v2866
    %v2868 = vmul.f32 1.0, %v2867
    %v2869 = vadd.f32 %v2575, %v2817
    %v2870 = vxor.u32 %v2869, 2147483648
    %v2871 = vmul.f32 %v2870, 1.442695
    %v2872 = vpow.pop %v2871
    %v2873 = vadd.f32 %v2872, 1.0
    %v2874 = vrcp.pop %v2873
    %v2875 = vmul.f32 1.0, %v2874
    %v2876 = vadd.f32 %v2856, %v531
    %v2877 = vmul.f32 %v2868, %v2876
    %v2878 = vadd.f32 %v2614, %v2877
    %v2879 = vtanh.pop %v2878
    %v2880 = vsub.f32 1.0, %v2875
    %v2881 = vmul.f32 %v2880, %v2879
    %v2882 = vmul.f32 %v2875, %v2861
    %v2883 = vadd.f32 %v2881, %v2882
    %2884 = vst [vmem:[%s1291] sm:$0xff] %v2883
    %v2885 = vpack.c.bf16 %v2883, %v2883
    %2886 = vst [vmem:[%s1048] sm:$0xf] %v2885
    %s2887 = scalar_lea.vmem [#allocation16], 8
    %2888 = vst [vmem:[%s2887] sm:$0xf] %v2885
    %s2889 = smul.u32 3, 3
    %s2890 = smul.addr %s2889, 8
    %s2891 = scalar_lea.vmem [#allocation4], %s2890
    %v2892 = vld [vmem:[%s2891] sm:$0xff]
    %v2893 = vld [vmem:[%s2891 + $0x8] sm:$0xff]
    %v2894 = vld [vmem:[%s2891 + $0x10] sm:$0xff]
    %v2895 = vld [vmem:[#allocation3] sm:$0xf]
    %v2896 = vld [vmem:[#allocation11] sm:$0xff]
    %v2897 = vld [vmem:[#allocation11 + $0x8] sm:$0xf]
    %v2898 = vld [vmem:[#allocation11 + $0xc] sm:$0xff]
    %v2899 = vld [vmem:[#allocation11 + $0x14] sm:$0xf]
    %v2900 = vld [vmem:[#allocation11 + $0x18] sm:$0xff]
    %v2901 = vld [vmem:[#allocation11 + $0x20] sm:$0xf]
    %v2902 = vld [vmem:[#allocation11 + $0x24] sm:$0xff]
    %v2903 = vld [vmem:[#allocation11 + $0x2c] sm:$0xf]
    %v2904 = vld [vmem:[#allocation11 + $0x30] sm:$0xff]
    %v2905 = vld [vmem:[#allocation11 + $0x38] sm:$0xf]
    %v2906 = vld [vmem:[#allocation11 + $0x3c] sm:$0xff]
    %v2907 = vld [vmem:[#allocation11 + $0x44] sm:$0xf]
    %v2908 = vld [vmem:[#allocation11 + $0x48] sm:$0xff]
    %v2909 = vld [vmem:[#allocation11 + $0x50] sm:$0xf]
    %v2910 = vld [vmem:[#allocation11 + $0x54] sm:$0xff]
    %v2911 = vld [vmem:[#allocation11 + $0x5c] sm:$0xf]
    %v2912 = vld [vmem:[#allocation11 + $0x60] sm:$0xff]
    %v2913 = vld [vmem:[#allocation11 + $0x68] sm:$0xf]
    %v2914 = vld [vmem:[#allocation11 + $0x6c] sm:$0xff]
    %v2915 = vld [vmem:[#allocation11 + $0x74] sm:$0xf]
    %v2916 = vld [vmem:[#allocation11 + $0x78] sm:$0xff]
    %v2917 = vld [vmem:[#allocation11 + $0x80] sm:$0xf]
    %v2918 = vld [vmem:[#allocation11 + $0x84] sm:$0xff]
    %v2919 = vld [vmem:[#allocation11 + $0x8c] sm:$0xf]
    %v2920 = vld [vmem:[#allocation11 + $0x90] sm:$0xff]
    %v2921 = vld [vmem:[#allocation11 + $0x98] sm:$0xf]
    %v2922 = vld [vmem:[#allocation11 + $0x9c] sm:$0xff]
    %v2923 = vld [vmem:[#allocation11 + $0xa4] sm:$0xf]
    %v2924 = vld [vmem:[#allocation11 + $0xa8] sm:$0xff]
    %v2925 = vld [vmem:[#allocation11 + $0xb0] sm:$0xf]
    %v2926 = vld [vmem:[#allocation11 + $0xb4] sm:$0xff]
    %v2927 = vld [vmem:[#allocation11 + $0xbc] sm:$0xf]
    %v2960 = vunpack.c.l.b16 %v2896
    %v2961 = vunpack.c.h.b16 %v2896
    %v2962 = vunpack.c.l.b16 %v2897
    %v2963 = vunpack.c.l.b16 %v2898
    %v2964 = vunpack.c.h.b16 %v2898
    %v2965 = vunpack.c.l.b16 %v2899
    %v2966 = vunpack.c.l.b16 %v2900
    %v2967 = vunpack.c.h.b16 %v2900
    %v2968 = vunpack.c.l.b16 %v2901
    %v2969 = vunpack.c.l.b16 %v2902
    %v2970 = vunpack.c.h.b16 %v2902
    %v2971 = vunpack.c.l.b16 %v2903
    %v2972 = vunpack.c.l.b16 %v2904
    %v2973 = vunpack.c.h.b16 %v2904
    %v2974 = vunpack.c.l.b16 %v2905
    %v2975 = vunpack.c.l.b16 %v2906
    %v2976 = vunpack.c.h.b16 %v2906
    %v2977 = vunpack.c.l.b16 %v2907
    %v2978 = vunpack.c.l.b16 %v2908
    %v2979 = vunpack.c.h.b16 %v2908
    %v2980 = vunpack.c.l.b16 %v2909
    %v2981 = vunpack.c.l.b16 %v2910
    %v2982 = vunpack.c.h.b16 %v2910
    %v2983 = vunpack.c.l.b16 %v2911
    %v2984 = vunpack.c.l.b16 %v2912
    %v2985 = vunpack.c.h.b16 %v2912
    %v2986 = vunpack.c.l.b16 %v2913
    %v2987 = vunpack.c.l.b16 %v2914
    %v2988 = vunpack.c.h.b16 %v2914
    %v2989 = vunpack.c.l.b16 %v2915
    %v2990 = vunpack.c.l.b16 %v2916
    %v2991 = vunpack.c.h.b16 %v2916
    %v2992 = vunpack.c.l.b16 %v2917
    %v2993 = vunpack.c.l.b16 %v2918
    %v2994 = vunpack.c.h.b16 %v2918
    %v2995 = vunpack.c.l.b16 %v2919
    %v2996 = vunpack.c.l.b16 %v2920
    %v2997 = vunpack.c.h.b16 %v2920
    %v2998 = vunpack.c.l.b16 %v2921
    %v2999 = vunpack.c.l.b16 %v2922
    %v3000 = vunpack.c.h.b16 %v2922
    %v3001 = vunpack.c.l.b16 %v2923
    %v3002 = vunpack.c.l.b16 %v2924
    %v3003 = vunpack.c.h.b16 %v2924
    %v3004 = vunpack.c.l.b16 %v2925
    %v3005 = vunpack.c.l.b16 %v2926
    %v3006 = vunpack.c.h.b16 %v2926
    %v3007 = vunpack.c.l.b16 %v2927
    %v3008 = vpack.c.b16 %v2963, %v2960
    %v3009 = vpack.c.b16 %v2964, %v2961
    %v3010 = vpack.c.b16 %v2965, %v2962
    %v3011 = vpack.c.b16 %v2969, %v2966
    %v3012 = vpack.c.b16 %v2970, %v2967
    %v3013 = vpack.c.b16 %v2971, %v2968
    %v3014 = vpack.c.b16 %v2975, %v2972
    %v3015 = vpack.c.b16 %v2976, %v2973
    %v3016 = vpack.c.b16 %v2977, %v2974
    %v3017 = vpack.c.b16 %v2981, %v2978
    %v3018 = vpack.c.b16 %v2982, %v2979
    %v3019 = vpack.c.b16 %v2983, %v2980
    %v3020 = vpack.c.b16 %v2987, %v2984
    %v3021 = vpack.c.b16 %v2988, %v2985
    %v3022 = vpack.c.b16 %v2989, %v2986
    %v3023 = vpack.c.b16 %v2993, %v2990
    %v3024 = vpack.c.b16 %v2994, %v2991
    %v3025 = vpack.c.b16 %v2995, %v2992
    %v3026 = vpack.c.b16 %v2999, %v2996
    %v3027 = vpack.c.b16 %v3000, %v2997
    %v3028 = vpack.c.b16 %v3001, %v2998
    %v3029 = vpack.c.b16 %v3005, %v3002
    %v3030 = vpack.c.b16 %v3006, %v3003
    %v3031 = vpack.c.b16 %v3007, %v3004
    %3056 = vmatprep.subr.bf16.mxu0 %v3009
    %3057 = vmatpush1.bf16.msra.mxu0 %v3008
    %3058 = vmatprep.subr.bf16.mxu0 %v3012
    %3059 = vmatpush1.bf16.msra.mxu0 %v3011
    %3060 = vmatprep.subr.bf16.mxu0 %v3015
    %3061 = vmatpush1.bf16.msra.mxu0 %v3014
    %3062 = vmatprep.subr.bf16.mxu0 %v3018
    %3063 = vmatpush1.bf16.msra.mxu0 %v3017
    %3064 = vmatprep.subr.bf16.mxu0 %v3021
    %3065 = vmatpush1.bf16.msra.mxu0 %v3020
    %3066 = vmatprep.subr.bf16.mxu0 %v3024
    %3067 = vmatpush1.bf16.msra.mxu0 %v3023
    %3068 = vmatprep.subr.bf16.mxu0 %v3027
    %3069 = vmatpush1.bf16.msra.mxu0 %v3026
    %3070 = vmatprep.subr.bf16.mxu0 %v3030
    %3071 = vmatpush1.bf16.msra.mxu0 %v3029
    %3072 = vmatprep.subr.bf16.mxu0 0
    %3073 = vmatpush1.bf16.msra.mxu0 0
    %3074 = vmatprep.subr.bf16.mxu0 0
    %3075 = vmatpush1.bf16.msra.mxu0 0
    %3076 = vmatprep.subr.bf16.mxu0 0
    %3077 = vmatpush1.bf16.msra.mxu0 0
    %3078 = vmatprep.subr.bf16.mxu0 0
    %3079 = vmatpush1.bf16.msra.mxu0 0
    %3080 = vmatprep.subr.bf16.mxu0 0
    %3081 = vmatpush1.bf16.msra.mxu0 0
    %3082 = vmatprep.subr.bf16.mxu0 0
    %3083 = vmatpush1.bf16.msra.mxu0 0
    %3084 = vmatprep.subr.bf16.mxu0 0
    %3085 = vmatpush1.bf16.msra.mxu0 0
    %3086 = vmatprep.subr.bf16.mxu0 0
    %3087 = vmatpush1.bf16.msra.mxu0 0
    %3088 = vmatprep.mubr.bf16.mxu0 0
    %3089 = vmatmul.mubr.bf16.gmra.mrb[0].mxu0 %v2895
    %v3090 = vpop.f32.mrb[0].mxu0
    %v3091 = vadd.f32 0.0, %v3090
    %v3092 = vpop.f32.mrb[0].mxu0
    %v3093 = vadd.f32 0.0, %v3092
    %v3094 = vpop.f32.mrb[0].mxu0
    %v3095 = vpop.f32.mrb[0].mxu0
    %3096 = vdwg.mxu0
    %3097 = vmatprep.subr.bf16.mxu0 0
    %3098 = vmatpush1.bf16.msra.mxu0 %v3010
    %3099 = vmatprep.subr.bf16.mxu0 0
    %3100 = vmatpush1.bf16.msra.mxu0 %v3013
    %3101 = vmatprep.subr.bf16.mxu0 0
    %3102 = vmatpush1.bf16.msra.mxu0 %v3016
    %3103 = vmatprep.subr.bf16.mxu0 0
    %3104 = vmatpush1.bf16.msra.mxu0 %v3019
    %3105 = vmatprep.subr.bf16.mxu0 0
    %3106 = vmatpush1.bf16.msra.mxu0 %v3022
    %3107 = vmatprep.subr.bf16.mxu0 0
    %3108 = vmatpush1.bf16.msra.mxu0 %v3025
    %3109 = vmatprep.subr.bf16.mxu0 0
    %3110 = vmatpush1.bf16.msra.mxu0 %v3028
    %3111 = vmatprep.subr.bf16.mxu0 0
    %3112 = vmatpush1.bf16.msra.mxu0 %v3031
    %3113 = vmatprep.subr.bf16.mxu0 0
    %3114 = vmatpush1.bf16.msra.mxu0 0
    %3115 = vmatprep.subr.bf16.mxu0 0
    %3116 = vmatpush1.bf16.msra.mxu0 0
    %3117 = vmatprep.subr.bf16.mxu0 0
    %3118 = vmatpush1.bf16.msra.mxu0 0
    %3119 = vmatprep.subr.bf16.mxu0 0
    %3120 = vmatpush1.bf16.msra.mxu0 0
    %3121 = vmatprep.subr.bf16.mxu0 0
    %3122 = vmatpush1.bf16.msra.mxu0 0
    %3123 = vmatprep.subr.bf16.mxu0 0
    %3124 = vmatpush1.bf16.msra.mxu0 0
    %3125 = vmatprep.subr.bf16.mxu0 0
    %3126 = vmatpush1.bf16.msra.mxu0 0
    %3127 = vmatprep.subr.bf16.mxu0 0
    %3128 = vmatpush1.bf16.msra.mxu0 0
    %3129 = vmatprep.mubr.bf16.mxu0 0
    %3130 = vmatmul.mubr.bf16.gmra.mrb[0].mxu0 %v2895
    %v3131 = vpop.f32.mrb[0].mxu0
    %v3132 = vadd.f32 0.0, %v3131
    %v3133 = vpop.f32.mrb[0].mxu0
    %v3134 = vpop.f32.mrb[0].mxu0
    %v3135 = vpop.f32.mrb[0].mxu0
    %3136 = vdwg.mxu0
    %v3137 = vld [vmem:[#allocation2] sm:$0xff]
    %v3138 = vadd.f32 %v2892, %v3091
    %v3139 = vxor.u32 %v3138, 2147483648
    %v3140 = vmul.f32 %v3139, 1.442695
    %v3141 = vpow.pop %v3140
    %v3142 = vadd.f32 %v3141, 1.0
    %v3143 = vrcp.pop %v3142
    %v3144 = vmul.f32 1.0, %v3143
    %v3145 = vadd.f32 %v2893, %v3093
    %v3146 = vxor.u32 %v3145, 2147483648
    %v3147 = vmul.f32 %v3146, 1.442695
    %v3148 = vpow.pop %v3147
    %v3149 = vadd.f32 %v3148, 1.0
    %v3150 = vrcp.pop %v3149
    %v3151 = vmul.f32 1.0, %v3150
    %v3152 = vadd.f32 %v3132, %v507
    %v3153 = vmul.f32 %v3144, %v3152
    %v3154 = vadd.f32 %v2894, %v3153
    %v3155 = vtanh.pop %v3154
    %v3156 = vsub.f32 1.0, %v3151
    %v3157 = vmul.f32 %v3156, %v3155
    %v3158 = vmul.f32 %v3151, %v3137
    %v3159 = vadd.f32 %v3157, %v3158
    %3160 = vst [vmem:[#allocation2] sm:$0xff] %v3159
    %v3161 = vpack.c.bf16 %v3159, %v3159
    %3162 = vst [vmem:[#allocation3] sm:$0xf] %v3161
    %v3163 = vld [vmem:[#allocation13] sm:$0xff]
    %v3164 = vld [vmem:[#allocation13 + $0x8] sm:$0xf]
    %v3165 = vld [vmem:[#allocation13 + $0xc] sm:$0xff]
    %v3166 = vld [vmem:[#allocation13 + $0x14] sm:$0xf]
    %v3167 = vld [vmem:[#allocation13 + $0x18] sm:$0xff]
    %v3168 = vld [vmem:[#allocation13 + $0x20] sm:$0xf]
    %v3169 = vld [vmem:[#allocation13 + $0x24] sm:$0xff]
    %v3170 = vld [vmem:[#allocation13 + $0x2c] sm:$0xf]
    %v3171 = vld [vmem:[#allocation13 + $0x30] sm:$0xff]
    %v3172 = vld [vmem:[#allocation13 + $0x38] sm:$0xf]
    %v3173 = vld [vmem:[#allocation13 + $0x3c] sm:$0xff]
    %v3174 = vld [vmem:[#allocation13 + $0x44] sm:$0xf]
    %v3175 = vld [vmem:[#allocation13 + $0x48] sm:$0xff]
    %v3176 = vld [vmem:[#allocation13 + $0x50] sm:$0xf]
    %v3177 = vld [vmem:[#allocation13 + $0x54] sm:$0xff]
    %v3178 = vld [vmem:[#allocation13 + $0x5c] sm:$0xf]
    %v3179 = vld [vmem:[#allocation13 + $0x60] sm:$0xff]
    %v3180 = vld [vmem:[#allocation13 + $0x68] sm:$0xf]
    %v3181 = vld [vmem:[#allocation13 + $0x6c] sm:$0xff]
    %v3182 = vld [vmem:[#allocation13 + $0x74] sm:$0xf]
    %v3183 = vld [vmem:[#allocation13 + $0x78] sm:$0xff]
    %v3184 = vld [vmem:[#allocation13 + $0x80] sm:$0xf]
    %v3185 = vld [vmem:[#allocation13 + $0x84] sm:$0xff]
    %v3186 = vld [vmem:[#allocation13 + $0x8c] sm:$0xf]
    %v3187 = vld [vmem:[#allocation13 + $0x90] sm:$0xff]
    %v3188 = vld [vmem:[#allocation13 + $0x98] sm:$0xf]
    %v3189 = vld [vmem:[#allocation13 + $0x9c] sm:$0xff]
    %v3190 = vld [vmem:[#allocation13 + $0xa4] sm:$0xf]
    %v3191 = vld [vmem:[#allocation13 + $0xa8] sm:$0xff]
    %v3192 = vld [vmem:[#allocation13 + $0xb0] sm:$0xf]
    %v3193 = vld [vmem:[#allocation13 + $0xb4] sm:$0xff]
    %v3194 = vld [vmem:[#allocation13 + $0xbc] sm:$0xf]
    %v3227 = vunpack.c.l.b16 %v3163
    %v3228 = vunpack.c.h.b16 %v3163
    %v3229 = vunpack.c.l.b16 %v3164
    %v3230 = vunpack.c.l.b16 %v3165
    %v3231 = vunpack.c.h.b16 %v3165
    %v3232 = vunpack.c.l.b16 %v3166
    %v3233 = vunpack.c.l.b16 %v3167
    %v3234 = vunpack.c.h.b16 %v3167
    %v3235 = vunpack.c.l.b16 %v3168
    %v3236 = vunpack.c.l.b16 %v3169
    %v3237 = vunpack.c.h.b16 %v3169
    %v3238 = vunpack.c.l.b16 %v3170
    %v3239 = vunpack.c.l.b16 %v3171
    %v3240 = vunpack.c.h.b16 %v3171
    %v3241 = vunpack.c.l.b16 %v3172
    %v3242 = vunpack.c.l.b16 %v3173
    %v3243 = vunpack.c.h.b16 %v3173
    %v3244 = vunpack.c.l.b16 %v3174
    %v3245 = vunpack.c.l.b16 %v3175
    %v3246 = vunpack.c.h.b16 %v3175
    %v3247 = vunpack.c.l.b16 %v3176
    %v3248 = vunpack.c.l.b16 %v3177
    %v3249 = vunpack.c.h.b16 %v3177
    %v3250 = vunpack.c.l.b16 %v3178
    %v3251 = vunpack.c.l.b16 %v3179
    %v3252 = vunpack.c.h.b16 %v3179
    %v3253 = vunpack.c.l.b16 %v3180
    %v3254 = vunpack.c.l.b16 %v3181
    %v3255 = vunpack.c.h.b16 %v3181
    %v3256 = vunpack.c.l.b16 %v3182
    %v3257 = vunpack.c.l.b16 %v3183
    %v3258 = vunpack.c.h.b16 %v3183
    %v3259 = vunpack.c.l.b16 %v3184
    %v3260 = vunpack.c.l.b16 %v3185
    %v3261 = vunpack.c.h.b16 %v3185
    %v3262 = vunpack.c.l.b16 %v3186
    %v3263 = vunpack.c.l.b16 %v3187
    %v3264 = vunpack.c.h.b16 %v3187
    %v3265 = vunpack.c.l.b16 %v3188
    %v3266 = vunpack.c.l.b16 %v3189
    %v3267 = vunpack.c.h.b16 %v3189
    %v3268 = vunpack.c.l.b16 %v3190
    %v3269 = vunpack.c.l.b16 %v3191
    %v3270 = vunpack.c.h.b16 %v3191
    %v3271 = vunpack.c.l.b16 %v3192
    %v3272 = vunpack.c.l.b16 %v3193
    %v3273 = vunpack.c.h.b16 %v3193
    %v3274 = vunpack.c.l.b16 %v3194
    %v3275 = vpack.c.b16 %v3230, %v3227
    %v3276 = vpack.c.b16 %v3231, %v3228
    %v3277 = vpack.c.b16 %v3232, %v3229
    %v3278 = vpack.c.b16 %v3236, %v3233
    %v3279 = vpack.c.b16 %v3237, %v3234
    %v3280 = vpack.c.b16 %v3238, %v3235
    %v3281 = vpack.c.b16 %v3242, %v3239
    %v3282 = vpack.c.b16 %v3243, %v3240
    %v3283 = vpack.c.b16 %v3244, %v3241
    %v3284 = vpack.c.b16 %v3248, %v3245
    %v3285 = vpack.c.b16 %v3249, %v3246
    %v3286 = vpack.c.b16 %v3250, %v3247
    %v3287 = vpack.c.b16 %v3254, %v3251
    %v3288 = vpack.c.b16 %v3255, %v3252
    %v3289 = vpack.c.b16 %v3256, %v3253
    %v3290 = vpack.c.b16 %v3260, %v3257
    %v3291 = vpack.c.b16 %v3261, %v3258
    %v3292 = vpack.c.b16 %v3262, %v3259
    %v3293 = vpack.c.b16 %v3266, %v3263
    %v3294 = vpack.c.b16 %v3267, %v3264
    %v3295 = vpack.c.b16 %v3268, %v3265
    %v3296 = vpack.c.b16 %v3272, %v3269
    %v3297 = vpack.c.b16 %v3273, %v3270
    %v3298 = vpack.c.b16 %v3274, %v3271
    %3323 = vmatprep.subr.bf16.mxu0 %v3276
    %3324 = vmatpush1.bf16.msra.mxu0 %v3275
    %3325 = vmatprep.subr.bf16.mxu0 %v3279
    %3326 = vmatpush1.bf16.msra.mxu0 %v3278
    %3327 = vmatprep.subr.bf16.mxu0 %v3282
    %3328 = vmatpush1.bf16.msra.mxu0 %v3281
    %3329 = vmatprep.subr.bf16.mxu0 %v3285
    %3330 = vmatpush1.bf16.msra.mxu0 %v3284
    %3331 = vmatprep.subr.bf16.mxu0 %v3288
    %3332 = vmatpush1.bf16.msra.mxu0 %v3287
    %3333 = vmatprep.subr.bf16.mxu0 %v3291
    %3334 = vmatpush1.bf16.msra.mxu0 %v3290
    %3335 = vmatprep.subr.bf16.mxu0 %v3294
    %3336 = vmatpush1.bf16.msra.mxu0 %v3293
    %3337 = vmatprep.subr.bf16.mxu0 %v3297
    %3338 = vmatpush1.bf16.msra.mxu0 %v3296
    %3339 = vmatprep.subr.bf16.mxu0 0
    %3340 = vmatpush1.bf16.msra.mxu0 0
    %3341 = vmatprep.subr.bf16.mxu0 0
    %3342 = vmatpush1.bf16.msra.mxu0 0
    %3343 = vmatprep.subr.bf16.mxu0 0
    %3344 = vmatpush1.bf16.msra.mxu0 0
    %3345 = vmatprep.subr.bf16.mxu0 0
    %3346 = vmatpush1.bf16.msra.mxu0 0
    %3347 = vmatprep.subr.bf16.mxu0 0
    %3348 = vmatpush1.bf16.msra.mxu0 0
    %3349 = vmatprep.subr.bf16.mxu0 0
    %3350 = vmatpush1.bf16.msra.mxu0 0
    %3351 = vmatprep.subr.bf16.mxu0 0
    %3352 = vmatpush1.bf16.msra.mxu0 0
    %3353 = vmatprep.subr.bf16.mxu0 0
    %3354 = vmatpush1.bf16.msra.mxu0 0
    %3355 = vmatprep.mubr.bf16.mxu0 0
    %3356 = vmatmul.mubr.bf16.gmra.mrb[0].mxu0 %v3161
    %v3357 = vpop.f32.mrb[0].mxu0
    %v3358 = vadd.f32 %v514, %v3357
    %v3359 = vpop.f32.mrb[0].mxu0
    %v3360 = vadd.f32 %v518, %v3359
    %v3361 = vpop.f32.mrb[0].mxu0
    %v3362 = vpop.f32.mrb[0].mxu0
    %3363 = vdwg.mxu0
    %3364 = vmatprep.subr.bf16.mxu0 0
    %3365 = vmatpush1.bf16.msra.mxu0 %v3277
    %3366 = vmatprep.subr.bf16.mxu0 0
    %3367 = vmatpush1.bf16.msra.mxu0 %v3280
    %3368 = vmatprep.subr.bf16.mxu0 0
    %3369 = vmatpush1.bf16.msra.mxu0 %v3283
    %3370 = vmatprep.subr.bf16.mxu0 0
    %3371 = vmatpush1.bf16.msra.mxu0 %v3286
    %3372 = vmatprep.subr.bf16.mxu0 0
    %3373 = vmatpush1.bf16.msra.mxu0 %v3289
    %3374 = vmatprep.subr.bf16.mxu0 0
    %3375 = vmatpush1.bf16.msra.mxu0 %v3292
    %3376 = vmatprep.subr.bf16.mxu0 0
    %3377 = vmatpush1.bf16.msra.mxu0 %v3295
    %3378 = vmatprep.subr.bf16.mxu0 0
    %3379 = vmatpush1.bf16.msra.mxu0 %v3298
    %3380 = vmatprep.subr.bf16.mxu0 0
    %3381 = vmatpush1.bf16.msra.mxu0 0
    %3382 = vmatprep.subr.bf16.mxu0 0
    %3383 = vmatpush1.bf16.msra.mxu0 0
    %3384 = vmatprep.subr.bf16.mxu0 0
    %3385 = vmatpush1.bf16.msra.mxu0 0
    %3386 = vmatprep.subr.bf16.mxu0 0
    %3387 = vmatpush1.bf16.msra.mxu0 0
    %3388 = vmatprep.subr.bf16.mxu0 0
    %3389 = vmatpush1.bf16.msra.mxu0 0
    %3390 = vmatprep.subr.bf16.mxu0 0
    %3391 = vmatpush1.bf16.msra.mxu0 0
    %3392 = vmatprep.subr.bf16.mxu0 0
    %3393 = vmatpush1.bf16.msra.mxu0 0
    %3394 = vmatprep.subr.bf16.mxu0 0
    %3395 = vmatpush1.bf16.msra.mxu0 0
    %3396 = vmatprep.mubr.bf16.mxu0 0
    %3397 = vmatmul.mubr.bf16.gmra.mrb[0].mxu0 %v3161
    %v3398 = vpop.f32.mrb[0].mxu0
    %v3399 = vadd.f32 %v522, %v3398
    %v3400 = vpop.f32.mrb[0].mxu0
    %v3401 = vpop.f32.mrb[0].mxu0
    %v3402 = vpop.f32.mrb[0].mxu0
    %3403 = vdwg.mxu0
    %v3404 = vld [vmem:[%s1048] sm:$0xf]
    %v3405 = vld [vmem:[#allocation14] sm:$0xff]
    %v3406 = vld [vmem:[#allocation14 + $0x8] sm:$0xf]
    %v3407 = vld [vmem:[#allocation14 + $0xc] sm:$0xff]
    %v3408 = vld [vmem:[#allocation14 + $0x14] sm:$0xf]
    %v3409 = vld [vmem:[#allocation14 + $0x18] sm:$0xff]
    %v3410 = vld [vmem:[#allocation14 + $0x20] sm:$0xf]
    %v3411 = vld [vmem:[#allocation14 + $0x24] sm:$0xff]
    %v3412 = vld [vmem:[#allocation14 + $0x2c] sm:$0xf]
    %v3413 = vld [vmem:[#allocation14 + $0x30] sm:$0xff]
    %v3414 = vld [vmem:[#allocation14 + $0x38] sm:$0xf]
    %v3415 = vld [vmem:[#allocation14 + $0x3c] sm:$0xff]
    %v3416 = vld [vmem:[#allocation14 + $0x44] sm:$0xf]
    %v3417 = vld [vmem:[#allocation14 + $0x48] sm:$0xff]
    %v3418 = vld [vmem:[#allocation14 + $0x50] sm:$0xf]
    %v3419 = vld [vmem:[#allocation14 + $0x54] sm:$0xff]
    %v3420 = vld [vmem:[#allocation14 + $0x5c] sm:$0xf]
    %v3421 = vld [vmem:[#allocation14 + $0x60] sm:$0xff]
    %v3422 = vld [vmem:[#allocation14 + $0x68] sm:$0xf]
    %v3423 = vld [vmem:[#allocation14 + $0x6c] sm:$0xff]
    %v3424 = vld [vmem:[#allocation14 + $0x74] sm:$0xf]
    %v3425 = vld [vmem:[#allocation14 + $0x78] sm:$0xff]
    %v3426 = vld [vmem:[#allocation14 + $0x80] sm:$0xf]
    %v3427 = vld [vmem:[#allocation14 + $0x84] sm:$0xff]
    %v3428 = vld [vmem:[#allocation14 + $0x8c] sm:$0xf]
    %v3429 = vld [vmem:[#allocation14 + $0x90] sm:$0xff]
    %v3430 = vld [vmem:[#allocation14 + $0x98] sm:$0xf]
    %v3431 = vld [vmem:[#allocation14 + $0x9c] sm:$0xff]
    %v3432 = vld [vmem:[#allocation14 + $0xa4] sm:$0xf]
    %v3433 = vld [vmem:[#allocation14 + $0xa8] sm:$0xff]
    %v3434 = vld [vmem:[#allocation14 + $0xb0] sm:$0xf]
    %v3435 = vld [vmem:[#allocation14 + $0xb4] sm:$0xff]
    %v3436 = vld [vmem:[#allocation14 + $0xbc] sm:$0xf]
    %v3469 = vunpack.c.l.b16 %v3405
    %v3470 = vunpack.c.h.b16 %v3405
    %v3471 = vunpack.c.l.b16 %v3406
    %v3472 = vunpack.c.l.b16 %v3407
    %v3473 = vunpack.c.h.b16 %v3407
    %v3474 = vunpack.c.l.b16 %v3408
    %v3475 = vunpack.c.l.b16 %v3409
    %v3476 = vunpack.c.h.b16 %v3409
    %v3477 = vunpack.c.l.b16 %v3410
    %v3478 = vunpack.c.l.b16 %v3411
    %v3479 = vunpack.c.h.b16 %v3411
    %v3480 = vunpack.c.l.b16 %v3412
    %v3481 = vunpack.c.l.b16 %v3413
    %v3482 = vunpack.c.h.b16 %v3413
    %v3483 = vunpack.c.l.b16 %v3414
    %v3484 = vunpack.c.l.b16 %v3415
    %v3485 = vunpack.c.h.b16 %v3415
    %v3486 = vunpack.c.l.b16 %v3416
    %v3487 = vunpack.c.l.b16 %v3417
    %v3488 = vunpack.c.h.b16 %v3417
    %v3489 = vunpack.c.l.b16 %v3418
    %v3490 = vunpack.c.l.b16 %v3419
    %v3491 = vunpack.c.h.b16 %v3419
    %v3492 = vunpack.c.l.b16 %v3420
    %v3493 = vunpack.c.l.b16 %v3421
    %v3494 = vunpack.c.h.b16 %v3421
    %v3495 = vunpack.c.l.b16 %v3422
    %v3496 = vunpack.c.l.b16 %v3423
    %v3497 = vunpack.c.h.b16 %v3423
    %v3498 = vunpack.c.l.b16 %v3424
    %v3499 = vunpack.c.l.b16 %v3425
    %v3500 = vunpack.c.h.b16 %v3425
    %v3501 = vunpack.c.l.b16 %v3426
    %v3502 = vunpack.c.l.b16 %v3427
    %v3503 = vunpack.c.h.b16 %v3427
    %v3504 = vunpack.c.l.b16 %v3428
    %v3505 = vunpack.c.l.b16 %v3429
    %v3506 = vunpack.c.h.b16 %v3429
    %v3507 = vunpack.c.l.b16 %v3430
    %v3508 = vunpack.c.l.b16 %v3431
    %v3509 = vunpack.c.h.b16 %v3431
    %v3510 = vunpack.c.l.b16 %v3432
    %v3511 = vunpack.c.l.b16 %v3433
    %v3512 = vunpack.c.h.b16 %v3433
    %v3513 = vunpack.c.l.b16 %v3434
    %v3514 = vunpack.c.l.b16 %v3435
    %v3515 = vunpack.c.h.b16 %v3435
    %v3516 = vunpack.c.l.b16 %v3436
    %v3517 = vpack.c.b16 %v3472, %v3469
    %v3518 = vpack.c.b16 %v3473, %v3470
    %v3519 = vpack.c.b16 %v3474, %v3471
    %v3520 = vpack.c.b16 %v3478, %v3475
    %v3521 = vpack.c.b16 %v3479, %v3476
    %v3522 = vpack.c.b16 %v3480, %v3477
    %v3523 = vpack.c.b16 %v3484, %v3481
    %v3524 = vpack.c.b16 %v3485, %v3482
    %v3525 = vpack.c.b16 %v3486, %v3483
    %v3526 = vpack.c.b16 %v3490, %v3487
    %v3527 = vpack.c.b16 %v3491, %v3488
    %v3528 = vpack.c.b16 %v3492, %v3489
    %v3529 = vpack.c.b16 %v3496, %v3493
    %v3530 = vpack.c.b16 %v3497, %v3494
    %v3531 = vpack.c.b16 %v3498, %v3495
    %v3532 = vpack.c.b16 %v3502, %v3499
    %v3533 = vpack.c.b16 %v3503, %v3500
    %v3534 = vpack.c.b16 %v3504, %v3501
    %v3535 = vpack.c.b16 %v3508, %v3505
    %v3536 = vpack.c.b16 %v3509, %v3506
    %v3537 = vpack.c.b16 %v3510, %v3507
    %v3538 = vpack.c.b16 %v3514, %v3511
    %v3539 = vpack.c.b16 %v3515, %v3512
    %v3540 = vpack.c.b16 %v3516, %v3513
    %3565 = vmatprep.subr.bf16.mxu0 %v3518
    %3566 = vmatpush1.bf16.msra.mxu0 %v3517
    %3567 = vmatprep.subr.bf16.mxu0 %v3521
    %3568 = vmatpush1.bf16.msra.mxu0 %v3520
    %3569 = vmatprep.subr.bf16.mxu0 %v3524
    %3570 = vmatpush1.bf16.msra.mxu0 %v3523
    %3571 = vmatprep.subr.bf16.mxu0 %v3527
    %3572 = vmatpush1.bf16.msra.mxu0 %v3526
    %3573 = vmatprep.subr.bf16.mxu0 %v3530
    %3574 = vmatpush1.bf16.msra.mxu0 %v3529
    %3575 = vmatprep.subr.bf16.mxu0 %v3533
    %3576 = vmatpush1.bf16.msra.mxu0 %v3532
    %3577 = vmatprep.subr.bf16.mxu0 %v3536
    %3578 = vmatpush1.bf16.msra.mxu0 %v3535
    %3579 = vmatprep.subr.bf16.mxu0 %v3539
    %3580 = vmatpush1.bf16.msra.mxu0 %v3538
    %3581 = vmatprep.subr.bf16.mxu0 0
    %3582 = vmatpush1.bf16.msra.mxu0 0
    %3583 = vmatprep.subr.bf16.mxu0 0
    %3584 = vmatpush1.bf16.msra.mxu0 0
    %3585 = vmatprep.subr.bf16.mxu0 0
    %3586 = vmatpush1.bf16.msra.mxu0 0
    %3587 = vmatprep.subr.bf16.mxu0 0
    %3588 = vmatpush1.bf16.msra.mxu0 0
    %3589 = vmatprep.subr.bf16.mxu0 0
    %3590 = vmatpush1.bf16.msra.mxu0 0
    %3591 = vmatprep.subr.bf16.mxu0 0
    %3592 = vmatpush1.bf16.msra.mxu0 0
    %3593 = vmatprep.subr.bf16.mxu0 0
    %3594 = vmatpush1.bf16.msra.mxu0 0
    %3595 = vmatprep.subr.bf16.mxu0 0
    %3596 = vmatpush1.bf16.msra.mxu0 0
    %3597 = vmatprep.mubr.bf16.mxu0 0
    %3598 = vmatmul.mubr.bf16.gmra.mrb[0].mxu0 %v3404
    %v3599 = vpop.f32.mrb[0].mxu0
    %v3600 = vadd.f32 0.0, %v3599
    %v3601 = vpop.f32.mrb[0].mxu0
    %v3602 = vadd.f32 0.0, %v3601
    %v3603 = vpop.f32.mrb[0].mxu0
    %v3604 = vpop.f32.mrb[0].mxu0
    %3605 = vdwg.mxu0
    %3606 = vmatprep.subr.bf16.mxu0 0
    %3607 = vmatpush1.bf16.msra.mxu0 %v3519
    %3608 = vmatprep.subr.bf16.mxu0 0
    %3609 = vmatpush1.bf16.msra.mxu0 %v3522
    %3610 = vmatprep.subr.bf16.mxu0 0
    %3611 = vmatpush1.bf16.msra.mxu0 %v3525
    %3612 = vmatprep.subr.bf16.mxu0 0
    %3613 = vmatpush1.bf16.msra.mxu0 %v3528
    %3614 = vmatprep.subr.bf16.mxu0 0
    %3615 = vmatpush1.bf16.msra.mxu0 %v3531
    %3616 = vmatprep.subr.bf16.mxu0 0
    %3617 = vmatpush1.bf16.msra.mxu0 %v3534
    %3618 = vmatprep.subr.bf16.mxu0 0
    %3619 = vmatpush1.bf16.msra.mxu0 %v3537
    %3620 = vmatprep.subr.bf16.mxu0 0
    %3621 = vmatpush1.bf16.msra.mxu0 %v3540
    %3622 = vmatprep.subr.bf16.mxu0 0
    %3623 = vmatpush1.bf16.msra.mxu0 0
    %3624 = vmatprep.subr.bf16.mxu0 0
    %3625 = vmatpush1.bf16.msra.mxu0 0
    %3626 = vmatprep.subr.bf16.mxu0 0
    %3627 = vmatpush1.bf16.msra.mxu0 0
    %3628 = vmatprep.subr.bf16.mxu0 0
    %3629 = vmatpush1.bf16.msra.mxu0 0
    %3630 = vmatprep.subr.bf16.mxu0 0
    %3631 = vmatpush1.bf16.msra.mxu0 0
    %3632 = vmatprep.subr.bf16.mxu0 0
    %3633 = vmatpush1.bf16.msra.mxu0 0
    %3634 = vmatprep.subr.bf16.mxu0 0
    %3635 = vmatpush1.bf16.msra.mxu0 0
    %3636 = vmatprep.subr.bf16.mxu0 0
    %3637 = vmatpush1.bf16.msra.mxu0 0
    %3638 = vmatprep.mubr.bf16.mxu0 0
    %3639 = vmatmul.mubr.bf16.gmra.mrb[0].mxu0 %v3404
    %v3640 = vpop.f32.mrb[0].mxu0
    %v3641 = vadd.f32 0.0, %v3640
    %v3642 = vpop.f32.mrb[0].mxu0
    %v3643 = vpop.f32.mrb[0].mxu0
    %v3644 = vpop.f32.mrb[0].mxu0
    %3645 = vdwg.mxu0
    %v3646 = vld [vmem:[%s1291] sm:$0xff]
    %v3647 = vadd.f32 %v3358, %v3600
    %v3648 = vxor.u32 %v3647, 2147483648
    %v3649 = vmul.f32 %v3648, 1.442695
    %v3650 = vpow.pop %v3649
    %v3651 = vadd.f32 %v3650, 1.0
    %v3652 = vrcp.pop %v3651
    %v3653 = vmul.f32 1.0, %v3652
    %v3654 = vadd.f32 %v3360, %v3602
    %v3655 = vxor.u32 %v3654, 2147483648
    %v3656 = vmul.f32 %v3655, 1.442695
    %v3657 = vpow.pop %v3656
    %v3658 = vadd.f32 %v3657, 1.0
    %v3659 = vrcp.pop %v3658
    %v3660 = vmul.f32 1.0, %v3659
    %v3661 = vadd.f32 %v3641, %v531
    %v3662 = vmul.f32 %v3653, %v3661
    %v3663 = vadd.f32 %v3399, %v3662
    %v3664 = vtanh.pop %v3663
    %v3665 = vsub.f32 1.0, %v3660
    %v3666 = vmul.f32 %v3665, %v3664
    %v3667 = vmul.f32 %v3660, %v3646
    %v3668 = vadd.f32 %v3666, %v3667
    %3669 = vst [vmem:[%s1291] sm:$0xff] %v3668
    %v3670 = vpack.c.bf16 %v3668, %v3668
    %3671 = vst [vmem:[%s1048] sm:$0xf] %v3670
    %s3672 = scalar_lea.vmem [#allocation16], 12
    %3673 = vst [vmem:[%s3672] sm:$0xf] %v3670
    %s3674 = smul.u32 4, 3
    %s3675 = smul.addr %s3674, 8
    %s3676 = scalar_lea.vmem [#allocation4], %s3675
    %v3677 = vld [vmem:[%s3676] sm:$0xff]
    %v3678 = vld [vmem:[%s3676 + $0x8] sm:$0xff]
    %v3679 = vld [vmem:[%s3676 + $0x10] sm:$0xff]
    %v3680 = vld [vmem:[#allocation3] sm:$0xf]
    %v3681 = vld [vmem:[#allocation11] sm:$0xff]
    %v3682 = vld [vmem:[#allocation11 + $0x8] sm:$0xf]
    %v3683 = vld [vmem:[#allocation11 + $0xc] sm:$0xff]
    %v3684 = vld [vmem:[#allocation11 + $0x14] sm:$0xf]
    %v3685 = vld [vmem:[#allocation11 + $0x18] sm:$0xff]
    %v3686 = vld [vmem:[#allocation11 + $0x20] sm:$0xf]
    %v3687 = vld [vmem:[#allocation11 + $0x24] sm:$0xff]
    %v3688 = vld [vmem:[#allocation11 + $0x2c] sm:$0xf]
    %v3689 = vld [vmem:[#allocation11 + $0x30] sm:$0xff]
    %v3690 = vld [vmem:[#allocation11 + $0x38] sm:$0xf]
    %v3691 = vld [vmem:[#allocation11 + $0x3c] sm:$0xff]
    %v3692 = vld [vmem:[#allocation11 + $0x44] sm:$0xf]
    %v3693 = vld [vmem:[#allocation11 + $0x48] sm:$0xff]
    %v3694 = vld [vmem:[#allocation11 + $0x50] sm:$0xf]
    %v3695 = vld [vmem:[#allocation11 + $0x54] sm:$0xff]
    %v3696 = vld [vmem:[#allocation11 + $0x5c] sm:$0xf]
    %v3697 = vld [vmem:[#allocation11 + $0x60] sm:$0xff]
    %v3698 = vld [vmem:[#allocation11 + $0x68] sm:$0xf]
    %v3699 = vld [vmem:[#allocation11 + $0x6c] sm:$0xff]
    %v3700 = vld [vmem:[#allocation11 + $0x74] sm:$0xf]
    %v3701 = vld [vmem:[#allocation11 + $0x78] sm:$0xff]
    %v3702 = vld [vmem:[#allocation11 + $0x80] sm:$0xf]
    %v3703 = vld [vmem:[#allocation11 + $0x84] sm:$0xff]
    %v3704 = vld [vmem:[#allocation11 + $0x8c] sm:$0xf]
    %v3705 = vld [vmem:[#allocation11 + $0x90] sm:$0xff]
    %v3706 = vld [vmem:[#allocation11 + $0x98] sm:$0xf]
    %v3707 = vld [vmem:[#allocation11 + $0x9c] sm:$0xff]
    %v3708 = vld [vmem:[#allocation11 + $0xa4] sm:$0xf]
    %v3709 = vld [vmem:[#allocation11 + $0xa8] sm:$0xff]
    %v3710 = vld [vmem:[#allocation11 + $0xb0] sm:$0xf]
    %v3711 = vld [vmem:[#allocation11 + $0xb4] sm:$0xff]
    %v3712 = vld [vmem:[#allocation11 + $0xbc] sm:$0xf]
    %v3745 = vunpack.c.l.b16 %v3681
    %v3746 = vunpack.c.h.b16 %v3681
    %v3747 = vunpack.c.l.b16 %v3682
    %v3748 = vunpack.c.l.b16 %v3683
    %v3749 = vunpack.c.h.b16 %v3683
    %v3750 = vunpack.c.l.b16 %v3684
    %v3751 = vunpack.c.l.b16 %v3685
    %v3752 = vunpack.c.h.b16 %v3685
    %v3753 = vunpack.c.l.b16 %v3686
    %v3754 = vunpack.c.l.b16 %v3687
    %v3755 = vunpack.c.h.b16 %v3687
    %v3756 = vunpack.c.l.b16 %v3688
    %v3757 = vunpack.c.l.b16 %v3689
    %v3758 = vunpack.c.h.b16 %v3689
    %v3759 = vunpack.c.l.b16 %v3690
    %v3760 = vunpack.c.l.b16 %v3691
    %v3761 = vunpack.c.h.b16 %v3691
    %v3762 = vunpack.c.l.b16 %v3692
    %v3763 = vunpack.c.l.b16 %v3693
    %v3764 = vunpack.c.h.b16 %v3693
    %v3765 = vunpack.c.l.b16 %v3694
    %v3766 = vunpack.c.l.b16 %v3695
    %v3767 = vunpack.c.h.b16 %v3695
    %v3768 = vunpack.c.l.b16 %v3696
    %v3769 = vunpack.c.l.b16 %v3697
    %v3770 = vunpack.c.h.b16 %v3697
    %v3771 = vunpack.c.l.b16 %v3698
    %v3772 = vunpack.c.l.b16 %v3699
    %v3773 = vunpack.c.h.b16 %v3699
    %v3774 = vunpack.c.l.b16 %v3700
    %v3775 = vunpack.c.l.b16 %v3701
    %v3776 = vunpack.c.h.b16 %v3701
    %v3777 = vunpack.c.l.b16 %v3702
    %v3778 = vunpack.c.l.b16 %v3703
    %v3779 = vunpack.c.h.b16 %v3703
    %v3780 = vunpack.c.l.b16 %v3704
    %v3781 = vunpack.c.l.b16 %v3705
    %v3782 = vunpack.c.h.b16 %v3705
    %v3783 = vunpack.c.l.b16 %v3706
    %v3784 = vunpack.c.l.b16 %v3707
    %v3785 = vunpack.c.h.b16 %v3707
    %v3786 = vunpack.c.l.b16 %v3708
    %v3787 = vunpack.c.l.b16 %v3709
    %v3788 = vunpack.c.h.b16 %v3709
    %v3789 = vunpack.c.l.b16 %v3710
    %v3790 = vunpack.c.l.b16 %v3711
    %v3791 = vunpack.c.h.b16 %v3711
    %v3792 = vunpack.c.l.b16 %v3712
    %v3793 = vpack.c.b16 %v3748, %v3745
    %v3794 = vpack.c.b16 %v3749, %v3746
    %v3795 = vpack.c.b16 %v3750, %v3747
    %v3796 = vpack.c.b16 %v3754, %v3751
    %v3797 = vpack.c.b16 %v3755, %v3752
    %v3798 = vpack.c.b16 %v3756, %v3753
    %v3799 = vpack.c.b16 %v3760, %v3757
    %v3800 = vpack.c.b16 %v3761, %v3758
    %v3801 = vpack.c.b16 %v3762, %v3759
    %v3802 = vpack.c.b16 %v3766, %v3763
    %v3803 = vpack.c.b16 %v3767, %v3764
    %v3804 = vpack.c.b16 %v3768, %v3765
    %v3805 = vpack.c.b16 %v3772, %v3769
    %v3806 = vpack.c.b16 %v3773, %v3770
    %v3807 = vpack.c.b16 %v3774, %v3771
    %v3808 = vpack.c.b16 %v3778, %v3775
    %v3809 = vpack.c.b16 %v3779, %v3776
    %v3810 = vpack.c.b16 %v3780, %v3777
    %v3811 = vpack.c.b16 %v3784, %v3781
    %v3812 = vpack.c.b16 %v3785, %v3782
    %v3813 = vpack.c.b16 %v3786, %v3783
    %v3814 = vpack.c.b16 %v3790, %v3787
    %v3815 = vpack.c.b16 %v3791, %v3788
    %v3816 = vpack.c.b16 %v3792, %v3789
    %3841 = vmatprep.subr.bf16.mxu0 %v3794
    %3842 = vmatpush1.bf16.msra.mxu0 %v3793
    %3843 = vmatprep.subr.bf16.mxu0 %v3797
    %3844 = vmatpush1.bf16.msra.mxu0 %v3796
    %3845 = vmatprep.subr.bf16.mxu0 %v3800
    %3846 = vmatpush1.bf16.msra.mxu0 %v3799
    %3847 = vmatprep.subr.bf16.mxu0 %v3803
    %3848 = vmatpush1.bf16.msra.mxu0 %v3802
    %3849 = vmatprep.subr.bf16.mxu0 %v3806
    %3850 = vmatpush1.bf16.msra.mxu0 %v3805
    %3851 = vmatprep.subr.bf16.mxu0 %v3809
    %3852 = vmatpush1.bf16.msra.mxu0 %v3808
    %3853 = vmatprep.subr.bf16.mxu0 %v3812
    %3854 = vmatpush1.bf16.msra.mxu0 %v3811
    %3855 = vmatprep.subr.bf16.mxu0 %v3815
    %3856 = vmatpush1.bf16.msra.mxu0 %v3814
    %3857 = vmatprep.subr.bf16.mxu0 0
    %3858 = vmatpush1.bf16.msra.mxu0 0
    %3859 = vmatprep.subr.bf16.mxu0 0
    %3860 = vmatpush1.bf16.msra.mxu0 0
    %3861 = vmatprep.subr.bf16.mxu0 0
    %3862 = vmatpush1.bf16.msra.mxu0 0
    %3863 = vmatprep.subr.bf16.mxu0 0
    %3864 = vmatpush1.bf16.msra.mxu0 0
    %3865 = vmatprep.subr.bf16.mxu0 0
    %3866 = vmatpush1.bf16.msra.mxu0 0
    %3867 = vmatprep.subr.bf16.mxu0 0
    %3868 = vmatpush1.bf16.msra.mxu0 0
    %3869 = vmatprep.subr.bf16.mxu0 0
    %3870 = vmatpush1.bf16.msra.mxu0 0
    %3871 = vmatprep.subr.bf16.mxu0 0
    %3872 = vmatpush1.bf16.msra.mxu0 0
    %3873 = vmatprep.mubr.bf16.mxu0 0
    %3874 = vmatmul.mubr.bf16.gmra.mrb[0].mxu0 %v3680
    %v3875 = vpop.f32.mrb[0].mxu0
    %v3876 = vadd.f32 0.0, %v3875
    %v3877 = vpop.f32.mrb[0].mxu0
    %v3878 = vadd.f32 0.0, %v3877
    %v3879 = vpop.f32.mrb[0].mxu0
    %v3880 = vpop.f32.mrb[0].mxu0
    %3881 = vdwg.mxu0
    %3882 = vmatprep.subr.bf16.mxu0 0
    %3883 = vmatpush1.bf16.msra.mxu0 %v3795
    %3884 = vmatprep.subr.bf16.mxu0 0
    %3885 = vmatpush1.bf16.msra.mxu0 %v3798
    %3886 = vmatprep.subr.bf16.mxu0 0
    %3887 = vmatpush1.bf16.msra.mxu0 %v3801
    %3888 = vmatprep.subr.bf16.mxu0 0
    %3889 = vmatpush1.bf16.msra.mxu0 %v3804
    %3890 = vmatprep.subr.bf16.mxu0 0
    %3891 = vmatpush1.bf16.msra.mxu0 %v3807
    %3892 = vmatprep.subr.bf16.mxu0 0
    %3893 = vmatpush1.bf16.msra.mxu0 %v3810
    %3894 = vmatprep.subr.bf16.mxu0 0
    %3895 = vmatpush1.bf16.msra.mxu0 %v3813
    %3896 = vmatprep.subr.bf16.mxu0 0
    %3897 = vmatpush1.bf16.msra.mxu0 %v3816
    %3898 = vmatprep.subr.bf16.mxu0 0
    %3899 = vmatpush1.bf16.msra.mxu0 0
    %3900 = vmatprep.subr.bf16.mxu0 0
    %3901 = vmatpush1.bf16.msra.mxu0 0
    %3902 = vmatprep.subr.bf16.mxu0 0
    %3903 = vmatpush1.bf16.msra.mxu0 0
    %3904 = vmatprep.subr.bf16.mxu0 0
    %3905 = vmatpush1.bf16.msra.mxu0 0
    %3906 = vmatprep.subr.bf16.mxu0 0
    %3907 = vmatpush1.bf16.msra.mxu0 0
    %3908 = vmatprep.subr.bf16.mxu0 0
    %3909 = vmatpush1.bf16.msra.mxu0 0
    %3910 = vmatprep.subr.bf16.mxu0 0
    %3911 = vmatpush1.bf16.msra.mxu0 0
    %3912 = vmatprep.subr.bf16.mxu0 0
    %3913 = vmatpush1.bf16.msra.mxu0 0
    %3914 = vmatprep.mubr.bf16.mxu0 0
    %3915 = vmatmul.mubr.bf16.gmra.mrb[0].mxu0 %v3680
    %v3916 = vpop.f32.mrb[0].mxu0
    %v3917 = vadd.f32 0.0, %v3916
    %v3918 = vpop.f32.mrb[0].mxu0
    %v3919 = vpop.f32.mrb[0].mxu0
    %v3920 = vpop.f32.mrb[0].mxu0
    %3921 = vdwg.mxu0
    %v3922 = vld [vmem:[#allocation2] sm:$0xff]
    %v3923 = vadd.f32 %v3677, %v3876
    %v3924 = vxor.u32 %v3923, 2147483648
    %v3925 = vmul.f32 %v3924, 1.442695
    %v3926 = vpow.pop %v3925
    %v3927 = vadd.f32 %v3926, 1.0
    %v3928 = vrcp.pop %v3927
    %v3929 = vmul.f32 1.0, %v3928
    %v3930 = vadd.f32 %v3678, %v3878
    %v3931 = vxor.u32 %v3930, 2147483648
    %v3932 = vmul.f32 %v3931, 1.442695
    %v3933 = vpow.pop %v3932
    %v3934 = vadd.f32 %v3933, 1.0
    %v3935 = vrcp.pop %v3934
    %v3936 = vmul.f32 1.0, %v3935
    %v3937 = vadd.f32 %v3917, %v507
    %v3938 = vmul.f32 %v3929, %v3937
    %v3939 = vadd.f32 %v3679, %v3938
    %v3940 = vtanh.pop %v3939
    %v3941 = vsub.f32 1.0, %v3936
    %v3942 = vmul.f32 %v3941, %v3940
    %v3943 = vmul.f32 %v3936, %v3922
    %v3944 = vadd.f32 %v3942, %v3943
    %3945 = vst [vmem:[#allocation2] sm:$0xff] %v3944
    %v3946 = vpack.c.bf16 %v3944, %v3944
    %3947 = vst [vmem:[#allocation3] sm:$0xf] %v3946
    %v3948 = vld [vmem:[#allocation13] sm:$0xff]
    %v3949 = vld [vmem:[#allocation13 + $0x8] sm:$0xf]
    %v3950 = vld [vmem:[#allocation13 + $0xc] sm:$0xff]
    %v3951 = vld [vmem:[#allocation13 + $0x14] sm:$0xf]
    %v3952 = vld [vmem:[#allocation13 + $0x18] sm:$0xff]
    %v3953 = vld [vmem:[#allocation13 + $0x20] sm:$0xf]
    %v3954 = vld [vmem:[#allocation13 + $0x24] sm:$0xff]
    %v3955 = vld [vmem:[#allocation13 + $0x2c] sm:$0xf]
    %v3956 = vld [vmem:[#allocation13 + $0x30] sm:$0xff]
    %v3957 = vld [vmem:[#allocation13 + $0x38] sm:$0xf]
    %v3958 = vld [vmem:[#allocation13 + $0x3c] sm:$0xff]
    %v3959 = vld [vmem:[#allocation13 + $0x44] sm:$0xf]
    %v3960 = vld [vmem:[#allocation13 + $0x48] sm:$0xff]
    %v3961 = vld [vmem:[#allocation13 + $0x50] sm:$0xf]
    %v3962 = vld [vmem:[#allocation13 + $0x54] sm:$0xff]
    %v3963 = vld [vmem:[#allocation13 + $0x5c] sm:$0xf]
    %v3964 = vld [vmem:[#allocation13 + $0x60] sm:$0xff]
    %v3965 = vld [vmem:[#allocation13 + $0x68] sm:$0xf]
    %v3966 = vld [vmem:[#allocation13 + $0x6c] sm:$0xff]
    %v3967 = vld [vmem:[#allocation13 + $0x74] sm:$0xf]
    %v3968 = vld [vmem:[#allocation13 + $0x78] sm:$0xff]
    %v3969 = vld [vmem:[#allocation13 + $0x80] sm:$0xf]
    %v3970 = vld [vmem:[#allocation13 + $0x84] sm:$0xff]
    %v3971 = vld [vmem:[#allocation13 + $0x8c] sm:$0xf]
    %v3972 = vld [vmem:[#allocation13 + $0x90] sm:$0xff]
    %v3973 = vld [vmem:[#allocation13 + $0x98] sm:$0xf]
    %v3974 = vld [vmem:[#allocation13 + $0x9c] sm:$0xff]
    %v3975 = vld [vmem:[#allocation13 + $0xa4] sm:$0xf]
    %v3976 = vld [vmem:[#allocation13 + $0xa8] sm:$0xff]
    %v3977 = vld [vmem:[#allocation13 + $0xb0] sm:$0xf]
    %v3978 = vld [vmem:[#allocation13 + $0xb4] sm:$0xff]
    %v3979 = vld [vmem:[#allocation13 + $0xbc] sm:$0xf]
    %v4012 = vunpack.c.l.b16 %v3948
    %v4013 = vunpack.c.h.b16 %v3948
    %v4014 = vunpack.c.l.b16 %v3949
    %v4015 = vunpack.c.l.b16 %v3950
    %v4016 = vunpack.c.h.b16 %v3950
    %v4017 = vunpack.c.l.b16 %v3951
    %v4018 = vunpack.c.l.b16 %v3952
    %v4019 = vunpack.c.h.b16 %v3952
    %v4020 = vunpack.c.l.b16 %v3953
    %v4021 = vunpack.c.l.b16 %v3954
    %v4022 = vunpack.c.h.b16 %v3954
    %v4023 = vunpack.c.l.b16 %v3955
    %v4024 = vunpack.c.l.b16 %v3956
    %v4025 = vunpack.c.h.b16 %v3956
    %v4026 = vunpack.c.l.b16 %v3957
    %v4027 = vunpack.c.l.b16 %v3958
    %v4028 = vunpack.c.h.b16 %v3958
    %v4029 = vunpack.c.l.b16 %v3959
    %v4030 = vunpack.c.l.b16 %v3960
    %v4031 = vunpack.c.h.b16 %v3960
    %v4032 = vunpack.c.l.b16 %v3961
    %v4033 = vunpack.c.l.b16 %v3962
    %v4034 = vunpack.c.h.b16 %v3962
    %v4035 = vunpack.c.l.b16 %v3963
    %v4036 = vunpack.c.l.b16 %v3964
    %v4037 = vunpack.c.h.b16 %v3964
    %v4038 = vunpack.c.l.b16 %v3965
    %v4039 = vunpack.c.l.b16 %v3966
    %v4040 = vunpack.c.h.b16 %v3966
    %v4041 = vunpack.c.l.b16 %v3967
    %v4042 = vunpack.c.l.b16 %v3968
    %v4043 = vunpack.c.h.b16 %v3968
    %v4044 = vunpack.c.l.b16 %v3969
    %v4045 = vunpack.c.l.b16 %v3970
    %v4046 = vunpack.c.h.b16 %v3970
    %v4047 = vunpack.c.l.b16 %v3971
    %v4048 = vunpack.c.l.b16 %v3972
    %v4049 = vunpack.c.h.b16 %v3972
    %v4050 = vunpack.c.l.b16 %v3973
    %v4051 = vunpack.c.l.b16 %v3974
    %v4052 = vunpack.c.h.b16 %v3974
    %v4053 = vunpack.c.l.b16 %v3975
    %v4054 = vunpack.c.l.b16 %v3976
    %v4055 = vunpack.c.h.b16 %v3976
    %v4056 = vunpack.c.l.b16 %v3977
    %v4057 = vunpack.c.l.b16 %v3978
    %v4058 = vunpack.c.h.b16 %v3978
    %v4059 = vunpack.c.l.b16 %v3979
    %v4060 = vpack.c.b16 %v4015, %v4012
    %v4061 = vpack.c.b16 %v4016, %v4013
    %v4062 = vpack.c.b16 %v4017, %v4014
    %v4063 = vpack.c.b16 %v4021, %v4018
    %v4064 = vpack.c.b16 %v4022, %v4019
    %v4065 = vpack.c.b16 %v4023, %v4020
    %v4066 = vpack.c.b16 %v4027, %v4024
    %v4067 = vpack.c.b16 %v4028, %v4025
    %v4068 = vpack.c.b16 %v4029, %v4026
    %v4069 = vpack.c.b16 %v4033, %v4030
    %v4070 = vpack.c.b16 %v4034, %v4031
    %v4071 = vpack.c.b16 %v4035, %v4032
    %v4072 = vpack.c.b16 %v4039, %v4036
    %v4073 = vpack.c.b16 %v4040, %v4037
    %v4074 = vpack.c.b16 %v4041, %v4038
    %v4075 = vpack.c.b16 %v4045, %v4042
    %v4076 = vpack.c.b16 %v4046, %v4043
    %v4077 = vpack.c.b16 %v4047, %v4044
    %v4078 = vpack.c.b16 %v4051, %v4048
    %v4079 = vpack.c.b16 %v4052, %v4049
    %v4080 = vpack.c.b16 %v4053, %v4050
    %v4081 = vpack.c.b16 %v4057, %v4054
    %v4082 = vpack.c.b16 %v4058, %v4055
    %v4083 = vpack.c.b16 %v4059, %v4056
    %4108 = vmatprep.subr.bf16.mxu0 %v4061
    %4109 = vmatpush1.bf16.msra.mxu0 %v4060
    %4110 = vmatprep.subr.bf16.mxu0 %v4064
    %4111 = vmatpush1.bf16.msra.mxu0 %v4063
    %4112 = vmatprep.subr.bf16.mxu0 %v4067
    %4113 = vmatpush1.bf16.msra.mxu0 %v4066
    %4114 = vmatprep.subr.bf16.mxu0 %v4070
    %4115 = vmatpush1.bf16.msra.mxu0 %v4069
    %4116 = vmatprep.subr.bf16.mxu0 %v4073
    %4117 = vmatpush1.bf16.msra.mxu0 %v4072
    %4118 = vmatprep.subr.bf16.mxu0 %v4076
    %4119 = vmatpush1.bf16.msra.mxu0 %v4075
    %4120 = vmatprep.subr.bf16.mxu0 %v4079
    %4121 = vmatpush1.bf16.msra.mxu0 %v4078
    %4122 = vmatprep.subr.bf16.mxu0 %v4082
    %4123 = vmatpush1.bf16.msra.mxu0 %v4081
    %4124 = vmatprep.subr.bf16.mxu0 0
    %4125 = vmatpush1.bf16.msra.mxu0 0
    %4126 = vmatprep.subr.bf16.mxu0 0
    %4127 = vmatpush1.bf16.msra.mxu0 0
    %4128 = vmatprep.subr.bf16.mxu0 0
    %4129 = vmatpush1.bf16.msra.mxu0 0
    %4130 = vmatprep.subr.bf16.mxu0 0
    %4131 = vmatpush1.bf16.msra.mxu0 0
    %4132 = vmatprep.subr.bf16.mxu0 0
    %4133 = vmatpush1.bf16.msra.mxu0 0
    %4134 = vmatprep.subr.bf16.mxu0 0
    %4135 = vmatpush1.bf16.msra.mxu0 0
    %4136 = vmatprep.subr.bf16.mxu0 0
    %4137 = vmatpush1.bf16.msra.mxu0 0
    %4138 = vmatprep.subr.bf16.mxu0 0
    %4139 = vmatpush1.bf16.msra.mxu0 0
    %4140 = vmatprep.mubr.bf16.mxu0 0
    %4141 = vmatmul.mubr.bf16.gmra.mrb[0].mxu0 %v3946
    %v4142 = vpop.f32.mrb[0].mxu0
    %v4143 = vadd.f32 %v514, %v4142
    %v4144 = vpop.f32.mrb[0].mxu0
    %v4145 = vadd.f32 %v518, %v4144
    %v4146 = vpop.f32.mrb[0].mxu0
    %v4147 = vpop.f32.mrb[0].mxu0
    %4148 = vdwg.mxu0
    %4149 = vmatprep.subr.bf16.mxu0 0
    %4150 = vmatpush1.bf16.msra.mxu0 %v4062
    %4151 = vmatprep.subr.bf16.mxu0 0
    %4152 = vmatpush1.bf16.msra.mxu0 %v4065
    %4153 = vmatprep.subr.bf16.mxu0 0
    %4154 = vmatpush1.bf16.msra.mxu0 %v4068
    %4155 = vmatprep.subr.bf16.mxu0 0
    %4156 = vmatpush1.bf16.msra.mxu0 %v4071
    %4157 = vmatprep.subr.bf16.mxu0 0
    %4158 = vmatpush1.bf16.msra.mxu0 %v4074
    %4159 = vmatprep.subr.bf16.mxu0 0
    %4160 = vmatpush1.bf16.msra.mxu0 %v4077
    %4161 = vmatprep.subr.bf16.mxu0 0
    %4162 = vmatpush1.bf16.msra.mxu0 %v4080
    %4163 = vmatprep.subr.bf16.mxu0 0
    %4164 = vmatpush1.bf16.msra.mxu0 %v4083
    %4165 = vmatprep.subr.bf16.mxu0 0
    %4166 = vmatpush1.bf16.msra.mxu0 0
    %4167 = vmatprep.subr.bf16.mxu0 0
    %4168 = vmatpush1.bf16.msra.mxu0 0
    %4169 = vmatprep.subr.bf16.mxu0 0
    %4170 = vmatpush1.bf16.msra.mxu0 0
    %4171 = vmatprep.subr.bf16.mxu0 0
    %4172 = vmatpush1.bf16.msra.mxu0 0
    %4173 = vmatprep.subr.bf16.mxu0 0
    %4174 = vmatpush1.bf16.msra.mxu0 0
    %4175 = vmatprep.subr.bf16.mxu0 0
    %4176 = vmatpush1.bf16.msra.mxu0 0
    %4177 = vmatprep.subr.bf16.mxu0 0
    %4178 = vmatpush1.bf16.msra.mxu0 0
    %4179 = vmatprep.subr.bf16.mxu0 0
    %4180 = vmatpush1.bf16.msra.mxu0 0
    %4181 = vmatprep.mubr.bf16.mxu0 0
    %4182 = vmatmul.mubr.bf16.gmra.mrb[0].mxu0 %v3946
    %v4183 = vpop.f32.mrb[0].mxu0
    %v4184 = vadd.f32 %v522, %v4183
    %v4185 = vpop.f32.mrb[0].mxu0
    %v4186 = vpop.f32.mrb[0].mxu0
    %v4187 = vpop.f32.mrb[0].mxu0
    %4188 = vdwg.mxu0
    %v4189 = vld [vmem:[%s1048] sm:$0xf]
    %v4190 = vld [vmem:[#allocation14] sm:$0xff]
    %v4191 = vld [vmem:[#allocation14 + $0x8] sm:$0xf]
    %v4192 = vld [vmem:[#allocation14 + $0xc] sm:$0xff]
    %v4193 = vld [vmem:[#allocation14 + $0x14] sm:$0xf]
    %v4194 = vld [vmem:[#allocation14 + $0x18] sm:$0xff]
    %v4195 = vld [vmem:[#allocation14 + $0x20] sm:$0xf]
    %v4196 = vld [vmem:[#allocation14 + $0x24] sm:$0xff]
    %v4197 = vld [vmem:[#allocation14 + $0x2c] sm:$0xf]
    %v4198 = vld [vmem:[#allocation14 + $0x30] sm:$0xff]
    %v4199 = vld [vmem:[#allocation14 + $0x38] sm:$0xf]
    %v4200 = vld [vmem:[#allocation14 + $0x3c] sm:$0xff]
    %v4201 = vld [vmem:[#allocation14 + $0x44] sm:$0xf]
    %v4202 = vld [vmem:[#allocation14 + $0x48] sm:$0xff]
    %v4203 = vld [vmem:[#allocation14 + $0x50] sm:$0xf]
    %v4204 = vld [vmem:[#allocation14 + $0x54] sm:$0xff]
    %v4205 = vld [vmem:[#allocation14 + $0x5c] sm:$0xf]
    %v4206 = vld [vmem:[#allocation14 + $0x60] sm:$0xff]
    %v4207 = vld [vmem:[#allocation14 + $0x68] sm:$0xf]
    %v4208 = vld [vmem:[#allocation14 + $0x6c] sm:$0xff]
    %v4209 = vld [vmem:[#allocation14 + $0x74] sm:$0xf]
    %v4210 = vld [vmem:[#allocation14 + $0x78] sm:$0xff]
    %v4211 = vld [vmem:[#allocation14 + $0x80] sm:$0xf]
    %v4212 = vld [vmem:[#allocation14 + $0x84] sm:$0xff]
    %v4213 = vld [vmem:[#allocation14 + $0x8c] sm:$0xf]
    %v4214 = vld [vmem:[#allocation14 + $0x90] sm:$0xff]
    %v4215 = vld [vmem:[#allocation14 + $0x98] sm:$0xf]
    %v4216 = vld [vmem:[#allocation14 + $0x9c] sm:$0xff]
    %v4217 = vld [vmem:[#allocation14 + $0xa4] sm:$0xf]
    %v4218 = vld [vmem:[#allocation14 + $0xa8] sm:$0xff]
    %v4219 = vld [vmem:[#allocation14 + $0xb0] sm:$0xf]
    %v4220 = vld [vmem:[#allocation14 + $0xb4] sm:$0xff]
    %v4221 = vld [vmem:[#allocation14 + $0xbc] sm:$0xf]
    %v4254 = vunpack.c.l.b16 %v4190
    %v4255 = vunpack.c.h.b16 %v4190
    %v4256 = vunpack.c.l.b16 %v4191
    %v4257 = vunpack.c.l.b16 %v4192
    %v4258 = vunpack.c.h.b16 %v4192
    %v4259 = vunpack.c.l.b16 %v4193
    %v4260 = vunpack.c.l.b16 %v4194
    %v4261 = vunpack.c.h.b16 %v4194
    %v4262 = vunpack.c.l.b16 %v4195
    %v4263 = vunpack.c.l.b16 %v4196
    %v4264 = vunpack.c.h.b16 %v4196
    %v4265 = vunpack.c.l.b16 %v4197
    %v4266 = vunpack.c.l.b16 %v4198
    %v4267 = vunpack.c.h.b16 %v4198
    %v4268 = vunpack.c.l.b16 %v4199
    %v4269 = vunpack.c.l.b16 %v4200
    %v4270 = vunpack.c.h.b16 %v4200
    %v4271 = vunpack.c.l.b16 %v4201
    %v4272 = vunpack.c.l.b16 %v4202
    %v4273 = vunpack.c.h.b16 %v4202
    %v4274 = vunpack.c.l.b16 %v4203
    %v4275 = vunpack.c.l.b16 %v4204
    %v4276 = vunpack.c.h.b16 %v4204
    %v4277 = vunpack.c.l.b16 %v4205
    %v4278 = vunpack.c.l.b16 %v4206
    %v4279 = vunpack.c.h.b16 %v4206
    %v4280 = vunpack.c.l.b16 %v4207
    %v4281 = vunpack.c.l.b16 %v4208
    %v4282 = vunpack.c.h.b16 %v4208
    %v4283 = vunpack.c.l.b16 %v4209
    %v4284 = vunpack.c.l.b16 %v4210
    %v4285 = vunpack.c.h.b16 %v4210
    %v4286 = vunpack.c.l.b16 %v4211
    %v4287 = vunpack.c.l.b16 %v4212
    %v4288 = vunpack.c.h.b16 %v4212
    %v4289 = vunpack.c.l.b16 %v4213
    %v4290 = vunpack.c.l.b16 %v4214
    %v4291 = vunpack.c.h.b16 %v4214
    %v4292 = vunpack.c.l.b16 %v4215
    %v4293 = vunpack.c.l.b16 %v4216
    %v4294 = vunpack.c.h.b16 %v4216
    %v4295 = vunpack.c.l.b16 %v4217
    %v4296 = vunpack.c.l.b16 %v4218
    %v4297 = vunpack.c.h.b16 %v4218
    %v4298 = vunpack.c.l.b16 %v4219
    %v4299 = vunpack.c.l.b16 %v4220
    %v4300 = vunpack.c.h.b16 %v4220
    %v4301 = vunpack.c.l.b16 %v4221
    %v4302 = vpack.c.b16 %v4257, %v4254
    %v4303 = vpack.c.b16 %v4258, %v4255
    %v4304 = vpack.c.b16 %v4259, %v4256
    %v4305 = vpack.c.b16 %v4263, %v4260
    %v4306 = vpack.c.b16 %v4264, %v4261
    %v4307 = vpack.c.b16 %v4265, %v4262
    %v4308 = vpack.c.b16 %v4269, %v4266
    %v4309 = vpack.c.b16 %v4270, %v4267
    %v4310 = vpack.c.b16 %v4271, %v4268
    %v4311 = vpack.c.b16 %v4275, %v4272
    %v4312 = vpack.c.b16 %v4276, %v4273
    %v4313 = vpack.c.b16 %v4277, %v4274
    %v4314 = vpack.c.b16 %v4281, %v4278
    %v4315 = vpack.c.b16 %v4282, %v4279
    %v4316 = vpack.c.b16 %v4283, %v4280
    %v4317 = vpack.c.b16 %v4287, %v4284
    %v4318 = vpack.c.b16 %v4288, %v4285
    %v4319 = vpack.c.b16 %v4289, %v4286
    %v4320 = vpack.c.b16 %v4293, %v4290
    %v4321 = vpack.c.b16 %v4294, %v4291
    %v4322 = vpack.c.b16 %v4295, %v4292
    %v4323 = vpack.c.b16 %v4299, %v4296
    %v4324 = vpack.c.b16 %v4300, %v4297
    %v4325 = vpack.c.b16 %v4301, %v4298
    %4350 = vmatprep.subr.bf16.mxu0 %v4303
    %4351 = vmatpush1.bf16.msra.mxu0 %v4302
    %4352 = vmatprep.subr.bf16.mxu0 %v4306
    %4353 = vmatpush1.bf16.msra.mxu0 %v4305
    %4354 = vmatprep.subr.bf16.mxu0 %v4309
    %4355 = vmatpush1.bf16.msra.mxu0 %v4308
    %4356 = vmatprep.subr.bf16.mxu0 %v4312
    %4357 = vmatpush1.bf16.msra.mxu0 %v4311
    %4358 = vmatprep.subr.bf16.mxu0 %v4315
    %4359 = vmatpush1.bf16.msra.mxu0 %v4314
    %4360 = vmatprep.subr.bf16.mxu0 %v4318
    %4361 = vmatpush1.bf16.msra.mxu0 %v4317
    %4362 = vmatprep.subr.bf16.mxu0 %v4321
    %4363 = vmatpush1.bf16.msra.mxu0 %v4320
    %4364 = vmatprep.subr.bf16.mxu0 %v4324
    %4365 = vmatpush1.bf16.msra.mxu0 %v4323
    %4366 = vmatprep.subr.bf16.mxu0 0
    %4367 = vmatpush1.bf16.msra.mxu0 0
    %4368 = vmatprep.subr.bf16.mxu0 0
    %4369 = vmatpush1.bf16.msra.mxu0 0
    %4370 = vmatprep.subr.bf16.mxu0 0
    %4371 = vmatpush1.bf16.msra.mxu0 0
    %4372 = vmatprep.subr.bf16.mxu0 0
    %4373 = vmatpush1.bf16.msra.mxu0 0
    %4374 = vmatprep.subr.bf16.mxu0 0
    %4375 = vmatpush1.bf16.msra.mxu0 0
    %4376 = vmatprep.subr.bf16.mxu0 0
    %4377 = vmatpush1.bf16.msra.mxu0 0
    %4378 = vmatprep.subr.bf16.mxu0 0
    %4379 = vmatpush1.bf16.msra.mxu0 0
    %4380 = vmatprep.subr.bf16.mxu0 0
    %4381 = vmatpush1.bf16.msra.mxu0 0
    %4382 = vmatprep.mubr.bf16.mxu0 0
    %4383 = vmatmul.mubr.bf16.gmra.mrb[0].mxu0 %v4189
    %v4384 = vpop.f32.mrb[0].mxu0
    %v4385 = vadd.f32 0.0, %v4384
    %v4386 = vpop.f32.mrb[0].mxu0
    %v4387 = vadd.f32 0.0, %v4386
    %v4388 = vpop.f32.mrb[0].mxu0
    %v4389 = vpop.f32.mrb[0].mxu0
    %4390 = vdwg.mxu0
    %4391 = vmatprep.subr.bf16.mxu0 0
    %4392 = vmatpush1.bf16.msra.mxu0 %v4304
    %4393 = vmatprep.subr.bf16.mxu0 0
    %4394 = vmatpush1.bf16.msra.mxu0 %v4307
    %4395 = vmatprep.subr.bf16.mxu0 0
    %4396 = vmatpush1.bf16.msra.mxu0 %v4310
    %4397 = vmatprep.subr.bf16.mxu0 0
    %4398 = vmatpush1.bf16.msra.mxu0 %v4313
    %4399 = vmatprep.subr.bf16.mxu0 0
    %4400 = vmatpush1.bf16.msra.mxu0 %v4316
    %4401 = vmatprep.subr.bf16.mxu0 0
    %4402 = vmatpush1.bf16.msra.mxu0 %v4319
    %4403 = vmatprep.subr.bf16.mxu0 0
    %4404 = vmatpush1.bf16.msra.mxu0 %v4322
    %4405 = vmatprep.subr.bf16.mxu0 0
    %4406 = vmatpush1.bf16.msra.mxu0 %v4325
    %4407 = vmatprep.subr.bf16.mxu0 0
    %4408 = vmatpush1.bf16.msra.mxu0 0
    %4409 = vmatprep.subr.bf16.mxu0 0
    %4410 = vmatpush1.bf16.msra.mxu0 0
    %4411 = vmatprep.subr.bf16.mxu0 0
    %4412 = vmatpush1.bf16.msra.mxu0 0
    %4413 = vmatprep.subr.bf16.mxu0 0
    %4414 = vmatpush1.bf16.msra.mxu0 0
    %4415 = vmatprep.subr.bf16.mxu0 0
    %4416 = vmatpush1.bf16.msra.mxu0 0
    %4417 = vmatprep.subr.bf16.mxu0 0
    %4418 = vmatpush1.bf16.msra.mxu0 0
    %4419 = vmatprep.subr.bf16.mxu0 0
    %4420 = vmatpush1.bf16.msra.mxu0 0
    %4421 = vmatprep.subr.bf16.mxu0 0
    %4422 = vmatpush1.bf16.msra.mxu0 0
    %4423 = vmatprep.mubr.bf16.mxu0 0
    %4424 = vmatmul.mubr.bf16.gmra.mrb[0].mxu0 %v4189
    %v4425 = vpop.f32.mrb[0].mxu0
    %v4426 = vadd.f32 0.0, %v4425
    %v4427 = vpop.f32.mrb[0].mxu0
    %v4428 = vpop.f32.mrb[0].mxu0
    %v4429 = vpop.f32.mrb[0].mxu0
    %4430 = vdwg.mxu0
    %v4431 = vld [vmem:[%s1291] sm:$0xff]
    %v4432 = vadd.f32 %v4143, %v4385
    %v4433 = vxor.u32 %v4432, 2147483648
    %v4434 = vmul.f32 %v4433, 1.442695
    %v4435 = vpow.pop %v4434
    %v4436 = vadd.f32 %v4435, 1.0
    %v4437 = vrcp.pop %v4436
    %v4438 = vmul.f32 1.0, %v4437
    %v4439 = vadd.f32 %v4145, %v4387
    %v4440 = vxor.u32 %v4439, 2147483648
    %v4441 = vmul.f32 %v4440, 1.442695
    %v4442 = vpow.pop %v4441
    %v4443 = vadd.f32 %v4442, 1.0
    %v4444 = vrcp.pop %v4443
    %v4445 = vmul.f32 1.0, %v4444
    %v4446 = vadd.f32 %v4426, %v531
    %v4447 = vmul.f32 %v4438, %v4446
    %v4448 = vadd.f32 %v4184, %v4447
    %v4449 = vtanh.pop %v4448
    %v4450 = vsub.f32 1.0, %v4445
    %v4451 = vmul.f32 %v4450, %v4449
    %v4452 = vmul.f32 %v4445, %v4431
    %v4453 = vadd.f32 %v4451, %v4452
    %4454 = vst [vmem:[%s1291] sm:$0xff] %v4453
    %v4455 = vpack.c.bf16 %v4453, %v4453
    %4456 = vst [vmem:[%s1048] sm:$0xf] %v4455
    %s4457 = scalar_lea.vmem [#allocation16], 16
    %4458 = vst [vmem:[%s4457] sm:$0xf] %v4455
    %s4459 = smul.u32 5, 3
    %s4460 = smul.addr %s4459, 8
    %s4461 = scalar_lea.vmem [#allocation4], %s4460
    %v4462 = vld [vmem:[%s4461] sm:$0xff]
    %v4463 = vld [vmem:[%s4461 + $0x8] sm:$0xff]
    %v4464 = vld [vmem:[%s4461 + $0x10] sm:$0xff]
    %v4465 = vld [vmem:[#allocation3] sm:$0xf]
    %v4466 = vld [vmem:[#allocation11] sm:$0xff]
    %v4467 = vld [vmem:[#allocation11 + $0x8] sm:$0xf]
    %v4468 = vld [vmem:[#allocation11 + $0xc] sm:$0xff]
    %v4469 = vld [vmem:[#allocation11 + $0x14] sm:$0xf]
    %v4470 = vld [vmem:[#allocation11 + $0x18] sm:$0xff]
    %v4471 = vld [vmem:[#allocation11 + $0x20] sm:$0xf]
    %v4472 = vld [vmem:[#allocation11 + $0x24] sm:$0xff]
    %v4473 = vld [vmem:[#allocation11 + $0x2c] sm:$0xf]
    %v4474 = vld [vmem:[#allocation11 + $0x30] sm:$0xff]
    %v4475 = vld [vmem:[#allocation11 + $0x38] sm:$0xf]
    %v4476 = vld [vmem:[#allocation11 + $0x3c] sm:$0xff]
    %v4477 = vld [vmem:[#allocation11 + $0x44] sm:$0xf]
    %v4478 = vld [vmem:[#allocation11 + $0x48] sm:$0xff]
    %v4479 = vld [vmem:[#allocation11 + $0x50] sm:$0xf]
    %v4480 = vld [vmem:[#allocation11 + $0x54] sm:$0xff]
    %v4481 = vld [vmem:[#allocation11 + $0x5c] sm:$0xf]
    %v4482 = vld [vmem:[#allocation11 + $0x60] sm:$0xff]
    %v4483 = vld [vmem:[#allocation11 + $0x68] sm:$0xf]
    %v4484 = vld [vmem:[#allocation11 + $0x6c] sm:$0xff]
    %v4485 = vld [vmem:[#allocation11 + $0x74] sm:$0xf]
    %v4486 = vld [vmem:[#allocation11 + $0x78] sm:$0xff]
    %v4487 = vld [vmem:[#allocation11 + $0x80] sm:$0xf]
    %v4488 = vld [vmem:[#allocation11 + $0x84] sm:$0xff]
    %v4489 = vld [vmem:[#allocation11 + $0x8c] sm:$0xf]
    %v4490 = vld [vmem:[#allocation11 + $0x90] sm:$0xff]
    %v4491 = vld [vmem:[#allocation11 + $0x98] sm:$0xf]
    %v4492 = vld [vmem:[#allocation11 + $0x9c] sm:$0xff]
    %v4493 = vld [vmem:[#allocation11 + $0xa4] sm:$0xf]
    %v4494 = vld [vmem:[#allocation11 + $0xa8] sm:$0xff]
    %v4495 = vld [vmem:[#allocation11 + $0xb0] sm:$0xf]
    %v4496 = vld [vmem:[#allocation11 + $0xb4] sm:$0xff]
    %v4497 = vld [vmem:[#allocation11 + $0xbc] sm:$0xf]
    %v4530 = vunpack.c.l.b16 %v4466
    %v4531 = vunpack.c.h.b16 %v4466
    %v4532 = vunpack.c.l.b16 %v4467
    %v4533 = vunpack.c.l.b16 %v4468
    %v4534 = vunpack.c.h.b16 %v4468
    %v4535 = vunpack.c.l.b16 %v4469
    %v4536 = vunpack.c.l.b16 %v4470
    %v4537 = vunpack.c.h.b16 %v4470
    %v4538 = vunpack.c.l.b16 %v4471
    %v4539 = vunpack.c.l.b16 %v4472
    %v4540 = vunpack.c.h.b16 %v4472
    %v4541 = vunpack.c.l.b16 %v4473
    %v4542 = vunpack.c.l.b16 %v4474
    %v4543 = vunpack.c.h.b16 %v4474
    %v4544 = vunpack.c.l.b16 %v4475
    %v4545 = vunpack.c.l.b16 %v4476
    %v4546 = vunpack.c.h.b16 %v4476
    %v4547 = vunpack.c.l.b16 %v4477
    %v4548 = vunpack.c.l.b16 %v4478
    %v4549 = vunpack.c.h.b16 %v4478
    %v4550 = vunpack.c.l.b16 %v4479
    %v4551 = vunpack.c.l.b16 %v4480
    %v4552 = vunpack.c.h.b16 %v4480
    %v4553 = vunpack.c.l.b16 %v4481
    %v4554 = vunpack.c.l.b16 %v4482
    %v4555 = vunpack.c.h.b16 %v4482
    %v4556 = vunpack.c.l.b16 %v4483
    %v4557 = vunpack.c.l.b16 %v4484
    %v4558 = vunpack.c.h.b16 %v4484
    %v4559 = vunpack.c.l.b16 %v4485
    %v4560 = vunpack.c.l.b16 %v4486
    %v4561 = vunpack.c.h.b16 %v4486
    %v4562 = vunpack.c.l.b16 %v4487
    %v4563 = vunpack.c.l.b16 %v4488
    %v4564 = vunpack.c.h.b16 %v4488
    %v4565 = vunpack.c.l.b16 %v4489
    %v4566 = vunpack.c.l.b16 %v4490
    %v4567 = vunpack.c.h.b16 %v4490
    %v4568 = vunpack.c.l.b16 %v4491
    %v4569 = vunpack.c.l.b16 %v4492
    %v4570 = vunpack.c.h.b16 %v4492
    %v4571 = vunpack.c.l.b16 %v4493
    %v4572 = vunpack.c.l.b16 %v4494
    %v4573 = vunpack.c.h.b16 %v4494
    %v4574 = vunpack.c.l.b16 %v4495
    %v4575 = vunpack.c.l.b16 %v4496
    %v4576 = vunpack.c.h.b16 %v4496
    %v4577 = vunpack.c.l.b16 %v4497
    %v4578 = vpack.c.b16 %v4533, %v4530
    %v4579 = vpack.c.b16 %v4534, %v4531
    %v4580 = vpack.c.b16 %v4535, %v4532
    %v4581 = vpack.c.b16 %v4539, %v4536
    %v4582 = vpack.c.b16 %v4540, %v4537
    %v4583 = vpack.c.b16 %v4541, %v4538
    %v4584 = vpack.c.b16 %v4545, %v4542
    %v4585 = vpack.c.b16 %v4546, %v4543
    %v4586 = vpack.c.b16 %v4547, %v4544
    %v4587 = vpack.c.b16 %v4551, %v4548
    %v4588 = vpack.c.b16 %v4552, %v4549
    %v4589 = vpack.c.b16 %v4553, %v4550
    %v4590 = vpack.c.b16 %v4557, %v4554
    %v4591 = vpack.c.b16 %v4558, %v4555
    %v4592 = vpack.c.b16 %v4559, %v4556
    %v4593 = vpack.c.b16 %v4563, %v4560
    %v4594 = vpack.c.b16 %v4564, %v4561
    %v4595 = vpack.c.b16 %v4565, %v4562
    %v4596 = vpack.c.b16 %v4569, %v4566
    %v4597 = vpack.c.b16 %v4570, %v4567
    %v4598 = vpack.c.b16 %v4571, %v4568
    %v4599 = vpack.c.b16 %v4575, %v4572
    %v4600 = vpack.c.b16 %v4576, %v4573
    %v4601 = vpack.c.b16 %v4577, %v4574
    %4626 = vmatprep.subr.bf16.mxu0 %v4579
    %4627 = vmatpush1.bf16.msra.mxu0 %v4578
    %4628 = vmatprep.subr.bf16.mxu0 %v4582
    %4629 = vmatpush1.bf16.msra.mxu0 %v4581
    %4630 = vmatprep.subr.bf16.mxu0 %v4585
    %4631 = vmatpush1.bf16.msra.mxu0 %v4584
    %4632 = vmatprep.subr.bf16.mxu0 %v4588
    %4633 = vmatpush1.bf16.msra.mxu0 %v4587
    %4634 = vmatprep.subr.bf16.mxu0 %v4591
    %4635 = vmatpush1.bf16.msra.mxu0 %v4590
    %4636 = vmatprep.subr.bf16.mxu0 %v4594
    %4637 = vmatpush1.bf16.msra.mxu0 %v4593
    %4638 = vmatprep.subr.bf16.mxu0 %v4597
    %4639 = vmatpush1.bf16.msra.mxu0 %v4596
    %4640 = vmatprep.subr.bf16.mxu0 %v4600
    %4641 = vmatpush1.bf16.msra.mxu0 %v4599
    %4642 = vmatprep.subr.bf16.mxu0 0
    %4643 = vmatpush1.bf16.msra.mxu0 0
    %4644 = vmatprep.subr.bf16.mxu0 0
    %4645 = vmatpush1.bf16.msra.mxu0 0
    %4646 = vmatprep.subr.bf16.mxu0 0
    %4647 = vmatpush1.bf16.msra.mxu0 0
    %4648 = vmatprep.subr.bf16.mxu0 0
    %4649 = vmatpush1.bf16.msra.mxu0 0
    %4650 = vmatprep.subr.bf16.mxu0 0
    %4651 = vmatpush1.bf16.msra.mxu0 0
    %4652 = vmatprep.subr.bf16.mxu0 0
    %4653 = vmatpush1.bf16.msra.mxu0 0
    %4654 = vmatprep.subr.bf16.mxu0 0
    %4655 = vmatpush1.bf16.msra.mxu0 0
    %4656 = vmatprep.subr.bf16.mxu0 0
    %4657 = vmatpush1.bf16.msra.mxu0 0
    %4658 = vmatprep.mubr.bf16.mxu0 0
    %4659 = vmatmul.mubr.bf16.gmra.mrb[0].mxu0 %v4465
    %v4660 = vpop.f32.mrb[0].mxu0
    %v4661 = vadd.f32 0.0, %v4660
    %v4662 = vpop.f32.mrb[0].mxu0
    %v4663 = vadd.f32 0.0, %v4662
    %v4664 = vpop.f32.mrb[0].mxu0
    %v4665 = vpop.f32.mrb[0].mxu0
    %4666 = vdwg.mxu0
    %4667 = vmatprep.subr.bf16.mxu0 0
    %4668 = vmatpush1.bf16.msra.mxu0 %v4580
    %4669 = vmatprep.subr.bf16.mxu0 0
    %4670 = vmatpush1.bf16.msra.mxu0 %v4583
    %4671 = vmatprep.subr.bf16.mxu0 0
    %4672 = vmatpush1.bf16.msra.mxu0 %v4586
    %4673 = vmatprep.subr.bf16.mxu0 0
    %4674 = vmatpush1.bf16.msra.mxu0 %v4589
    %4675 = vmatprep.subr.bf16.mxu0 0
    %4676 = vmatpush1.bf16.msra.mxu0 %v4592
    %4677 = vmatprep.subr.bf16.mxu0 0
    %4678 = vmatpush1.bf16.msra.mxu0 %v4595
    %4679 = vmatprep.subr.bf16.mxu0 0
    %4680 = vmatpush1.bf16.msra.mxu0 %v4598
    %4681 = vmatprep.subr.bf16.mxu0 0
    %4682 = vmatpush1.bf16.msra.mxu0 %v4601
    %4683 = vmatprep.subr.bf16.mxu0 0
    %4684 = vmatpush1.bf16.msra.mxu0 0
    %4685 = vmatprep.subr.bf16.mxu0 0
    %4686 = vmatpush1.bf16.msra.mxu0 0
    %4687 = vmatprep.subr.bf16.mxu0 0
    %4688 = vmatpush1.bf16.msra.mxu0 0
    %4689 = vmatprep.subr.bf16.mxu0 0
    %4690 = vmatpush1.bf16.msra.mxu0 0
    %4691 = vmatprep.subr.bf16.mxu0 0
    %4692 = vmatpush1.bf16.msra.mxu0 0
    %4693 = vmatprep.subr.bf16.mxu0 0
    %4694 = vmatpush1.bf16.msra.mxu0 0
    %4695 = vmatprep.subr.bf16.mxu0 0
    %4696 = vmatpush1.bf16.msra.mxu0 0
    %4697 = vmatprep.subr.bf16.mxu0 0
    %4698 = vmatpush1.bf16.msra.mxu0 0
    %4699 = vmatprep.mubr.bf16.mxu0 0
    %4700 = vmatmul.mubr.bf16.gmra.mrb[0].mxu0 %v4465
    %v4701 = vpop.f32.mrb[0].mxu0
    %v4702 = vadd.f32 0.0, %v4701
    %v4703 = vpop.f32.mrb[0].mxu0
    %v4704 = vpop.f32.mrb[0].mxu0
    %v4705 = vpop.f32.mrb[0].mxu0
    %4706 = vdwg.mxu0
    %v4707 = vld [vmem:[#allocation2] sm:$0xff]
    %v4708 = vadd.f32 %v4462, %v4661
    %v4709 = vxor.u32 %v4708, 2147483648
    %v4710 = vmul.f32 %v4709, 1.442695
    %v4711 = vpow.pop %v4710
    %v4712 = vadd.f32 %v4711, 1.0
    %v4713 = vrcp.pop %v4712
    %v4714 = vmul.f32 1.0, %v4713
    %v4715 = vadd.f32 %v4463, %v4663
    %v4716 = vxor.u32 %v4715, 2147483648
    %v4717 = vmul.f32 %v4716, 1.442695
    %v4718 = vpow.pop %v4717
    %v4719 = vadd.f32 %v4718, 1.0
    %v4720 = vrcp.pop %v4719
    %v4721 = vmul.f32 1.0, %v4720
    %v4722 = vadd.f32 %v4702, %v507
    %v4723 = vmul.f32 %v4714, %v4722
    %v4724 = vadd.f32 %v4464, %v4723
    %v4725 = vtanh.pop %v4724
    %v4726 = vsub.f32 1.0, %v4721
    %v4727 = vmul.f32 %v4726, %v4725
    %v4728 = vmul.f32 %v4721, %v4707
    %v4729 = vadd.f32 %v4727, %v4728
    %4730 = vst [vmem:[#allocation2] sm:$0xff] %v4729
    %v4731 = vpack.c.bf16 %v4729, %v4729
    %4732 = vst [vmem:[#allocation3] sm:$0xf] %v4731
    %v4733 = vld [vmem:[#allocation13] sm:$0xff]
    %v4734 = vld [vmem:[#allocation13 + $0x8] sm:$0xf]
    %v4735 = vld [vmem:[#allocation13 + $0xc] sm:$0xff]
    %v4736 = vld [vmem:[#allocation13 + $0x14] sm:$0xf]
    %v4737 = vld [vmem:[#allocation13 + $0x18] sm:$0xff]
    %v4738 = vld [vmem:[#allocation13 + $0x20] sm:$0xf]
    %v4739 = vld [vmem:[#allocation13 + $0x24] sm:$0xff]
    %v4740 = vld [vmem:[#allocation13 + $0x2c] sm:$0xf]
    %v4741 = vld [vmem:[#allocation13 + $0x30] sm:$0xff]
    %v4742 = vld [vmem:[#allocation13 + $0x38] sm:$0xf]
    %v4743 = vld [vmem:[#allocation13 + $0x3c] sm:$0xff]
    %v4744 = vld [vmem:[#allocation13 + $0x44] sm:$0xf]
    %v4745 = vld [vmem:[#allocation13 + $0x48] sm:$0xff]
    %v4746 = vld [vmem:[#allocation13 + $0x50] sm:$0xf]
    %v4747 = vld [vmem:[#allocation13 + $0x54] sm:$0xff]
    %v4748 = vld [vmem:[#allocation13 + $0x5c] sm:$0xf]
    %v4749 = vld [vmem:[#allocation13 + $0x60] sm:$0xff]
    %v4750 = vld [vmem:[#allocation13 + $0x68] sm:$0xf]
    %v4751 = vld [vmem:[#allocation13 + $0x6c] sm:$0xff]
    %v4752 = vld [vmem:[#allocation13 + $0x74] sm:$0xf]
    %v4753 = vld [vmem:[#allocation13 + $0x78] sm:$0xff]
    %v4754 = vld [vmem:[#allocation13 + $0x80] sm:$0xf]
    %v4755 = vld [vmem:[#allocation13 + $0x84] sm:$0xff]
    %v4756 = vld [vmem:[#allocation13 + $0x8c] sm:$0xf]
    %v4757 = vld [vmem:[#allocation13 + $0x90] sm:$0xff]
    %v4758 = vld [vmem:[#allocation13 + $0x98] sm:$0xf]
    %v4759 = vld [vmem:[#allocation13 + $0x9c] sm:$0xff]
    %v4760 = vld [vmem:[#allocation13 + $0xa4] sm:$0xf]
    %v4761 = vld [vmem:[#allocation13 + $0xa8] sm:$0xff]
    %v4762 = vld [vmem:[#allocation13 + $0xb0] sm:$0xf]
    %v4763 = vld [vmem:[#allocation13 + $0xb4] sm:$0xff]
    %v4764 = vld [vmem:[#allocation13 + $0xbc] sm:$0xf]
    %v4797 = vunpack.c.l.b16 %v4733
    %v4798 = vunpack.c.h.b16 %v4733
    %v4799 = vunpack.c.l.b16 %v4734
    %v4800 = vunpack.c.l.b16 %v4735
    %v4801 = vunpack.c.h.b16 %v4735
    %v4802 = vunpack.c.l.b16 %v4736
    %v4803 = vunpack.c.l.b16 %v4737
    %v4804 = vunpack.c.h.b16 %v4737
    %v4805 = vunpack.c.l.b16 %v4738
    %v4806 = vunpack.c.l.b16 %v4739
    %v4807 = vunpack.c.h.b16 %v4739
    %v4808 = vunpack.c.l.b16 %v4740
    %v4809 = vunpack.c.l.b16 %v4741
    %v4810 = vunpack.c.h.b16 %v4741
    %v4811 = vunpack.c.l.b16 %v4742
    %v4812 = vunpack.c.l.b16 %v4743
    %v4813 = vunpack.c.h.b16 %v4743
    %v4814 = vunpack.c.l.b16 %v4744
    %v4815 = vunpack.c.l.b16 %v4745
    %v4816 = vunpack.c.h.b16 %v4745
    %v4817 = vunpack.c.l.b16 %v4746
    %v4818 = vunpack.c.l.b16 %v4747
    %v4819 = vunpack.c.h.b16 %v4747
    %v4820 = vunpack.c.l.b16 %v4748
    %v4821 = vunpack.c.l.b16 %v4749
    %v4822 = vunpack.c.h.b16 %v4749
    %v4823 = vunpack.c.l.b16 %v4750
    %v4824 = vunpack.c.l.b16 %v4751
    %v4825 = vunpack.c.h.b16 %v4751
    %v4826 = vunpack.c.l.b16 %v4752
    %v4827 = vunpack.c.l.b16 %v4753
    %v4828 = vunpack.c.h.b16 %v4753
    %v4829 = vunpack.c.l.b16 %v4754
    %v4830 = vunpack.c.l.b16 %v4755
    %v4831 = vunpack.c.h.b16 %v4755
    %v4832 = vunpack.c.l.b16 %v4756
    %v4833 = vunpack.c.l.b16 %v4757
    %v4834 = vunpack.c.h.b16 %v4757
    %v4835 = vunpack.c.l.b16 %v4758
    %v4836 = vunpack.c.l.b16 %v4759
    %v4837 = vunpack.c.h.b16 %v4759
    %v4838 = vunpack.c.l.b16 %v4760
    %v4839 = vunpack.c.l.b16 %v4761
    %v4840 = vunpack.c.h.b16 %v4761
    %v4841 = vunpack.c.l.b16 %v4762
    %v4842 = vunpack.c.l.b16 %v4763
    %v4843 = vunpack.c.h.b16 %v4763
    %v4844 = vunpack.c.l.b16 %v4764
    %v4845 = vpack.c.b16 %v4800, %v4797
    %v4846 = vpack.c.b16 %v4801, %v4798
    %v4847 = vpack.c.b16 %v4802, %v4799
    %v4848 = vpack.c.b16 %v4806, %v4803
    %v4849 = vpack.c.b16 %v4807, %v4804
    %v4850 = vpack.c.b16 %v4808, %v4805
    %v4851 = vpack.c.b16 %v4812, %v4809
    %v4852 = vpack.c.b16 %v4813, %v4810
    %v4853 = vpack.c.b16 %v4814, %v4811
    %v4854 = vpack.c.b16 %v4818, %v4815
    %v4855 = vpack.c.b16 %v4819, %v4816
    %v4856 = vpack.c.b16 %v4820, %v4817
    %v4857 = vpack.c.b16 %v4824, %v4821
    %v4858 = vpack.c.b16 %v4825, %v4822
    %v4859 = vpack.c.b16 %v4826, %v4823
    %v4860 = vpack.c.b16 %v4830, %v4827
    %v4861 = vpack.c.b16 %v4831, %v4828
    %v4862 = vpack.c.b16 %v4832, %v4829
    %v4863 = vpack.c.b16 %v4836, %v4833
    %v4864 = vpack.c.b16 %v4837, %v4834
    %v4865 = vpack.c.b16 %v4838, %v4835
    %v4866 = vpack.c.b16 %v4842, %v4839
    %v4867 = vpack.c.b16 %v4843, %v4840
    %v4868 = vpack.c.b16 %v4844, %v4841
    %4893 = vmatprep.subr.bf16.mxu0 %v4846
    %4894 = vmatpush1.bf16.msra.mxu0 %v4845
    %4895 = vmatprep.subr.bf16.mxu0 %v4849
    %4896 = vmatpush1.bf16.msra.mxu0 %v4848
    %4897 = vmatprep.subr.bf16.mxu0 %v4852
    %4898 = vmatpush1.bf16.msra.mxu0 %v4851
    %4899 = vmatprep.subr.bf16.mxu0 %v4855
    %4900 = vmatpush1.bf16.msra.mxu0 %v4854
    %4901 = vmatprep.subr.bf16.mxu0 %v4858
    %4902 = vmatpush1.bf16.msra.mxu0 %v4857
    %4903 = vmatprep.subr.bf16.mxu0 %v4861
    %4904 = vmatpush1.bf16.msra.mxu0 %v4860
    %4905 = vmatprep.subr.bf16.mxu0 %v4864
    %4906 = vmatpush1.bf16.msra.mxu0 %v4863
    %4907 = vmatprep.subr.bf16.mxu0 %v4867
    %4908 = vmatpush1.bf16.msra.mxu0 %v4866
    %4909 = vmatprep.subr.bf16.mxu0 0
    %4910 = vmatpush1.bf16.msra.mxu0 0
    %4911 = vmatprep.subr.bf16.mxu0 0
    %4912 = vmatpush1.bf16.msra.mxu0 0
    %4913 = vmatprep.subr.bf16.mxu0 0
    %4914 = vmatpush1.bf16.msra.mxu0 0
    %4915 = vmatprep.subr.bf16.mxu0 0
    %4916 = vmatpush1.bf16.msra.mxu0 0
    %4917 = vmatprep.subr.bf16.mxu0 0
    %4918 = vmatpush1.bf16.msra.mxu0 0
    %4919 = vmatprep.subr.bf16.mxu0 0
    %4920 = vmatpush1.bf16.msra.mxu0 0
    %4921 = vmatprep.subr.bf16.mxu0 0
    %4922 = vmatpush1.bf16.msra.mxu0 0
    %4923 = vmatprep.subr.bf16.mxu0 0
    %4924 = vmatpush1.bf16.msra.mxu0 0
    %4925 = vmatprep.mubr.bf16.mxu0 0
    %4926 = vmatmul.mubr.bf16.gmra.mrb[0].mxu0 %v4731
    %v4927 = vpop.f32.mrb[0].mxu0
    %v4928 = vadd.f32 %v514, %v4927
    %v4929 = vpop.f32.mrb[0].mxu0
    %v4930 = vadd.f32 %v518, %v4929
    %v4931 = vpop.f32.mrb[0].mxu0
    %v4932 = vpop.f32.mrb[0].mxu0
    %4933 = vdwg.mxu0
    %4934 = vmatprep.subr.bf16.mxu0 0
    %4935 = vmatpush1.bf16.msra.mxu0 %v4847
    %4936 = vmatprep.subr.bf16.mxu0 0
    %4937 = vmatpush1.bf16.msra.mxu0 %v4850
    %4938 = vmatprep.subr.bf16.mxu0 0
    %4939 = vmatpush1.bf16.msra.mxu0 %v4853
    %4940 = vmatprep.subr.bf16.mxu0 0
    %4941 = vmatpush1.bf16.msra.mxu0 %v4856
    %4942 = vmatprep.subr.bf16.mxu0 0
    %4943 = vmatpush1.bf16.msra.mxu0 %v4859
    %4944 = vmatprep.subr.bf16.mxu0 0
    %4945 = vmatpush1.bf16.msra.mxu0 %v4862
    %4946 = vmatprep.subr.bf16.mxu0 0
    %4947 = vmatpush1.bf16.msra.mxu0 %v4865
    %4948 = vmatprep.subr.bf16.mxu0 0
    %4949 = vmatpush1.bf16.msra.mxu0 %v4868
    %4950 = vmatprep.subr.bf16.mxu0 0
    %4951 = vmatpush1.bf16.msra.mxu0 0
    %4952 = vmatprep.subr.bf16.mxu0 0
    %4953 = vmatpush1.bf16.msra.mxu0 0
    %4954 = vmatprep.subr.bf16.mxu0 0
    %4955 = vmatpush1.bf16.msra.mxu0 0
    %4956 = vmatprep.subr.bf16.mxu0 0
    %4957 = vmatpush1.bf16.msra.mxu0 0
    %4958 = vmatprep.subr.bf16.mxu0 0
    %4959 = vmatpush1.bf16.msra.mxu0 0
    %4960 = vmatprep.subr.bf16.mxu0 0
    %4961 = vmatpush1.bf16.msra.mxu0 0
    %4962 = vmatprep.subr.bf16.mxu0 0
    %4963 = vmatpush1.bf16.msra.mxu0 0
    %4964 = vmatprep.subr.bf16.mxu0 0
    %4965 = vmatpush1.bf16.msra.mxu0 0
    %4966 = vmatprep.mubr.bf16.mxu0 0
    %4967 = vmatmul.mubr.bf16.gmra.mrb[0].mxu0 %v4731
    %v4968 = vpop.f32.mrb[0].mxu0
    %v4969 = vadd.f32 %v522, %v4968
    %v4970 = vpop.f32.mrb[0].mxu0
    %v4971 = vpop.f32.mrb[0].mxu0
    %v4972 = vpop.f32.mrb[0].mxu0
    %4973 = vdwg.mxu0
    %v4974 = vld [vmem:[%s1048] sm:$0xf]
    %v4975 = vld [vmem:[#allocation14] sm:$0xff]
    %v4976 = vld [vmem:[#allocation14 + $0x8] sm:$0xf]
    %v4977 = vld [vmem:[#allocation14 + $0xc] sm:$0xff]
    %v4978 = vld [vmem:[#allocation14 + $0x14] sm:$0xf]
    %v4979 = vld [vmem:[#allocation14 + $0x18] sm:$0xff]
    %v4980 = vld [vmem:[#allocation14 + $0x20] sm:$0xf]
    %v4981 = vld [vmem:[#allocation14 + $0x24] sm:$0xff]
    %v4982 = vld [vmem:[#allocation14 + $0x2c] sm:$0xf]
    %v4983 = vld [vmem:[#allocation14 + $0x30] sm:$0xff]
    %v4984 = vld [vmem:[#allocation14 + $0x38] sm:$0xf]
    %v4985 = vld [vmem:[#allocation14 + $0x3c] sm:$0xff]
    %v4986 = vld [vmem:[#allocation14 + $0x44] sm:$0xf]
    %v4987 = vld [vmem:[#allocation14 + $0x48] sm:$0xff]
    %v4988 = vld [vmem:[#allocation14 + $0x50] sm:$0xf]
    %v4989 = vld [vmem:[#allocation14 + $0x54] sm:$0xff]
    %v4990 = vld [vmem:[#allocation14 + $0x5c] sm:$0xf]
    %v4991 = vld [vmem:[#allocation14 + $0x60] sm:$0xff]
    %v4992 = vld [vmem:[#allocation14 + $0x68] sm:$0xf]
    %v4993 = vld [vmem:[#allocation14 + $0x6c] sm:$0xff]
    %v4994 = vld [vmem:[#allocation14 + $0x74] sm:$0xf]
    %v4995 = vld [vmem:[#allocation14 + $0x78] sm:$0xff]
    %v4996 = vld [vmem:[#allocation14 + $0x80] sm:$0xf]
    %v4997 = vld [vmem:[#allocation14 + $0x84] sm:$0xff]
    %v4998 = vld [vmem:[#allocation14 + $0x8c] sm:$0xf]
    %v4999 = vld [vmem:[#allocation14 + $0x90] sm:$0xff]
    %v5000 = vld [vmem:[#allocation14 + $0x98] sm:$0xf]
    %v5001 = vld [vmem:[#allocation14 + $0x9c] sm:$0xff]
    %v5002 = vld [vmem:[#allocation14 + $0xa4] sm:$0xf]
    %v5003 = vld [vmem:[#allocation14 + $0xa8] sm:$0xff]
    %v5004 = vld [vmem:[#allocation14 + $0xb0] sm:$0xf]
    %v5005 = vld [vmem:[#allocation14 + $0xb4] sm:$0xff]
    %v5006 = vld [vmem:[#allocation14 + $0xbc] sm:$0xf]
    %v5039 = vunpack.c.l.b16 %v4975
    %v5040 = vunpack.c.h.b16 %v4975
    %v5041 = vunpack.c.l.b16 %v4976
    %v5042 = vunpack.c.l.b16 %v4977
    %v5043 = vunpack.c.h.b16 %v4977
    %v5044 = vunpack.c.l.b16 %v4978
    %v5045 = vunpack.c.l.b16 %v4979
    %v5046 = vunpack.c.h.b16 %v4979
    %v5047 = vunpack.c.l.b16 %v4980
    %v5048 = vunpack.c.l.b16 %v4981
    %v5049 = vunpack.c.h.b16 %v4981
    %v5050 = vunpack.c.l.b16 %v4982
    %v5051 = vunpack.c.l.b16 %v4983
    %v5052 = vunpack.c.h.b16 %v4983
    %v5053 = vunpack.c.l.b16 %v4984
    %v5054 = vunpack.c.l.b16 %v4985
    %v5055 = vunpack.c.h.b16 %v4985
    %v5056 = vunpack.c.l.b16 %v4986
    %v5057 = vunpack.c.l.b16 %v4987
    %v5058 = vunpack.c.h.b16 %v4987
    %v5059 = vunpack.c.l.b16 %v4988
    %v5060 = vunpack.c.l.b16 %v4989
    %v5061 = vunpack.c.h.b16 %v4989
    %v5062 = vunpack.c.l.b16 %v4990
    %v5063 = vunpack.c.l.b16 %v4991
    %v5064 = vunpack.c.h.b16 %v4991
    %v5065 = vunpack.c.l.b16 %v4992
    %v5066 = vunpack.c.l.b16 %v4993
    %v5067 = vunpack.c.h.b16 %v4993
    %v5068 = vunpack.c.l.b16 %v4994
    %v5069 = vunpack.c.l.b16 %v4995
    %v5070 = vunpack.c.h.b16 %v4995
    %v5071 = vunpack.c.l.b16 %v4996
    %v5072 = vunpack.c.l.b16 %v4997
    %v5073 = vunpack.c.h.b16 %v4997
    %v5074 = vunpack.c.l.b16 %v4998
    %v5075 = vunpack.c.l.b16 %v4999
    %v5076 = vunpack.c.h.b16 %v4999
    %v5077 = vunpack.c.l.b16 %v5000
    %v5078 = vunpack.c.l.b16 %v5001
    %v5079 = vunpack.c.h.b16 %v5001
    %v5080 = vunpack.c.l.b16 %v5002
    %v5081 = vunpack.c.l.b16 %v5003
    %v5082 = vunpack.c.h.b16 %v5003
    %v5083 = vunpack.c.l.b16 %v5004
    %v5084 = vunpack.c.l.b16 %v5005
    %v5085 = vunpack.c.h.b16 %v5005
    %v5086 = vunpack.c.l.b16 %v5006
    %v5087 = vpack.c.b16 %v5042, %v5039
    %v5088 = vpack.c.b16 %v5043, %v5040
    %v5089 = vpack.c.b16 %v5044, %v5041
    %v5090 = vpack.c.b16 %v5048, %v5045
    %v5091 = vpack.c.b16 %v5049, %v5046
    %v5092 = vpack.c.b16 %v5050, %v5047
    %v5093 = vpack.c.b16 %v5054, %v5051
    %v5094 = vpack.c.b16 %v5055, %v5052
    %v5095 = vpack.c.b16 %v5056, %v5053
    %v5096 = vpack.c.b16 %v5060, %v5057
    %v5097 = vpack.c.b16 %v5061, %v5058
    %v5098 = vpack.c.b16 %v5062, %v5059
    %v5099 = vpack.c.b16 %v5066, %v5063
    %v5100 = vpack.c.b16 %v5067, %v5064
    %v5101 = vpack.c.b16 %v5068, %v5065
    %v5102 = vpack.c.b16 %v5072, %v5069
    %v5103 = vpack.c.b16 %v5073, %v5070
    %v5104 = vpack.c.b16 %v5074, %v5071
    %v5105 = vpack.c.b16 %v5078, %v5075
    %v5106 = vpack.c.b16 %v5079, %v5076
    %v5107 = vpack.c.b16 %v5080, %v5077
    %v5108 = vpack.c.b16 %v5084, %v5081
    %v5109 = vpack.c.b16 %v5085, %v5082
    %v5110 = vpack.c.b16 %v5086, %v5083
    %5135 = vmatprep.subr.bf16.mxu0 %v5088
    %5136 = vmatpush1.bf16.msra.mxu0 %v5087
    %5137 = vmatprep.subr.bf16.mxu0 %v5091
    %5138 = vmatpush1.bf16.msra.mxu0 %v5090
    %5139 = vmatprep.subr.bf16.mxu0 %v5094
    %5140 = vmatpush1.bf16.msra.mxu0 %v5093
    %5141 = vmatprep.subr.bf16.mxu0 %v5097
    %5142 = vmatpush1.bf16.msra.mxu0 %v5096
    %5143 = vmatprep.subr.bf16.mxu0 %v5100
    %5144 = vmatpush1.bf16.msra.mxu0 %v5099
    %5145 = vmatprep.subr.bf16.mxu0 %v5103
    %5146 = vmatpush1.bf16.msra.mxu0 %v5102
    %5147 = vmatprep.subr.bf16.mxu0 %v5106
    %5148 = vmatpush1.bf16.msra.mxu0 %v5105
    %5149 = vmatprep.subr.bf16.mxu0 %v5109
    %5150 = vmatpush1.bf16.msra.mxu0 %v5108
    %5151 = vmatprep.subr.bf16.mxu0 0
    %5152 = vmatpush1.bf16.msra.mxu0 0
    %5153 = vmatprep.subr.bf16.mxu0 0
    %5154 = vmatpush1.bf16.msra.mxu0 0
    %5155 = vmatprep.subr.bf16.mxu0 0
    %5156 = vmatpush1.bf16.msra.mxu0 0
    %5157 = vmatprep.subr.bf16.mxu0 0
    %5158 = vmatpush1.bf16.msra.mxu0 0
    %5159 = vmatprep.subr.bf16.mxu0 0
    %5160 = vmatpush1.bf16.msra.mxu0 0
    %5161 = vmatprep.subr.bf16.mxu0 0
    %5162 = vmatpush1.bf16.msra.mxu0 0
    %5163 = vmatprep.subr.bf16.mxu0 0
    %5164 = vmatpush1.bf16.msra.mxu0 0
    %5165 = vmatprep.subr.bf16.mxu0 0
    %5166 = vmatpush1.bf16.msra.mxu0 0
    %5167 = vmatprep.mubr.bf16.mxu0 0
    %5168 = vmatmul.mubr.bf16.gmra.mrb[0].mxu0 %v4974
    %v5169 = vpop.f32.mrb[0].mxu0
    %v5170 = vadd.f32 0.0, %v5169
    %v5171 = vpop.f32.mrb[0].mxu0
    %v5172 = vadd.f32 0.0, %v5171
    %v5173 = vpop.f32.mrb[0].mxu0
    %v5174 = vpop.f32.mrb[0].mxu0
    %5175 = vdwg.mxu0
    %5176 = vmatprep.subr.bf16.mxu0 0
    %5177 = vmatpush1.bf16.msra.mxu0 %v5089
    %5178 = vmatprep.subr.bf16.mxu0 0
    %5179 = vmatpush1.bf16.msra.mxu0 %v5092
    %5180 = vmatprep.subr.bf16.mxu0 0
    %5181 = vmatpush1.bf16.msra.mxu0 %v5095
    %5182 = vmatprep.subr.bf16.mxu0 0
    %5183 = vmatpush1.bf16.msra.mxu0 %v5098
    %5184 = vmatprep.subr.bf16.mxu0 0
    %5185 = vmatpush1.bf16.msra.mxu0 %v5101
    %5186 = vmatprep.subr.bf16.mxu0 0
    %5187 = vmatpush1.bf16.msra.mxu0 %v5104
    %5188 = vmatprep.subr.bf16.mxu0 0
    %5189 = vmatpush1.bf16.msra.mxu0 %v5107
    %5190 = vmatprep.subr.bf16.mxu0 0
    %5191 = vmatpush1.bf16.msra.mxu0 %v5110
    %5192 = vmatprep.subr.bf16.mxu0 0
    %5193 = vmatpush1.bf16.msra.mxu0 0
    %5194 = vmatprep.subr.bf16.mxu0 0
    %5195 = vmatpush1.bf16.msra.mxu0 0
    %5196 = vmatprep.subr.bf16.mxu0 0
    %5197 = vmatpush1.bf16.msra.mxu0 0
    %5198 = vmatprep.subr.bf16.mxu0 0
    %5199 = vmatpush1.bf16.msra.mxu0 0
    %5200 = vmatprep.subr.bf16.mxu0 0
    %5201 = vmatpush1.bf16.msra.mxu0 0
    %5202 = vmatprep.subr.bf16.mxu0 0
    %5203 = vmatpush1.bf16.msra.mxu0 0
    %5204 = vmatprep.subr.bf16.mxu0 0
    %5205 = vmatpush1.bf16.msra.mxu0 0
    %5206 = vmatprep.subr.bf16.mxu0 0
    %5207 = vmatpush1.bf16.msra.mxu0 0
    %5208 = vmatprep.mubr.bf16.mxu0 0
    %5209 = vmatmul.mubr.bf16.gmra.mrb[0].mxu0 %v4974
    %v5210 = vpop.f32.mrb[0].mxu0
    %v5211 = vadd.f32 0.0, %v5210
    %v5212 = vpop.f32.mrb[0].mxu0
    %v5213 = vpop.f32.mrb[0].mxu0
    %v5214 = vpop.f32.mrb[0].mxu0
    %5215 = vdwg.mxu0
    %v5216 = vld [vmem:[%s1291] sm:$0xff]
    %v5217 = vadd.f32 %v4928, %v5170
    %v5218 = vxor.u32 %v5217, 2147483648
    %v5219 = vmul.f32 %v5218, 1.442695
    %v5220 = vpow.pop %v5219
    %v5221 = vadd.f32 %v5220, 1.0
    %v5222 = vrcp.pop %v5221
    %v5223 = vmul.f32 1.0, %v5222
    %v5224 = vadd.f32 %v4930, %v5172
    %v5225 = vxor.u32 %v5224, 2147483648
    %v5226 = vmul.f32 %v5225, 1.442695
    %v5227 = vpow.pop %v5226
    %v5228 = vadd.f32 %v5227, 1.0
    %v5229 = vrcp.pop %v5228
    %v5230 = vmul.f32 1.0, %v5229
    %v5231 = vadd.f32 %v5211, %v531
    %v5232 = vmul.f32 %v5223, %v5231
    %v5233 = vadd.f32 %v4969, %v5232
    %v5234 = vtanh.pop %v5233
    %v5235 = vsub.f32 1.0, %v5230
    %v5236 = vmul.f32 %v5235, %v5234
    %v5237 = vmul.f32 %v5230, %v5216
    %v5238 = vadd.f32 %v5236, %v5237
    %5239 = vst [vmem:[%s1291] sm:$0xff] %v5238
    %v5240 = vpack.c.bf16 %v5238, %v5238
    %5241 = vst [vmem:[%s1048] sm:$0xf] %v5240
    %s5242 = scalar_lea.vmem [#allocation16], 20
    %5243 = vst [vmem:[%s5242] sm:$0xf] %v5240
    %s5244 = smul.u32 6, 3
    %s5245 = smul.addr %s5244, 8
    %s5246 = scalar_lea.vmem [#allocation4], %s5245
    %v5247 = vld [vmem:[%s5246] sm:$0xff]
    %v5248 = vld [vmem:[%s5246 + $0x8] sm:$0xff]
    %v5249 = vld [vmem:[%s5246 + $0x10] sm:$0xff]
    %v5250 = vld [vmem:[#allocation3] sm:$0xf]
    %v5251 = vld [vmem:[#allocation11] sm:$0xff]
    %v5252 = vld [vmem:[#allocation11 + $0x8] sm:$0xf]
    %v5253 = vld [vmem:[#allocation11 + $0xc] sm:$0xff]
    %v5254 = vld [vmem:[#allocation11 + $0x14] sm:$0xf]
    %v5255 = vld [vmem:[#allocation11 + $0x18] sm:$0xff]
    %v5256 = vld [vmem:[#allocation11 + $0x20] sm:$0xf]
    %v5257 = vld [vmem:[#allocation11 + $0x24] sm:$0xff]
    %v5258 = vld [vmem:[#allocation11 + $0x2c] sm:$0xf]
    %v5259 = vld [vmem:[#allocation11 + $0x30] sm:$0xff]
    %v5260 = vld [vmem:[#allocation11 + $0x38] sm:$0xf]
    %v5261 = vld [vmem:[#allocation11 + $0x3c] sm:$0xff]
    %v5262 = vld [vmem:[#allocation11 + $0x44] sm:$0xf]
    %v5263 = vld [vmem:[#allocation11 + $0x48] sm:$0xff]
    %v5264 = vld [vmem:[#allocation11 + $0x50] sm:$0xf]
    %v5265 = vld [vmem:[#allocation11 + $0x54] sm:$0xff]
    %v5266 = vld [vmem:[#allocation11 + $0x5c] sm:$0xf]
    %v5267 = vld [vmem:[#allocation11 + $0x60] sm:$0xff]
    %v5268 = vld [vmem:[#allocation11 + $0x68] sm:$0xf]
    %v5269 = vld [vmem:[#allocation11 + $0x6c] sm:$0xff]
    %v5270 = vld [vmem:[#allocation11 + $0x74] sm:$0xf]
    %v5271 = vld [vmem:[#allocation11 + $0x78] sm:$0xff]
    %v5272 = vld [vmem:[#allocation11 + $0x80] sm:$0xf]
    %v5273 = vld [vmem:[#allocation11 + $0x84] sm:$0xff]
    %v5274 = vld [vmem:[#allocation11 + $0x8c] sm:$0xf]
    %v5275 = vld [vmem:[#allocation11 + $0x90] sm:$0xff]
    %v5276 = vld [vmem:[#allocation11 + $0x98] sm:$0xf]
    %v5277 = vld [vmem:[#allocation11 + $0x9c] sm:$0xff]
    %v5278 = vld [vmem:[#allocation11 + $0xa4] sm:$0xf]
    %v5279 = vld [vmem:[#allocation11 + $0xa8] sm:$0xff]
    %v5280 = vld [vmem:[#allocation11 + $0xb0] sm:$0xf]
    %v5281 = vld [vmem:[#allocation11 + $0xb4] sm:$0xff]
    %v5282 = vld [vmem:[#allocation11 + $0xbc] sm:$0xf]
    %v5315 = vunpack.c.l.b16 %v5251
    %v5316 = vunpack.c.h.b16 %v5251
    %v5317 = vunpack.c.l.b16 %v5252
    %v5318 = vunpack.c.l.b16 %v5253
    %v5319 = vunpack.c.h.b16 %v5253
    %v5320 = vunpack.c.l.b16 %v5254
    %v5321 = vunpack.c.l.b16 %v5255
    %v5322 = vunpack.c.h.b16 %v5255
    %v5323 = vunpack.c.l.b16 %v5256
    %v5324 = vunpack.c.l.b16 %v5257
    %v5325 = vunpack.c.h.b16 %v5257
    %v5326 = vunpack.c.l.b16 %v5258
    %v5327 = vunpack.c.l.b16 %v5259
    %v5328 = vunpack.c.h.b16 %v5259
    %v5329 = vunpack.c.l.b16 %v5260
    %v5330 = vunpack.c.l.b16 %v5261
    %v5331 = vunpack.c.h.b16 %v5261
    %v5332 = vunpack.c.l.b16 %v5262
    %v5333 = vunpack.c.l.b16 %v5263
    %v5334 = vunpack.c.h.b16 %v5263
    %v5335 = vunpack.c.l.b16 %v5264
    %v5336 = vunpack.c.l.b16 %v5265
    %v5337 = vunpack.c.h.b16 %v5265
    %v5338 = vunpack.c.l.b16 %v5266
    %v5339 = vunpack.c.l.b16 %v5267
    %v5340 = vunpack.c.h.b16 %v5267
    %v5341 = vunpack.c.l.b16 %v5268
    %v5342 = vunpack.c.l.b16 %v5269
    %v5343 = vunpack.c.h.b16 %v5269
    %v5344 = vunpack.c.l.b16 %v5270
    %v5345 = vunpack.c.l.b16 %v5271
    %v5346 = vunpack.c.h.b16 %v5271
    %v5347 = vunpack.c.l.b16 %v5272
    %v5348 = vunpack.c.l.b16 %v5273
    %v5349 = vunpack.c.h.b16 %v5273
    %v5350 = vunpack.c.l.b16 %v5274
    %v5351 = vunpack.c.l.b16 %v5275
    %v5352 = vunpack.c.h.b16 %v5275
    %v5353 = vunpack.c.l.b16 %v5276
    %v5354 = vunpack.c.l.b16 %v5277
    %v5355 = vunpack.c.h.b16 %v5277
    %v5356 = vunpack.c.l.b16 %v5278
    %v5357 = vunpack.c.l.b16 %v5279
    %v5358 = vunpack.c.h.b16 %v5279
    %v5359 = vunpack.c.l.b16 %v5280
    %v5360 = vunpack.c.l.b16 %v5281
    %v5361 = vunpack.c.h.b16 %v5281
    %v5362 = vunpack.c.l.b16 %v5282
    %v5363 = vpack.c.b16 %v5318, %v5315
    %v5364 = vpack.c.b16 %v5319, %v5316
    %v5365 = vpack.c.b16 %v5320, %v5317
    %v5366 = vpack.c.b16 %v5324, %v5321
    %v5367 = vpack.c.b16 %v5325, %v5322
    %v5368 = vpack.c.b16 %v5326, %v5323
    %v5369 = vpack.c.b16 %v5330, %v5327
    %v5370 = vpack.c.b16 %v5331, %v5328
    %v5371 = vpack.c.b16 %v5332, %v5329
    %v5372 = vpack.c.b16 %v5336, %v5333
    %v5373 = vpack.c.b16 %v5337, %v5334
    %v5374 = vpack.c.b16 %v5338, %v5335
    %v5375 = vpack.c.b16 %v5342, %v5339
    %v5376 = vpack.c.b16 %v5343, %v5340
    %v5377 = vpack.c.b16 %v5344, %v5341
    %v5378 = vpack.c.b16 %v5348, %v5345
    %v5379 = vpack.c.b16 %v5349, %v5346
    %v5380 = vpack.c.b16 %v5350, %v5347
    %v5381 = vpack.c.b16 %v5354, %v5351
    %v5382 = vpack.c.b16 %v5355, %v5352
    %v5383 = vpack.c.b16 %v5356, %v5353
    %v5384 = vpack.c.b16 %v5360, %v5357
    %v5385 = vpack.c.b16 %v5361, %v5358
    %v5386 = vpack.c.b16 %v5362, %v5359
    %5411 = vmatprep.subr.bf16.mxu0 %v5364
    %5412 = vmatpush1.bf16.msra.mxu0 %v5363
    %5413 = vmatprep.subr.bf16.mxu0 %v5367
    %5414 = vmatpush1.bf16.msra.mxu0 %v5366
    %5415 = vmatprep.subr.bf16.mxu0 %v5370
    %5416 = vmatpush1.bf16.msra.mxu0 %v5369
    %5417 = vmatprep.subr.bf16.mxu0 %v5373
    %5418 = vmatpush1.bf16.msra.mxu0 %v5372
    %5419 = vmatprep.subr.bf16.mxu0 %v5376
    %5420 = vmatpush1.bf16.msra.mxu0 %v5375
    %5421 = vmatprep.subr.bf16.mxu0 %v5379
    %5422 = vmatpush1.bf16.msra.mxu0 %v5378
    %5423 = vmatprep.subr.bf16.mxu0 %v5382
    %5424 = vmatpush1.bf16.msra.mxu0 %v5381
    %5425 = vmatprep.subr.bf16.mxu0 %v5385
    %5426 = vmatpush1.bf16.msra.mxu0 %v5384
    %5427 = vmatprep.subr.bf16.mxu0 0
    %5428 = vmatpush1.bf16.msra.mxu0 0
    %5429 = vmatprep.subr.bf16.mxu0 0
    %5430 = vmatpush1.bf16.msra.mxu0 0
    %5431 = vmatprep.subr.bf16.mxu0 0
    %5432 = vmatpush1.bf16.msra.mxu0 0
    %5433 = vmatprep.subr.bf16.mxu0 0
    %5434 = vmatpush1.bf16.msra.mxu0 0
    %5435 = vmatprep.subr.bf16.mxu0 0
    %5436 = vmatpush1.bf16.msra.mxu0 0
    %5437 = vmatprep.subr.bf16.mxu0 0
    %5438 = vmatpush1.bf16.msra.mxu0 0
    %5439 = vmatprep.subr.bf16.mxu0 0
    %5440 = vmatpush1.bf16.msra.mxu0 0
    %5441 = vmatprep.subr.bf16.mxu0 0
    %5442 = vmatpush1.bf16.msra.mxu0 0
    %5443 = vmatprep.mubr.bf16.mxu0 0
    %5444 = vmatmul.mubr.bf16.gmra.mrb[0].mxu0 %v5250
    %v5445 = vpop.f32.mrb[0].mxu0
    %v5446 = vadd.f32 0.0, %v5445
    %v5447 = vpop.f32.mrb[0].mxu0
    %v5448 = vadd.f32 0.0, %v5447
    %v5449 = vpop.f32.mrb[0].mxu0
    %v5450 = vpop.f32.mrb[0].mxu0
    %5451 = vdwg.mxu0
    %5452 = vmatprep.subr.bf16.mxu0 0
    %5453 = vmatpush1.bf16.msra.mxu0 %v5365
    %5454 = vmatprep.subr.bf16.mxu0 0
    %5455 = vmatpush1.bf16.msra.mxu0 %v5368
    %5456 = vmatprep.subr.bf16.mxu0 0
    %5457 = vmatpush1.bf16.msra.mxu0 %v5371
    %5458 = vmatprep.subr.bf16.mxu0 0
    %5459 = vmatpush1.bf16.msra.mxu0 %v5374
    %5460 = vmatprep.subr.bf16.mxu0 0
    %5461 = vmatpush1.bf16.msra.mxu0 %v5377
    %5462 = vmatprep.subr.bf16.mxu0 0
    %5463 = vmatpush1.bf16.msra.mxu0 %v5380
    %5464 = vmatprep.subr.bf16.mxu0 0
    %5465 = vmatpush1.bf16.msra.mxu0 %v5383
    %5466 = vmatprep.subr.bf16.mxu0 0
    %5467 = vmatpush1.bf16.msra.mxu0 %v5386
    %5468 = vmatprep.subr.bf16.mxu0 0
    %5469 = vmatpush1.bf16.msra.mxu0 0
    %5470 = vmatprep.subr.bf16.mxu0 0
    %5471 = vmatpush1.bf16.msra.mxu0 0
    %5472 = vmatprep.subr.bf16.mxu0 0
    %5473 = vmatpush1.bf16.msra.mxu0 0
    %5474 = vmatprep.subr.bf16.mxu0 0
    %5475 = vmatpush1.bf16.msra.mxu0 0
    %5476 = vmatprep.subr.bf16.mxu0 0
    %5477 = vmatpush1.bf16.msra.mxu0 0
    %5478 = vmatprep.subr.bf16.mxu0 0
    %5479 = vmatpush1.bf16.msra.mxu0 0
    %5480 = vmatprep.subr.bf16.mxu0 0
    %5481 = vmatpush1.bf16.msra.mxu0 0
    %5482 = vmatprep.subr.bf16.mxu0 0
    %5483 = vmatpush1.bf16.msra.mxu0 0
    %5484 = vmatprep.mubr.bf16.mxu0 0
    %5485 = vmatmul.mubr.bf16.gmra.mrb[0].mxu0 %v5250
    %v5486 = vpop.f32.mrb[0].mxu0
    %v5487 = vadd.f32 0.0, %v5486
    %v5488 = vpop.f32.mrb[0].mxu0
    %v5489 = vpop.f32.mrb[0].mxu0
    %v5490 = vpop.f32.mrb[0].mxu0
    %5491 = vdwg.mxu0
    %v5492 = vld [vmem:[#allocation2] sm:$0xff]
    %v5493 = vadd.f32 %v5247, %v5446
    %v5494 = vxor.u32 %v5493, 2147483648
    %v5495 = vmul.f32 %v5494, 1.442695
    %v5496 = vpow.pop %v5495
    %v5497 = vadd.f32 %v5496, 1.0
    %v5498 = vrcp.pop %v5497
    %v5499 = vmul.f32 1.0, %v5498
    %v5500 = vadd.f32 %v5248, %v5448
    %v5501 = vxor.u32 %v5500, 2147483648
    %v5502 = vmul.f32 %v5501, 1.442695
    %v5503 = vpow.pop %v5502
    %v5504 = vadd.f32 %v5503, 1.0
    %v5505 = vrcp.pop %v5504
    %v5506 = vmul.f32 1.0, %v5505
    %v5507 = vadd.f32 %v5487, %v507
    %v5508 = vmul.f32 %v5499, %v5507
    %v5509 = vadd.f32 %v5249, %v5508
    %v5510 = vtanh.pop %v5509
    %v5511 = vsub.f32 1.0, %v5506
    %v5512 = vmul.f32 %v5511, %v5510
    %v5513 = vmul.f32 %v5506, %v5492
    %v5514 = vadd.f32 %v5512, %v5513
    %5515 = vst [vmem:[#allocation2] sm:$0xff] %v5514
    %v5516 = vpack.c.bf16 %v5514, %v5514
    %5517 = vst [vmem:[#allocation3] sm:$0xf] %v5516
    %v5518 = vld [vmem:[#allocation13] sm:$0xff]
    %v5519 = vld [vmem:[#allocation13 + $0x8] sm:$0xf]
    %v5520 = vld [vmem:[#allocation13 + $0xc] sm:$0xff]
    %v5521 = vld [vmem:[#allocation13 + $0x14] sm:$0xf]
    %v5522 = vld [vmem:[#allocation13 + $0x18] sm:$0xff]
    %v5523 = vld [vmem:[#allocation13 + $0x20] sm:$0xf]
    %v5524 = vld [vmem:[#allocation13 + $0x24] sm:$0xff]
    %v5525 = vld [vmem:[#allocation13 + $0x2c] sm:$0xf]
    %v5526 = vld [vmem:[#allocation13 + $0x30] sm:$0xff]
    %v5527 = vld [vmem:[#allocation13 + $0x38] sm:$0xf]
    %v5528 = vld [vmem:[#allocation13 + $0x3c] sm:$0xff]
    %v5529 = vld [vmem:[#allocation13 + $0x44] sm:$0xf]
    %v5530 = vld [vmem:[#allocation13 + $0x48] sm:$0xff]
    %v5531 = vld [vmem:[#allocation13 + $0x50] sm:$0xf]
    %v5532 = vld [vmem:[#allocation13 + $0x54] sm:$0xff]
    %v5533 = vld [vmem:[#allocation13 + $0x5c] sm:$0xf]
    %v5534 = vld [vmem:[#allocation13 + $0x60] sm:$0xff]
    %v5535 = vld [vmem:[#allocation13 + $0x68] sm:$0xf]
    %v5536 = vld [vmem:[#allocation13 + $0x6c] sm:$0xff]
    %v5537 = vld [vmem:[#allocation13 + $0x74] sm:$0xf]
    %v5538 = vld [vmem:[#allocation13 + $0x78] sm:$0xff]
    %v5539 = vld [vmem:[#allocation13 + $0x80] sm:$0xf]
    %v5540 = vld [vmem:[#allocation13 + $0x84] sm:$0xff]
    %v5541 = vld [vmem:[#allocation13 + $0x8c] sm:$0xf]
    %v5542 = vld [vmem:[#allocation13 + $0x90] sm:$0xff]
    %v5543 = vld [vmem:[#allocation13 + $0x98] sm:$0xf]
    %v5544 = vld [vmem:[#allocation13 + $0x9c] sm:$0xff]
    %v5545 = vld [vmem:[#allocation13 + $0xa4] sm:$0xf]
    %v5546 = vld [vmem:[#allocation13 + $0xa8] sm:$0xff]
    %v5547 = vld [vmem:[#allocation13 + $0xb0] sm:$0xf]
    %v5548 = vld [vmem:[#allocation13 + $0xb4] sm:$0xff]
    %v5549 = vld [vmem:[#allocation13 + $0xbc] sm:$0xf]
    %v5582 = vunpack.c.l.b16 %v5518
    %v5583 = vunpack.c.h.b16 %v5518
    %v5584 = vunpack.c.l.b16 %v5519
    %v5585 = vunpack.c.l.b16 %v5520
    %v5586 = vunpack.c.h.b16 %v5520
    %v5587 = vunpack.c.l.b16 %v5521
    %v5588 = vunpack.c.l.b16 %v5522
    %v5589 = vunpack.c.h.b16 %v5522
    %v5590 = vunpack.c.l.b16 %v5523
    %v5591 = vunpack.c.l.b16 %v5524
    %v5592 = vunpack.c.h.b16 %v5524
    %v5593 = vunpack.c.l.b16 %v5525
    %v5594 = vunpack.c.l.b16 %v5526
    %v5595 = vunpack.c.h.b16 %v5526
    %v5596 = vunpack.c.l.b16 %v5527
    %v5597 = vunpack.c.l.b16 %v5528
    %v5598 = vunpack.c.h.b16 %v5528
    %v5599 = vunpack.c.l.b16 %v5529
    %v5600 = vunpack.c.l.b16 %v5530
    %v5601 = vunpack.c.h.b16 %v5530
    %v5602 = vunpack.c.l.b16 %v5531
    %v5603 = vunpack.c.l.b16 %v5532
    %v5604 = vunpack.c.h.b16 %v5532
    %v5605 = vunpack.c.l.b16 %v5533
    %v5606 = vunpack.c.l.b16 %v5534
    %v5607 = vunpack.c.h.b16 %v5534
    %v5608 = vunpack.c.l.b16 %v5535
    %v5609 = vunpack.c.l.b16 %v5536
    %v5610 = vunpack.c.h.b16 %v5536
    %v5611 = vunpack.c.l.b16 %v5537
    %v5612 = vunpack.c.l.b16 %v5538
    %v5613 = vunpack.c.h.b16 %v5538
    %v5614 = vunpack.c.l.b16 %v5539
    %v5615 = vunpack.c.l.b16 %v5540
    %v5616 = vunpack.c.h.b16 %v5540
    %v5617 = vunpack.c.l.b16 %v5541
    %v5618 = vunpack.c.l.b16 %v5542
    %v5619 = vunpack.c.h.b16 %v5542
    %v5620 = vunpack.c.l.b16 %v5543
    %v5621 = vunpack.c.l.b16 %v5544
    %v5622 = vunpack.c.h.b16 %v5544
    %v5623 = vunpack.c.l.b16 %v5545
    %v5624 = vunpack.c.l.b16 %v5546
    %v5625 = vunpack.c.h.b16 %v5546
    %v5626 = vunpack.c.l.b16 %v5547
    %v5627 = vunpack.c.l.b16 %v5548
    %v5628 = vunpack.c.h.b16 %v5548
    %v5629 = vunpack.c.l.b16 %v5549
    %v5630 = vpack.c.b16 %v5585, %v5582
    %v5631 = vpack.c.b16 %v5586, %v5583
    %v5632 = vpack.c.b16 %v5587, %v5584
    %v5633 = vpack.c.b16 %v5591, %v5588
    %v5634 = vpack.c.b16 %v5592, %v5589
    %v5635 = vpack.c.b16 %v5593, %v5590
    %v5636 = vpack.c.b16 %v5597, %v5594
    %v5637 = vpack.c.b16 %v5598, %v5595
    %v5638 = vpack.c.b16 %v5599, %v5596
    %v5639 = vpack.c.b16 %v5603, %v5600
    %v5640 = vpack.c.b16 %v5604, %v5601
    %v5641 = vpack.c.b16 %v5605, %v5602
    %v5642 = vpack.c.b16 %v5609, %v5606
    %v5643 = vpack.c.b16 %v5610, %v5607
    %v5644 = vpack.c.b16 %v5611, %v5608
    %v5645 = vpack.c.b16 %v5615, %v5612
    %v5646 = vpack.c.b16 %v5616, %v5613
    %v5647 = vpack.c.b16 %v5617, %v5614
    %v5648 = vpack.c.b16 %v5621, %v5618
    %v5649 = vpack.c.b16 %v5622, %v5619
    %v5650 = vpack.c.b16 %v5623, %v5620
    %v5651 = vpack.c.b16 %v5627, %v5624
    %v5652 = vpack.c.b16 %v5628, %v5625
    %v5653 = vpack.c.b16 %v5629, %v5626
    %5678 = vmatprep.subr.bf16.mxu0 %v5631
    %5679 = vmatpush1.bf16.msra.mxu0 %v5630
    %5680 = vmatprep.subr.bf16.mxu0 %v5634
    %5681 = vmatpush1.bf16.msra.mxu0 %v5633
    %5682 = vmatprep.subr.bf16.mxu0 %v5637
    %5683 = vmatpush1.bf16.msra.mxu0 %v5636
    %5684 = vmatprep.subr.bf16.mxu0 %v5640
    %5685 = vmatpush1.bf16.msra.mxu0 %v5639
    %5686 = vmatprep.subr.bf16.mxu0 %v5643
    %5687 = vmatpush1.bf16.msra.mxu0 %v5642
    %5688 = vmatprep.subr.bf16.mxu0 %v5646
    %5689 = vmatpush1.bf16.msra.mxu0 %v5645
    %5690 = vmatprep.subr.bf16.mxu0 %v5649
    %5691 = vmatpush1.bf16.msra.mxu0 %v5648
    %5692 = vmatprep.subr.bf16.mxu0 %v5652
    %5693 = vmatpush1.bf16.msra.mxu0 %v5651
    %5694 = vmatprep.subr.bf16.mxu0 0
    %5695 = vmatpush1.bf16.msra.mxu0 0
    %5696 = vmatprep.subr.bf16.mxu0 0
    %5697 = vmatpush1.bf16.msra.mxu0 0
    %5698 = vmatprep.subr.bf16.mxu0 0
    %5699 = vmatpush1.bf16.msra.mxu0 0
    %5700 = vmatprep.subr.bf16.mxu0 0
    %5701 = vmatpush1.bf16.msra.mxu0 0
    %5702 = vmatprep.subr.bf16.mxu0 0
    %5703 = vmatpush1.bf16.msra.mxu0 0
    %5704 = vmatprep.subr.bf16.mxu0 0
    %5705 = vmatpush1.bf16.msra.mxu0 0
    %5706 = vmatprep.subr.bf16.mxu0 0
    %5707 = vmatpush1.bf16.msra.mxu0 0
    %5708 = vmatprep.subr.bf16.mxu0 0
    %5709 = vmatpush1.bf16.msra.mxu0 0
    %5710 = vmatprep.mubr.bf16.mxu0 0
    %5711 = vmatmul.mubr.bf16.gmra.mrb[0].mxu0 %v5516
    %v5712 = vpop.f32.mrb[0].mxu0
    %v5713 = vadd.f32 %v514, %v5712
    %v5714 = vpop.f32.mrb[0].mxu0
    %v5715 = vadd.f32 %v518, %v5714
    %v5716 = vpop.f32.mrb[0].mxu0
    %v5717 = vpop.f32.mrb[0].mxu0
    %5718 = vdwg.mxu0
    %5719 = vmatprep.subr.bf16.mxu0 0
    %5720 = vmatpush1.bf16.msra.mxu0 %v5632
    %5721 = vmatprep.subr.bf16.mxu0 0
    %5722 = vmatpush1.bf16.msra.mxu0 %v5635
    %5723 = vmatprep.subr.bf16.mxu0 0
    %5724 = vmatpush1.bf16.msra.mxu0 %v5638
    %5725 = vmatprep.subr.bf16.mxu0 0
    %5726 = vmatpush1.bf16.msra.mxu0 %v5641
    %5727 = vmatprep.subr.bf16.mxu0 0
    %5728 = vmatpush1.bf16.msra.mxu0 %v5644
    %5729 = vmatprep.subr.bf16.mxu0 0
    %5730 = vmatpush1.bf16.msra.mxu0 %v5647
    %5731 = vmatprep.subr.bf16.mxu0 0
    %5732 = vmatpush1.bf16.msra.mxu0 %v5650
    %5733 = vmatprep.subr.bf16.mxu0 0
    %5734 = vmatpush1.bf16.msra.mxu0 %v5653
    %5735 = vmatprep.subr.bf16.mxu0 0
    %5736 = vmatpush1.bf16.msra.mxu0 0
    %5737 = vmatprep.subr.bf16.mxu0 0
    %5738 = vmatpush1.bf16.msra.mxu0 0
    %5739 = vmatprep.subr.bf16.mxu0 0
    %5740 = vmatpush1.bf16.msra.mxu0 0
    %5741 = vmatprep.subr.bf16.mxu0 0
    %5742 = vmatpush1.bf16.msra.mxu0 0
    %5743 = vmatprep.subr.bf16.mxu0 0
    %5744 = vmatpush1.bf16.msra.mxu0 0
    %5745 = vmatprep.subr.bf16.mxu0 0
    %5746 = vmatpush1.bf16.msra.mxu0 0
    %5747 = vmatprep.subr.bf16.mxu0 0
    %5748 = vmatpush1.bf16.msra.mxu0 0
    %5749 = vmatprep.subr.bf16.mxu0 0
    %5750 = vmatpush1.bf16.msra.mxu0 0
    %5751 = vmatprep.mubr.bf16.mxu0 0
    %5752 = vmatmul.mubr.bf16.gmra.mrb[0].mxu0 %v5516
    %v5753 = vpop.f32.mrb[0].mxu0
    %v5754 = vadd.f32 %v522, %v5753
    %v5755 = vpop.f32.mrb[0].mxu0
    %v5756 = vpop.f32.mrb[0].mxu0
    %v5757 = vpop.f32.mrb[0].mxu0
    %5758 = vdwg.mxu0
    %v5759 = vld [vmem:[%s1048] sm:$0xf]
    %v5760 = vld [vmem:[#allocation14] sm:$0xff]
    %v5761 = vld [vmem:[#allocation14 + $0x8] sm:$0xf]
    %v5762 = vld [vmem:[#allocation14 + $0xc] sm:$0xff]
    %v5763 = vld [vmem:[#allocation14 + $0x14] sm:$0xf]
    %v5764 = vld [vmem:[#allocation14 + $0x18] sm:$0xff]
    %v5765 = vld [vmem:[#allocation14 + $0x20] sm:$0xf]
    %v5766 = vld [vmem:[#allocation14 + $0x24] sm:$0xff]
    %v5767 = vld [vmem:[#allocation14 + $0x2c] sm:$0xf]
    %v5768 = vld [vmem:[#allocation14 + $0x30] sm:$0xff]
    %v5769 = vld [vmem:[#allocation14 + $0x38] sm:$0xf]
    %v5770 = vld [vmem:[#allocation14 + $0x3c] sm:$0xff]
    %v5771 = vld [vmem:[#allocation14 + $0x44] sm:$0xf]
    %v5772 = vld [vmem:[#allocation14 + $0x48] sm:$0xff]
    %v5773 = vld [vmem:[#allocation14 + $0x50] sm:$0xf]
    %v5774 = vld [vmem:[#allocation14 + $0x54] sm:$0xff]
    %v5775 = vld [vmem:[#allocation14 + $0x5c] sm:$0xf]
    %v5776 = vld [vmem:[#allocation14 + $0x60] sm:$0xff]
    %v5777 = vld [vmem:[#allocation14 + $0x68] sm:$0xf]
    %v5778 = vld [vmem:[#allocation14 + $0x6c] sm:$0xff]
    %v5779 = vld [vmem:[#allocation14 + $0x74] sm:$0xf]
    %v5780 = vld [vmem:[#allocation14 + $0x78] sm:$0xff]
    %v5781 = vld [vmem:[#allocation14 + $0x80] sm:$0xf]
    %v5782 = vld [vmem:[#allocation14 + $0x84] sm:$0xff]
    %v5783 = vld [vmem:[#allocation14 + $0x8c] sm:$0xf]
    %v5784 = vld [vmem:[#allocation14 + $0x90] sm:$0xff]
    %v5785 = vld [vmem:[#allocation14 + $0x98] sm:$0xf]
    %v5786 = vld [vmem:[#allocation14 + $0x9c] sm:$0xff]
    %v5787 = vld [vmem:[#allocation14 + $0xa4] sm:$0xf]
    %v5788 = vld [vmem:[#allocation14 + $0xa8] sm:$0xff]
    %v5789 = vld [vmem:[#allocation14 + $0xb0] sm:$0xf]
    %v5790 = vld [vmem:[#allocation14 + $0xb4] sm:$0xff]
    %v5791 = vld [vmem:[#allocation14 + $0xbc] sm:$0xf]
    %v5824 = vunpack.c.l.b16 %v5760
    %v5825 = vunpack.c.h.b16 %v5760
    %v5826 = vunpack.c.l.b16 %v5761
    %v5827 = vunpack.c.l.b16 %v5762
    %v5828 = vunpack.c.h.b16 %v5762
    %v5829 = vunpack.c.l.b16 %v5763
    %v5830 = vunpack.c.l.b16 %v5764
    %v5831 = vunpack.c.h.b16 %v5764
    %v5832 = vunpack.c.l.b16 %v5765
    %v5833 = vunpack.c.l.b16 %v5766
    %v5834 = vunpack.c.h.b16 %v5766
    %v5835 = vunpack.c.l.b16 %v5767
    %v5836 = vunpack.c.l.b16 %v5768
    %v5837 = vunpack.c.h.b16 %v5768
    %v5838 = vunpack.c.l.b16 %v5769
    %v5839 = vunpack.c.l.b16 %v5770
    %v5840 = vunpack.c.h.b16 %v5770
    %v5841 = vunpack.c.l.b16 %v5771
    %v5842 = vunpack.c.l.b16 %v5772
    %v5843 = vunpack.c.h.b16 %v5772
    %v5844 = vunpack.c.l.b16 %v5773
    %v5845 = vunpack.c.l.b16 %v5774
    %v5846 = vunpack.c.h.b16 %v5774
    %v5847 = vunpack.c.l.b16 %v5775
    %v5848 = vunpack.c.l.b16 %v5776
    %v5849 = vunpack.c.h.b16 %v5776
    %v5850 = vunpack.c.l.b16 %v5777
    %v5851 = vunpack.c.l.b16 %v5778
    %v5852 = vunpack.c.h.b16 %v5778
    %v5853 = vunpack.c.l.b16 %v5779
    %v5854 = vunpack.c.l.b16 %v5780
    %v5855 = vunpack.c.h.b16 %v5780
    %v5856 = vunpack.c.l.b16 %v5781
    %v5857 = vunpack.c.l.b16 %v5782
    %v5858 = vunpack.c.h.b16 %v5782
    %v5859 = vunpack.c.l.b16 %v5783
    %v5860 = vunpack.c.l.b16 %v5784
    %v5861 = vunpack.c.h.b16 %v5784
    %v5862 = vunpack.c.l.b16 %v5785
    %v5863 = vunpack.c.l.b16 %v5786
    %v5864 = vunpack.c.h.b16 %v5786
    %v5865 = vunpack.c.l.b16 %v5787
    %v5866 = vunpack.c.l.b16 %v5788
    %v5867 = vunpack.c.h.b16 %v5788
    %v5868 = vunpack.c.l.b16 %v5789
    %v5869 = vunpack.c.l.b16 %v5790
    %v5870 = vunpack.c.h.b16 %v5790
    %v5871 = vunpack.c.l.b16 %v5791
    %v5872 = vpack.c.b16 %v5827, %v5824
    %v5873 = vpack.c.b16 %v5828, %v5825
    %v5874 = vpack.c.b16 %v5829, %v5826
    %v5875 = vpack.c.b16 %v5833, %v5830
    %v5876 = vpack.c.b16 %v5834, %v5831
    %v5877 = vpack.c.b16 %v5835, %v5832
    %v5878 = vpack.c.b16 %v5839, %v5836
    %v5879 = vpack.c.b16 %v5840, %v5837
    %v5880 = vpack.c.b16 %v5841, %v5838
    %v5881 = vpack.c.b16 %v5845, %v5842
    %v5882 = vpack.c.b16 %v5846, %v5843
    %v5883 = vpack.c.b16 %v5847, %v5844
    %v5884 = vpack.c.b16 %v5851, %v5848
    %v5885 = vpack.c.b16 %v5852, %v5849
    %v5886 = vpack.c.b16 %v5853, %v5850
    %v5887 = vpack.c.b16 %v5857, %v5854
    %v5888 = vpack.c.b16 %v5858, %v5855
    %v5889 = vpack.c.b16 %v5859, %v5856
    %v5890 = vpack.c.b16 %v5863, %v5860
    %v5891 = vpack.c.b16 %v5864, %v5861
    %v5892 = vpack.c.b16 %v5865, %v5862
    %v5893 = vpack.c.b16 %v5869, %v5866
    %v5894 = vpack.c.b16 %v5870, %v5867
    %v5895 = vpack.c.b16 %v5871, %v5868
    %5920 = vmatprep.subr.bf16.mxu0 %v5873
    %5921 = vmatpush1.bf16.msra.mxu0 %v5872
    %5922 = vmatprep.subr.bf16.mxu0 %v5876
    %5923 = vmatpush1.bf16.msra.mxu0 %v5875
    %5924 = vmatprep.subr.bf16.mxu0 %v5879
    %5925 = vmatpush1.bf16.msra.mxu0 %v5878
    %5926 = vmatprep.subr.bf16.mxu0 %v5882
    %5927 = vmatpush1.bf16.msra.mxu0 %v5881
    %5928 = vmatprep.subr.bf16.mxu0 %v5885
    %5929 = vmatpush1.bf16.msra.mxu0 %v5884
    %5930 = vmatprep.subr.bf16.mxu0 %v5888
    %5931 = vmatpush1.bf16.msra.mxu0 %v5887
    %5932 = vmatprep.subr.bf16.mxu0 %v5891
    %5933 = vmatpush1.bf16.msra.mxu0 %v5890
    %5934 = vmatprep.subr.bf16.mxu0 %v5894
    %5935 = vmatpush1.bf16.msra.mxu0 %v5893
    %5936 = vmatprep.subr.bf16.mxu0 0
    %5937 = vmatpush1.bf16.msra.mxu0 0
    %5938 = vmatprep.subr.bf16.mxu0 0
    %5939 = vmatpush1.bf16.msra.mxu0 0
    %5940 = vmatprep.subr.bf16.mxu0 0
    %5941 = vmatpush1.bf16.msra.mxu0 0
    %5942 = vmatprep.subr.bf16.mxu0 0
    %5943 = vmatpush1.bf16.msra.mxu0 0
    %5944 = vmatprep.subr.bf16.mxu0 0
    %5945 = vmatpush1.bf16.msra.mxu0 0
    %5946 = vmatprep.subr.bf16.mxu0 0
    %5947 = vmatpush1.bf16.msra.mxu0 0
    %5948 = vmatprep.subr.bf16.mxu0 0
    %5949 = vmatpush1.bf16.msra.mxu0 0
    %5950 = vmatprep.subr.bf16.mxu0 0
    %5951 = vmatpush1.bf16.msra.mxu0 0
    %5952 = vmatprep.mubr.bf16.mxu0 0
    %5953 = vmatmul.mubr.bf16.gmra.mrb[0].mxu0 %v5759
    %v5954 = vpop.f32.mrb[0].mxu0
    %v5955 = vadd.f32 0.0, %v5954
    %v5956 = vpop.f32.mrb[0].mxu0
    %v5957 = vadd.f32 0.0, %v5956
    %v5958 = vpop.f32.mrb[0].mxu0
    %v5959 = vpop.f32.mrb[0].mxu0
    %5960 = vdwg.mxu0
    %5961 = vmatprep.subr.bf16.mxu0 0
    %5962 = vmatpush1.bf16.msra.mxu0 %v5874
    %5963 = vmatprep.subr.bf16.mxu0 0
    %5964 = vmatpush1.bf16.msra.mxu0 %v5877
    %5965 = vmatprep.subr.bf16.mxu0 0
    %5966 = vmatpush1.bf16.msra.mxu0 %v5880
    %5967 = vmatprep.subr.bf16.mxu0 0
    %5968 = vmatpush1.bf16.msra.mxu0 %v5883
    %5969 = vmatprep.subr.bf16.mxu0 0
    %5970 = vmatpush1.bf16.msra.mxu0 %v5886
    %5971 = vmatprep.subr.bf16.mxu0 0
    %5972 = vmatpush1.bf16.msra.mxu0 %v5889
    %5973 = vmatprep.subr.bf16.mxu0 0
    %5974 = vmatpush1.bf16.msra.mxu0 %v5892
    %5975 = vmatprep.subr.bf16.mxu0 0
    %5976 = vmatpush1.bf16.msra.mxu0 %v5895
    %5977 = vmatprep.subr.bf16.mxu0 0
    %5978 = vmatpush1.bf16.msra.mxu0 0
    %5979 = vmatprep.subr.bf16.mxu0 0
    %5980 = vmatpush1.bf16.msra.mxu0 0
    %5981 = vmatprep.subr.bf16.mxu0 0
    %5982 = vmatpush1.bf16.msra.mxu0 0
    %5983 = vmatprep.subr.bf16.mxu0 0
    %5984 = vmatpush1.bf16.msra.mxu0 0
    %5985 = vmatprep.subr.bf16.mxu0 0
    %5986 = vmatpush1.bf16.msra.mxu0 0
    %5987 = vmatprep.subr.bf16.mxu0 0
    %5988 = vmatpush1.bf16.msra.mxu0 0
    %5989 = vmatprep.subr.bf16.mxu0 0
    %5990 = vmatpush1.bf16.msra.mxu0 0
    %5991 = vmatprep.subr.bf16.mxu0 0
    %5992 = vmatpush1.bf16.msra.mxu0 0
    %5993 = vmatprep.mubr.bf16.mxu0 0
    %5994 = vmatmul.mubr.bf16.gmra.mrb[0].mxu0 %v5759
    %v5995 = vpop.f32.mrb[0].mxu0
    %v5996 = vadd.f32 0.0, %v5995
    %v5997 = vpop.f32.mrb[0].mxu0
    %v5998 = vpop.f32.mrb[0].mxu0
    %v5999 = vpop.f32.mrb[0].mxu0
    %6000 = vdwg.mxu0
    %v6001 = vld [vmem:[%s1291] sm:$0xff]
    %v6002 = vadd.f32 %v5713, %v5955
    %v6003 = vxor.u32 %v6002, 2147483648
    %v6004 = vmul.f32 %v6003, 1.442695
    %v6005 = vpow.pop %v6004
    %v6006 = vadd.f32 %v6005, 1.0
    %v6007 = vrcp.pop %v6006
    %v6008 = vmul.f32 1.0, %v6007
    %v6009 = vadd.f32 %v5715, %v5957
    %v6010 = vxor.u32 %v6009, 2147483648
    %v6011 = vmul.f32 %v6010, 1.442695
    %v6012 = vpow.pop %v6011
    %v6013 = vadd.f32 %v6012, 1.0
    %v6014 = vrcp.pop %v6013
    %v6015 = vmul.f32 1.0, %v6014
    %v6016 = vadd.f32 %v5996, %v531
    %v6017 = vmul.f32 %v6008, %v6016
    %v6018 = vadd.f32 %v5754, %v6017
    %v6019 = vtanh.pop %v6018
    %v6020 = vsub.f32 1.0, %v6015
    %v6021 = vmul.f32 %v6020, %v6019
    %v6022 = vmul.f32 %v6015, %v6001
    %v6023 = vadd.f32 %v6021, %v6022
    %6024 = vst [vmem:[%s1291] sm:$0xff] %v6023
    %v6025 = vpack.c.bf16 %v6023, %v6023
    %6026 = vst [vmem:[%s1048] sm:$0xf] %v6025
    %s6027 = scalar_lea.vmem [#allocation16], 24
    %6028 = vst [vmem:[%s6027] sm:$0xf] %v6025
    %s6029 = smul.u32 7, 3
    %s6030 = smul.addr %s6029, 8
    %s6031 = scalar_lea.vmem [#allocation4], %s6030
    %v6032 = vld [vmem:[%s6031] sm:$0xff]
    %v6033 = vld [vmem:[%s6031 + $0x8] sm:$0xff]
    %v6034 = vld [vmem:[%s6031 + $0x10] sm:$0xff]
    %v6035 = vld [vmem:[#allocation3] sm:$0xf]
    %v6036 = vld [vmem:[#allocation11] sm:$0xff]
    %v6037 = vld [vmem:[#allocation11 + $0x8] sm:$0xf]
    %v6038 = vld [vmem:[#allocation11 + $0xc] sm:$0xff]
    %v6039 = vld [vmem:[#allocation11 + $0x14] sm:$0xf]
    %v6040 = vld [vmem:[#allocation11 + $0x18] sm:$0xff]
    %v6041 = vld [vmem:[#allocation11 + $0x20] sm:$0xf]
    %v6042 = vld [vmem:[#allocation11 + $0x24] sm:$0xff]
    %v6043 = vld [vmem:[#allocation11 + $0x2c] sm:$0xf]
    %v6044 = vld [vmem:[#allocation11 + $0x30] sm:$0xff]
    %v6045 = vld [vmem:[#allocation11 + $0x38] sm:$0xf]
    %v6046 = vld [vmem:[#allocation11 + $0x3c] sm:$0xff]
    %v6047 = vld [vmem:[#allocation11 + $0x44] sm:$0xf]
    %v6048 = vld [vmem:[#allocation11 + $0x48] sm:$0xff]
    %v6049 = vld [vmem:[#allocation11 + $0x50] sm:$0xf]
    %v6050 = vld [vmem:[#allocation11 + $0x54] sm:$0xff]
    %v6051 = vld [vmem:[#allocation11 + $0x5c] sm:$0xf]
    %v6052 = vld [vmem:[#allocation11 + $0x60] sm:$0xff]
    %v6053 = vld [vmem:[#allocation11 + $0x68] sm:$0xf]
    %v6054 = vld [vmem:[#allocation11 + $0x6c] sm:$0xff]
    %v6055 = vld [vmem:[#allocation11 + $0x74] sm:$0xf]
    %v6056 = vld [vmem:[#allocation11 + $0x78] sm:$0xff]
    %v6057 = vld [vmem:[#allocation11 + $0x80] sm:$0xf]
    %v6058 = vld [vmem:[#allocation11 + $0x84] sm:$0xff]
    %v6059 = vld [vmem:[#allocation11 + $0x8c] sm:$0xf]
    %v6060 = vld [vmem:[#allocation11 + $0x90] sm:$0xff]
    %v6061 = vld [vmem:[#allocation11 + $0x98] sm:$0xf]
    %v6062 = vld [vmem:[#allocation11 + $0x9c] sm:$0xff]
    %v6063 = vld [vmem:[#allocation11 + $0xa4] sm:$0xf]
    %v6064 = vld [vmem:[#allocation11 + $0xa8] sm:$0xff]
    %v6065 = vld [vmem:[#allocation11 + $0xb0] sm:$0xf]
    %v6066 = vld [vmem:[#allocation11 + $0xb4] sm:$0xff]
    %v6067 = vld [vmem:[#allocation11 + $0xbc] sm:$0xf]
    %v6100 = vunpack.c.l.b16 %v6036
    %v6101 = vunpack.c.h.b16 %v6036
    %v6102 = vunpack.c.l.b16 %v6037
    %v6103 = vunpack.c.l.b16 %v6038
    %v6104 = vunpack.c.h.b16 %v6038
    %v6105 = vunpack.c.l.b16 %v6039
    %v6106 = vunpack.c.l.b16 %v6040
    %v6107 = vunpack.c.h.b16 %v6040
    %v6108 = vunpack.c.l.b16 %v6041
    %v6109 = vunpack.c.l.b16 %v6042
    %v6110 = vunpack.c.h.b16 %v6042
    %v6111 = vunpack.c.l.b16 %v6043
    %v6112 = vunpack.c.l.b16 %v6044
    %v6113 = vunpack.c.h.b16 %v6044
    %v6114 = vunpack.c.l.b16 %v6045
    %v6115 = vunpack.c.l.b16 %v6046
    %v6116 = vunpack.c.h.b16 %v6046
    %v6117 = vunpack.c.l.b16 %v6047
    %v6118 = vunpack.c.l.b16 %v6048
    %v6119 = vunpack.c.h.b16 %v6048
    %v6120 = vunpack.c.l.b16 %v6049
    %v6121 = vunpack.c.l.b16 %v6050
    %v6122 = vunpack.c.h.b16 %v6050
    %v6123 = vunpack.c.l.b16 %v6051
    %v6124 = vunpack.c.l.b16 %v6052
    %v6125 = vunpack.c.h.b16 %v6052
    %v6126 = vunpack.c.l.b16 %v6053
    %v6127 = vunpack.c.l.b16 %v6054
    %v6128 = vunpack.c.h.b16 %v6054
    %v6129 = vunpack.c.l.b16 %v6055
    %v6130 = vunpack.c.l.b16 %v6056
    %v6131 = vunpack.c.h.b16 %v6056
    %v6132 = vunpack.c.l.b16 %v6057
    %v6133 = vunpack.c.l.b16 %v6058
    %v6134 = vunpack.c.h.b16 %v6058
    %v6135 = vunpack.c.l.b16 %v6059
    %v6136 = vunpack.c.l.b16 %v6060
    %v6137 = vunpack.c.h.b16 %v6060
    %v6138 = vunpack.c.l.b16 %v6061
    %v6139 = vunpack.c.l.b16 %v6062
    %v6140 = vunpack.c.h.b16 %v6062
    %v6141 = vunpack.c.l.b16 %v6063
    %v6142 = vunpack.c.l.b16 %v6064
    %v6143 = vunpack.c.h.b16 %v6064
    %v6144 = vunpack.c.l.b16 %v6065
    %v6145 = vunpack.c.l.b16 %v6066
    %v6146 = vunpack.c.h.b16 %v6066
    %v6147 = vunpack.c.l.b16 %v6067
    %v6148 = vpack.c.b16 %v6103, %v6100
    %v6149 = vpack.c.b16 %v6104, %v6101
    %v6150 = vpack.c.b16 %v6105, %v6102
    %v6151 = vpack.c.b16 %v6109, %v6106
    %v6152 = vpack.c.b16 %v6110, %v6107
    %v6153 = vpack.c.b16 %v6111, %v6108
    %v6154 = vpack.c.b16 %v6115, %v6112
    %v6155 = vpack.c.b16 %v6116, %v6113
    %v6156 = vpack.c.b16 %v6117, %v6114
    %v6157 = vpack.c.b16 %v6121, %v6118
    %v6158 = vpack.c.b16 %v6122, %v6119
    %v6159 = vpack.c.b16 %v6123, %v6120
    %v6160 = vpack.c.b16 %v6127, %v6124
    %v6161 = vpack.c.b16 %v6128, %v6125
    %v6162 = vpack.c.b16 %v6129, %v6126
    %v6163 = vpack.c.b16 %v6133, %v6130
    %v6164 = vpack.c.b16 %v6134, %v6131
    %v6165 = vpack.c.b16 %v6135, %v6132
    %v6166 = vpack.c.b16 %v6139, %v6136
    %v6167 = vpack.c.b16 %v6140, %v6137
    %v6168 = vpack.c.b16 %v6141, %v6138
    %v6169 = vpack.c.b16 %v6145, %v6142
    %v6170 = vpack.c.b16 %v6146, %v6143
    %v6171 = vpack.c.b16 %v6147, %v6144
    %6196 = vmatprep.subr.bf16.mxu0 %v6149
    %6197 = vmatpush1.bf16.msra.mxu0 %v6148
    %6198 = vmatprep.subr.bf16.mxu0 %v6152
    %6199 = vmatpush1.bf16.msra.mxu0 %v6151
    %6200 = vmatprep.subr.bf16.mxu0 %v6155
    %6201 = vmatpush1.bf16.msra.mxu0 %v6154
    %6202 = vmatprep.subr.bf16.mxu0 %v6158
    %6203 = vmatpush1.bf16.msra.mxu0 %v6157
    %6204 = vmatprep.subr.bf16.mxu0 %v6161
    %6205 = vmatpush1.bf16.msra.mxu0 %v6160
    %6206 = vmatprep.subr.bf16.mxu0 %v6164
    %6207 = vmatpush1.bf16.msra.mxu0 %v6163
    %6208 = vmatprep.subr.bf16.mxu0 %v6167
    %6209 = vmatpush1.bf16.msra.mxu0 %v6166
    %6210 = vmatprep.subr.bf16.mxu0 %v6170
    %6211 = vmatpush1.bf16.msra.mxu0 %v6169
    %6212 = vmatprep.subr.bf16.mxu0 0
    %6213 = vmatpush1.bf16.msra.mxu0 0
    %6214 = vmatprep.subr.bf16.mxu0 0
    %6215 = vmatpush1.bf16.msra.mxu0 0
    %6216 = vmatprep.subr.bf16.mxu0 0
    %6217 = vmatpush1.bf16.msra.mxu0 0
    %6218 = vmatprep.subr.bf16.mxu0 0
    %6219 = vmatpush1.bf16.msra.mxu0 0
    %6220 = vmatprep.subr.bf16.mxu0 0
    %6221 = vmatpush1.bf16.msra.mxu0 0
    %6222 = vmatprep.subr.bf16.mxu0 0
    %6223 = vmatpush1.bf16.msra.mxu0 0
    %6224 = vmatprep.subr.bf16.mxu0 0
    %6225 = vmatpush1.bf16.msra.mxu0 0
    %6226 = vmatprep.subr.bf16.mxu0 0
    %6227 = vmatpush1.bf16.msra.mxu0 0
    %6228 = vmatprep.mubr.bf16.mxu0 0
    %6229 = vmatmul.mubr.bf16.gmra.mrb[0].mxu0 %v6035
    %v6230 = vpop.f32.mrb[0].mxu0
    %v6231 = vadd.f32 0.0, %v6230
    %v6232 = vpop.f32.mrb[0].mxu0
    %v6233 = vadd.f32 0.0, %v6232
    %v6234 = vpop.f32.mrb[0].mxu0
    %v6235 = vpop.f32.mrb[0].mxu0
    %6236 = vdwg.mxu0
    %6237 = vmatprep.subr.bf16.mxu0 0
    %6238 = vmatpush1.bf16.msra.mxu0 %v6150
    %6239 = vmatprep.subr.bf16.mxu0 0
    %6240 = vmatpush1.bf16.msra.mxu0 %v6153
    %6241 = vmatprep.subr.bf16.mxu0 0
    %6242 = vmatpush1.bf16.msra.mxu0 %v6156
    %6243 = vmatprep.subr.bf16.mxu0 0
    %6244 = vmatpush1.bf16.msra.mxu0 %v6159
    %6245 = vmatprep.subr.bf16.mxu0 0
    %6246 = vmatpush1.bf16.msra.mxu0 %v6162
    %6247 = vmatprep.subr.bf16.mxu0 0
    %6248 = vmatpush1.bf16.msra.mxu0 %v6165
    %6249 = vmatprep.subr.bf16.mxu0 0
    %6250 = vmatpush1.bf16.msra.mxu0 %v6168
    %6251 = vmatprep.subr.bf16.mxu0 0
    %6252 = vmatpush1.bf16.msra.mxu0 %v6171
    %6253 = vmatprep.subr.bf16.mxu0 0
    %6254 = vmatpush1.bf16.msra.mxu0 0
    %6255 = vmatprep.subr.bf16.mxu0 0
    %6256 = vmatpush1.bf16.msra.mxu0 0
    %6257 = vmatprep.subr.bf16.mxu0 0
    %6258 = vmatpush1.bf16.msra.mxu0 0
    %6259 = vmatprep.subr.bf16.mxu0 0
    %6260 = vmatpush1.bf16.msra.mxu0 0
    %6261 = vmatprep.subr.bf16.mxu0 0
    %6262 = vmatpush1.bf16.msra.mxu0 0
    %6263 = vmatprep.subr.bf16.mxu0 0
    %6264 = vmatpush1.bf16.msra.mxu0 0
    %6265 = vmatprep.subr.bf16.mxu0 0
    %6266 = vmatpush1.bf16.msra.mxu0 0
    %6267 = vmatprep.subr.bf16.mxu0 0
    %6268 = vmatpush1.bf16.msra.mxu0 0
    %6269 = vmatprep.mubr.bf16.mxu0 0
    %6270 = vmatmul.mubr.bf16.gmra.mrb[0].mxu0 %v6035
    %v6271 = vpop.f32.mrb[0].mxu0
    %v6272 = vadd.f32 0.0, %v6271
    %v6273 = vpop.f32.mrb[0].mxu0
    %v6274 = vpop.f32.mrb[0].mxu0
    %v6275 = vpop.f32.mrb[0].mxu0
    %6276 = vdwg.mxu0
    %v6277 = vld [vmem:[#allocation2] sm:$0xff]
    %v6278 = vadd.f32 %v6032, %v6231
    %v6279 = vxor.u32 %v6278, 2147483648
    %v6280 = vmul.f32 %v6279, 1.442695
    %v6281 = vpow.pop %v6280
    %v6282 = vadd.f32 %v6281, 1.0
    %v6283 = vrcp.pop %v6282
    %v6284 = vmul.f32 1.0, %v6283
    %v6285 = vadd.f32 %v6033, %v6233
    %v6286 = vxor.u32 %v6285, 2147483648
    %v6287 = vmul.f32 %v6286, 1.442695
    %v6288 = vpow.pop %v6287
    %v6289 = vadd.f32 %v6288, 1.0
    %v6290 = vrcp.pop %v6289
    %v6291 = vmul.f32 1.0, %v6290
    %v6292 = vadd.f32 %v6272, %v507
    %v6293 = vmul.f32 %v6284, %v6292
    %v6294 = vadd.f32 %v6034, %v6293
    %v6295 = vtanh.pop %v6294
    %v6296 = vsub.f32 1.0, %v6291
    %v6297 = vmul.f32 %v6296, %v6295
    %v6298 = vmul.f32 %v6291, %v6277
    %v6299 = vadd.f32 %v6297, %v6298
    %6300 = vst [vmem:[#allocation2] sm:$0xff] %v6299
    %v6301 = vpack.c.bf16 %v6299, %v6299
    %6302 = vst [vmem:[#allocation3] sm:$0xf] %v6301
    %v6303 = vld [vmem:[#allocation13] sm:$0xff]
    %v6304 = vld [vmem:[#allocation13 + $0x8] sm:$0xf]
    %v6305 = vld [vmem:[#allocation13 + $0xc] sm:$0xff]
    %v6306 = vld [vmem:[#allocation13 + $0x14] sm:$0xf]
    %v6307 = vld [vmem:[#allocation13 + $0x18] sm:$0xff]
    %v6308 = vld [vmem:[#allocation13 + $0x20] sm:$0xf]
    %v6309 = vld [vmem:[#allocation13 + $0x24] sm:$0xff]
    %v6310 = vld [vmem:[#allocation13 + $0x2c] sm:$0xf]
    %v6311 = vld [vmem:[#allocation13 + $0x30] sm:$0xff]
    %v6312 = vld [vmem:[#allocation13 + $0x38] sm:$0xf]
    %v6313 = vld [vmem:[#allocation13 + $0x3c] sm:$0xff]
    %v6314 = vld [vmem:[#allocation13 + $0x44] sm:$0xf]
    %v6315 = vld [vmem:[#allocation13 + $0x48] sm:$0xff]
    %v6316 = vld [vmem:[#allocation13 + $0x50] sm:$0xf]
    %v6317 = vld [vmem:[#allocation13 + $0x54] sm:$0xff]
    %v6318 = vld [vmem:[#allocation13 + $0x5c] sm:$0xf]
    %v6319 = vld [vmem:[#allocation13 + $0x60] sm:$0xff]
    %v6320 = vld [vmem:[#allocation13 + $0x68] sm:$0xf]
    %v6321 = vld [vmem:[#allocation13 + $0x6c] sm:$0xff]
    %v6322 = vld [vmem:[#allocation13 + $0x74] sm:$0xf]
    %v6323 = vld [vmem:[#allocation13 + $0x78] sm:$0xff]
    %v6324 = vld [vmem:[#allocation13 + $0x80] sm:$0xf]
    %v6325 = vld [vmem:[#allocation13 + $0x84] sm:$0xff]
    %v6326 = vld [vmem:[#allocation13 + $0x8c] sm:$0xf]
    %v6327 = vld [vmem:[#allocation13 + $0x90] sm:$0xff]
    %v6328 = vld [vmem:[#allocation13 + $0x98] sm:$0xf]
    %v6329 = vld [vmem:[#allocation13 + $0x9c] sm:$0xff]
    %v6330 = vld [vmem:[#allocation13 + $0xa4] sm:$0xf]
    %v6331 = vld [vmem:[#allocation13 + $0xa8] sm:$0xff]
    %v6332 = vld [vmem:[#allocation13 + $0xb0] sm:$0xf]
    %v6333 = vld [vmem:[#allocation13 + $0xb4] sm:$0xff]
    %v6334 = vld [vmem:[#allocation13 + $0xbc] sm:$0xf]
    %v6367 = vunpack.c.l.b16 %v6303
    %v6368 = vunpack.c.h.b16 %v6303
    %v6369 = vunpack.c.l.b16 %v6304
    %v6370 = vunpack.c.l.b16 %v6305
    %v6371 = vunpack.c.h.b16 %v6305
    %v6372 = vunpack.c.l.b16 %v6306
    %v6373 = vunpack.c.l.b16 %v6307
    %v6374 = vunpack.c.h.b16 %v6307
    %v6375 = vunpack.c.l.b16 %v6308
    %v6376 = vunpack.c.l.b16 %v6309
    %v6377 = vunpack.c.h.b16 %v6309
    %v6378 = vunpack.c.l.b16 %v6310
    %v6379 = vunpack.c.l.b16 %v6311
    %v6380 = vunpack.c.h.b16 %v6311
    %v6381 = vunpack.c.l.b16 %v6312
    %v6382 = vunpack.c.l.b16 %v6313
    %v6383 = vunpack.c.h.b16 %v6313
    %v6384 = vunpack.c.l.b16 %v6314
    %v6385 = vunpack.c.l.b16 %v6315
    %v6386 = vunpack.c.h.b16 %v6315
    %v6387 = vunpack.c.l.b16 %v6316
    %v6388 = vunpack.c.l.b16 %v6317
    %v6389 = vunpack.c.h.b16 %v6317
    %v6390 = vunpack.c.l.b16 %v6318
    %v6391 = vunpack.c.l.b16 %v6319
    %v6392 = vunpack.c.h.b16 %v6319
    %v6393 = vunpack.c.l.b16 %v6320
    %v6394 = vunpack.c.l.b16 %v6321
    %v6395 = vunpack.c.h.b16 %v6321
    %v6396 = vunpack.c.l.b16 %v6322
    %v6397 = vunpack.c.l.b16 %v6323
    %v6398 = vunpack.c.h.b16 %v6323
    %v6399 = vunpack.c.l.b16 %v6324
    %v6400 = vunpack.c.l.b16 %v6325
    %v6401 = vunpack.c.h.b16 %v6325
    %v6402 = vunpack.c.l.b16 %v6326
    %v6403 = vunpack.c.l.b16 %v6327
    %v6404 = vunpack.c.h.b16 %v6327
    %v6405 = vunpack.c.l.b16 %v6328
    %v6406 = vunpack.c.l.b16 %v6329
    %v6407 = vunpack.c.h.b16 %v6329
    %v6408 = vunpack.c.l.b16 %v6330
    %v6409 = vunpack.c.l.b16 %v6331
    %v6410 = vunpack.c.h.b16 %v6331
    %v6411 = vunpack.c.l.b16 %v6332
    %v6412 = vunpack.c.l.b16 %v6333
    %v6413 = vunpack.c.h.b16 %v6333
    %v6414 = vunpack.c.l.b16 %v6334
    %v6415 = vpack.c.b16 %v6370, %v6367
    %v6416 = vpack.c.b16 %v6371, %v6368
    %v6417 = vpack.c.b16 %v6372, %v6369
    %v6418 = vpack.c.b16 %v6376, %v6373
    %v6419 = vpack.c.b16 %v6377, %v6374
    %v6420 = vpack.c.b16 %v6378, %v6375
    %v6421 = vpack.c.b16 %v6382, %v6379
    %v6422 = vpack.c.b16 %v6383, %v6380
    %v6423 = vpack.c.b16 %v6384, %v6381
    %v6424 = vpack.c.b16 %v6388, %v6385
    %v6425 = vpack.c.b16 %v6389, %v6386
    %v6426 = vpack.c.b16 %v6390, %v6387
    %v6427 = vpack.c.b16 %v6394, %v6391
    %v6428 = vpack.c.b16 %v6395, %v6392
    %v6429 = vpack.c.b16 %v6396, %v6393
    %v6430 = vpack.c.b16 %v6400, %v6397
    %v6431 = vpack.c.b16 %v6401, %v6398
    %v6432 = vpack.c.b16 %v6402, %v6399
    %v6433 = vpack.c.b16 %v6406, %v6403
    %v6434 = vpack.c.b16 %v6407, %v6404
    %v6435 = vpack.c.b16 %v6408, %v6405
    %v6436 = vpack.c.b16 %v6412, %v6409
    %v6437 = vpack.c.b16 %v6413, %v6410
    %v6438 = vpack.c.b16 %v6414, %v6411
    %6463 = vmatprep.subr.bf16.mxu0 %v6416
    %6464 = vmatpush1.bf16.msra.mxu0 %v6415
    %6465 = vmatprep.subr.bf16.mxu0 %v6419
    %6466 = vmatpush1.bf16.msra.mxu0 %v6418
    %6467 = vmatprep.subr.bf16.mxu0 %v6422
    %6468 = vmatpush1.bf16.msra.mxu0 %v6421
    %6469 = vmatprep.subr.bf16.mxu0 %v6425
    %6470 = vmatpush1.bf16.msra.mxu0 %v6424
    %6471 = vmatprep.subr.bf16.mxu0 %v6428
    %6472 = vmatpush1.bf16.msra.mxu0 %v6427
    %6473 = vmatprep.subr.bf16.mxu0 %v6431
    %6474 = vmatpush1.bf16.msra.mxu0 %v6430
    %6475 = vmatprep.subr.bf16.mxu0 %v6434
    %6476 = vmatpush1.bf16.msra.mxu0 %v6433
    %6477 = vmatprep.subr.bf16.mxu0 %v6437
    %6478 = vmatpush1.bf16.msra.mxu0 %v6436
    %6479 = vmatprep.subr.bf16.mxu0 0
    %6480 = vmatpush1.bf16.msra.mxu0 0
    %6481 = vmatprep.subr.bf16.mxu0 0
    %6482 = vmatpush1.bf16.msra.mxu0 0
    %6483 = vmatprep.subr.bf16.mxu0 0
    %6484 = vmatpush1.bf16.msra.mxu0 0
    %6485 = vmatprep.subr.bf16.mxu0 0
    %6486 = vmatpush1.bf16.msra.mxu0 0
    %6487 = vmatprep.subr.bf16.mxu0 0
    %6488 = vmatpush1.bf16.msra.mxu0 0
    %6489 = vmatprep.subr.bf16.mxu0 0
    %6490 = vmatpush1.bf16.msra.mxu0 0
    %6491 = vmatprep.subr.bf16.mxu0 0
    %6492 = vmatpush1.bf16.msra.mxu0 0
    %6493 = vmatprep.subr.bf16.mxu0 0
    %6494 = vmatpush1.bf16.msra.mxu0 0
    %6495 = vmatprep.mubr.bf16.mxu0 0
    %6496 = vmatmul.mubr.bf16.gmra.mrb[0].mxu0 %v6301
    %v6497 = vpop.f32.mrb[0].mxu0
    %v6498 = vadd.f32 %v514, %v6497
    %v6499 = vpop.f32.mrb[0].mxu0
    %v6500 = vadd.f32 %v518, %v6499
    %v6501 = vpop.f32.mrb[0].mxu0
    %v6502 = vpop.f32.mrb[0].mxu0
    %6503 = vdwg.mxu0
    %6504 = vmatprep.subr.bf16.mxu0 0
    %6505 = vmatpush1.bf16.msra.mxu0 %v6417
    %6506 = vmatprep.subr.bf16.mxu0 0
    %6507 = vmatpush1.bf16.msra.mxu0 %v6420
    %6508 = vmatprep.subr.bf16.mxu0 0
    %6509 = vmatpush1.bf16.msra.mxu0 %v6423
    %6510 = vmatprep.subr.bf16.mxu0 0
    %6511 = vmatpush1.bf16.msra.mxu0 %v6426
    %6512 = vmatprep.subr.bf16.mxu0 0
    %6513 = vmatpush1.bf16.msra.mxu0 %v6429
    %6514 = vmatprep.subr.bf16.mxu0 0
    %6515 = vmatpush1.bf16.msra.mxu0 %v6432
    %6516 = vmatprep.subr.bf16.mxu0 0
    %6517 = vmatpush1.bf16.msra.mxu0 %v6435
    %6518 = vmatprep.subr.bf16.mxu0 0
    %6519 = vmatpush1.bf16.msra.mxu0 %v6438
    %6520 = vmatprep.subr.bf16.mxu0 0
    %6521 = vmatpush1.bf16.msra.mxu0 0
    %6522 = vmatprep.subr.bf16.mxu0 0
    %6523 = vmatpush1.bf16.msra.mxu0 0
    %6524 = vmatprep.subr.bf16.mxu0 0
    %6525 = vmatpush1.bf16.msra.mxu0 0
    %6526 = vmatprep.subr.bf16.mxu0 0
    %6527 = vmatpush1.bf16.msra.mxu0 0
    %6528 = vmatprep.subr.bf16.mxu0 0
    %6529 = vmatpush1.bf16.msra.mxu0 0
    %6530 = vmatprep.subr.bf16.mxu0 0
    %6531 = vmatpush1.bf16.msra.mxu0 0
    %6532 = vmatprep.subr.bf16.mxu0 0
    %6533 = vmatpush1.bf16.msra.mxu0 0
    %6534 = vmatprep.subr.bf16.mxu0 0
    %6535 = vmatpush1.bf16.msra.mxu0 0
    %6536 = vmatprep.mubr.bf16.mxu0 0
    %6537 = vmatmul.mubr.bf16.gmra.mrb[0].mxu0 %v6301
    %v6538 = vpop.f32.mrb[0].mxu0
    %v6539 = vadd.f32 %v522, %v6538
    %v6540 = vpop.f32.mrb[0].mxu0
    %v6541 = vpop.f32.mrb[0].mxu0
    %v6542 = vpop.f32.mrb[0].mxu0
    %6543 = vdwg.mxu0
    %v6544 = vld [vmem:[%s1048] sm:$0xf]
    %v6545 = vld [vmem:[#allocation14] sm:$0xff]
    %v6546 = vld [vmem:[#allocation14 + $0x8] sm:$0xf]
    %v6547 = vld [vmem:[#allocation14 + $0xc] sm:$0xff]
    %v6548 = vld [vmem:[#allocation14 + $0x14] sm:$0xf]
    %v6549 = vld [vmem:[#allocation14 + $0x18] sm:$0xff]
    %v6550 = vld [vmem:[#allocation14 + $0x20] sm:$0xf]
    %v6551 = vld [vmem:[#allocation14 + $0x24] sm:$0xff]
    %v6552 = vld [vmem:[#allocation14 + $0x2c] sm:$0xf]
    %v6553 = vld [vmem:[#allocation14 + $0x30] sm:$0xff]
    %v6554 = vld [vmem:[#allocation14 + $0x38] sm:$0xf]
    %v6555 = vld [vmem:[#allocation14 + $0x3c] sm:$0xff]
    %v6556 = vld [vmem:[#allocation14 + $0x44] sm:$0xf]
    %v6557 = vld [vmem:[#allocation14 + $0x48] sm:$0xff]
    %v6558 = vld [vmem:[#allocation14 + $0x50] sm:$0xf]
    %v6559 = vld [vmem:[#allocation14 + $0x54] sm:$0xff]
    %v6560 = vld [vmem:[#allocation14 + $0x5c] sm:$0xf]
    %v6561 = vld [vmem:[#allocation14 + $0x60] sm:$0xff]
    %v6562 = vld [vmem:[#allocation14 + $0x68] sm:$0xf]
    %v6563 = vld [vmem:[#allocation14 + $0x6c] sm:$0xff]
    %v6564 = vld [vmem:[#allocation14 + $0x74] sm:$0xf]
    %v6565 = vld [vmem:[#allocation14 + $0x78] sm:$0xff]
    %v6566 = vld [vmem:[#allocation14 + $0x80] sm:$0xf]
    %v6567 = vld [vmem:[#allocation14 + $0x84] sm:$0xff]
    %v6568 = vld [vmem:[#allocation14 + $0x8c] sm:$0xf]
    %v6569 = vld [vmem:[#allocation14 + $0x90] sm:$0xff]
    %v6570 = vld [vmem:[#allocation14 + $0x98] sm:$0xf]
    %v6571 = vld [vmem:[#allocation14 + $0x9c] sm:$0xff]
    %v6572 = vld [vmem:[#allocation14 + $0xa4] sm:$0xf]
    %v6573 = vld [vmem:[#allocation14 + $0xa8] sm:$0xff]
    %v6574 = vld [vmem:[#allocation14 + $0xb0] sm:$0xf]
    %v6575 = vld [vmem:[#allocation14 + $0xb4] sm:$0xff]
    %v6576 = vld [vmem:[#allocation14 + $0xbc] sm:$0xf]
    %v6609 = vunpack.c.l.b16 %v6545
    %v6610 = vunpack.c.h.b16 %v6545
    %v6611 = vunpack.c.l.b16 %v6546
    %v6612 = vunpack.c.l.b16 %v6547
    %v6613 = vunpack.c.h.b16 %v6547
    %v6614 = vunpack.c.l.b16 %v6548
    %v6615 = vunpack.c.l.b16 %v6549
    %v6616 = vunpack.c.h.b16 %v6549
    %v6617 = vunpack.c.l.b16 %v6550
    %v6618 = vunpack.c.l.b16 %v6551
    %v6619 = vunpack.c.h.b16 %v6551
    %v6620 = vunpack.c.l.b16 %v6552
    %v6621 = vunpack.c.l.b16 %v6553
    %v6622 = vunpack.c.h.b16 %v6553
    %v6623 = vunpack.c.l.b16 %v6554
    %v6624 = vunpack.c.l.b16 %v6555
    %v6625 = vunpack.c.h.b16 %v6555
    %v6626 = vunpack.c.l.b16 %v6556
    %v6627 = vunpack.c.l.b16 %v6557
    %v6628 = vunpack.c.h.b16 %v6557
    %v6629 = vunpack.c.l.b16 %v6558
    %v6630 = vunpack.c.l.b16 %v6559
    %v6631 = vunpack.c.h.b16 %v6559
    %v6632 = vunpack.c.l.b16 %v6560
    %v6633 = vunpack.c.l.b16 %v6561
    %v6634 = vunpack.c.h.b16 %v6561
    %v6635 = vunpack.c.l.b16 %v6562
    %v6636 = vunpack.c.l.b16 %v6563
    %v6637 = vunpack.c.h.b16 %v6563
    %v6638 = vunpack.c.l.b16 %v6564
    %v6639 = vunpack.c.l.b16 %v6565
    %v6640 = vunpack.c.h.b16 %v6565
    %v6641 = vunpack.c.l.b16 %v6566
    %v6642 = vunpack.c.l.b16 %v6567
    %v6643 = vunpack.c.h.b16 %v6567
    %v6644 = vunpack.c.l.b16 %v6568
    %v6645 = vunpack.c.l.b16 %v6569
    %v6646 = vunpack.c.h.b16 %v6569
    %v6647 = vunpack.c.l.b16 %v6570
    %v6648 = vunpack.c.l.b16 %v6571
    %v6649 = vunpack.c.h.b16 %v6571
    %v6650 = vunpack.c.l.b16 %v6572
    %v6651 = vunpack.c.l.b16 %v6573
    %v6652 = vunpack.c.h.b16 %v6573
    %v6653 = vunpack.c.l.b16 %v6574
    %v6654 = vunpack.c.l.b16 %v6575
    %v6655 = vunpack.c.h.b16 %v6575
    %v6656 = vunpack.c.l.b16 %v6576
    %v6657 = vpack.c.b16 %v6612, %v6609
    %v6658 = vpack.c.b16 %v6613, %v6610
    %v6659 = vpack.c.b16 %v6614, %v6611
    %v6660 = vpack.c.b16 %v6618, %v6615
    %v6661 = vpack.c.b16 %v6619, %v6616
    %v6662 = vpack.c.b16 %v6620, %v6617
    %v6663 = vpack.c.b16 %v6624, %v6621
    %v6664 = vpack.c.b16 %v6625, %v6622
    %v6665 = vpack.c.b16 %v6626, %v6623
    %v6666 = vpack.c.b16 %v6630, %v6627
    %v6667 = vpack.c.b16 %v6631, %v6628
    %v6668 = vpack.c.b16 %v6632, %v6629
    %v6669 = vpack.c.b16 %v6636, %v6633
    %v6670 = vpack.c.b16 %v6637, %v6634
    %v6671 = vpack.c.b16 %v6638, %v6635
    %v6672 = vpack.c.b16 %v6642, %v6639
    %v6673 = vpack.c.b16 %v6643, %v6640
    %v6674 = vpack.c.b16 %v6644, %v6641
    %v6675 = vpack.c.b16 %v6648, %v6645
    %v6676 = vpack.c.b16 %v6649, %v6646
    %v6677 = vpack.c.b16 %v6650, %v6647
    %v6678 = vpack.c.b16 %v6654, %v6651
    %v6679 = vpack.c.b16 %v6655, %v6652
    %v6680 = vpack.c.b16 %v6656, %v6653
    %6705 = vmatprep.subr.bf16.mxu0 %v6658
    %6706 = vmatpush1.bf16.msra.mxu0 %v6657
    %6707 = vmatprep.subr.bf16.mxu0 %v6661
    %6708 = vmatpush1.bf16.msra.mxu0 %v6660
    %6709 = vmatprep.subr.bf16.mxu0 %v6664
    %6710 = vmatpush1.bf16.msra.mxu0 %v6663
    %6711 = vmatprep.subr.bf16.mxu0 %v6667
    %6712 = vmatpush1.bf16.msra.mxu0 %v6666
    %6713 = vmatprep.subr.bf16.mxu0 %v6670
    %6714 = vmatpush1.bf16.msra.mxu0 %v6669
    %6715 = vmatprep.subr.bf16.mxu0 %v6673
    %6716 = vmatpush1.bf16.msra.mxu0 %v6672
    %6717 = vmatprep.subr.bf16.mxu0 %v6676
    %6718 = vmatpush1.bf16.msra.mxu0 %v6675
    %6719 = vmatprep.subr.bf16.mxu0 %v6679
    %6720 = vmatpush1.bf16.msra.mxu0 %v6678
    %6721 = vmatprep.subr.bf16.mxu0 0
    %6722 = vmatpush1.bf16.msra.mxu0 0
    %6723 = vmatprep.subr.bf16.mxu0 0
    %6724 = vmatpush1.bf16.msra.mxu0 0
    %6725 = vmatprep.subr.bf16.mxu0 0
    %6726 = vmatpush1.bf16.msra.mxu0 0
    %6727 = vmatprep.subr.bf16.mxu0 0
    %6728 = vmatpush1.bf16.msra.mxu0 0
    %6729 = vmatprep.subr.bf16.mxu0 0
    %6730 = vmatpush1.bf16.msra.mxu0 0
    %6731 = vmatprep.subr.bf16.mxu0 0
    %6732 = vmatpush1.bf16.msra.mxu0 0
    %6733 = vmatprep.subr.bf16.mxu0 0
    %6734 = vmatpush1.bf16.msra.mxu0 0
    %6735 = vmatprep.subr.bf16.mxu0 0
    %6736 = vmatpush1.bf16.msra.mxu0 0
    %6737 = vmatprep.mubr.bf16.mxu0 0
    %6738 = vmatmul.mubr.bf16.gmra.mrb[0].mxu0 %v6544
    %v6739 = vpop.f32.mrb[0].mxu0
    %v6740 = vadd.f32 0.0, %v6739
    %v6741 = vpop.f32.mrb[0].mxu0
    %v6742 = vadd.f32 0.0, %v6741
    %v6743 = vpop.f32.mrb[0].mxu0
    %v6744 = vpop.f32.mrb[0].mxu0
    %6745 = vdwg.mxu0
    %6746 = vmatprep.subr.bf16.mxu0 0
    %6747 = vmatpush1.bf16.msra.mxu0 %v6659
    %6748 = vmatprep.subr.bf16.mxu0 0
    %6749 = vmatpush1.bf16.msra.mxu0 %v6662
    %6750 = vmatprep.subr.bf16.mxu0 0
    %6751 = vmatpush1.bf16.msra.mxu0 %v6665
    %6752 = vmatprep.subr.bf16.mxu0 0
    %6753 = vmatpush1.bf16.msra.mxu0 %v6668
    %6754 = vmatprep.subr.bf16.mxu0 0
    %6755 = vmatpush1.bf16.msra.mxu0 %v6671
    %6756 = vmatprep.subr.bf16.mxu0 0
    %6757 = vmatpush1.bf16.msra.mxu0 %v6674
    %6758 = vmatprep.subr.bf16.mxu0 0
    %6759 = vmatpush1.bf16.msra.mxu0 %v6677
    %6760 = vmatprep.subr.bf16.mxu0 0
    %6761 = vmatpush1.bf16.msra.mxu0 %v6680
    %6762 = vmatprep.subr.bf16.mxu0 0
    %6763 = vmatpush1.bf16.msra.mxu0 0
    %6764 = vmatprep.subr.bf16.mxu0 0
    %6765 = vmatpush1.bf16.msra.mxu0 0
    %6766 = vmatprep.subr.bf16.mxu0 0
    %6767 = vmatpush1.bf16.msra.mxu0 0
    %6768 = vmatprep.subr.bf16.mxu0 0
    %6769 = vmatpush1.bf16.msra.mxu0 0
    %6770 = vmatprep.subr.bf16.mxu0 0
    %6771 = vmatpush1.bf16.msra.mxu0 0
    %6772 = vmatprep.subr.bf16.mxu0 0
    %6773 = vmatpush1.bf16.msra.mxu0 0
    %6774 = vmatprep.subr.bf16.mxu0 0
    %6775 = vmatpush1.bf16.msra.mxu0 0
    %6776 = vmatprep.subr.bf16.mxu0 0
    %6777 = vmatpush1.bf16.msra.mxu0 0
    %6778 = vmatprep.mubr.bf16.mxu0 0
    %6779 = vmatmul.mubr.bf16.gmra.mrb[0].mxu0 %v6544
    %v6780 = vpop.f32.mrb[0].mxu0
    %v6781 = vadd.f32 0.0, %v6780
    %v6782 = vpop.f32.mrb[0].mxu0
    %v6783 = vpop.f32.mrb[0].mxu0
    %v6784 = vpop.f32.mrb[0].mxu0
    %6785 = vdwg.mxu0
    %v6786 = vld [vmem:[%s1291] sm:$0xff]
    %v6787 = vadd.f32 %v6498, %v6740
    %v6788 = vxor.u32 %v6787, 2147483648
    %v6789 = vmul.f32 %v6788, 1.442695
    %v6790 = vpow.pop %v6789
    %v6791 = vadd.f32 %v6790, 1.0
    %v6792 = vrcp.pop %v6791
    %v6793 = vmul.f32 1.0, %v6792
    %v6794 = vadd.f32 %v6500, %v6742
    %v6795 = vxor.u32 %v6794, 2147483648
    %v6796 = vmul.f32 %v6795, 1.442695
    %v6797 = vpow.pop %v6796
    %v6798 = vadd.f32 %v6797, 1.0
    %v6799 = vrcp.pop %v6798
    %v6800 = vmul.f32 1.0, %v6799
    %v6801 = vadd.f32 %v6781, %v531
    %v6802 = vmul.f32 %v6793, %v6801
    %v6803 = vadd.f32 %v6539, %v6802
    %v6804 = vtanh.pop %v6803
    %v6805 = vsub.f32 1.0, %v6800
    %v6806 = vmul.f32 %v6805, %v6804
    %v6807 = vmul.f32 %v6800, %v6786
    %v6808 = vadd.f32 %v6806, %v6807
    %6809 = vst [vmem:[%s1291] sm:$0xff] %v6808
    %v6810 = vpack.c.bf16 %v6808, %v6808
    %6811 = vst [vmem:[%s1048] sm:$0xf] %v6810
    %s6812 = scalar_lea.vmem [#allocation16], 28
    %6813 = vst [vmem:[%s6812] sm:$0xf] %v6810
    // Predicated region
    $region70: #{tpu_custom_call.1} parent=1 // pred_check
      _
    $region71: #{tpu_custom_call.1} parent=1 // pred_check_branch
      %6815 = sbr.rel (0) target = $region73
    $region72: #{tpu_custom_call.1} parent=1 // pred_region
      %s6817 = ssub.s32 512, 512
      %6818 = vsyncadd [#allocation7], %s6817
      %s6819 = sshll.u32 [#allocation16], 4
      %s6820 = int_to_ptr.vmem [resolvable:$true] %s6819
      %6825 = dma.vmem_to_hbm [thread:$0]  %s6820, 512, %s10, [#allocation7], 64, 64, 4
    $region73: #{tpu_custom_call.1} parent=1 // pred_fallthru
      _
    // Predicated region
    $region74: #{tpu_custom_call.1} parent=1 // pred_check
      _
    $region75: #{tpu_custom_call.1} parent=1 // pred_check_branch
      %6827 = sbr.rel (0) target = $region77
    $region76: #{tpu_custom_call.1} parent=1 // pred_region
      %6828 = dma.done [#allocation7], 512
    $region77: #{tpu_custom_call.1} parent=1 // pred_fallthru
      _
    %6829 = vsyncpa [#allocation6], 1
    %6830 = vsyncpa [#allocation9], 1
    %6831 = vsyncpa [#allocation12], 1
    %6832 = vsyncpa [#allocation15], 1
    %6833 = vsyncpa [#allocation7], 1

</llo_original>
